<compile_context>
chip_gen: v7x
topology: tpu7x:2x2x1
jax: 0.10.0
libtpu: 0.0.40
codegen_flags: <defaults>
</compile_context>

<pallas_src>
import functools

import jax
import jax.numpy as jnp
from jax.experimental import pallas as pl
from jax.experimental.pallas import tpu as pltpu


# ----------------------------- activations ---------------------------------

def _act(y, act):
    if act == "none":
        return y
    if act == "RE":
        return jnp.maximum(y, 0.0)
    if act == "HS":  # h-swish: x * relu6(x+3)/6
        return y * (jnp.clip(y + 3.0, 0.0, 6.0) * (1.0 / 6.0))
    raise ValueError(act)


# ------------------------- fused block kernel --------------------------------

def _block_kernel(*refs, k, s, se, use_res, nl, H, W, Ho, Wo, exp, cout):
    """One SlimInvertedResidual block for one batch element, fully in VMEM."""
    refs = list(refs)
    x_ref, w1_ref, s1_ref, b1_ref, dww_ref, sdw_ref, bdw_ref = refs[:7]
    rest = refs[7:]
    sel_ref = rest.pop(0) if s > 1 else None
    if se:
        se1_ref = rest.pop(0)
        se2_ref = rest.pop(0)
    w2_ref, s2_ref, b2_ref, o_ref, hpad_ref = rest

    p = (k - 1) // 2
    cin = x_ref.shape[-1]

    # ---- pointwise expand: 1x1 conv -> folded BN -> NL (bf16 x bf16 -> f32 MXU)
    x = x_ref[...].reshape(H * W, cin)                                # (HW, Cin) bf16
    h1 = jnp.dot(x, w1_ref[...], preferred_element_type=jnp.float32)  # (HW, exp)
    h1 = _act(h1 * s1_ref[...] + b1_ref[...], nl)

    # ---- depthwise kxk: write h1 into zero-padded VMEM scratch, MAC over k^2
    #      statically shifted views (no HBM taps tensor).
    hpad_ref[...] = jnp.zeros(hpad_ref.shape, hpad_ref.dtype)
    hpad_ref[p:p + H, p:p + W, :] = h1.reshape(H, W, exp)

    dww = dww_ref[...]                                 # (k*k, exp) f32, hoisted load
    acc = jnp.zeros((H, W, exp), jnp.float32)          # stride-1 output (odd k => same size)
    for t in range(k * k):
        kh, kw = divmod(t, k)
        acc = acc + hpad_ref[kh:kh + H, kw:kw + W, :] * dww[t]
    y = acc.reshape(H * W, exp)
    if s > 1:
        # Exact subsample of the stride-1 output at stride-s positions via a
        # tiny 0/1 selection matmul (avoids strided vector slices).
        y = jnp.dot(sel_ref[...], y, preferred_element_type=jnp.float32)  # (Ho*Wo, exp)
    y = y * sdw_ref[...] + bdw_ref[...]                # folded BN

    # ---- squeeze-excite, fused (pool -> FC -> ReLU -> FC -> h-sigmoid -> scale)
    if se:
        pooled = jnp.mean(y, axis=0, keepdims=True)                               # (1, exp)
        hh = jnp.maximum(
            jnp.dot(pooled, se1_ref[...], preferred_element_type=jnp.float32), 0.0)
        g = jnp.dot(hh, se2_ref[...], preferred_element_type=jnp.float32)         # (1, exp)
        gate = jnp.clip(g + 3.0, 0.0, 6.0) * (1.0 / 6.0)
        y = y * gate
    y = _act(y, nl)

    # ---- pointwise project: 1x1 conv -> folded BN (+ residual)
    out = jnp.dot(y.astype(jnp.bfloat16), w2_ref[...],
                  preferred_element_type=jnp.float32)                             # (Ho*Wo, c)
    out = out * s2_ref[...] + b2_ref[...]
    if use_res:                                        # s == 1 and Cin == Cout
        out = out + x.astype(jnp.float32)
    o_ref[...] = out.reshape(1, Ho, Wo, cout).astype(o_ref.dtype)


# --------------------------- pallas_call wrapper ------------------------------

def slim_inverted_residual(x, params, k, exp, c, se, nl, s):
    """x: (N, H, W, Cin) bf16 NHWC."""
    N, H, W, Cin = x.shape
    p = (k - 1) // 2
    Ho = (H + 2 * p - k) // s + 1
    Wo = (W + 2 * p - k) // s + 1
    use_res = (s == 1 and Cin == c)

    inputs = [x, params["pw1_w"], params["pw1_scale"], params["pw1_bias"],
              params["dw_w"], params["dw_scale"], params["dw_bias"]]
    if s > 1:
        # 0/1 selection matrix mapping stride-1 output positions -> stride-s ones.
        r = jnp.arange(Ho * Wo)
        src = (r // Wo) * (s * W) + (r % Wo) * s
        sel = (jnp.arange(H * W)[None, :] == src[:, None]).astype(jnp.float32)
        inputs.append(sel)
    if se:
        inputs += [params["se_w1"], params["se_w2"]]
    inputs += [params["pw2_w"], params["pw2_scale"], params["pw2_bias"]]

    def _const_spec(a):
        nd = a.ndim
        return pl.BlockSpec(a.shape, lambda n: (0,) * nd)

    in_specs = [pl.BlockSpec((1, H, W, Cin), lambda n: (n, 0, 0, 0))]
    in_specs += [_const_spec(a) for a in inputs[1:]]

    kernel = functools.partial(
        _block_kernel, k=k, s=s, se=se, use_res=use_res, nl=nl,
        H=H, W=W, Ho=Ho, Wo=Wo, exp=exp, cout=c)

    return pl.pallas_call(
        kernel,
        out_shape=jax.ShapeDtypeStruct((N, Ho, Wo, c), jnp.bfloat16),
        grid=(N,),
        in_specs=in_specs,
        out_specs=pl.BlockSpec((1, Ho, Wo, c), lambda n: (n, 0, 0, 0)),
        scratch_shapes=[pltpu.VMEM((H + 2 * p, W + 2 * p, exp), jnp.float32)],
        compiler_params=pltpu.CompilerParams(
            dimension_semantics=("parallel",),
            vmem_limit_bytes=32 * 1024 * 1024),
    )(*inputs)


def slim_stage(x, params, local_setting):
    # head + tail (Sequential): one fused pallas_call per inverted-residual block.
    for blk, (k, exp, c, se, nl, s) in zip(params, local_setting):
        x = slim_inverted_residual(x, blk, k, exp, c, se, nl, s)
    return x


# ---------------------------- parameter init ---------------------------------

def _folded_bn(key, ch):
    k1, k2, k3, k4 = jax.random.split(key, 4)
    gamma = jax.random.uniform(k1, (ch,), minval=0.5, maxval=1.5)
    beta = jax.random.normal(k2, (ch,)) * 0.1
    mean = jax.random.normal(k3, (ch,)) * 0.1
    var = jax.random.uniform(k4, (ch,), minval=0.5, maxval=1.5)
    scale = gamma / jnp.sqrt(var + 1e-5)
    bias = beta - mean * scale
    return (scale.reshape(1, ch).astype(jnp.float32),
            bias.reshape(1, ch).astype(jnp.float32))


def init_block_params(key, inp, k, exp, c, se):
    keys = jax.random.split(key, 8)
    p = {}
    p["pw1_w"] = (jax.random.normal(keys[0], (inp, exp)) / jnp.sqrt(inp)).astype(jnp.bfloat16)
    p["pw1_scale"], p["pw1_bias"] = _folded_bn(keys[1], exp)
    p["dw_w"] = (jax.random.normal(keys[2], (k * k, exp)) / k).astype(jnp.float32)
    p["dw_scale"], p["dw_bias"] = _folded_bn(keys[3], exp)
    if se:
        cr = max(exp // 4, 1)
        p["se_w1"] = (jax.random.normal(keys[4], (exp, cr)) / jnp.sqrt(exp)).astype(jnp.float32)
        p["se_w2"] = (jax.random.normal(keys[5], (cr, exp)) / jnp.sqrt(cr)).astype(jnp.float32)
    p["pw2_w"] = (jax.random.normal(keys[6], (exp, c)) / jnp.sqrt(exp)).astype(jnp.bfloat16)
    p["pw2_scale"], p["pw2_bias"] = _folded_bn(keys[7], c)
    return p


# --------------------------------- main ---------------------------------------

if __name__ == "__main__":
    key = jax.random.PRNGKey(0)
    kx, kp = jax.random.split(key)

    input_channel = 8
    # (k, exp, c, se, nl, s) per SlimInvertedResidual; head = first entry.
    local_setting = (
        (3, 16, 16, True,  "RE", 2),   # head: stride 2, SE, ReLU
        (3, 32, 16, False, "HS", 1),   # tail[0]: residual block, h-swish
        (5, 32, 24, True,  "HS", 1),   # tail[1]: k=5, SE, h-swish
    )

    # PyTorch-style NCHW input, transposed to NHWC (bf16) for the kernels.
    x_nchw = jax.random.normal(kx, (2, input_channel, 16, 16), dtype=jnp.float32)
    x = jnp.transpose(x_nchw, (0, 2, 3, 1)).astype(jnp.bfloat16)  # (N, H, W, C)

    params = []
    inp = input_channel
    bkeys = jax.random.split(kp, len(local_setting))
    for i, (k, exp, c, se, nl, s) in enumerate(local_setting):
        params.append(init_block_params(bkeys[i], inp, k, exp, c, se))
        inp = c

    run = jax.jit(functools.partial(slim_stage, local_setting=local_setting))
    out = jax.block_until_ready(run(x, params))

    # Expected: head stride-2 halves spatial -> (2, 8, 8, 24) in NHWC.
    assert out.shape == (2, 8, 8, 24), out.shape
    assert jnp.all(jnp.isfinite(out.astype(jnp.float32)))
    print("KERNEL_OK")
</pallas_src>

<mosaic_0001>
module attributes {stable_mosaic.version = 11 : i64} {
  func.func @_block_kernel(%arg0: i32, %arg1: memref<1x8x8x16xbf16, #tpu.memory_space<vmem>>, %arg2: memref<16x32xbf16, #tpu.memory_space<vmem>>, %arg3: memref<1x32xf32, #tpu.memory_space<vmem>>, %arg4: memref<1x32xf32, #tpu.memory_space<vmem>>, %arg5: memref<9x32xf32, #tpu.memory_space<vmem>>, %arg6: memref<1x32xf32, #tpu.memory_space<vmem>>, %arg7: memref<1x32xf32, #tpu.memory_space<vmem>>, %arg8: memref<32x16xbf16, #tpu.memory_space<vmem>>, %arg9: memref<1x16xf32, #tpu.memory_space<vmem>>, %arg10: memref<1x16xf32, #tpu.memory_space<vmem>>, %arg11: memref<1x8x8x16xbf16, #tpu.memory_space<vmem>>, %arg12: memref<10x10x32xf32, #tpu.memory_space<vmem>>) attributes {dimension_semantics = [#tpu.dimension_semantics<parallel>], iteration_bounds = array<i64: 2>, scalar_prefetch = 0 : i64, scratch_operands = 1 : i64, tpu.core_type = #tpu.core_type<tc>, window_params = [{transform_indices = @transform_0, window_bounds = array<i64: 1, 8, 8, 16>}, {pipeline_mode = #tpu.pipeline_mode<synchronous>, transform_indices = @transform_1, window_bounds = array<i64: 16, 32>}, {pipeline_mode = #tpu.pipeline_mode<synchronous>, transform_indices = @transform_2, window_bounds = array<i64: 1, 32>}, {pipeline_mode = #tpu.pipeline_mode<synchronous>, transform_indices = @transform_3, window_bounds = array<i64: 1, 32>}, {pipeline_mode = #tpu.pipeline_mode<synchronous>, transform_indices = @transform_4, window_bounds = array<i64: 9, 32>}, {pipeline_mode = #tpu.pipeline_mode<synchronous>, transform_indices = @transform_5, window_bounds = array<i64: 1, 32>}, {pipeline_mode = #tpu.pipeline_mode<synchronous>, transform_indices = @transform_6, window_bounds = array<i64: 1, 32>}, {pipeline_mode = #tpu.pipeline_mode<synchronous>, transform_indices = @transform_7, window_bounds = array<i64: 32, 16>}, {pipeline_mode = #tpu.pipeline_mode<synchronous>, transform_indices = @transform_8, window_bounds = array<i64: 1, 16>}, {pipeline_mode = #tpu.pipeline_mode<synchronous>, transform_indices = @transform_9, window_bounds = array<i64: 1, 16>}, {transform_indices = @transform_10, window_bounds = array<i64: 1, 8, 8, 16>}]} {
    %c0 = arith.constant 0 : index
    %c0_0 = arith.constant 0 : index
    %c0_1 = arith.constant 0 : index
    %c0_2 = arith.constant 0 : index
    %0 = vector.load %arg1[%c0, %c0_0, %c0_1, %c0_2] : memref<1x8x8x16xbf16, #tpu.memory_space<vmem>>, vector<1x8x8x16xbf16>
    %1 = vector.shape_cast %0 : vector<1x8x8x16xbf16> to vector<64x16xbf16>
    %c0_3 = arith.constant 0 : index
    %c0_4 = arith.constant 0 : index
    %2 = vector.load %arg2[%c0_3, %c0_4] : memref<16x32xbf16, #tpu.memory_space<vmem>>, vector<16x32xbf16>
    %cst = arith.constant dense<0.000000e+00> : vector<64x32xf32>
    %3 = tpu.matmul %1, %2, %cst {dimension_numbers = #tpu.dot_dimension_numbers<[1], [0], [0], [1], [0, 0, 1, 1], [], []>} : vector<64x16xbf16>, vector<16x32xbf16>, vector<64x32xf32> -> vector<64x32xf32>
    %c0_5 = arith.constant 0 : index
    %c0_6 = arith.constant 0 : index
    %4 = vector.load %arg3[%c0_5, %c0_6] : memref<1x32xf32, #tpu.memory_space<vmem>>, vector<1x32xf32>
    %5 = vector.broadcast %4 : vector<1x32xf32> to vector<64x32xf32>
    %6 = arith.mulf %3, %5 : vector<64x32xf32>
    %c0_7 = arith.constant 0 : index
    %c0_8 = arith.constant 0 : index
    %7 = vector.load %arg4[%c0_7, %c0_8] : memref<1x32xf32, #tpu.memory_space<vmem>>, vector<1x32xf32>
    %8 = vector.broadcast %7 : vector<1x32xf32> to vector<64x32xf32>
    %9 = arith.addf %6, %8 : vector<64x32xf32>
    %cst_9 = arith.constant 3.000000e+00 : f32
    %10 = vector.broadcast %cst_9 : f32 to vector<64x32xf32>
    %11 = arith.addf %9, %10 : vector<64x32xf32>
    %cst_10 = arith.constant 0.000000e+00 : f32
    %cst_11 = arith.constant 6.000000e+00 : f32
    %12 = vector.broadcast %cst_10 : f32 to vector<64x32xf32>
    %13 = arith.maximumf %12, %11 : vector<64x32xf32>
    %14 = vector.broadcast %cst_11 : f32 to vector<64x32xf32>
    %15 = arith.minimumf %14, %13 : vector<64x32xf32>
    %cst_12 = arith.constant 0.166666672 : f32
    %16 = vector.broadcast %cst_12 : f32 to vector<64x32xf32>
    %17 = arith.mulf %15, %16 : vector<64x32xf32>
    %18 = arith.mulf %9, %17 : vector<64x32xf32>
    %cst_13 = arith.constant 0.000000e+00 : f32
    %19 = vector.broadcast %cst_13 : f32 to vector<10x10x32xf32>
    %c0_14 = arith.constant 0 : index
    %c0_15 = arith.constant 0 : index
    %c0_16 = arith.constant 0 : index
    %20 = vector.load %arg12[%c0_14, %c0_15, %c0_16] : memref<10x10x32xf32, #tpu.memory_space<vmem>>, vector<10x10x32xf32>
    tpu.vector_store %arg12[%c0_14, %c0_15, %c0_16], %19 {strides = array<i32>} : memref<10x10x32xf32, #tpu.memory_space<vmem>>, vector<10x10x32xf32>,
    %21 = vector.shape_cast %18 : vector<64x32xf32> to vector<8x8x32xf32>
    %c1 = arith.constant 1 : index
    %c1_17 = arith.constant 1 : index
    %c0_18 = arith.constant 0 : index
    %22 = vector.load %arg12[%c1, %c1_17, %c0_18] : memref<10x10x32xf32, #tpu.memory_space<vmem>>, vector<8x8x32xf32>
    tpu.vector_store %arg12[%c1, %c1_17, %c0_18], %21 {strides = array<i32>} : memref<10x10x32xf32, #tpu.memory_space<vmem>>, vector<8x8x32xf32>,
    %c0_19 = arith.constant 0 : index
    %c0_20 = arith.constant 0 : index
    %23 = vector.load %arg5[%c0_19, %c0_20] : memref<9x32xf32, #tpu.memory_space<vmem>>, vector<9x32xf32>
    %cst_21 = arith.constant 0.000000e+00 : f32
    %24 = vector.broadcast %cst_21 : f32 to vector<8x8x32xf32>
    %c0_22 = arith.constant 0 : index
    %c0_23 = arith.constant 0 : index
    %c0_24 = arith.constant 0 : index
    %25 = vector.load %arg12[%c0_22, %c0_23, %c0_24] : memref<10x10x32xf32, #tpu.memory_space<vmem>>, vector<8x8x32xf32>
    %26 = vector.extract_strided_slice %23 {offsets = [0, 0], sizes = [1, 32], strides = [1, 1]} : vector<9x32xf32> to vector<1x32xf32>
    %27 = vector.shape_cast %26 : vector<1x32xf32> to vector<32xf32>
    %28 = vector.shape_cast %27 : vector<32xf32> to vector<1x1x32xf32>
    %29 = vector.broadcast %28 : vector<1x1x32xf32> to vector<8x8x32xf32>
    %30 = arith.mulf %25, %29 : vector<8x8x32xf32>
    %31 = arith.addf %24, %30 : vector<8x8x32xf32>
    %c0_25 = arith.constant 0 : index
    %c1_26 = arith.constant 1 : index
    %c0_27 = arith.constant 0 : index
    %32 = vector.load %arg12[%c0_25, %c1_26, %c0_27] : memref<10x10x32xf32, #tpu.memory_space<vmem>>, vector<8x8x32xf32>
    %33 = vector.extract_strided_slice %23 {offsets = [1, 0], sizes = [1, 32], strides = [1, 1]} : vector<9x32xf32> to vector<1x32xf32>
    %34 = vector.shape_cast %33 : vector<1x32xf32> to vector<32xf32>
    %35 = vector.shape_cast %34 : vector<32xf32> to vector<1x1x32xf32>
    %36 = vector.broadcast %35 : vector<1x1x32xf32> to vector<8x8x32xf32>
    %37 = arith.mulf %32, %36 : vector<8x8x32xf32>
    %38 = arith.addf %31, %37 : vector<8x8x32xf32>
    %c0_28 = arith.constant 0 : index
    %c2 = arith.constant 2 : index
    %c0_29 = arith.constant 0 : index
    %39 = vector.load %arg12[%c0_28, %c2, %c0_29] : memref<10x10x32xf32, #tpu.memory_space<vmem>>, vector<8x8x32xf32>
    %40 = vector.extract_strided_slice %23 {offsets = [2, 0], sizes = [1, 32], strides = [1, 1]} : vector<9x32xf32> to vector<1x32xf32>
    %41 = vector.shape_cast %40 : vector<1x32xf32> to vector<32xf32>
    %42 = vector.shape_cast %41 : vector<32xf32> to vector<1x1x32xf32>
    %43 = vector.broadcast %42 : vector<1x1x32xf32> to vector<8x8x32xf32>
    %44 = arith.mulf %39, %43 : vector<8x8x32xf32>
    %45 = arith.addf %38, %44 : vector<8x8x32xf32>
    %c1_30 = arith.constant 1 : index
    %c0_31 = arith.constant 0 : index
    %c0_32 = arith.constant 0 : index
    %46 = vector.load %arg12[%c1_30, %c0_31, %c0_32] : memref<10x10x32xf32, #tpu.memory_space<vmem>>, vector<8x8x32xf32>
    %47 = vector.extract_strided_slice %23 {offsets = [3, 0], sizes = [1, 32], strides = [1, 1]} : vector<9x32xf32> to vector<1x32xf32>
    %48 = vector.shape_cast %47 : vector<1x32xf32> to vector<32xf32>
    %49 = vector.shape_cast %48 : vector<32xf32> to vector<1x1x32xf32>
    %50 = vector.broadcast %49 : vector<1x1x32xf32> to vector<8x8x32xf32>
    %51 = arith.mulf %46, %50 : vector<8x8x32xf32>
    %52 = arith.addf %45, %51 : vector<8x8x32xf32>
    %c1_33 = arith.constant 1 : index
    %c1_34 = arith.constant 1 : index
    %c0_35 = arith.constant 0 : index
    %53 = vector.load %arg12[%c1_33, %c1_34, %c0_35] : memref<10x10x32xf32, #tpu.memory_space<vmem>>, vector<8x8x32xf32>
    %54 = vector.extract_strided_slice %23 {offsets = [4, 0], sizes = [1, 32], strides = [1, 1]} : vector<9x32xf32> to vector<1x32xf32>
    %55 = vector.shape_cast %54 : vector<1x32xf32> to vector<32xf32>
    %56 = vector.shape_cast %55 : vector<32xf32> to vector<1x1x32xf32>
    %57 = vector.broadcast %56 : vector<1x1x32xf32> to vector<8x8x32xf32>
    %58 = arith.mulf %53, %57 : vector<8x8x32xf32>
    %59 = arith.addf %52, %58 : vector<8x8x32xf32>
    %c1_36 = arith.constant 1 : index
    %c2_37 = arith.constant 2 : index
    %c0_38 = arith.constant 0 : index
    %60 = vector.load %arg12[%c1_36, %c2_37, %c0_38] : memref<10x10x32xf32, #tpu.memory_space<vmem>>, vector<8x8x32xf32>
    %61 = vector.extract_strided_slice %23 {offsets = [5, 0], sizes = [1, 32], strides = [1, 1]} : vector<9x32xf32> to vector<1x32xf32>
    %62 = vector.shape_cast %61 : vector<1x32xf32> to vector<32xf32>
    %63 = vector.shape_cast %62 : vector<32xf32> to vector<1x1x32xf32>
    %64 = vector.broadcast %63 : vector<1x1x32xf32> to vector<8x8x32xf32>
    %65 = arith.mulf %60, %64 : vector<8x8x32xf32>
    %66 = arith.addf %59, %65 : vector<8x8x32xf32>
    %c2_39 = arith.constant 2 : index
    %c0_40 = arith.constant 0 : index
    %c0_41 = arith.constant 0 : index
    %67 = vector.load %arg12[%c2_39, %c0_40, %c0_41] : memref<10x10x32xf32, #tpu.memory_space<vmem>>, vector<8x8x32xf32>
    %68 = vector.extract_strided_slice %23 {offsets = [6, 0], sizes = [1, 32], strides = [1, 1]} : vector<9x32xf32> to vector<1x32xf32>
    %69 = vector.shape_cast %68 : vector<1x32xf32> to vector<32xf32>
    %70 = vector.shape_cast %69 : vector<32xf32> to vector<1x1x32xf32>
    %71 = vector.broadcast %70 : vector<1x1x32xf32> to vector<8x8x32xf32>
    %72 = arith.mulf %67, %71 : vector<8x8x32xf32>
    %73 = arith.addf %66, %72 : vector<8x8x32xf32>
    %c2_42 = arith.constant 2 : index
    %c1_43 = arith.constant 1 : index
    %c0_44 = arith.constant 0 : index
    %74 = vector.load %arg12[%c2_42, %c1_43, %c0_44] : memref<10x10x32xf32, #tpu.memory_space<vmem>>, vector<8x8x32xf32>
    %75 = vector.extract_strided_slice %23 {offsets = [7, 0], sizes = [1, 32], strides = [1, 1]} : vector<9x32xf32> to vector<1x32xf32>
    %76 = vector.shape_cast %75 : vector<1x32xf32> to vector<32xf32>
    %77 = vector.shape_cast %76 : vector<32xf32> to vector<1x1x32xf32>
    %78 = vector.broadcast %77 : vector<1x1x32xf32> to vector<8x8x32xf32>
    %79 = arith.mulf %74, %78 : vector<8x8x32xf32>
    %80 = arith.addf %73, %79 : vector<8x8x32xf32>
    %c2_45 = arith.constant 2 : index
    %c2_46 = arith.constant 2 : index
    %c0_47 = arith.constant 0 : index
    %81 = vector.load %arg12[%c2_45, %c2_46, %c0_47] : memref<10x10x32xf32, #tpu.memory_space<vmem>>, vector<8x8x32xf32>
    %82 = vector.extract_strided_slice %23 {offsets = [8, 0], sizes = [1, 32], strides = [1, 1]} : vector<9x32xf32> to vector<1x32xf32>
    %83 = vector.shape_cast %82 : vector<1x32xf32> to vector<32xf32>
    %84 = vector.shape_cast %83 : vector<32xf32> to vector<1x1x32xf32>
    %85 = vector.broadcast %84 : vector<1x1x32xf32> to vector<8x8x32xf32>
    %86 = arith.mulf %81, %85 : vector<8x8x32xf32>
    %87 = arith.addf %80, %86 : vector<8x8x32xf32>
    %88 = vector.shape_cast %87 : vector<8x8x32xf32> to vector<64x32xf32>
    %c0_48 = arith.constant 0 : index
    %c0_49 = arith.constant 0 : index
    %89 = vector.load %arg6[%c0_48, %c0_49] : memref<1x32xf32, #tpu.memory_space<vmem>>, vector<1x32xf32>
    %90 = vector.broadcast %89 : vector<1x32xf32> to vector<64x32xf32>
    %91 = arith.mulf %88, %90 : vector<64x32xf32>
    %c0_50 = arith.constant 0 : index
    %c0_51 = arith.constant 0 : index
    %92 = vector.load %arg7[%c0_50, %c0_51] : memref<1x32xf32, #tpu.memory_space<vmem>>, vector<1x32xf32>
    %93 = vector.broadcast %92 : vector<1x32xf32> to vector<64x32xf32>
    %94 = arith.addf %91, %93 : vector<64x32xf32>
    %cst_52 = arith.constant 3.000000e+00 : f32
    %95 = vector.broadcast %cst_52 : f32 to vector<64x32xf32>
    %96 = arith.addf %94, %95 : vector<64x32xf32>
    %cst_53 = arith.constant 0.000000e+00 : f32
    %cst_54 = arith.constant 6.000000e+00 : f32
    %97 = vector.broadcast %cst_53 : f32 to vector<64x32xf32>
    %98 = arith.maximumf %97, %96 : vector<64x32xf32>
    %99 = vector.broadcast %cst_54 : f32 to vector<64x32xf32>
    %100 = arith.minimumf %99, %98 : vector<64x32xf32>
    %cst_55 = arith.constant 0.166666672 : f32
    %101 = vector.broadcast %cst_55 : f32 to vector<64x32xf32>
    %102 = arith.mulf %100, %101 : vector<64x32xf32>
    %103 = arith.mulf %94, %102 : vector<64x32xf32>
    %104 = arith.truncf %103 : vector<64x32xf32> to vector<64x32xbf16>
    %c0_56 = arith.constant 0 : index
    %c0_57 = arith.constant 0 : index
    %105 = vector.load %arg8[%c0_56, %c0_57] : memref<32x16xbf16, #tpu.memory_space<vmem>>, vector<32x16xbf16>
    %cst_58 = arith.constant dense<0.000000e+00> : vector<64x16xf32>
    %106 = tpu.matmul %104, %105, %cst_58 {dimension_numbers = #tpu.dot_dimension_numbers<[1], [0], [0], [1], [0, 0, 1, 1], [], []>} : vector<64x32xbf16>, vector<32x16xbf16>, vector<64x16xf32> -> vector<64x16xf32>
    %c0_59 = arith.constant 0 : index
    %c0_60 = arith.constant 0 : index
    %107 = vector.load %arg9[%c0_59, %c0_60] : memref<1x16xf32, #tpu.memory_space<vmem>>, vector<1x16xf32>
    %108 = vector.broadcast %107 : vector<1x16xf32> to vector<64x16xf32>
    %109 = arith.mulf %106, %108 : vector<64x16xf32>
    %c0_61 = arith.constant 0 : index
    %c0_62 = arith.constant 0 : index
    %110 = vector.load %arg10[%c0_61, %c0_62] : memref<1x16xf32, #tpu.memory_space<vmem>>, vector<1x16xf32>
    %111 = vector.broadcast %110 : vector<1x16xf32> to vector<64x16xf32>
    %112 = arith.addf %109, %111 : vector<64x16xf32>
    %113 = arith.extf %1 : vector<64x16xbf16> to vector<64x16xf32>
    %114 = arith.addf %112, %113 : vector<64x16xf32>
    %115 = vector.shape_cast %114 : vector<64x16xf32> to vector<1x8x8x16xf32>
    %116 = arith.truncf %115 : vector<1x8x8x16xf32> to vector<1x8x8x16xbf16>
    %c0_63 = arith.constant 0 : index
    %c0_64 = arith.constant 0 : index
    %c0_65 = arith.constant 0 : index
    %c0_66 = arith.constant 0 : index
    %117 = vector.load %arg11[%c0_63, %c0_64, %c0_65, %c0_66] : memref<1x8x8x16xbf16, #tpu.memory_space<vmem>>, vector<1x8x8x16xbf16>
    tpu.vector_store %arg11[%c0_63, %c0_64, %c0_65, %c0_66], %116 {strides = array<i32>} : memref<1x8x8x16xbf16, #tpu.memory_space<vmem>>, vector<1x8x8x16xbf16>,
    return
  }
  func.func @transform_0(%arg0: i32) -> (i32, i32, i32, i32) {
    %c0_i32 = arith.constant 0 : i32
    %c0_i32_0 = arith.constant 0 : i32
    %c0_i32_1 = arith.constant 0 : i32
    %c0_i32_2 = arith.constant 0 : i32
    return %arg0, %c0_i32, %c0_i32_0, %c0_i32_1 : i32, i32, i32, i32
  }
  func.func @transform_1(%arg0: i32) -> (i32, i32) {
    %c0_i32 = arith.constant 0 : i32
    %c0_i32_0 = arith.constant 0 : i32
    %c0_i32_1 = arith.constant 0 : i32
    return %c0_i32, %c0_i32_0 : i32, i32
  }
  func.func @transform_2(%arg0: i32) -> (i32, i32) {
    %c0_i32 = arith.constant 0 : i32
    %c0_i32_0 = arith.constant 0 : i32
    %c0_i32_1 = arith.constant 0 : i32
    return %c0_i32, %c0_i32_0 : i32, i32
  }
  func.func @transform_3(%arg0: i32) -> (i32, i32) {
    %c0_i32 = arith.constant 0 : i32
    %c0_i32_0 = arith.constant 0 : i32
    %c0_i32_1 = arith.constant 0 : i32
    return %c0_i32, %c0_i32_0 : i32, i32
  }
  func.func @transform_4(%arg0: i32) -> (i32, i32) {
    %c0_i32 = arith.constant 0 : i32
    %c0_i32_0 = arith.constant 0 : i32
    %c0_i32_1 = arith.constant 0 : i32
    return %c0_i32, %c0_i32_0 : i32, i32
  }
  func.func @transform_5(%arg0: i32) -> (i32, i32) {
    %c0_i32 = arith.constant 0 : i32
    %c0_i32_0 = arith.constant 0 : i32
    %c0_i32_1 = arith.constant 0 : i32
    return %c0_i32, %c0_i32_0 : i32, i32
  }
  func.func @transform_6(%arg0: i32) -> (i32, i32) {
    %c0_i32 = arith.constant 0 : i32
    %c0_i32_0 = arith.constant 0 : i32
    %c0_i32_1 = arith.constant 0 : i32
    return %c0_i32, %c0_i32_0 : i32, i32
  }
  func.func @transform_7(%arg0: i32) -> (i32, i32) {
    %c0_i32 = arith.constant 0 : i32
    %c0_i32_0 = arith.constant 0 : i32
    %c0_i32_1 = arith.constant 0 : i32
    return %c0_i32, %c0_i32_0 : i32, i32
  }
  func.func @transform_8(%arg0: i32) -> (i32, i32) {
    %c0_i32 = arith.constant 0 : i32
    %c0_i32_0 = arith.constant 0 : i32
    %c0_i32_1 = arith.constant 0 : i32
    return %c0_i32, %c0_i32_0 : i32, i32
  }
  func.func @transform_9(%arg0: i32) -> (i32, i32) {
    %c0_i32 = arith.constant 0 : i32
    %c0_i32_0 = arith.constant 0 : i32
    %c0_i32_1 = arith.constant 0 : i32
    return %c0_i32, %c0_i32_0 : i32, i32
  }
  func.func @transform_10(%arg0: i32) -> (i32, i32, i32, i32) {
    %c0_i32 = arith.constant 0 : i32
    %c0_i32_0 = arith.constant 0 : i32
    %c0_i32_1 = arith.constant 0 : i32
    %c0_i32_2 = arith.constant 0 : i32
    return %arg0, %c0_i32, %c0_i32_0, %c0_i32_1 : i32, i32, i32, i32
  }
}

module attributes {stable_mosaic.version = 11 : i64} {
  func.func @_block_kernel(%arg0: i32, %arg1: memref<1x16x16x8xbf16, #tpu.memory_space<vmem>>, %arg2: memref<8x16xbf16, #tpu.memory_space<vmem>>, %arg3: memref<1x16xf32, #tpu.memory_space<vmem>>, %arg4: memref<1x16xf32, #tpu.memory_space<vmem>>, %arg5: memref<9x16xf32, #tpu.memory_space<vmem>>, %arg6: memref<1x16xf32, #tpu.memory_space<vmem>>, %arg7: memref<1x16xf32, #tpu.memory_space<vmem>>, %arg8: memref<64x256xf32, #tpu.memory_space<vmem>>, %arg9: memref<16x4xf32, #tpu.memory_space<vmem>>, %arg10: memref<4x16xf32, #tpu.memory_space<vmem>>, %arg11: memref<16x16xbf16, #tpu.memory_space<vmem>>, %arg12: memref<1x16xf32, #tpu.memory_space<vmem>>, %arg13: memref<1x16xf32, #tpu.memory_space<vmem>>, %arg14: memref<1x8x8x16xbf16, #tpu.memory_space<vmem>>, %arg15: memref<18x18x16xf32, #tpu.memory_space<vmem>>) attributes {dimension_semantics = [#tpu.dimension_semantics<parallel>], iteration_bounds = array<i64: 2>, scalar_prefetch = 0 : i64, scratch_operands = 1 : i64, tpu.core_type = #tpu.core_type<tc>, window_params = [{transform_indices = @transform_0, window_bounds = array<i64: 1, 16, 16, 8>}, {pipeline_mode = #tpu.pipeline_mode<synchronous>, transform_indices = @transform_1, window_bounds = array<i64: 8, 16>}, {pipeline_mode = #tpu.pipeline_mode<synchronous>, transform_indices = @transform_2, window_bounds = array<i64: 1, 16>}, {pipeline_mode = #tpu.pipeline_mode<synchronous>, transform_indices = @transform_3, window_bounds = array<i64: 1, 16>}, {pipeline_mode = #tpu.pipeline_mode<synchronous>, transform_indices = @transform_4, window_bounds = array<i64: 9, 16>}, {pipeline_mode = #tpu.pipeline_mode<synchronous>, transform_indices = @transform_5, window_bounds = array<i64: 1, 16>}, {pipeline_mode = #tpu.pipeline_mode<synchronous>, transform_indices = @transform_6, window_bounds = array<i64: 1, 16>}, {pipeline_mode = #tpu.pipeline_mode<synchronous>, transform_indices = @transform_7, window_bounds = array<i64: 64, 256>}, {pipeline_mode = #tpu.pipeline_mode<synchronous>, transform_indices = @transform_8, window_bounds = array<i64: 16, 4>}, {pipeline_mode = #tpu.pipeline_mode<synchronous>, transform_indices = @transform_9, window_bounds = array<i64: 4, 16>}, {pipeline_mode = #tpu.pipeline_mode<synchronous>, transform_indices = @transform_10, window_bounds = array<i64: 16, 16>}, {pipeline_mode = #tpu.pipeline_mode<synchronous>, transform_indices = @transform_11, window_bounds = array<i64: 1, 16>}, {pipeline_mode = #tpu.pipeline_mode<synchronous>, transform_indices = @transform_12, window_bounds = array<i64: 1, 16>}, {transform_indices = @transform_13, window_bounds = array<i64: 1, 8, 8, 16>}]} {
    %c0 = arith.constant 0 : index
    %c0_0 = arith.constant 0 : index
    %c0_1 = arith.constant 0 : index
    %c0_2 = arith.constant 0 : index
    %0 = vector.load %arg1[%c0, %c0_0, %c0_1, %c0_2] : memref<1x16x16x8xbf16, #tpu.memory_space<vmem>>, vector<1x16x16x8xbf16>
    %1 = vector.shape_cast %0 : vector<1x16x16x8xbf16> to vector<256x8xbf16>
    %c0_3 = arith.constant 0 : index
    %c0_4 = arith.constant 0 : index
    %2 = vector.load %arg2[%c0_3, %c0_4] : memref<8x16xbf16, #tpu.memory_space<vmem>>, vector<8x16xbf16>
    %cst = arith.constant dense<0.000000e+00> : vector<256x16xf32>
    %3 = tpu.matmul %1, %2, %cst {dimension_numbers = #tpu.dot_dimension_numbers<[1], [0], [0], [1], [0, 0, 1, 1], [], []>} : vector<256x8xbf16>, vector<8x16xbf16>, vector<256x16xf32> -> vector<256x16xf32>
    %c0_5 = arith.constant 0 : index
    %c0_6 = arith.constant 0 : index
    %4 = vector.load %arg3[%c0_5, %c0_6] : memref<1x16xf32, #tpu.memory_space<vmem>>, vector<1x16xf32>
    %5 = vector.broadcast %4 : vector<1x16xf32> to vector<256x16xf32>
    %6 = arith.mulf %3, %5 : vector<256x16xf32>
    %c0_7 = arith.constant 0 : index
    %c0_8 = arith.constant 0 : index
    %7 = vector.load %arg4[%c0_7, %c0_8] : memref<1x16xf32, #tpu.memory_space<vmem>>, vector<1x16xf32>
    %8 = vector.broadcast %7 : vector<1x16xf32> to vector<256x16xf32>
    %9 = arith.addf %6, %8 : vector<256x16xf32>
    %cst_9 = arith.constant 0.000000e+00 : f32
    %10 = vector.broadcast %cst_9 : f32 to vector<256x16xf32>
    %11 = arith.maximumf %9, %10 : vector<256x16xf32>
    %cst_10 = arith.constant 0.000000e+00 : f32
    %12 = vector.broadcast %cst_10 : f32 to vector<18x18x16xf32>
    %c0_11 = arith.constant 0 : index
    %c0_12 = arith.constant 0 : index
    %c0_13 = arith.constant 0 : index
    %13 = vector.load %arg15[%c0_11, %c0_12, %c0_13] : memref<18x18x16xf32, #tpu.memory_space<vmem>>, vector<18x18x16xf32>
    tpu.vector_store %arg15[%c0_11, %c0_12, %c0_13], %12 {strides = array<i32>} : memref<18x18x16xf32, #tpu.memory_space<vmem>>, vector<18x18x16xf32>,
    %14 = vector.shape_cast %11 : vector<256x16xf32> to vector<16x16x16xf32>
    %c1 = arith.constant 1 : index
    %c1_14 = arith.constant 1 : index
    %c0_15 = arith.constant 0 : index
    %15 = vector.load %arg15[%c1, %c1_14, %c0_15] : memref<18x18x16xf32, #tpu.memory_space<vmem>>, vector<16x16x16xf32>
    tpu.vector_store %arg15[%c1, %c1_14, %c0_15], %14 {strides = array<i32>} : memref<18x18x16xf32, #tpu.memory_space<vmem>>, vector<16x16x16xf32>,
    %c0_16 = arith.constant 0 : index
    %c0_17 = arith.constant 0 : index
    %16 = vector.load %arg5[%c0_16, %c0_17] : memref<9x16xf32, #tpu.memory_space<vmem>>, vector<9x16xf32>
    %cst_18 = arith.constant 0.000000e+00 : f32
    %17 = vector.broadcast %cst_18 : f32 to vector<16x16x16xf32>
    %c0_19 = arith.constant 0 : index
    %c0_20 = arith.constant 0 : index
    %c0_21 = arith.constant 0 : index
    %18 = vector.load %arg15[%c0_19, %c0_20, %c0_21] : memref<18x18x16xf32, #tpu.memory_space<vmem>>, vector<16x16x16xf32>
    %19 = vector.extract_strided_slice %16 {offsets = [0, 0], sizes = [1, 16], strides = [1, 1]} : vector<9x16xf32> to vector<1x16xf32>
    %20 = vector.shape_cast %19 : vector<1x16xf32> to vector<16xf32>
    %21 = vector.shape_cast %20 : vector<16xf32> to vector<1x1x16xf32>
    %22 = vector.broadcast %21 : vector<1x1x16xf32> to vector<16x16x16xf32>
    %23 = arith.mulf %18, %22 : vector<16x16x16xf32>
    %24 = arith.addf %17, %23 : vector<16x16x16xf32>
    %c0_22 = arith.constant 0 : index
    %c1_23 = arith.constant 1 : index
    %c0_24 = arith.constant 0 : index
    %25 = vector.load %arg15[%c0_22, %c1_23, %c0_24] : memref<18x18x16xf32, #tpu.memory_space<vmem>>, vector<16x16x16xf32>
    %26 = vector.extract_strided_slice %16 {offsets = [1, 0], sizes = [1, 16], strides = [1, 1]} : vector<9x16xf32> to vector<1x16xf32>
    %27 = vector.shape_cast %26 : vector<1x16xf32> to vector<16xf32>
    %28 = vector.shape_cast %27 : vector<16xf32> to vector<1x1x16xf32>
    %29 = vector.broadcast %28 : vector<1x1x16xf32> to vector<16x16x16xf32>
    %30 = arith.mulf %25, %29 : vector<16x16x16xf32>
    %31 = arith.addf %24, %30 : vector<16x16x16xf32>
    %c0_25 = arith.constant 0 : index
    %c2 = arith.constant 2 : index
    %c0_26 = arith.constant 0 : index
    %32 = vector.load %arg15[%c0_25, %c2, %c0_26] : memref<18x18x16xf32, #tpu.memory_space<vmem>>, vector<16x16x16xf32>
    %33 = vector.extract_strided_slice %16 {offsets = [2, 0], sizes = [1, 16], strides = [1, 1]} : vector<9x16xf32> to vector<1x16xf32>
    %34 = vector.shape_cast %33 : vector<1x16xf32> to vector<16xf32>
    %35 = vector.shape_cast %34 : vector<16xf32> to vector<1x1x16xf32>
    %36 = vector.broadcast %35 : vector<1x1x16xf32> to vector<16x16x16xf32>
    %37 = arith.mulf %32, %36 : vector<16x16x16xf32>
    %38 = arith.addf %31, %37 : vector<16x16x16xf32>
    %c1_27 = arith.constant 1 : index
    %c0_28 = arith.constant 0 : index
    %c0_29 = arith.constant 0 : index
    %39 = vector.load %arg15[%c1_27, %c0_28, %c0_29] : memref<18x18x16xf32, #tpu.memory_space<vmem>>, vector<16x16x16xf32>
    %40 = vector.extract_strided_slice %16 {offsets = [3, 0], sizes = [1, 16], strides = [1, 1]} : vector<9x16xf32> to vector<1x16xf32>
    %41 = vector.shape_cast %40 : vector<1x16xf32> to vector<16xf32>
    %42 = vector.shape_cast %41 : vector<16xf32> to vector<1x1x16xf32>
    %43 = vector.broadcast %42 : vector<1x1x16xf32> to vector<16x16x16xf32>
    %44 = arith.mulf %39, %43 : vector<16x16x16xf32>
    %45 = arith.addf %38, %44 : vector<16x16x16xf32>
    %c1_30 = arith.constant 1 : index
    %c1_31 = arith.constant 1 : index
    %c0_32 = arith.constant 0 : index
    %46 = vector.load %arg15[%c1_30, %c1_31, %c0_32] : memref<18x18x16xf32, #tpu.memory_space<vmem>>, vector<16x16x16xf32>
    %47 = vector.extract_strided_slice %16 {offsets = [4, 0], sizes = [1, 16], strides = [1, 1]} : vector<9x16xf32> to vector<1x16xf32>
    %48 = vector.shape_cast %47 : vector<1x16xf32> to vector<16xf32>
    %49 = vector.shape_cast %48 : vector<16xf32> to vector<1x1x16xf32>
    %50 = vector.broadcast %49 : vector<1x1x16xf32> to vector<16x16x16xf32>
    %51 = arith.mulf %46, %50 : vector<16x16x16xf32>
    %52 = arith.addf %45, %51 : vector<16x16x16xf32>
    %c1_33 = arith.constant 1 : index
    %c2_34 = arith.constant 2 : index
    %c0_35 = arith.constant 0 : index
    %53 = vector.load %arg15[%c1_33, %c2_34, %c0_35] : memref<18x18x16xf32, #tpu.memory_space<vmem>>, vector<16x16x16xf32>
    %54 = vector.extract_strided_slice %16 {offsets = [5, 0], sizes = [1, 16], strides = [1, 1]} : vector<9x16xf32> to vector<1x16xf32>
    %55 = vector.shape_cast %54 : vector<1x16xf32> to vector<16xf32>
    %56 = vector.shape_cast %55 : vector<16xf32> to vector<1x1x16xf32>
    %57 = vector.broadcast %56 : vector<1x1x16xf32> to vector<16x16x16xf32>
    %58 = arith.mulf %53, %57 : vector<16x16x16xf32>
    %59 = arith.addf %52, %58 : vector<16x16x16xf32>
    %c2_36 = arith.constant 2 : index
    %c0_37 = arith.constant 0 : index
    %c0_38 = arith.constant 0 : index
    %60 = vector.load %arg15[%c2_36, %c0_37, %c0_38] : memref<18x18x16xf32, #tpu.memory_space<vmem>>, vector<16x16x16xf32>
    %61 = vector.extract_strided_slice %16 {offsets = [6, 0], sizes = [1, 16], strides = [1, 1]} : vector<9x16xf32> to vector<1x16xf32>
    %62 = vector.shape_cast %61 : vector<1x16xf32> to vector<16xf32>
    %63 = vector.shape_cast %62 : vector<16xf32> to vector<1x1x16xf32>
    %64 = vector.broadcast %63 : vector<1x1x16xf32> to vector<16x16x16xf32>
    %65 = arith.mulf %60, %64 : vector<16x16x16xf32>
    %66 = arith.addf %59, %65 : vector<16x16x16xf32>
    %c2_39 = arith.constant 2 : index
    %c1_40 = arith.constant 1 : index
    %c0_41 = arith.constant 0 : index
    %67 = vector.load %arg15[%c2_39, %c1_40, %c0_41] : memref<18x18x16xf32, #tpu.memory_space<vmem>>, vector<16x16x16xf32>
    %68 = vector.extract_strided_slice %16 {offsets = [7, 0], sizes = [1, 16], strides = [1, 1]} : vector<9x16xf32> to vector<1x16xf32>
    %69 = vector.shape_cast %68 : vector<1x16xf32> to vector<16xf32>
    %70 = vector.shape_cast %69 : vector<16xf32> to vector<1x1x16xf32>
    %71 = vector.broadcast %70 : vector<1x1x16xf32> to vector<16x16x16xf32>
    %72 = arith.mulf %67, %71 : vector<16x16x16xf32>
    %73 = arith.addf %66, %72 : vector<16x16x16xf32>
    %c2_42 = arith.constant 2 : index
    %c2_43 = arith.constant 2 : index
    %c0_44 = arith.constant 0 : index
    %74 = vector.load %arg15[%c2_42, %c2_43, %c0_44] : memref<18x18x16xf32, #tpu.memory_space<vmem>>, vector<16x16x16xf32>
    %75 = vector.extract_strided_slice %16 {offsets = [8, 0], sizes = [1, 16], strides = [1, 1]} : vector<9x16xf32> to vector<1x16xf32>
    %76 = vector.shape_cast %75 : vector<1x16xf32> to vector<16xf32>
    %77 = vector.shape_cast %76 : vector<16xf32> to vector<1x1x16xf32>
    %78 = vector.broadcast %77 : vector<1x1x16xf32> to vector<16x16x16xf32>
    %79 = arith.mulf %74, %78 : vector<16x16x16xf32>
    %80 = arith.addf %73, %79 : vector<16x16x16xf32>
    %81 = vector.shape_cast %80 : vector<16x16x16xf32> to vector<256x16xf32>
    %c0_45 = arith.constant 0 : index
    %c0_46 = arith.constant 0 : index
    %82 = vector.load %arg8[%c0_45, %c0_46] : memref<64x256xf32, #tpu.memory_space<vmem>>, vector<64x256xf32>
    %cst_47 = arith.constant dense<0.000000e+00> : vector<64x16xf32>
    %83 = tpu.matmul %82, %81, %cst_47 {dimension_numbers = #tpu.dot_dimension_numbers<[1], [0], [0], [1], [0, 0, 1, 1], [], []>} : vector<64x256xf32>, vector<256x16xf32>, vector<64x16xf32> -> vector<64x16xf32>
    %c0_48 = arith.constant 0 : index
    %c0_49 = arith.constant 0 : index
    %84 = vector.load %arg6[%c0_48, %c0_49] : memref<1x16xf32, #tpu.memory_space<vmem>>, vector<1x16xf32>
    %85 = vector.broadcast %84 : vector<1x16xf32> to vector<64x16xf32>
    %86 = arith.mulf %83, %85 : vector<64x16xf32>
    %c0_50 = arith.constant 0 : index
    %c0_51 = arith.constant 0 : index
    %87 = vector.load %arg7[%c0_50, %c0_51] : memref<1x16xf32, #tpu.memory_space<vmem>>, vector<1x16xf32>
    %88 = vector.broadcast %87 : vector<1x16xf32> to vector<64x16xf32>
    %89 = arith.addf %86, %88 : vector<64x16xf32>
    %cst_52 = arith.constant dense<0.000000e+00> : vector<16xf32>
    %90 = vector.multi_reduction <add>, %89, %cst_52 [0] : vector<64x16xf32> to vector<16xf32>
    %91 = vector.shape_cast %90 : vector<16xf32> to vector<1x16xf32>
    %cst_53 = arith.constant 6.400000e+01 : f32
    %92 = vector.broadcast %cst_53 : f32 to vector<1x16xf32>
    %93 = arith.divf %91, %92 : vector<1x16xf32>
    %c0_54 = arith.constant 0 : index
    %c0_55 = arith.constant 0 : index
    %94 = vector.load %arg9[%c0_54, %c0_55] : memref<16x4xf32, #tpu.memory_space<vmem>>, vector<16x4xf32>
    %cst_56 = arith.constant dense<0.000000e+00> : vector<1x4xf32>
    %95 = tpu.matmul %93, %94, %cst_56 {dimension_numbers = #tpu.dot_dimension_numbers<[1], [0], [0], [1], [0, 0, 1, 1], [], []>} : vector<1x16xf32>, vector<16x4xf32>, vector<1x4xf32> -> vector<1x4xf32>
    %cst_57 = arith.constant 0.000000e+00 : f32
    %96 = vector.broadcast %cst_57 : f32 to vector<1x4xf32>
    %97 = arith.maximumf %95, %96 : vector<1x4xf32>
    %c0_58 = arith.constant 0 : index
    %c0_59 = arith.constant 0 : index
    %98 = vector.load %arg10[%c0_58, %c0_59] : memref<4x16xf32, #tpu.memory_space<vmem>>, vector<4x16xf32>
    %cst_60 = arith.constant dense<0.000000e+00> : vector<1x16xf32>
    %99 = tpu.matmul %97, %98, %cst_60 {dimension_numbers = #tpu.dot_dimension_numbers<[1], [0], [0], [1], [0, 0, 1, 1], [], []>} : vector<1x4xf32>, vector<4x16xf32>, vector<1x16xf32> -> vector<1x16xf32>
    %cst_61 = arith.constant 3.000000e+00 : f32
    %100 = vector.broadcast %cst_61 : f32 to vector<1x16xf32>
    %101 = arith.addf %99, %100 : vector<1x16xf32>
    %cst_62 = arith.constant 0.000000e+00 : f32
    %cst_63 = arith.constant 6.000000e+00 : f32
    %102 = vector.broadcast %cst_62 : f32 to vector<1x16xf32>
    %103 = arith.maximumf %102, %101 : vector<1x16xf32>
    %104 = vector.broadcast %cst_63 : f32 to vector<1x16xf32>
    %105 = arith.minimumf %104, %103 : vector<1x16xf32>
    %cst_64 = arith.constant 0.166666672 : f32
    %106 = vector.broadcast %cst_64 : f32 to vector<1x16xf32>
    %107 = arith.mulf %105, %106 : vector<1x16xf32>
    %108 = vector.broadcast %107 : vector<1x16xf32> to vector<64x16xf32>
    %109 = arith.mulf %89, %108 : vector<64x16xf32>
    %cst_65 = arith.constant 0.000000e+00 : f32
    %110 = vector.broadcast %cst_65 : f32 to vector<64x16xf32>
    %111 = arith.maximumf %109, %110 : vector<64x16xf32>
    %112 = arith.truncf %111 : vector<64x16xf32> to vector<64x16xbf16>
    %c0_66 = arith.constant 0 : index
    %c0_67 = arith.constant 0 : index
    %113 = vector.load %arg11[%c0_66, %c0_67] : memref<16x16xbf16, #tpu.memory_space<vmem>>, vector<16x16xbf16>
    %cst_68 = arith.constant dense<0.000000e+00> : vector<64x16xf32>
    %114 = tpu.matmul %112, %113, %cst_68 {dimension_numbers = #tpu.dot_dimension_numbers<[1], [0], [0], [1], [0, 0, 1, 1], [], []>} : vector<64x16xbf16>, vector<16x16xbf16>, vector<64x16xf32> -> vector<64x16xf32>
    %c0_69 = arith.constant 0 : index
    %c0_70 = arith.constant 0 : index
    %115 = vector.load %arg12[%c0_69, %c0_70] : memref<1x16xf32, #tpu.memory_space<vmem>>, vector<1x16xf32>
    %116 = vector.broadcast %115 : vector<1x16xf32> to vector<64x16xf32>
    %117 = arith.mulf %114, %116 : vector<64x16xf32>
    %c0_71 = arith.constant 0 : index
    %c0_72 = arith.constant 0 : index
    %118 = vector.load %arg13[%c0_71, %c0_72] : memref<1x16xf32, #tpu.memory_space<vmem>>, vector<1x16xf32>
    %119 = vector.broadcast %118 : vector<1x16xf32> to vector<64x16xf32>
    %120 = arith.addf %117, %119 : vector<64x16xf32>
    %121 = vector.shape_cast %120 : vector<64x16xf32> to vector<1x8x8x16xf32>
    %122 = arith.truncf %121 : vector<1x8x8x16xf32> to vector<1x8x8x16xbf16>
    %c0_73 = arith.constant 0 : index
    %c0_74 = arith.constant 0 : index
    %c0_75 = arith.constant 0 : index
    %c0_76 = arith.constant 0 : index
    %123 = vector.load %arg14[%c0_73, %c0_74, %c0_75, %c0_76] : memref<1x8x8x16xbf16, #tpu.memory_space<vmem>>, vector<1x8x8x16xbf16>
    tpu.vector_store %arg14[%c0_73, %c0_74, %c0_75, %c0_76], %122 {strides = array<i32>} : memref<1x8x8x16xbf16, #tpu.memory_space<vmem>>, vector<1x8x8x16xbf16>,
    return
  }
  func.func @transform_0(%arg0: i32) -> (i32, i32, i32, i32) {
    %c0_i32 = arith.constant 0 : i32
    %c0_i32_0 = arith.constant 0 : i32
    %c0_i32_1 = arith.constant 0 : i32
    %c0_i32_2 = arith.constant 0 : i32
    return %arg0, %c0_i32, %c0_i32_0, %c0_i32_1 : i32, i32, i32, i32
  }
  func.func @transform_1(%arg0: i32) -> (i32, i32) {
    %c0_i32 = arith.constant 0 : i32
    %c0_i32_0 = arith.constant 0 : i32
    %c0_i32_1 = arith.constant 0 : i32
    return %c0_i32, %c0_i32_0 : i32, i32
  }
  func.func @transform_2(%arg0: i32) -> (i32, i32) {
    %c0_i32 = arith.constant 0 : i32
    %c0_i32_0 = arith.constant 0 : i32
    %c0_i32_1 = arith.constant 0 : i32
    return %c0_i32, %c0_i32_0 : i32, i32
  }
  func.func @transform_3(%arg0: i32) -> (i32, i32) {
    %c0_i32 = arith.constant 0 : i32
    %c0_i32_0 = arith.constant 0 : i32
    %c0_i32_1 = arith.constant 0 : i32
    return %c0_i32, %c0_i32_0 : i32, i32
  }
  func.func @transform_4(%arg0: i32) -> (i32, i32) {
    %c0_i32 = arith.constant 0 : i32
    %c0_i32_0 = arith.constant 0 : i32
    %c0_i32_1 = arith.constant 0 : i32
    return %c0_i32, %c0_i32_0 : i32, i32
  }
  func.func @transform_5(%arg0: i32) -> (i32, i32) {
    %c0_i32 = arith.constant 0 : i32
    %c0_i32_0 = arith.constant 0 : i32
    %c0_i32_1 = arith.constant 0 : i32
    return %c0_i32, %c0_i32_0 : i32, i32
  }
  func.func @transform_6(%arg0: i32) -> (i32, i32) {
    %c0_i32 = arith.constant 0 : i32
    %c0_i32_0 = arith.constant 0 : i32
    %c0_i32_1 = arith.constant 0 : i32
    return %c0_i32, %c0_i32_0 : i32, i32
  }
  func.func @transform_7(%arg0: i32) -> (i32, i32) {
    %c0_i32 = arith.constant 0 : i32
    %c0_i32_0 = arith.constant 0 : i32
    %c0_i32_1 = arith.constant 0 : i32
    return %c0_i32, %c0_i32_0 : i32, i32
  }
  func.func @transform_8(%arg0: i32) -> (i32, i32) {
    %c0_i32 = arith.constant 0 : i32
    %c0_i32_0 = arith.constant 0 : i32
    %c0_i32_1 = arith.constant 0 : i32
    return %c0_i32, %c0_i32_0 : i32, i32
  }
  func.func @transform_9(%arg0: i32) -> (i32, i32) {
    %c0_i32 = arith.constant 0 : i32
    %c0_i32_0 = arith.constant 0 : i32
    %c0_i32_1 = arith.constant 0 : i32
    return %c0_i32, %c0_i32_0 : i32, i32
  }
  func.func @transform_10(%arg0: i32) -> (i32, i32) {
    %c0_i32 = arith.constant 0 : i32
    %c0_i32_0 = arith.constant 0 : i32
    %c0_i32_1 = arith.constant 0 : i32
    return %c0_i32, %c0_i32_0 : i32, i32
  }
  func.func @transform_11(%arg0: i32) -> (i32, i32) {
    %c0_i32 = arith.constant 0 : i32
    %c0_i32_0 = arith.constant 0 : i32
    %c0_i32_1 = arith.constant 0 : i32
    return %c0_i32, %c0_i32_0 : i32, i32
  }
  func.func @transform_12(%arg0: i32) -> (i32, i32) {
    %c0_i32 = arith.constant 0 : i32
    %c0_i32_0 = arith.constant 0 : i32
    %c0_i32_1 = arith.constant 0 : i32
    return %c0_i32, %c0_i32_0 : i32, i32
  }
  func.func @transform_13(%arg0: i32) -> (i32, i32, i32, i32) {
    %c0_i32 = arith.constant 0 : i32
    %c0_i32_0 = arith.constant 0 : i32
    %c0_i32_1 = arith.constant 0 : i32
    %c0_i32_2 = arith.constant 0 : i32
    return %arg0, %c0_i32, %c0_i32_0, %c0_i32_1 : i32, i32, i32, i32
  }
}

module attributes {stable_mosaic.version = 11 : i64} {
  func.func @_block_kernel(%arg0: i32, %arg1: memref<1x8x8x16xbf16, #tpu.memory_space<vmem>>, %arg2: memref<16x32xbf16, #tpu.memory_space<vmem>>, %arg3: memref<1x32xf32, #tpu.memory_space<vmem>>, %arg4: memref<1x32xf32, #tpu.memory_space<vmem>>, %arg5: memref<25x32xf32, #tpu.memory_space<vmem>>, %arg6: memref<1x32xf32, #tpu.memory_space<vmem>>, %arg7: memref<1x32xf32, #tpu.memory_space<vmem>>, %arg8: memref<32x8xf32, #tpu.memory_space<vmem>>, %arg9: memref<8x32xf32, #tpu.memory_space<vmem>>, %arg10: memref<32x24xbf16, #tpu.memory_space<vmem>>, %arg11: memref<1x24xf32, #tpu.memory_space<vmem>>, %arg12: memref<1x24xf32, #tpu.memory_space<vmem>>, %arg13: memref<1x8x8x24xbf16, #tpu.memory_space<vmem>>, %arg14: memref<12x12x32xf32, #tpu.memory_space<vmem>>) attributes {dimension_semantics = [#tpu.dimension_semantics<parallel>], iteration_bounds = array<i64: 2>, scalar_prefetch = 0 : i64, scratch_operands = 1 : i64, tpu.core_type = #tpu.core_type<tc>, window_params = [{transform_indices = @transform_0, window_bounds = array<i64: 1, 8, 8, 16>}, {pipeline_mode = #tpu.pipeline_mode<synchronous>, transform_indices = @transform_1, window_bounds = array<i64: 16, 32>}, {pipeline_mode = #tpu.pipeline_mode<synchronous>, transform_indices = @transform_2, window_bounds = array<i64: 1, 32>}, {pipeline_mode = #tpu.pipeline_mode<synchronous>, transform_indices = @transform_3, window_bounds = array<i64: 1, 32>}, {pipeline_mode = #tpu.pipeline_mode<synchronous>, transform_indices = @transform_4, window_bounds = array<i64: 25, 32>}, {pipeline_mode = #tpu.pipeline_mode<synchronous>, transform_indices = @transform_5, window_bounds = array<i64: 1, 32>}, {pipeline_mode = #tpu.pipeline_mode<synchronous>, transform_indices = @transform_6, window_bounds = array<i64: 1, 32>}, {pipeline_mode = #tpu.pipeline_mode<synchronous>, transform_indices = @transform_7, window_bounds = array<i64: 32, 8>}, {pipeline_mode = #tpu.pipeline_mode<synchronous>, transform_indices = @transform_8, window_bounds = array<i64: 8, 32>}, {pipeline_mode = #tpu.pipeline_mode<synchronous>, transform_indices = @transform_9, window_bounds = array<i64: 32, 24>}, {pipeline_mode = #tpu.pipeline_mode<synchronous>, transform_indices = @transform_10, window_bounds = array<i64: 1, 24>}, {pipeline_mode = #tpu.pipeline_mode<synchronous>, transform_indices = @transform_11, window_bounds = array<i64: 1, 24>}, {transform_indices = @transform_12, window_bounds = array<i64: 1, 8, 8, 24>}]} {
    %c0 = arith.constant 0 : index
    %c0_0 = arith.constant 0 : index
    %c0_1 = arith.constant 0 : index
    %c0_2 = arith.constant 0 : index
    %0 = vector.load %arg1[%c0, %c0_0, %c0_1, %c0_2] : memref<1x8x8x16xbf16, #tpu.memory_space<vmem>>, vector<1x8x8x16xbf16>
    %1 = vector.shape_cast %0 : vector<1x8x8x16xbf16> to vector<64x16xbf16>
    %c0_3 = arith.constant 0 : index
    %c0_4 = arith.constant 0 : index
    %2 = vector.load %arg2[%c0_3, %c0_4] : memref<16x32xbf16, #tpu.memory_space<vmem>>, vector<16x32xbf16>
    %cst = arith.constant dense<0.000000e+00> : vector<64x32xf32>
    %3 = tpu.matmul %1, %2, %cst {dimension_numbers = #tpu.dot_dimension_numbers<[1], [0], [0], [1], [0, 0, 1, 1], [], []>} : vector<64x16xbf16>, vector<16x32xbf16>, vector<64x32xf32> -> vector<64x32xf32>
    %c0_5 = arith.constant 0 : index
    %c0_6 = arith.constant 0 : index
    %4 = vector.load %arg3[%c0_5, %c0_6] : memref<1x32xf32, #tpu.memory_space<vmem>>, vector<1x32xf32>
    %5 = vector.broadcast %4 : vector<1x32xf32> to vector<64x32xf32>
    %6 = arith.mulf %3, %5 : vector<64x32xf32>
    %c0_7 = arith.constant 0 : index
    %c0_8 = arith.constant 0 : index
    %7 = vector.load %arg4[%c0_7, %c0_8] : memref<1x32xf32, #tpu.memory_space<vmem>>, vector<1x32xf32>
    %8 = vector.broadcast %7 : vector<1x32xf32> to vector<64x32xf32>
    %9 = arith.addf %6, %8 : vector<64x32xf32>
    %cst_9 = arith.constant 3.000000e+00 : f32
    %10 = vector.broadcast %cst_9 : f32 to vector<64x32xf32>
    %11 = arith.addf %9, %10 : vector<64x32xf32>
    %cst_10 = arith.constant 0.000000e+00 : f32
    %cst_11 = arith.constant 6.000000e+00 : f32
    %12 = vector.broadcast %cst_10 : f32 to vector<64x32xf32>
    %13 = arith.maximumf %12, %11 : vector<64x32xf32>
    %14 = vector.broadcast %cst_11 : f32 to vector<64x32xf32>
    %15 = arith.minimumf %14, %13 : vector<64x32xf32>
    %cst_12 = arith.constant 0.166666672 : f32
    %16 = vector.broadcast %cst_12 : f32 to vector<64x32xf32>
    %17 = arith.mulf %15, %16 : vector<64x32xf32>
    %18 = arith.mulf %9, %17 : vector<64x32xf32>
    %cst_13 = arith.constant 0.000000e+00 : f32
    %19 = vector.broadcast %cst_13 : f32 to vector<12x12x32xf32>
    %c0_14 = arith.constant 0 : index
    %c0_15 = arith.constant 0 : index
    %c0_16 = arith.constant 0 : index
    %20 = vector.load %arg14[%c0_14, %c0_15, %c0_16] : memref<12x12x32xf32, #tpu.memory_space<vmem>>, vector<12x12x32xf32>
    tpu.vector_store %arg14[%c0_14, %c0_15, %c0_16], %19 {strides = array<i32>} : memref<12x12x32xf32, #tpu.memory_space<vmem>>, vector<12x12x32xf32>,
    %21 = vector.shape_cast %18 : vector<64x32xf32> to vector<8x8x32xf32>
    %c2 = arith.constant 2 : index
    %c2_17 = arith.constant 2 : index
    %c0_18 = arith.constant 0 : index
    %22 = vector.load %arg14[%c2, %c2_17, %c0_18] : memref<12x12x32xf32, #tpu.memory_space<vmem>>, vector<8x8x32xf32>
    tpu.vector_store %arg14[%c2, %c2_17, %c0_18], %21 {strides = array<i32>} : memref<12x12x32xf32, #tpu.memory_space<vmem>>, vector<8x8x32xf32>,
    %c0_19 = arith.constant 0 : index
    %c0_20 = arith.constant 0 : index
    %23 = vector.load %arg5[%c0_19, %c0_20] : memref<25x32xf32, #tpu.memory_space<vmem>>, vector<25x32xf32>
    %cst_21 = arith.constant 0.000000e+00 : f32
    %24 = vector.broadcast %cst_21 : f32 to vector<8x8x32xf32>
    %c0_22 = arith.constant 0 : index
    %c0_23 = arith.constant 0 : index
    %c0_24 = arith.constant 0 : index
    %25 = vector.load %arg14[%c0_22, %c0_23, %c0_24] : memref<12x12x32xf32, #tpu.memory_space<vmem>>, vector<8x8x32xf32>
    %26 = vector.extract_strided_slice %23 {offsets = [0, 0], sizes = [1, 32], strides = [1, 1]} : vector<25x32xf32> to vector<1x32xf32>
    %27 = vector.shape_cast %26 : vector<1x32xf32> to vector<32xf32>
    %28 = vector.shape_cast %27 : vector<32xf32> to vector<1x1x32xf32>
    %29 = vector.broadcast %28 : vector<1x1x32xf32> to vector<8x8x32xf32>
    %30 = arith.mulf %25, %29 : vector<8x8x32xf32>
    %31 = arith.addf %24, %30 : vector<8x8x32xf32>
    %c0_25 = arith.constant 0 : index
    %c1 = arith.constant 1 : index
    %c0_26 = arith.constant 0 : index
    %32 = vector.load %arg14[%c0_25, %c1, %c0_26] : memref<12x12x32xf32, #tpu.memory_space<vmem>>, vector<8x8x32xf32>
    %33 = vector.extract_strided_slice %23 {offsets = [1, 0], sizes = [1, 32], strides = [1, 1]} : vector<25x32xf32> to vector<1x32xf32>
    %34 = vector.shape_cast %33 : vector<1x32xf32> to vector<32xf32>
    %35 = vector.shape_cast %34 : vector<32xf32> to vector<1x1x32xf32>
    %36 = vector.broadcast %35 : vector<1x1x32xf32> to vector<8x8x32xf32>
    %37 = arith.mulf %32, %36 : vector<8x8x32xf32>
    %38 = arith.addf %31, %37 : vector<8x8x32xf32>
    %c0_27 = arith.constant 0 : index
    %c2_28 = arith.constant 2 : index
    %c0_29 = arith.constant 0 : index
    %39 = vector.load %arg14[%c0_27, %c2_28, %c0_29] : memref<12x12x32xf32, #tpu.memory_space<vmem>>, vector<8x8x32xf32>
    %40 = vector.extract_strided_slice %23 {offsets = [2, 0], sizes = [1, 32], strides = [1, 1]} : vector<25x32xf32> to vector<1x32xf32>
    %41 = vector.shape_cast %40 : vector<1x32xf32> to vector<32xf32>
    %42 = vector.shape_cast %41 : vector<32xf32> to vector<1x1x32xf32>
    %43 = vector.broadcast %42 : vector<1x1x32xf32> to vector<8x8x32xf32>
    %44 = arith.mulf %39, %43 : vector<8x8x32xf32>
    %45 = arith.addf %38, %44 : vector<8x8x32xf32>
    %c0_30 = arith.constant 0 : index
    %c3 = arith.constant 3 : index
    %c0_31 = arith.constant 0 : index
    %46 = vector.load %arg14[%c0_30, %c3, %c0_31] : memref<12x12x32xf32, #tpu.memory_space<vmem>>, vector<8x8x32xf32>
    %47 = vector.extract_strided_slice %23 {offsets = [3, 0], sizes = [1, 32], strides = [1, 1]} : vector<25x32xf32> to vector<1x32xf32>
    %48 = vector.shape_cast %47 : vector<1x32xf32> to vector<32xf32>
    %49 = vector.shape_cast %48 : vector<32xf32> to vector<1x1x32xf32>
    %50 = vector.broadcast %49 : vector<1x1x32xf32> to vector<8x8x32xf32>
    %51 = arith.mulf %46, %50 : vector<8x8x32xf32>
    %52 = arith.addf %45, %51 : vector<8x8x32xf32>
    %c0_32 = arith.constant 0 : index
    %c4 = arith.constant 4 : index
    %c0_33 = arith.constant 0 : index
    %53 = vector.load %arg14[%c0_32, %c4, %c0_33] : memref<12x12x32xf32, #tpu.memory_space<vmem>>, vector<8x8x32xf32>
    %54 = vector.extract_strided_slice %23 {offsets = [4, 0], sizes = [1, 32], strides = [1, 1]} : vector<25x32xf32> to vector<1x32xf32>
    %55 = vector.shape_cast %54 : vector<1x32xf32> to vector<32xf32>
    %56 = vector.shape_cast %55 : vector<32xf32> to vector<1x1x32xf32>
    %57 = vector.broadcast %56 : vector<1x1x32xf32> to vector<8x8x32xf32>
    %58 = arith.mulf %53, %57 : vector<8x8x32xf32>
    %59 = arith.addf %52, %58 : vector<8x8x32xf32>
    %c1_34 = arith.constant 1 : index
    %c0_35 = arith.constant 0 : index
    %c0_36 = arith.constant 0 : index
    %60 = vector.load %arg14[%c1_34, %c0_35, %c0_36] : memref<12x12x32xf32, #tpu.memory_space<vmem>>, vector<8x8x32xf32>
    %61 = vector.extract_strided_slice %23 {offsets = [5, 0], sizes = [1, 32], strides = [1, 1]} : vector<25x32xf32> to vector<1x32xf32>
    %62 = vector.shape_cast %61 : vector<1x32xf32> to vector<32xf32>
    %63 = vector.shape_cast %62 : vector<32xf32> to vector<1x1x32xf32>
    %64 = vector.broadcast %63 : vector<1x1x32xf32> to vector<8x8x32xf32>
    %65 = arith.mulf %60, %64 : vector<8x8x32xf32>
    %66 = arith.addf %59, %65 : vector<8x8x32xf32>
    %c1_37 = arith.constant 1 : index
    %c1_38 = arith.constant 1 : index
    %c0_39 = arith.constant 0 : index
    %67 = vector.load %arg14[%c1_37, %c1_38, %c0_39] : memref<12x12x32xf32, #tpu.memory_space<vmem>>, vector<8x8x32xf32>
    %68 = vector.extract_strided_slice %23 {offsets = [6, 0], sizes = [1, 32], strides = [1, 1]} : vector<25x32xf32> to vector<1x32xf32>
    %69 = vector.shape_cast %68 : vector<1x32xf32> to vector<32xf32>
    %70 = vector.shape_cast %69 : vector<32xf32> to vector<1x1x32xf32>
    %71 = vector.broadcast %70 : vector<1x1x32xf32> to vector<8x8x32xf32>
    %72 = arith.mulf %67, %71 : vector<8x8x32xf32>
    %73 = arith.addf %66, %72 : vector<8x8x32xf32>
    %c1_40 = arith.constant 1 : index
    %c2_41 = arith.constant 2 : index
    %c0_42 = arith.constant 0 : index
    %74 = vector.load %arg14[%c1_40, %c2_41, %c0_42] : memref<12x12x32xf32, #tpu.memory_space<vmem>>, vector<8x8x32xf32>
    %75 = vector.extract_strided_slice %23 {offsets = [7, 0], sizes = [1, 32], strides = [1, 1]} : vector<25x32xf32> to vector<1x32xf32>
    %76 = vector.shape_cast %75 : vector<1x32xf32> to vector<32xf32>
    %77 = vector.shape_cast %76 : vector<32xf32> to vector<1x1x32xf32>
    %78 = vector.broadcast %77 : vector<1x1x32xf32> to vector<8x8x32xf32>
    %79 = arith.mulf %74, %78 : vector<8x8x32xf32>
    %80 = arith.addf %73, %79 : vector<8x8x32xf32>
    %c1_43 = arith.constant 1 : index
    %c3_44 = arith.constant 3 : index
    %c0_45 = arith.constant 0 : index
    %81 = vector.load %arg14[%c1_43, %c3_44, %c0_45] : memref<12x12x32xf32, #tpu.memory_space<vmem>>, vector<8x8x32xf32>
    %82 = vector.extract_strided_slice %23 {offsets = [8, 0], sizes = [1, 32], strides = [1, 1]} : vector<25x32xf32> to vector<1x32xf32>
    %83 = vector.shape_cast %82 : vector<1x32xf32> to vector<32xf32>
    %84 = vector.shape_cast %83 : vector<32xf32> to vector<1x1x32xf32>
    %85 = vector.broadcast %84 : vector<1x1x32xf32> to vector<8x8x32xf32>
    %86 = arith.mulf %81, %85 : vector<8x8x32xf32>
    %87 = arith.addf %80, %86 : vector<8x8x32xf32>
    %c1_46 = arith.constant 1 : index
    %c4_47 = arith.constant 4 : index
    %c0_48 = arith.constant 0 : index
    %88 = vector.load %arg14[%c1_46, %c4_47, %c0_48] : memref<12x12x32xf32, #tpu.memory_space<vmem>>, vector<8x8x32xf32>
    %89 = vector.extract_strided_slice %23 {offsets = [9, 0], sizes = [1, 32], strides = [1, 1]} : vector<25x32xf32> to vector<1x32xf32>
    %90 = vector.shape_cast %89 : vector<1x32xf32> to vector<32xf32>
    %91 = vector.shape_cast %90 : vector<32xf32> to vector<1x1x32xf32>
    %92 = vector.broadcast %91 : vector<1x1x32xf32> to vector<8x8x32xf32>
    %93 = arith.mulf %88, %92 : vector<8x8x32xf32>
    %94 = arith.addf %87, %93 : vector<8x8x32xf32>
    %c2_49 = arith.constant 2 : index
    %c0_50 = arith.constant 0 : index
    %c0_51 = arith.constant 0 : index
    %95 = vector.load %arg14[%c2_49, %c0_50, %c0_51] : memref<12x12x32xf32, #tpu.memory_space<vmem>>, vector<8x8x32xf32>
    %96 = vector.extract_strided_slice %23 {offsets = [10, 0], sizes = [1, 32], strides = [1, 1]} : vector<25x32xf32> to vector<1x32xf32>
    %97 = vector.shape_cast %96 : vector<1x32xf32> to vector<32xf32>
    %98 = vector.shape_cast %97 : vector<32xf32> to vector<1x1x32xf32>
    %99 = vector.broadcast %98 : vector<1x1x32xf32> to vector<8x8x32xf32>
    %100 = arith.mulf %95, %99 : vector<8x8x32xf32>
    %101 = arith.addf %94, %100 : vector<8x8x32xf32>
    %c2_52 = arith.constant 2 : index
    %c1_53 = arith.constant 1 : index
    %c0_54 = arith.constant 0 : index
    %102 = vector.load %arg14[%c2_52, %c1_53, %c0_54] : memref<12x12x32xf32, #tpu.memory_space<vmem>>, vector<8x8x32xf32>
    %103 = vector.extract_strided_slice %23 {offsets = [11, 0], sizes = [1, 32], strides = [1, 1]} : vector<25x32xf32> to vector<1x32xf32>
    %104 = vector.shape_cast %103 : vector<1x32xf32> to vector<32xf32>
    %105 = vector.shape_cast %104 : vector<32xf32> to vector<1x1x32xf32>
    %106 = vector.broadcast %105 : vector<1x1x32xf32> to vector<8x8x32xf32>
    %107 = arith.mulf %102, %106 : vector<8x8x32xf32>
    %108 = arith.addf %101, %107 : vector<8x8x32xf32>
    %c2_55 = arith.constant 2 : index
    %c2_56 = arith.constant 2 : index
    %c0_57 = arith.constant 0 : index
    %109 = vector.load %arg14[%c2_55, %c2_56, %c0_57] : memref<12x12x32xf32, #tpu.memory_space<vmem>>, vector<8x8x32xf32>
    %110 = vector.extract_strided_slice %23 {offsets = [12, 0], sizes = [1, 32], strides = [1, 1]} : vector<25x32xf32> to vector<1x32xf32>
    %111 = vector.shape_cast %110 : vector<1x32xf32> to vector<32xf32>
    %112 = vector.shape_cast %111 : vector<32xf32> to vector<1x1x32xf32>
    %113 = vector.broadcast %112 : vector<1x1x32xf32> to vector<8x8x32xf32>
    %114 = arith.mulf %109, %113 : vector<8x8x32xf32>
    %115 = arith.addf %108, %114 : vector<8x8x32xf32>
    %c2_58 = arith.constant 2 : index
    %c3_59 = arith.constant 3 : index
    %c0_60 = arith.constant 0 : index
    %116 = vector.load %arg14[%c2_58, %c3_59, %c0_60] : memref<12x12x32xf32, #tpu.memory_space<vmem>>, vector<8x8x32xf32>
    %117 = vector.extract_strided_slice %23 {offsets = [13, 0], sizes = [1, 32], strides = [1, 1]} : vector<25x32xf32> to vector<1x32xf32>
    %118 = vector.shape_cast %117 : vector<1x32xf32> to vector<32xf32>
    %119 = vector.shape_cast %118 : vector<32xf32> to vector<1x1x32xf32>
    %120 = vector.broadcast %119 : vector<1x1x32xf32> to vector<8x8x32xf32>
    %121 = arith.mulf %116, %120 : vector<8x8x32xf32>
    %122 = arith.addf %115, %121 : vector<8x8x32xf32>
    %c2_61 = arith.constant 2 : index
    %c4_62 = arith.constant 4 : index
    %c0_63 = arith.constant 0 : index
    %123 = vector.load %arg14[%c2_61, %c4_62, %c0_63] : memref<12x12x32xf32, #tpu.memory_space<vmem>>, vector<8x8x32xf32>
    %124 = vector.extract_strided_slice %23 {offsets = [14, 0], sizes = [1, 32], strides = [1, 1]} : vector<25x32xf32> to vector<1x32xf32>
    %125 = vector.shape_cast %124 : vector<1x32xf32> to vector<32xf32>
    %126 = vector.shape_cast %125 : vector<32xf32> to vector<1x1x32xf32>
    %127 = vector.broadcast %126 : vector<1x1x32xf32> to vector<8x8x32xf32>
    %128 = arith.mulf %123, %127 : vector<8x8x32xf32>
    %129 = arith.addf %122, %128 : vector<8x8x32xf32>
    %c3_64 = arith.constant 3 : index
    %c0_65 = arith.constant 0 : index
    %c0_66 = arith.constant 0 : index
    %130 = vector.load %arg14[%c3_64, %c0_65, %c0_66] : memref<12x12x32xf32, #tpu.memory_space<vmem>>, vector<8x8x32xf32>
    %131 = vector.extract_strided_slice %23 {offsets = [15, 0], sizes = [1, 32], strides = [1, 1]} : vector<25x32xf32> to vector<1x32xf32>
    %132 = vector.shape_cast %131 : vector<1x32xf32> to vector<32xf32>
    %133 = vector.shape_cast %132 : vector<32xf32> to vector<1x1x32xf32>
    %134 = vector.broadcast %133 : vector<1x1x32xf32> to vector<8x8x32xf32>
    %135 = arith.mulf %130, %134 : vector<8x8x32xf32>
    %136 = arith.addf %129, %135 : vector<8x8x32xf32>
    %c3_67 = arith.constant 3 : index
    %c1_68 = arith.constant 1 : index
    %c0_69 = arith.constant 0 : index
    %137 = vector.load %arg14[%c3_67, %c1_68, %c0_69] : memref<12x12x32xf32, #tpu.memory_space<vmem>>, vector<8x8x32xf32>
    %138 = vector.extract_strided_slice %23 {offsets = [16, 0], sizes = [1, 32], strides = [1, 1]} : vector<25x32xf32> to vector<1x32xf32>
    %139 = vector.shape_cast %138 : vector<1x32xf32> to vector<32xf32>
    %140 = vector.shape_cast %139 : vector<32xf32> to vector<1x1x32xf32>
    %141 = vector.broadcast %140 : vector<1x1x32xf32> to vector<8x8x32xf32>
    %142 = arith.mulf %137, %141 : vector<8x8x32xf32>
    %143 = arith.addf %136, %142 : vector<8x8x32xf32>
    %c3_70 = arith.constant 3 : index
    %c2_71 = arith.constant 2 : index
    %c0_72 = arith.constant 0 : index
    %144 = vector.load %arg14[%c3_70, %c2_71, %c0_72] : memref<12x12x32xf32, #tpu.memory_space<vmem>>, vector<8x8x32xf32>
    %145 = vector.extract_strided_slice %23 {offsets = [17, 0], sizes = [1, 32], strides = [1, 1]} : vector<25x32xf32> to vector<1x32xf32>
    %146 = vector.shape_cast %145 : vector<1x32xf32> to vector<32xf32>
    %147 = vector.shape_cast %146 : vector<32xf32> to vector<1x1x32xf32>
    %148 = vector.broadcast %147 : vector<1x1x32xf32> to vector<8x8x32xf32>
    %149 = arith.mulf %144, %148 : vector<8x8x32xf32>
    %150 = arith.addf %143, %149 : vector<8x8x32xf32>
    %c3_73 = arith.constant 3 : index
    %c3_74 = arith.constant 3 : index
    %c0_75 = arith.constant 0 : index
    %151 = vector.load %arg14[%c3_73, %c3_74, %c0_75] : memref<12x12x32xf32, #tpu.memory_space<vmem>>, vector<8x8x32xf32>
    %152 = vector.extract_strided_slice %23 {offsets = [18, 0], sizes = [1, 32], strides = [1, 1]} : vector<25x32xf32> to vector<1x32xf32>
    %153 = vector.shape_cast %152 : vector<1x32xf32> to vector<32xf32>
    %154 = vector.shape_cast %153 : vector<32xf32> to vector<1x1x32xf32>
    %155 = vector.broadcast %154 : vector<1x1x32xf32> to vector<8x8x32xf32>
    %156 = arith.mulf %151, %155 : vector<8x8x32xf32>
    %157 = arith.addf %150, %156 : vector<8x8x32xf32>
    %c3_76 = arith.constant 3 : index
    %c4_77 = arith.constant 4 : index
    %c0_78 = arith.constant 0 : index
    %158 = vector.load %arg14[%c3_76, %c4_77, %c0_78] : memref<12x12x32xf32, #tpu.memory_space<vmem>>, vector<8x8x32xf32>
    %159 = vector.extract_strided_slice %23 {offsets = [19, 0], sizes = [1, 32], strides = [1, 1]} : vector<25x32xf32> to vector<1x32xf32>
    %160 = vector.shape_cast %159 : vector<1x32xf32> to vector<32xf32>
    %161 = vector.shape_cast %160 : vector<32xf32> to vector<1x1x32xf32>
    %162 = vector.broadcast %161 : vector<1x1x32xf32> to vector<8x8x32xf32>
    %163 = arith.mulf %158, %162 : vector<8x8x32xf32>
    %164 = arith.addf %157, %163 : vector<8x8x32xf32>
    %c4_79 = arith.constant 4 : index
    %c0_80 = arith.constant 0 : index
    %c0_81 = arith.constant 0 : index
    %165 = vector.load %arg14[%c4_79, %c0_80, %c0_81] : memref<12x12x32xf32, #tpu.memory_space<vmem>>, vector<8x8x32xf32>
    %166 = vector.extract_strided_slice %23 {offsets = [20, 0], sizes = [1, 32], strides = [1, 1]} : vector<25x32xf32> to vector<1x32xf32>
    %167 = vector.shape_cast %166 : vector<1x32xf32> to vector<32xf32>
    %168 = vector.shape_cast %167 : vector<32xf32> to vector<1x1x32xf32>
    %169 = vector.broadcast %168 : vector<1x1x32xf32> to vector<8x8x32xf32>
    %170 = arith.mulf %165, %169 : vector<8x8x32xf32>
    %171 = arith.addf %164, %170 : vector<8x8x32xf32>
    %c4_82 = arith.constant 4 : index
    %c1_83 = arith.constant 1 : index
    %c0_84 = arith.constant 0 : index
    %172 = vector.load %arg14[%c4_82, %c1_83, %c0_84] : memref<12x12x32xf32, #tpu.memory_space<vmem>>, vector<8x8x32xf32>
    %173 = vector.extract_strided_slice %23 {offsets = [21, 0], sizes = [1, 32], strides = [1, 1]} : vector<25x32xf32> to vector<1x32xf32>
    %174 = vector.shape_cast %173 : vector<1x32xf32> to vector<32xf32>
    %175 = vector.shape_cast %174 : vector<32xf32> to vector<1x1x32xf32>
    %176 = vector.broadcast %175 : vector<1x1x32xf32> to vector<8x8x32xf32>
    %177 = arith.mulf %172, %176 : vector<8x8x32xf32>
    %178 = arith.addf %171, %177 : vector<8x8x32xf32>
    %c4_85 = arith.constant 4 : index
    %c2_86 = arith.constant 2 : index
    %c0_87 = arith.constant 0 : index
    %179 = vector.load %arg14[%c4_85, %c2_86, %c0_87] : memref<12x12x32xf32, #tpu.memory_space<vmem>>, vector<8x8x32xf32>
    %180 = vector.extract_strided_slice %23 {offsets = [22, 0], sizes = [1, 32], strides = [1, 1]} : vector<25x32xf32> to vector<1x32xf32>
    %181 = vector.shape_cast %180 : vector<1x32xf32> to vector<32xf32>
    %182 = vector.shape_cast %181 : vector<32xf32> to vector<1x1x32xf32>
    %183 = vector.broadcast %182 : vector<1x1x32xf32> to vector<8x8x32xf32>
    %184 = arith.mulf %179, %183 : vector<8x8x32xf32>
    %185 = arith.addf %178, %184 : vector<8x8x32xf32>
    %c4_88 = arith.constant 4 : index
    %c3_89 = arith.constant 3 : index
    %c0_90 = arith.constant 0 : index
    %186 = vector.load %arg14[%c4_88, %c3_89, %c0_90] : memref<12x12x32xf32, #tpu.memory_space<vmem>>, vector<8x8x32xf32>
    %187 = vector.extract_strided_slice %23 {offsets = [23, 0], sizes = [1, 32], strides = [1, 1]} : vector<25x32xf32> to vector<1x32xf32>
    %188 = vector.shape_cast %187 : vector<1x32xf32> to vector<32xf32>
    %189 = vector.shape_cast %188 : vector<32xf32> to vector<1x1x32xf32>
    %190 = vector.broadcast %189 : vector<1x1x32xf32> to vector<8x8x32xf32>
    %191 = arith.mulf %186, %190 : vector<8x8x32xf32>
    %192 = arith.addf %185, %191 : vector<8x8x32xf32>
    %c4_91 = arith.constant 4 : index
    %c4_92 = arith.constant 4 : index
    %c0_93 = arith.constant 0 : index
    %193 = vector.load %arg14[%c4_91, %c4_92, %c0_93] : memref<12x12x32xf32, #tpu.memory_space<vmem>>, vector<8x8x32xf32>
    %194 = vector.extract_strided_slice %23 {offsets = [24, 0], sizes = [1, 32], strides = [1, 1]} : vector<25x32xf32> to vector<1x32xf32>
    %195 = vector.shape_cast %194 : vector<1x32xf32> to vector<32xf32>
    %196 = vector.shape_cast %195 : vector<32xf32> to vector<1x1x32xf32>
    %197 = vector.broadcast %196 : vector<1x1x32xf32> to vector<8x8x32xf32>
    %198 = arith.mulf %193, %197 : vector<8x8x32xf32>
    %199 = arith.addf %192, %198 : vector<8x8x32xf32>
    %200 = vector.shape_cast %199 : vector<8x8x32xf32> to vector<64x32xf32>
    %c0_94 = arith.constant 0 : index
    %c0_95 = arith.constant 0 : index
    %201 = vector.load %arg6[%c0_94, %c0_95] : memref<1x32xf32, #tpu.memory_space<vmem>>, vector<1x32xf32>
    %202 = vector.broadcast %201 : vector<1x32xf32> to vector<64x32xf32>
    %203 = arith.mulf %200, %202 : vector<64x32xf32>
    %c0_96 = arith.constant 0 : index
    %c0_97 = arith.constant 0 : index
    %204 = vector.load %arg7[%c0_96, %c0_97] : memref<1x32xf32, #tpu.memory_space<vmem>>, vector<1x32xf32>
    %205 = vector.broadcast %204 : vector<1x32xf32> to vector<64x32xf32>
    %206 = arith.addf %203, %205 : vector<64x32xf32>
    %cst_98 = arith.constant dense<0.000000e+00> : vector<32xf32>
    %207 = vector.multi_reduction <add>, %206, %cst_98 [0] : vector<64x32xf32> to vector<32xf32>
    %208 = vector.shape_cast %207 : vector<32xf32> to vector<1x32xf32>
    %cst_99 = arith.constant 6.400000e+01 : f32
    %209 = vector.broadcast %cst_99 : f32 to vector<1x32xf32>
    %210 = arith.divf %208, %209 : vector<1x32xf32>
    %c0_100 = arith.constant 0 : index
    %c0_101 = arith.constant 0 : index
    %211 = vector.load %arg8[%c0_100, %c0_101] : memref<32x8xf32, #tpu.memory_space<vmem>>, vector<32x8xf32>
    %cst_102 = arith.constant dense<0.000000e+00> : vector<1x8xf32>
    %212 = tpu.matmul %210, %211, %cst_102 {dimension_numbers = #tpu.dot_dimension_numbers<[1], [0], [0], [1], [0, 0, 1, 1], [], []>} : vector<1x32xf32>, vector<32x8xf32>, vector<1x8xf32> -> vector<1x8xf32>
    %cst_103 = arith.constant 0.000000e+00 : f32
    %213 = vector.broadcast %cst_103 : f32 to vector<1x8xf32>
    %214 = arith.maximumf %212, %213 : vector<1x8xf32>
    %c0_104 = arith.constant 0 : index
    %c0_105 = arith.constant 0 : index
    %215 = vector.load %arg9[%c0_104, %c0_105] : memref<8x32xf32, #tpu.memory_space<vmem>>, vector<8x32xf32>
    %cst_106 = arith.constant dense<0.000000e+00> : vector<1x32xf32>
    %216 = tpu.matmul %214, %215, %cst_106 {dimension_numbers = #tpu.dot_dimension_numbers<[1], [0], [0], [1], [0, 0, 1, 1], [], []>} : vector<1x8xf32>, vector<8x32xf32>, vector<1x32xf32> -> vector<1x32xf32>
    %cst_107 = arith.constant 3.000000e+00 : f32
    %217 = vector.broadcast %cst_107 : f32 to vector<1x32xf32>
    %218 = arith.addf %216, %217 : vector<1x32xf32>
    %cst_108 = arith.constant 0.000000e+00 : f32
    %cst_109 = arith.constant 6.000000e+00 : f32
    %219 = vector.broadcast %cst_108 : f32 to vector<1x32xf32>
    %220 = arith.maximumf %219, %218 : vector<1x32xf32>
    %221 = vector.broadcast %cst_109 : f32 to vector<1x32xf32>
    %222 = arith.minimumf %221, %220 : vector<1x32xf32>
    %cst_110 = arith.constant 0.166666672 : f32
    %223 = vector.broadcast %cst_110 : f32 to vector<1x32xf32>
    %224 = arith.mulf %222, %223 : vector<1x32xf32>
    %225 = vector.broadcast %224 : vector<1x32xf32> to vector<64x32xf32>
    %226 = arith.mulf %206, %225 : vector<64x32xf32>
    %cst_111 = arith.constant 3.000000e+00 : f32
    %227 = vector.broadcast %cst_111 : f32 to vector<64x32xf32>
    %228 = arith.addf %226, %227 : vector<64x32xf32>
    %cst_112 = arith.constant 0.000000e+00 : f32
    %cst_113 = arith.constant 6.000000e+00 : f32
    %229 = vector.broadcast %cst_112 : f32 to vector<64x32xf32>
    %230 = arith.maximumf %229, %228 : vector<64x32xf32>
    %231 = vector.broadcast %cst_113 : f32 to vector<64x32xf32>
    %232 = arith.minimumf %231, %230 : vector<64x32xf32>
    %cst_114 = arith.constant 0.166666672 : f32
    %233 = vector.broadcast %cst_114 : f32 to vector<64x32xf32>
    %234 = arith.mulf %232, %233 : vector<64x32xf32>
    %235 = arith.mulf %226, %234 : vector<64x32xf32>
    %236 = arith.truncf %235 : vector<64x32xf32> to vector<64x32xbf16>
    %c0_115 = arith.constant 0 : index
    %c0_116 = arith.constant 0 : index
    %237 = vector.load %arg10[%c0_115, %c0_116] : memref<32x24xbf16, #tpu.memory_space<vmem>>, vector<32x24xbf16>
    %cst_117 = arith.constant dense<0.000000e+00> : vector<64x24xf32>
    %238 = tpu.matmul %236, %237, %cst_117 {dimension_numbers = #tpu.dot_dimension_numbers<[1], [0], [0], [1], [0, 0, 1, 1], [], []>} : vector<64x32xbf16>, vector<32x24xbf16>, vector<64x24xf32> -> vector<64x24xf32>
    %c0_118 = arith.constant 0 : index
    %c0_119 = arith.constant 0 : index
    %239 = vector.load %arg11[%c0_118, %c0_119] : memref<1x24xf32, #tpu.memory_space<vmem>>, vector<1x24xf32>
    %240 = vector.broadcast %239 : vector<1x24xf32> to vector<64x24xf32>
    %241 = arith.mulf %238, %240 : vector<64x24xf32>
    %c0_120 = arith.constant 0 : index
    %c0_121 = arith.constant 0 : index
    %242 = vector.load %arg12[%c0_120, %c0_121] : memref<1x24xf32, #tpu.memory_space<vmem>>, vector<1x24xf32>
    %243 = vector.broadcast %242 : vector<1x24xf32> to vector<64x24xf32>
    %244 = arith.addf %241, %243 : vector<64x24xf32>
    %245 = vector.shape_cast %244 : vector<64x24xf32> to vector<1x8x8x24xf32>
    %246 = arith.truncf %245 : vector<1x8x8x24xf32> to vector<1x8x8x24xbf16>
    %c0_122 = arith.constant 0 : index
    %c0_123 = arith.constant 0 : index
    %c0_124 = arith.constant 0 : index
    %c0_125 = arith.constant 0 : index
    %247 = vector.load %arg13[%c0_122, %c0_123, %c0_124, %c0_125] : memref<1x8x8x24xbf16, #tpu.memory_space<vmem>>, vector<1x8x8x24xbf16>
    tpu.vector_store %arg13[%c0_122, %c0_123, %c0_124, %c0_125], %246 {strides = array<i32>} : memref<1x8x8x24xbf16, #tpu.memory_space<vmem>>, vector<1x8x8x24xbf16>,
    return
  }
  func.func @transform_0(%arg0: i32) -> (i32, i32, i32, i32) {
    %c0_i32 = arith.constant 0 : i32
    %c0_i32_0 = arith.constant 0 : i32
    %c0_i32_1 = arith.constant 0 : i32
    %c0_i32_2 = arith.constant 0 : i32
    return %arg0, %c0_i32, %c0_i32_0, %c0_i32_1 : i32, i32, i32, i32
  }
  func.func @transform_1(%arg0: i32) -> (i32, i32) {
    %c0_i32 = arith.constant 0 : i32
    %c0_i32_0 = arith.constant 0 : i32
    %c0_i32_1 = arith.constant 0 : i32
    return %c0_i32, %c0_i32_0 : i32, i32
  }
  func.func @transform_2(%arg0: i32) -> (i32, i32) {
    %c0_i32 = arith.constant 0 : i32
    %c0_i32_0 = arith.constant 0 : i32
    %c0_i32_1 = arith.constant 0 : i32
    return %c0_i32, %c0_i32_0 : i32, i32
  }
  func.func @transform_3(%arg0: i32) -> (i32, i32) {
    %c0_i32 = arith.constant 0 : i32
    %c0_i32_0 = arith.constant 0 : i32
    %c0_i32_1 = arith.constant 0 : i32
    return %c0_i32, %c0_i32_0 : i32, i32
  }
  func.func @transform_4(%arg0: i32) -> (i32, i32) {
    %c0_i32 = arith.constant 0 : i32
    %c0_i32_0 = arith.constant 0 : i32
    %c0_i32_1 = arith.constant 0 : i32
    return %c0_i32, %c0_i32_0 : i32, i32
  }
  func.func @transform_5(%arg0: i32) -> (i32, i32) {
    %c0_i32 = arith.constant 0 : i32
    %c0_i32_0 = arith.constant 0 : i32
    %c0_i32_1 = arith.constant 0 : i32
    return %c0_i32, %c0_i32_0 : i32, i32
  }
  func.func @transform_6(%arg0: i32) -> (i32, i32) {
    %c0_i32 = arith.constant 0 : i32
    %c0_i32_0 = arith.constant 0 : i32
    %c0_i32_1 = arith.constant 0 : i32
    return %c0_i32, %c0_i32_0 : i32, i32
  }
  func.func @transform_7(%arg0: i32) -> (i32, i32) {
    %c0_i32 = arith.constant 0 : i32
    %c0_i32_0 = arith.constant 0 : i32
    %c0_i32_1 = arith.constant 0 : i32
    return %c0_i32, %c0_i32_0 : i32, i32
  }
  func.func @transform_8(%arg0: i32) -> (i32, i32) {
    %c0_i32 = arith.constant 0 : i32
    %c0_i32_0 = arith.constant 0 : i32
    %c0_i32_1 = arith.constant 0 : i32
    return %c0_i32, %c0_i32_0 : i32, i32
  }
  func.func @transform_9(%arg0: i32) -> (i32, i32) {
    %c0_i32 = arith.constant 0 : i32
    %c0_i32_0 = arith.constant 0 : i32
    %c0_i32_1 = arith.constant 0 : i32
    return %c0_i32, %c0_i32_0 : i32, i32
  }
  func.func @transform_10(%arg0: i32) -> (i32, i32) {
    %c0_i32 = arith.constant 0 : i32
    %c0_i32_0 = arith.constant 0 : i32
    %c0_i32_1 = arith.constant 0 : i32
    return %c0_i32, %c0_i32_0 : i32, i32
  }
  func.func @transform_11(%arg0: i32) -> (i32, i32) {
    %c0_i32 = arith.constant 0 : i32
    %c0_i32_0 = arith.constant 0 : i32
    %c0_i32_1 = arith.constant 0 : i32
    return %c0_i32, %c0_i32_0 : i32, i32
  }
  func.func @transform_12(%arg0: i32) -> (i32, i32, i32, i32) {
    %c0_i32 = arith.constant 0 : i32
    %c0_i32_0 = arith.constant 0 : i32
    %c0_i32_1 = arith.constant 0 : i32
    %c0_i32_2 = arith.constant 0 : i32
    return %arg0, %c0_i32, %c0_i32_0, %c0_i32_1 : i32, i32, i32, i32
  }
}

</mosaic_0001>

<llo_original>
// kernel: slim_stage.4
$region0: #{slim_stage.4}
  #allocation0 [shape = 'u32[]', space=smem, size = 0x4, offset = 0x4, fixed_abs, tag = 'smem constant byte address 0x4 - core index']
  #allocation1 [shape = 'u32[144,128]{1,0:T(1,128)}', space=vmem, size = 0x12000, scoped, tag = 'internal scratch']
  #allocation2 [shape = 'f32[10,10,32]{2,1,0:T(8,128)}', space=vmem, size = 0x14000, scoped, tag = 'scratch operand']
  %s0 = inlined_call_operand.vmem [shape: bf16[2,8,8,16], index: 0, kind: input, shape index: {}]
  %s1 = inlined_call_operand.vmem [shape: bf16[16,32], index: 1, kind: input, shape index: {}]
  %s2 = inlined_call_operand.vmem [shape: f32[1,32], index: 2, kind: input, shape index: {}]
  %s3 = inlined_call_operand.vmem [shape: f32[1,32], index: 3, kind: input, shape index: {}]
  %s4 = inlined_call_operand.vmem [shape: f32[9,32], index: 4, kind: input, shape index: {}]
  %s5 = inlined_call_operand.vmem [shape: f32[1,32], index: 5, kind: input, shape index: {}]
  %s6 = inlined_call_operand.vmem [shape: f32[1,32], index: 6, kind: input, shape index: {}]
  %s7 = inlined_call_operand.vmem [shape: bf16[32,16], index: 7, kind: input, shape index: {}]
  %s8 = inlined_call_operand.vmem [shape: f32[1,16], index: 8, kind: input, shape index: {}]
  %s9 = inlined_call_operand.vmem [shape: f32[1,16], index: 9, kind: input, shape index: {}]
  %s10 = inlined_call_operand.vmem [shape: bf16[2,8,8,16], index: 10, kind: output, shape index: {}]
  %s11 = sld [smem:[#allocation0]]
  $region73: #{slim_stage.4} parent=0
    _
  %s13 = ssub.s32 1, %s11
  %s14 = scalar_select 0, %s13, %s11
  loop: start=0, step=1, limit=4
  $region2: #{slim_stage.4} parent=0 // loop_pre_header
    _
  $region3: #{slim_stage.4} parent=0 // loop_header
    %s16 = sphi 0, %s20
    %p17 = scmp.ge.s32.totalorder %s16, 4
    %s26 = sphi 0, %s28
    %s29 = sphi 0, %s26
    %s30 = sphi 0, %s29
    %s46 = sphi 0, %s30
    %s50 = sphi 0, %s50
    %s52 = sphi 0, %s50
    %s53 = sphi 0, %s52
    %s67 = sphi 0, %s53
    %s71 = sphi 0, %s71
    %s73 = sphi 0, %s71
    %s74 = sphi 0, %s73
    %s88 = sphi 0, %s74
    %s92 = sphi 0, %s92
    %s94 = sphi 0, %s92
    %s95 = sphi 0, %s94
    %s109 = sphi 0, %s95
    %s113 = sphi 0, %s113
    %s115 = sphi 0, %s113
    %s116 = sphi 0, %s115
    %s130 = sphi 0, %s116
    %s134 = sphi 0, %s134
    %s136 = sphi 0, %s134
    %s137 = sphi 0, %s136
    %s151 = sphi 0, %s137
    %s155 = sphi 0, %s155
    %s157 = sphi 0, %s155
    %s158 = sphi 0, %s157
    %s172 = sphi 0, %s158
    %s176 = sphi 0, %s176
    %s178 = sphi 0, %s176
    %s179 = sphi 0, %s178
    %s193 = sphi 0, %s179
    %s197 = sphi 0, %s197
    %s199 = sphi 0, %s197
    %s200 = sphi 0, %s199
    %s214 = sphi 0, %s200
    %s218 = sphi 0, %s218
    %s220 = sphi 0, %s218
    %s221 = sphi 0, %s220
    %s235 = sphi 0, %s221
    %s241 = sphi 0, %s243
    %s244 = sphi 0, %s241
    %s245 = sphi 0, %s244
    %s261 = sphi 0, %s245
  $region4: #{slim_stage.4} parent=0 // loop_header_branch
    %19 = sbr.rel (%p17) target = $region8
  $region5: #{slim_stage.4} parent=0 // loop_body
    %s21 = ssub.s32 %s16, 1
    %s22 = ssub.s32 %s16, 2
    %s23 = sadd.s32 %s16, 1
    %s24 = ssub.s32 %s16, %s23
    %p25 = scmp.eq.s32.totalorder %s24, 0
    %s27 = sadd.s32 %s26, 1
    %s28 = scalar_select %p25, %s26, %s27
    %p31 = pneg %p25
    %p32 = scmp.eq.s32.totalorder %s16, 1
    %p33 = por %p31, %p32
    %p34 = scmp.ne.s32.totalorder %s26, %s29
    %p35 = scmp.eq.s32.totalorder %s16, 0
    %p36 = por %p34, %p35
    %p37 = scmp.ne.s32.totalorder %s26, %s29
    %p38 = scmp.eq.s32.totalorder %s21, 1
    %p39 = por %p37, %p38
    %p40 = scmp.ne.s32.totalorder %s29, %s30
    %p41 = scmp.eq.s32.totalorder %s21, 0
    %p42 = por %p40, %p41
    %p43 = scmp.ne.s32.totalorder %s29, %s30
    %p44 = scmp.eq.s32.totalorder %s22, 1
    %p45 = por %p43, %p44
    %p47 = scmp.ne.s32.totalorder %s30, %s46
    %p48 = scmp.eq.s32.totalorder %s22, 0
    %p49 = por %p47, %p48
    %s51 = sadd.s32 %s50, 1
    %p54 = scmp.eq.s32.totalorder %s16, 1
    %p55 = scmp.ne.s32.totalorder %s50, %s52
    %p56 = scmp.eq.s32.totalorder %s16, 0
    %p57 = por %p55, %p56
    %p58 = scmp.ne.s32.totalorder %s50, %s52
    %p59 = scmp.eq.s32.totalorder %s21, 1
    %p60 = por %p58, %p59
    %p61 = scmp.ne.s32.totalorder %s52, %s53
    %p62 = scmp.eq.s32.totalorder %s21, 0
    %p63 = por %p61, %p62
    %p64 = scmp.ne.s32.totalorder %s52, %s53
    %p65 = scmp.eq.s32.totalorder %s22, 1
    %p66 = por %p64, %p65
    %p68 = scmp.ne.s32.totalorder %s53, %s67
    %p69 = scmp.eq.s32.totalorder %s22, 0
    %p70 = por %p68, %p69
    %s72 = sadd.s32 %s71, 1
    %p75 = scmp.eq.s32.totalorder %s16, 1
    %p76 = scmp.ne.s32.totalorder %s71, %s73
    %p77 = scmp.eq.s32.totalorder %s16, 0
    %p78 = por %p76, %p77
    %p79 = scmp.ne.s32.totalorder %s71, %s73
    %p80 = scmp.eq.s32.totalorder %s21, 1
    %p81 = por %p79, %p80
    %p82 = scmp.ne.s32.totalorder %s73, %s74
    %p83 = scmp.eq.s32.totalorder %s21, 0
    %p84 = por %p82, %p83
    %p85 = scmp.ne.s32.totalorder %s73, %s74
    %p86 = scmp.eq.s32.totalorder %s22, 1
    %p87 = por %p85, %p86
    %p89 = scmp.ne.s32.totalorder %s74, %s88
    %p90 = scmp.eq.s32.totalorder %s22, 0
    %p91 = por %p89, %p90
    %s93 = sadd.s32 %s92, 1
    %p96 = scmp.eq.s32.totalorder %s16, 1
    %p97 = scmp.ne.s32.totalorder %s92, %s94
    %p98 = scmp.eq.s32.totalorder %s16, 0
    %p99 = por %p97, %p98
    %p100 = scmp.ne.s32.totalorder %s92, %s94
    %p101 = scmp.eq.s32.totalorder %s21, 1
    %p102 = por %p100, %p101
    %p103 = scmp.ne.s32.totalorder %s94, %s95
    %p104 = scmp.eq.s32.totalorder %s21, 0
    %p105 = por %p103, %p104
    %p106 = scmp.ne.s32.totalorder %s94, %s95
    %p107 = scmp.eq.s32.totalorder %s22, 1
    %p108 = por %p106, %p107
    %p110 = scmp.ne.s32.totalorder %s95, %s109
    %p111 = scmp.eq.s32.totalorder %s22, 0
    %p112 = por %p110, %p111
    %s114 = sadd.s32 %s113, 1
    %p117 = scmp.eq.s32.totalorder %s16, 1
    %p118 = scmp.ne.s32.totalorder %s113, %s115
    %p119 = scmp.eq.s32.totalorder %s16, 0
    %p120 = por %p118, %p119
    %p121 = scmp.ne.s32.totalorder %s113, %s115
    %p122 = scmp.eq.s32.totalorder %s21, 1
    %p123 = por %p121, %p122
    %p124 = scmp.ne.s32.totalorder %s115, %s116
    %p125 = scmp.eq.s32.totalorder %s21, 0
    %p126 = por %p124, %p125
    %p127 = scmp.ne.s32.totalorder %s115, %s116
    %p128 = scmp.eq.s32.totalorder %s22, 1
    %p129 = por %p127, %p128
    %p131 = scmp.ne.s32.totalorder %s116, %s130
    %p132 = scmp.eq.s32.totalorder %s22, 0
    %p133 = por %p131, %p132
    %s135 = sadd.s32 %s134, 1
    %p138 = scmp.eq.s32.totalorder %s16, 1
    %p139 = scmp.ne.s32.totalorder %s134, %s136
    %p140 = scmp.eq.s32.totalorder %s16, 0
    %p141 = por %p139, %p140
    %p142 = scmp.ne.s32.totalorder %s134, %s136
    %p143 = scmp.eq.s32.totalorder %s21, 1
    %p144 = por %p142, %p143
    %p145 = scmp.ne.s32.totalorder %s136, %s137
    %p146 = scmp.eq.s32.totalorder %s21, 0
    %p147 = por %p145, %p146
    %p148 = scmp.ne.s32.totalorder %s136, %s137
    %p149 = scmp.eq.s32.totalorder %s22, 1
    %p150 = por %p148, %p149
    %p152 = scmp.ne.s32.totalorder %s137, %s151
    %p153 = scmp.eq.s32.totalorder %s22, 0
    %p154 = por %p152, %p153
    %s156 = sadd.s32 %s155, 1
    %p159 = scmp.eq.s32.totalorder %s16, 1
    %p160 = scmp.ne.s32.totalorder %s155, %s157
    %p161 = scmp.eq.s32.totalorder %s16, 0
    %p162 = por %p160, %p161
    %p163 = scmp.ne.s32.totalorder %s155, %s157
    %p164 = scmp.eq.s32.totalorder %s21, 1
    %p165 = por %p163, %p164
    %p166 = scmp.ne.s32.totalorder %s157, %s158
    %p167 = scmp.eq.s32.totalorder %s21, 0
    %p168 = por %p166, %p167
    %p169 = scmp.ne.s32.totalorder %s157, %s158
    %p170 = scmp.eq.s32.totalorder %s22, 1
    %p171 = por %p169, %p170
    %p173 = scmp.ne.s32.totalorder %s158, %s172
    %p174 = scmp.eq.s32.totalorder %s22, 0
    %p175 = por %p173, %p174
    %s177 = sadd.s32 %s176, 1
    %p180 = scmp.eq.s32.totalorder %s16, 1
    %p181 = scmp.ne.s32.totalorder %s176, %s178
    %p182 = scmp.eq.s32.totalorder %s16, 0
    %p183 = por %p181, %p182
    %p184 = scmp.ne.s32.totalorder %s176, %s178
    %p185 = scmp.eq.s32.totalorder %s21, 1
    %p186 = por %p184, %p185
    %p187 = scmp.ne.s32.totalorder %s178, %s179
    %p188 = scmp.eq.s32.totalorder %s21, 0
    %p189 = por %p187, %p188
    %p190 = scmp.ne.s32.totalorder %s178, %s179
    %p191 = scmp.eq.s32.totalorder %s22, 1
    %p192 = por %p190, %p191
    %p194 = scmp.ne.s32.totalorder %s179, %s193
    %p195 = scmp.eq.s32.totalorder %s22, 0
    %p196 = por %p194, %p195
    %s198 = sadd.s32 %s197, 1
    %p201 = scmp.eq.s32.totalorder %s16, 1
    %p202 = scmp.ne.s32.totalorder %s197, %s199
    %p203 = scmp.eq.s32.totalorder %s16, 0
    %p204 = por %p202, %p203
    %p205 = scmp.ne.s32.totalorder %s197, %s199
    %p206 = scmp.eq.s32.totalorder %s21, 1
    %p207 = por %p205, %p206
    %p208 = scmp.ne.s32.totalorder %s199, %s200
    %p209 = scmp.eq.s32.totalorder %s21, 0
    %p210 = por %p208, %p209
    %p211 = scmp.ne.s32.totalorder %s199, %s200
    %p212 = scmp.eq.s32.totalorder %s22, 1
    %p213 = por %p211, %p212
    %p215 = scmp.ne.s32.totalorder %s200, %s214
    %p216 = scmp.eq.s32.totalorder %s22, 0
    %p217 = por %p215, %p216
    %s219 = sadd.s32 %s218, 1
    %p222 = scmp.eq.s32.totalorder %s16, 1
    %p223 = scmp.ne.s32.totalorder %s218, %s220
    %p224 = scmp.eq.s32.totalorder %s16, 0
    %p225 = por %p223, %p224
    %p226 = scmp.ne.s32.totalorder %s218, %s220
    %p227 = scmp.eq.s32.totalorder %s21, 1
    %p228 = por %p226, %p227
    %p229 = scmp.ne.s32.totalorder %s220, %s221
    %p230 = scmp.eq.s32.totalorder %s21, 0
    %p231 = por %p229, %p230
    %p232 = scmp.ne.s32.totalorder %s220, %s221
    %p233 = scmp.eq.s32.totalorder %s22, 1
    %p234 = por %p232, %p233
    %p236 = scmp.ne.s32.totalorder %s221, %s235
    %p237 = scmp.eq.s32.totalorder %s22, 0
    %p238 = por %p236, %p237
    %s239 = ssub.s32 %s16, %s23
    %p240 = scmp.eq.s32.totalorder %s239, 0
    %s242 = sadd.s32 %s241, 1
    %s243 = scalar_select %p240, %s241, %s242
    %p246 = pneg %p240
    %p247 = scmp.eq.s32.totalorder %s16, 1
    %p248 = por %p246, %p247
    %p249 = scmp.ne.s32.totalorder %s241, %s244
    %p250 = scmp.eq.s32.totalorder %s16, 0
    %p251 = por %p249, %p250
    %p252 = scmp.ne.s32.totalorder %s241, %s244
    %p253 = scmp.eq.s32.totalorder %s21, 1
    %p254 = por %p252, %p253
    %p255 = scmp.ne.s32.totalorder %s244, %s245
    %p256 = scmp.eq.s32.totalorder %s21, 0
    %p257 = por %p255, %p256
    %p258 = scmp.ne.s32.totalorder %s244, %s245
    %p259 = scmp.eq.s32.totalorder %s22, 1
    %p260 = por %p258, %p259
    %p262 = scmp.ne.s32.totalorder %s245, %s261
    %p263 = scmp.eq.s32.totalorder %s22, 0
    %p264 = por %p262, %p263
    %p265 = scmp.le.s32.totalorder 1, %s16
    %p266 = scmp.lt.s32.totalorder %s16, 3
    %p267 = pnand %p265, %p266
    %p268 = pneg %p267
    // Predicated region
    $region9: #{slim_stage.4} parent=5 // pred_check
      _
    $region10: #{slim_stage.4} parent=5 // pred_check_branch
      %270 = sbr.rel (%p267) target = $region12
    $region11: #{slim_stage.4} parent=5 // pred_region
      %s271 = ssub.s32 %s16, 1
      // Predicated region
      $region13: #{slim_stage.4} parent=11 // pred_check
        %p272 = pneg %p63
      $region14: #{slim_stage.4} parent=11 // pred_check_branch
        %274 = sbr.rel (%p272) target = $region16
      $region15: #{slim_stage.4} parent=11 // pred_region
        _
      $region16: #{slim_stage.4} parent=11 // pred_fallthru
        _
      // Predicated region
      $region17: #{slim_stage.4} parent=11 // pred_check
        %p275 = pneg %p84
      $region18: #{slim_stage.4} parent=11 // pred_check_branch
        %277 = sbr.rel (%p275) target = $region20
      $region19: #{slim_stage.4} parent=11 // pred_region
        _
      $region20: #{slim_stage.4} parent=11 // pred_fallthru
        _
      // Predicated region
      $region21: #{slim_stage.4} parent=11 // pred_check
        %p278 = pneg %p105
      $region22: #{slim_stage.4} parent=11 // pred_check_branch
        %280 = sbr.rel (%p278) target = $region24
      $region23: #{slim_stage.4} parent=11 // pred_region
        _
      $region24: #{slim_stage.4} parent=11 // pred_fallthru
        _
      // Predicated region
      $region25: #{slim_stage.4} parent=11 // pred_check
        %p281 = pneg %p126
      $region26: #{slim_stage.4} parent=11 // pred_check_branch
        %283 = sbr.rel (%p281) target = $region28
      $region27: #{slim_stage.4} parent=11 // pred_region
        _
      $region28: #{slim_stage.4} parent=11 // pred_fallthru
        _
      // Predicated region
      $region29: #{slim_stage.4} parent=11 // pred_check
        %p284 = pneg %p147
      $region30: #{slim_stage.4} parent=11 // pred_check_branch
        %286 = sbr.rel (%p284) target = $region32
      $region31: #{slim_stage.4} parent=11 // pred_region
        _
      $region32: #{slim_stage.4} parent=11 // pred_fallthru
        _
      // Predicated region
      $region33: #{slim_stage.4} parent=11 // pred_check
        %p287 = pneg %p168
      $region34: #{slim_stage.4} parent=11 // pred_check_branch
        %289 = sbr.rel (%p287) target = $region36
      $region35: #{slim_stage.4} parent=11 // pred_region
        _
      $region36: #{slim_stage.4} parent=11 // pred_fallthru
        _
      // Predicated region
      $region37: #{slim_stage.4} parent=11 // pred_check
        %p290 = pneg %p189
      $region38: #{slim_stage.4} parent=11 // pred_check_branch
        %292 = sbr.rel (%p290) target = $region40
      $region39: #{slim_stage.4} parent=11 // pred_region
        _
      $region40: #{slim_stage.4} parent=11 // pred_fallthru
        _
      // Predicated region
      $region41: #{slim_stage.4} parent=11 // pred_check
        %p293 = pneg %p210
      $region42: #{slim_stage.4} parent=11 // pred_check_branch
        %295 = sbr.rel (%p293) target = $region44
      $region43: #{slim_stage.4} parent=11 // pred_region
        _
      $region44: #{slim_stage.4} parent=11 // pred_fallthru
        _
      // Predicated region
      $region45: #{slim_stage.4} parent=11 // pred_check
        %p296 = pneg %p231
      $region46: #{slim_stage.4} parent=11 // pred_check_branch
        %298 = sbr.rel (%p296) target = $region48
      $region47: #{slim_stage.4} parent=11 // pred_region
        _
      $region48: #{slim_stage.4} parent=11 // pred_fallthru
        _
    $region12: #{slim_stage.4} parent=5 // pred_fallthru
      _
    %p299 = scmp.lt.s32.totalorder %s16, 2
    // Predicated region
    $region49: #{slim_stage.4} parent=5 // pred_check
      %p300 = pneg %p299
    $region50: #{slim_stage.4} parent=5 // pred_check_branch
      %302 = sbr.rel (%p300) target = $region52
    $region51: #{slim_stage.4} parent=5 // pred_region
      // Predicated region
      $region53: #{slim_stage.4} parent=51 // pred_check
        %p303 = pneg %p36
      $region54: #{slim_stage.4} parent=51 // pred_check_branch
        %305 = sbr.rel (%p303) target = $region56
      $region55: #{slim_stage.4} parent=51 // pred_region
        %p306 = scmp.lt.s32.totalorder %s16, 1
        %s307 = scalar_select %p306, %s16, 1
        %s308 = smul.addr %s307, 8
        %s309 = smul.addr %s308, 4
        %s310 = scalar_lea.vmem %s0, %s309
      $region56: #{slim_stage.4} parent=51 // pred_fallthru
        _
    $region52: #{slim_stage.4} parent=5 // pred_fallthru
      _
    %p311 = scmp.le.s32.totalorder 1, %s16
    %p312 = scmp.lt.s32.totalorder %s16, 3
    %p313 = pnand %p311, %p312
    %p314 = pneg %p313
    // Predicated region
    $region57: #{slim_stage.4} parent=5 // pred_check
      _
    $region58: #{slim_stage.4} parent=5 // pred_check_branch
      %316 = sbr.rel (%p313) target = $region60
    $region59: #{slim_stage.4} parent=5 // pred_region
      %s317 = ssub.s32 %s16, 1
      %p318 = scmp.lt.s32.totalorder %s21, 1
      %s319 = scalar_select %p318, %s21, 1
      %s320 = smul.addr %s319, 8
      %s321 = smul.addr %s320, 4
      %s322 = scalar_lea.vmem %s0, %s321
      %p323 = pneg %p42
      %p324 = pneg %p39
      %p325 = pneg %p63
      %p326 = pneg %p60
      %p327 = pneg %p84
      %p328 = pneg %p81
      %p329 = pneg %p105
      %p330 = pneg %p102
      %p331 = pneg %p126
      %p332 = pneg %p123
      %p333 = pneg %p147
      %p334 = pneg %p144
      %p335 = pneg %p168
      %p336 = pneg %p165
      %p337 = pneg %p189
      %p338 = pneg %p186
      %p339 = pneg %p210
      %p340 = pneg %p207
      %p341 = pneg %p231
      %p342 = pneg %p228
      %p343 = pneg %p257
      %p344 = pneg %p254
      %p345 = scmp.lt.s32.totalorder %s21, 1
      %s346 = scalar_select %p345, %s21, 1
      %s347 = smul.addr %s346, 8
      %s348 = smul.addr %s347, 4
      %s349 = scalar_lea.vmem %s10, %s348
      %p350 = scmp.lt.s32.totalorder %s21, 1
      %s351 = scalar_select %p350, %s21, 1
      %s352 = smul.addr %s351, 8
      %s353 = smul.addr %s352, 4
      %s354 = scalar_lea.vmem %s0, %s353
      %p355 = scmp.lt.s32.totalorder %s21, 1
      %s356 = scalar_select %p355, %s21, 1
      %s357 = smul.addr %s356, 8
      %s358 = smul.addr %s357, 4
      %s359 = scalar_lea.vmem %s10, %s358
      %v361 = vld [vmem:[%s354] sm:$0xf]
      %v362 = vld [vmem:[%s354 + $0x4] sm:$0xf]
      %v363 = vld [vmem:[%s354 + $0x8] sm:$0xf]
      %v364 = vld [vmem:[%s354 + $0xc] sm:$0xf]
      %v365 = vld [vmem:[%s354 + $0x10] sm:$0xf]
      %v366 = vld [vmem:[%s354 + $0x14] sm:$0xf]
      %v367 = vld [vmem:[%s354 + $0x18] sm:$0xf]
      %v368 = vld [vmem:[%s354 + $0x1c] sm:$0xf]
      %v369 = vld [vmem:[%s1] sm:$0xf]
      %v370 = vld [vmem:[%s1 + $0x4] sm:$0xf]
      %v379 = vunpack.c.l.b16 %v361
      %v380 = vunpack.c.l.b16 %v362
      %v381 = vunpack.c.l.b16 %v363
      %v382 = vunpack.c.l.b16 %v364
      %v383 = vunpack.c.l.b16 %v365
      %v384 = vunpack.c.l.b16 %v366
      %v385 = vunpack.c.l.b16 %v367
      %v386 = vunpack.c.l.b16 %v368
      %v387 = vpack.c.b16 %v380, %v379
      %v388 = vpack.c.b16 %v382, %v381
      %v389 = vpack.c.b16 %v384, %v383
      %v390 = vpack.c.b16 %v386, %v385
      %v393 = vunpack.c.l.b16 %v369
      %v394 = vunpack.c.l.b16 %v370
      %v395 = vpack.c.b16 %v394, %v393
      %vm397 = vcmask 130048
      %v399 = vsel %vm397, %v387, 0
      %v402 = vsel %vm397, %v388, 0
      %v405 = vsel %vm397, %v389, 0
      %v408 = vsel %vm397, %v390, 0
      %410 = vmatprep.subr.bf16.mxu0 0
      %411 = vmatpush1.bf16.msra.mxu0 %v395
      %412 = vmatprep.subr.bf16.mxu0 0
      %413 = vmatpush1.bf16.msra.mxu0 0
      %414 = vmatprep.subr.bf16.mxu0 0
      %415 = vmatpush1.bf16.msra.mxu0 0
      %416 = vmatprep.subr.bf16.mxu0 0
      %417 = vmatpush1.bf16.msra.mxu0 0
      %418 = vmatprep.subr.bf16.mxu0 0
      %419 = vmatpush1.bf16.msra.mxu0 0
      %420 = vmatprep.subr.bf16.mxu0 0
      %421 = vmatpush1.bf16.msra.mxu0 0
      %422 = vmatprep.subr.bf16.mxu0 0
      %423 = vmatpush1.bf16.msra.mxu0 0
      %424 = vmatprep.subr.bf16.mxu0 0
      %425 = vmatpush1.bf16.msra.mxu0 0
      %426 = vmatprep.subr.bf16.mxu0 0
      %427 = vmatpush1.bf16.msra.mxu0 0
      %428 = vmatprep.subr.bf16.mxu0 0
      %429 = vmatpush1.bf16.msra.mxu0 0
      %430 = vmatprep.subr.bf16.mxu0 0
      %431 = vmatpush1.bf16.msra.mxu0 0
      %432 = vmatprep.subr.bf16.mxu0 0
      %433 = vmatpush1.bf16.msra.mxu0 0
      %434 = vmatprep.subr.bf16.mxu0 0
      %435 = vmatpush1.bf16.msra.mxu0 0
      %436 = vmatprep.subr.bf16.mxu0 0
      %437 = vmatpush1.bf16.msra.mxu0 0
      %438 = vmatprep.subr.bf16.mxu0 0
      %439 = vmatpush1.bf16.msra.mxu0 0
      %440 = vmatprep.subr.bf16.mxu0 0
      %441 = vmatpush1.bf16.msra.mxu0 0
      %442 = vmatprep.mubr.bf16.mxu0 0
      %443 = vmatmul.mubr.bf16.gmra.mrb[0].mxu0 %v399
      %v444 = vpop.f32.mrb[0].mxu0
      %v445 = vadd.f32 0.0, %v444
      %v446 = vpop.f32.mrb[0].mxu0
      %v447 = vpop.f32.mrb[0].mxu0
      %v448 = vadd.f32 0.0, %v447
      %v449 = vpop.f32.mrb[0].mxu0
      %450 = vmatprep.mubr.bf16.mxu0 0
      %451 = vmatmul.mubr.bf16.gmra.mrb[0].mxu0 %v402
      %v452 = vpop.f32.mrb[0].mxu0
      %v453 = vadd.f32 0.0, %v452
      %v454 = vpop.f32.mrb[0].mxu0
      %v455 = vpop.f32.mrb[0].mxu0
      %v456 = vadd.f32 0.0, %v455
      %v457 = vpop.f32.mrb[0].mxu0
      %458 = vmatprep.mubr.bf16.mxu0 0
      %459 = vmatmul.mubr.bf16.gmra.mrb[0].mxu0 %v405
      %v460 = vpop.f32.mrb[0].mxu0
      %v461 = vadd.f32 0.0, %v460
      %v462 = vpop.f32.mrb[0].mxu0
      %v463 = vpop.f32.mrb[0].mxu0
      %v464 = vadd.f32 0.0, %v463
      %v465 = vpop.f32.mrb[0].mxu0
      %466 = vmatprep.mubr.bf16.mxu0 0
      %467 = vmatmul.mubr.bf16.gmra.mrb[0].mxu0 %v408
      %v468 = vpop.f32.mrb[0].mxu0
      %v469 = vadd.f32 0.0, %v468
      %v470 = vpop.f32.mrb[0].mxu0
      %v471 = vpop.f32.mrb[0].mxu0
      %v472 = vadd.f32 0.0, %v471
      %v473 = vpop.f32.mrb[0].mxu0
      %474 = vdwg.mxu0
      %v475 = vld [vmem:[%s2] sm:$0x1]
      %v477 = vlaneseq
      %v478 = vshrl.u32 %v477, 7
      %v479 = vsub.s32 0, %v478
      %v480 = vrot.slane %v475, %v479
      %v482 = vmul.f32 %v445, %v480
      %v483 = vmul.f32 %v448, %v480
      %v484 = vmul.f32 %v453, %v480
      %v485 = vmul.f32 %v456, %v480
      %v486 = vmul.f32 %v461, %v480
      %v487 = vmul.f32 %v464, %v480
      %v488 = vmul.f32 %v469, %v480
      %v489 = vmul.f32 %v472, %v480
      %v490 = vld [vmem:[%s3] sm:$0x1]
      %v492 = vlaneseq
      %v493 = vshrl.u32 %v492, 7
      %v494 = vsub.s32 0, %v493
      %v495 = vrot.slane %v490, %v494
      %v497 = vadd.f32 %v482, %v495
      %v498 = vadd.f32 %v483, %v495
      %v499 = vadd.f32 %v484, %v495
      %v500 = vadd.f32 %v485, %v495
      %v501 = vadd.f32 %v486, %v495
      %v502 = vadd.f32 %v487, %v495
      %v503 = vadd.f32 %v488, %v495
      %v504 = vadd.f32 %v489, %v495
      %v505 = vadd.f32 %v497, 3.0
      %v506 = vadd.f32 %v498, 3.0
      %v507 = vadd.f32 %v499, 3.0
      %v508 = vadd.f32 %v500, 3.0
      %v509 = vadd.f32 %v501, 3.0
      %v510 = vadd.f32 %v502, 3.0
      %v511 = vadd.f32 %v503, 3.0
      %v512 = vadd.f32 %v504, 3.0
      %v513 = vmax.f32 %v505, 0.0
      %v514 = vmax.f32 %v506, 0.0
      %v515 = vmax.f32 %v507, 0.0
      %v516 = vmax.f32 %v508, 0.0
      %v517 = vmax.f32 %v509, 0.0
      %v518 = vmax.f32 %v510, 0.0
      %v519 = vmax.f32 %v511, 0.0
      %v520 = vmax.f32 %v512, 0.0
      %v521 = vmin.f32 %v513, 6.0
      %v522 = vmin.f32 %v514, 6.0
      %v523 = vmin.f32 %v515, 6.0
      %v524 = vmin.f32 %v516, 6.0
      %v525 = vmin.f32 %v517, 6.0
      %v526 = vmin.f32 %v518, 6.0
      %v527 = vmin.f32 %v519, 6.0
      %v528 = vmin.f32 %v520, 6.0
      %v529 = vmul.f32 %v521, 0.16666667
      %v530 = vmul.f32 %v522, 0.16666667
      %v531 = vmul.f32 %v523, 0.16666667
      %v532 = vmul.f32 %v524, 0.16666667
      %v533 = vmul.f32 %v525, 0.16666667
      %v534 = vmul.f32 %v526, 0.16666667
      %v535 = vmul.f32 %v527, 0.16666667
      %v536 = vmul.f32 %v528, 0.16666667
      %v537 = vmul.f32 %v497, %v529
      %v538 = vmul.f32 %v498, %v530
      %v539 = vmul.f32 %v499, %v531
      %v540 = vmul.f32 %v500, %v532
      %v541 = vmul.f32 %v501, %v533
      %v542 = vmul.f32 %v502, %v534
      %v543 = vmul.f32 %v503, %v535
      %v544 = vmul.f32 %v504, %v536
      %vm545 = vcmask 261120
      %546 = vst.msk [vmem:[#allocation2] sm:$0xff] %vm545, 0.0
      %vm547 = vcmask 254976
      %548 = vst.msk [vmem:[#allocation2 + $0x8] sm:$0x3] %vm547, 0.0
      %549 = vst.msk [vmem:[#allocation2 + $0x10] sm:$0xff] %vm545, 0.0
      %550 = vst.msk [vmem:[#allocation2 + $0x18] sm:$0x3] %vm547, 0.0
      %551 = vst.msk [vmem:[#allocation2 + $0x20] sm:$0xff] %vm545, 0.0
      %552 = vst.msk [vmem:[#allocation2 + $0x28] sm:$0x3] %vm547, 0.0
      %553 = vst.msk [vmem:[#allocation2 + $0x30] sm:$0xff] %vm545, 0.0
      %554 = vst.msk [vmem:[#allocation2 + $0x38] sm:$0x3] %vm547, 0.0
      %555 = vst.msk [vmem:[#allocation2 + $0x40] sm:$0xff] %vm545, 0.0
      %556 = vst.msk [vmem:[#allocation2 + $0x48] sm:$0x3] %vm547, 0.0
      %557 = vst.msk [vmem:[#allocation2 + $0x50] sm:$0xff] %vm545, 0.0
      %558 = vst.msk [vmem:[#allocation2 + $0x58] sm:$0x3] %vm547, 0.0
      %559 = vst.msk [vmem:[#allocation2 + $0x60] sm:$0xff] %vm545, 0.0
      %560 = vst.msk [vmem:[#allocation2 + $0x68] sm:$0x3] %vm547, 0.0
      %561 = vst.msk [vmem:[#allocation2 + $0x70] sm:$0xff] %vm545, 0.0
      %562 = vst.msk [vmem:[#allocation2 + $0x78] sm:$0x3] %vm547, 0.0
      %563 = vst.msk [vmem:[#allocation2 + $0x80] sm:$0xff] %vm545, 0.0
      %564 = vst.msk [vmem:[#allocation2 + $0x88] sm:$0x3] %vm547, 0.0
      %565 = vst.msk [vmem:[#allocation2 + $0x90] sm:$0xff] %vm545, 0.0
      %566 = vst.msk [vmem:[#allocation2 + $0x98] sm:$0x3] %vm547, 0.0
      %s567 = scalar_lea.vmem [#allocation2], 16
      %568 = vst.msk [vmem:[%s567 + $0x1] sm:$0xff] %vm545, %v537
      %569 = vst.msk [vmem:[%s567 + $0x11] sm:$0xff] %vm545, %v538
      %570 = vst.msk [vmem:[%s567 + $0x21] sm:$0xff] %vm545, %v539
      %571 = vst.msk [vmem:[%s567 + $0x31] sm:$0xff] %vm545, %v540
      %572 = vst.msk [vmem:[%s567 + $0x41] sm:$0xff] %vm545, %v541
      %573 = vst.msk [vmem:[%s567 + $0x51] sm:$0xff] %vm545, %v542
      %574 = vst.msk [vmem:[%s567 + $0x61] sm:$0xff] %vm545, %v543
      %575 = vst.msk [vmem:[%s567 + $0x71] sm:$0xff] %vm545, %v544
      %v576 = vld [vmem:[%s4] sm:$0xff]
      %v577 = vld [vmem:[%s4 + $0x8] sm:$0x1]
      %v578 = vld [vmem:[#allocation2] sm:$0xff]
      %v579 = vld [vmem:[#allocation2 + $0x10] sm:$0xff]
      %v580 = vld [vmem:[#allocation2 + $0x20] sm:$0xff]
      %v581 = vld [vmem:[#allocation2 + $0x30] sm:$0xff]
      %v582 = vld [vmem:[#allocation2 + $0x40] sm:$0xff]
      %v583 = vld [vmem:[#allocation2 + $0x50] sm:$0xff]
      %v584 = vld [vmem:[#allocation2 + $0x60] sm:$0xff]
      %v585 = vld [vmem:[#allocation2 + $0x70] sm:$0xff]
      %v586 = vlaneseq
      %v587 = vshrl.u32 %v586, 7
      %v588 = vsub.s32 0, %v587
      %v589 = vrot.slane %v576, %v588
      %v590 = vmul.f32 %v578, %v589
      %v591 = vmul.f32 %v579, %v589
      %v592 = vmul.f32 %v580, %v589
      %v593 = vmul.f32 %v581, %v589
      %v594 = vmul.f32 %v582, %v589
      %v595 = vmul.f32 %v583, %v589
      %v596 = vmul.f32 %v584, %v589
      %v597 = vmul.f32 %v585, %v589
      %v598 = vadd.f32 %v590, 0.0
      %v599 = vadd.f32 %v591, 0.0
      %v600 = vadd.f32 %v592, 0.0
      %v601 = vadd.f32 %v593, 0.0
      %v602 = vadd.f32 %v594, 0.0
      %v603 = vadd.f32 %v595, 0.0
      %v604 = vadd.f32 %v596, 0.0
      %v605 = vadd.f32 %v597, 0.0
      %v606 = vld [vmem:[#allocation2 + $0x1] sm:$0xff]
      %v607 = vld [vmem:[#allocation2 + $0x11] sm:$0xff]
      %v608 = vld [vmem:[#allocation2 + $0x21] sm:$0xff]
      %v609 = vld [vmem:[#allocation2 + $0x31] sm:$0xff]
      %v610 = vld [vmem:[#allocation2 + $0x41] sm:$0xff]
      %v611 = vld [vmem:[#allocation2 + $0x51] sm:$0xff]
      %v612 = vld [vmem:[#allocation2 + $0x61] sm:$0xff]
      %v613 = vld [vmem:[#allocation2 + $0x71] sm:$0xff]
      %v614 = vlaneseq
      %v615 = vshrl.u32 %v614, 7
      %v616 = vsub.s32 1, %v615
      %v617 = vrot.slane %v576, %v616
      %v618 = vmul.f32 %v606, %v617
      %v619 = vmul.f32 %v607, %v617
      %v620 = vmul.f32 %v608, %v617
      %v621 = vmul.f32 %v609, %v617
      %v622 = vmul.f32 %v610, %v617
      %v623 = vmul.f32 %v611, %v617
      %v624 = vmul.f32 %v612, %v617
      %v625 = vmul.f32 %v613, %v617
      %v626 = vadd.f32 %v598, %v618
      %v627 = vadd.f32 %v599, %v619
      %v628 = vadd.f32 %v600, %v620
      %v629 = vadd.f32 %v601, %v621
      %v630 = vadd.f32 %v602, %v622
      %v631 = vadd.f32 %v603, %v623
      %v632 = vadd.f32 %v604, %v624
      %v633 = vadd.f32 %v605, %v625
      %v634 = vld [vmem:[#allocation2 + $0x2] sm:$0xff]
      %v635 = vld [vmem:[#allocation2 + $0x12] sm:$0xff]
      %v636 = vld [vmem:[#allocation2 + $0x22] sm:$0xff]
      %v637 = vld [vmem:[#allocation2 + $0x32] sm:$0xff]
      %v638 = vld [vmem:[#allocation2 + $0x42] sm:$0xff]
      %v639 = vld [vmem:[#allocation2 + $0x52] sm:$0xff]
      %v640 = vld [vmem:[#allocation2 + $0x62] sm:$0xff]
      %v641 = vld [vmem:[#allocation2 + $0x72] sm:$0xff]
      %v642 = vlaneseq
      %v643 = vshrl.u32 %v642, 7
      %v644 = vsub.s32 2, %v643
      %v645 = vrot.slane %v576, %v644
      %v646 = vmul.f32 %v634, %v645
      %v647 = vmul.f32 %v635, %v645
      %v648 = vmul.f32 %v636, %v645
      %v649 = vmul.f32 %v637, %v645
      %v650 = vmul.f32 %v638, %v645
      %v651 = vmul.f32 %v639, %v645
      %v652 = vmul.f32 %v640, %v645
      %v653 = vmul.f32 %v641, %v645
      %v654 = vadd.f32 %v626, %v646
      %v655 = vadd.f32 %v627, %v647
      %v656 = vadd.f32 %v628, %v648
      %v657 = vadd.f32 %v629, %v649
      %v658 = vadd.f32 %v630, %v650
      %v659 = vadd.f32 %v631, %v651
      %v660 = vadd.f32 %v632, %v652
      %v661 = vadd.f32 %v633, %v653
      %v662 = vld [vmem:[%s567] sm:$0xff]
      %v663 = vld [vmem:[%s567 + $0x10] sm:$0xff]
      %v664 = vld [vmem:[%s567 + $0x20] sm:$0xff]
      %v665 = vld [vmem:[%s567 + $0x30] sm:$0xff]
      %v666 = vld [vmem:[%s567 + $0x40] sm:$0xff]
      %v667 = vld [vmem:[%s567 + $0x50] sm:$0xff]
      %v668 = vld [vmem:[%s567 + $0x60] sm:$0xff]
      %v669 = vld [vmem:[%s567 + $0x70] sm:$0xff]
      %v670 = vlaneseq
      %v671 = vshrl.u32 %v670, 7
      %v672 = vsub.s32 3, %v671
      %v673 = vrot.slane %v576, %v672
      %v674 = vmul.f32 %v662, %v673
      %v675 = vmul.f32 %v663, %v673
      %v676 = vmul.f32 %v664, %v673
      %v677 = vmul.f32 %v665, %v673
      %v678 = vmul.f32 %v666, %v673
      %v679 = vmul.f32 %v667, %v673
      %v680 = vmul.f32 %v668, %v673
      %v681 = vmul.f32 %v669, %v673
      %v682 = vadd.f32 %v654, %v674
      %v683 = vadd.f32 %v655, %v675
      %v684 = vadd.f32 %v656, %v676
      %v685 = vadd.f32 %v657, %v677
      %v686 = vadd.f32 %v658, %v678
      %v687 = vadd.f32 %v659, %v679
      %v688 = vadd.f32 %v660, %v680
      %v689 = vadd.f32 %v661, %v681
      %v690 = vld [vmem:[%s567 + $0x1] sm:$0xff]
      %v691 = vld [vmem:[%s567 + $0x11] sm:$0xff]
      %v692 = vld [vmem:[%s567 + $0x21] sm:$0xff]
      %v693 = vld [vmem:[%s567 + $0x31] sm:$0xff]
      %v694 = vld [vmem:[%s567 + $0x41] sm:$0xff]
      %v695 = vld [vmem:[%s567 + $0x51] sm:$0xff]
      %v696 = vld [vmem:[%s567 + $0x61] sm:$0xff]
      %v697 = vld [vmem:[%s567 + $0x71] sm:$0xff]
      %v698 = vlaneseq
      %v699 = vshrl.u32 %v698, 7
      %v700 = vsub.s32 4, %v699
      %v701 = vrot.slane %v576, %v700
      %v702 = vmul.f32 %v690, %v701
      %v703 = vmul.f32 %v691, %v701
      %v704 = vmul.f32 %v692, %v701
      %v705 = vmul.f32 %v693, %v701
      %v706 = vmul.f32 %v694, %v701
      %v707 = vmul.f32 %v695, %v701
      %v708 = vmul.f32 %v696, %v701
      %v709 = vmul.f32 %v697, %v701
      %v710 = vadd.f32 %v682, %v702
      %v711 = vadd.f32 %v683, %v703
      %v712 = vadd.f32 %v684, %v704
      %v713 = vadd.f32 %v685, %v705
      %v714 = vadd.f32 %v686, %v706
      %v715 = vadd.f32 %v687, %v707
      %v716 = vadd.f32 %v688, %v708
      %v717 = vadd.f32 %v689, %v709
      %v718 = vld [vmem:[%s567 + $0x2] sm:$0xff]
      %v719 = vld [vmem:[%s567 + $0x12] sm:$0xff]
      %v720 = vld [vmem:[%s567 + $0x22] sm:$0xff]
      %v721 = vld [vmem:[%s567 + $0x32] sm:$0xff]
      %v722 = vld [vmem:[%s567 + $0x42] sm:$0xff]
      %v723 = vld [vmem:[%s567 + $0x52] sm:$0xff]
      %v724 = vld [vmem:[%s567 + $0x62] sm:$0xff]
      %v725 = vld [vmem:[%s567 + $0x72] sm:$0xff]
      %v726 = vlaneseq
      %v727 = vshrl.u32 %v726, 7
      %v728 = vsub.s32 5, %v727
      %v729 = vrot.slane %v576, %v728
      %v730 = vmul.f32 %v718, %v729
      %v731 = vmul.f32 %v719, %v729
      %v732 = vmul.f32 %v720, %v729
      %v733 = vmul.f32 %v721, %v729
      %v734 = vmul.f32 %v722, %v729
      %v735 = vmul.f32 %v723, %v729
      %v736 = vmul.f32 %v724, %v729
      %v737 = vmul.f32 %v725, %v729
      %v738 = vadd.f32 %v710, %v730
      %v739 = vadd.f32 %v711, %v731
      %v740 = vadd.f32 %v712, %v732
      %v741 = vadd.f32 %v713, %v733
      %v742 = vadd.f32 %v714, %v734
      %v743 = vadd.f32 %v715, %v735
      %v744 = vadd.f32 %v716, %v736
      %v745 = vadd.f32 %v717, %v737
      %s746 = scalar_lea.vmem [#allocation2], 32
      %v747 = vld [vmem:[%s746] sm:$0xff]
      %v748 = vld [vmem:[%s746 + $0x10] sm:$0xff]
      %v749 = vld [vmem:[%s746 + $0x20] sm:$0xff]
      %v750 = vld [vmem:[%s746 + $0x30] sm:$0xff]
      %v751 = vld [vmem:[%s746 + $0x40] sm:$0xff]
      %v752 = vld [vmem:[%s746 + $0x50] sm:$0xff]
      %v753 = vld [vmem:[%s746 + $0x60] sm:$0xff]
      %v754 = vld [vmem:[%s746 + $0x70] sm:$0xff]
      %v755 = vlaneseq
      %v756 = vshrl.u32 %v755, 7
      %v757 = vsub.s32 6, %v756
      %v758 = vrot.slane %v576, %v757
      %v759 = vmul.f32 %v747, %v758
      %v760 = vmul.f32 %v748, %v758
      %v761 = vmul.f32 %v749, %v758
      %v762 = vmul.f32 %v750, %v758
      %v763 = vmul.f32 %v751, %v758
      %v764 = vmul.f32 %v752, %v758
      %v765 = vmul.f32 %v753, %v758
      %v766 = vmul.f32 %v754, %v758
      %v767 = vadd.f32 %v738, %v759
      %v768 = vadd.f32 %v739, %v760
      %v769 = vadd.f32 %v740, %v761
      %v770 = vadd.f32 %v741, %v762
      %v771 = vadd.f32 %v742, %v763
      %v772 = vadd.f32 %v743, %v764
      %v773 = vadd.f32 %v744, %v765
      %v774 = vadd.f32 %v745, %v766
      %v775 = vld [vmem:[%s746 + $0x1] sm:$0xff]
      %v776 = vld [vmem:[%s746 + $0x11] sm:$0xff]
      %v777 = vld [vmem:[%s746 + $0x21] sm:$0xff]
      %v778 = vld [vmem:[%s746 + $0x31] sm:$0xff]
      %v779 = vld [vmem:[%s746 + $0x41] sm:$0xff]
      %v780 = vld [vmem:[%s746 + $0x51] sm:$0xff]
      %v781 = vld [vmem:[%s746 + $0x61] sm:$0xff]
      %v782 = vld [vmem:[%s746 + $0x71] sm:$0xff]
      %v783 = vlaneseq
      %v784 = vshrl.u32 %v783, 7
      %v785 = vsub.s32 7, %v784
      %v786 = vrot.slane %v576, %v785
      %v787 = vmul.f32 %v775, %v786
      %v788 = vmul.f32 %v776, %v786
      %v789 = vmul.f32 %v777, %v786
      %v790 = vmul.f32 %v778, %v786
      %v791 = vmul.f32 %v779, %v786
      %v792 = vmul.f32 %v780, %v786
      %v793 = vmul.f32 %v781, %v786
      %v794 = vmul.f32 %v782, %v786
      %v795 = vadd.f32 %v767, %v787
      %v796 = vadd.f32 %v768, %v788
      %v797 = vadd.f32 %v769, %v789
      %v798 = vadd.f32 %v770, %v790
      %v799 = vadd.f32 %v771, %v791
      %v800 = vadd.f32 %v772, %v792
      %v801 = vadd.f32 %v773, %v793
      %v802 = vadd.f32 %v774, %v794
      %v803 = vld [vmem:[%s746 + $0x2] sm:$0xff]
      %v804 = vld [vmem:[%s746 + $0x12] sm:$0xff]
      %v805 = vld [vmem:[%s746 + $0x22] sm:$0xff]
      %v806 = vld [vmem:[%s746 + $0x32] sm:$0xff]
      %v807 = vld [vmem:[%s746 + $0x42] sm:$0xff]
      %v808 = vld [vmem:[%s746 + $0x52] sm:$0xff]
      %v809 = vld [vmem:[%s746 + $0x62] sm:$0xff]
      %v810 = vld [vmem:[%s746 + $0x72] sm:$0xff]
      %v811 = vlaneseq
      %v812 = vshrl.u32 %v811, 7
      %v813 = vsub.s32 0, %v812
      %v814 = vrot.slane %v577, %v813
      %v815 = vmul.f32 %v803, %v814
      %v816 = vmul.f32 %v804, %v814
      %v817 = vmul.f32 %v805, %v814
      %v818 = vmul.f32 %v806, %v814
      %v819 = vmul.f32 %v807, %v814
      %v820 = vmul.f32 %v808, %v814
      %v821 = vmul.f32 %v809, %v814
      %v822 = vmul.f32 %v810, %v814
      %v823 = vadd.f32 %v795, %v815
      %v824 = vadd.f32 %v796, %v816
      %v825 = vadd.f32 %v797, %v817
      %v826 = vadd.f32 %v798, %v818
      %v827 = vadd.f32 %v799, %v819
      %v828 = vadd.f32 %v800, %v820
      %v829 = vadd.f32 %v801, %v821
      %v830 = vadd.f32 %v802, %v822
      %v831 = vld [vmem:[%s5] sm:$0x1]
      %v833 = vlaneseq
      %v834 = vshrl.u32 %v833, 7
      %v835 = vsub.s32 0, %v834
      %v836 = vrot.slane %v831, %v835
      %v838 = vmul.f32 %v823, %v836
      %v839 = vmul.f32 %v824, %v836
      %v840 = vmul.f32 %v825, %v836
      %v841 = vmul.f32 %v826, %v836
      %v842 = vmul.f32 %v827, %v836
      %v843 = vmul.f32 %v828, %v836
      %v844 = vmul.f32 %v829, %v836
      %v845 = vmul.f32 %v830, %v836
      %v846 = vld [vmem:[%s6] sm:$0x1]
      %v848 = vlaneseq
      %v849 = vshrl.u32 %v848, 7
      %v850 = vsub.s32 0, %v849
      %v851 = vrot.slane %v846, %v850
      %v853 = vadd.f32 %v838, %v851
      %v854 = vadd.f32 %v839, %v851
      %v855 = vadd.f32 %v840, %v851
      %v856 = vadd.f32 %v841, %v851
      %v857 = vadd.f32 %v842, %v851
      %v858 = vadd.f32 %v843, %v851
      %v859 = vadd.f32 %v844, %v851
      %v860 = vadd.f32 %v845, %v851
      %v861 = vadd.f32 %v853, 3.0
      %v862 = vadd.f32 %v854, 3.0
      %v863 = vadd.f32 %v855, 3.0
      %v864 = vadd.f32 %v856, 3.0
      %v865 = vadd.f32 %v857, 3.0
      %v866 = vadd.f32 %v858, 3.0
      %v867 = vadd.f32 %v859, 3.0
      %v868 = vadd.f32 %v860, 3.0
      %v869 = vmax.f32 %v861, 0.0
      %v870 = vmax.f32 %v862, 0.0
      %v871 = vmax.f32 %v863, 0.0
      %v872 = vmax.f32 %v864, 0.0
      %v873 = vmax.f32 %v865, 0.0
      %v874 = vmax.f32 %v866, 0.0
      %v875 = vmax.f32 %v867, 0.0
      %v876 = vmax.f32 %v868, 0.0
      %v877 = vmin.f32 %v869, 6.0
      %v878 = vmin.f32 %v870, 6.0
      %v879 = vmin.f32 %v871, 6.0
      %v880 = vmin.f32 %v872, 6.0
      %v881 = vmin.f32 %v873, 6.0
      %v882 = vmin.f32 %v874, 6.0
      %v883 = vmin.f32 %v875, 6.0
      %v884 = vmin.f32 %v876, 6.0
      %v885 = vmul.f32 %v877, 0.16666667
      %v886 = vmul.f32 %v878, 0.16666667
      %v887 = vmul.f32 %v879, 0.16666667
      %v888 = vmul.f32 %v880, 0.16666667
      %v889 = vmul.f32 %v881, 0.16666667
      %v890 = vmul.f32 %v882, 0.16666667
      %v891 = vmul.f32 %v883, 0.16666667
      %v892 = vmul.f32 %v884, 0.16666667
      %v893 = vmul.f32 %v853, %v885
      %v894 = vmul.f32 %v854, %v886
      %v895 = vmul.f32 %v855, %v887
      %v896 = vmul.f32 %v856, %v888
      %v897 = vmul.f32 %v857, %v889
      %v898 = vmul.f32 %v858, %v890
      %v899 = vmul.f32 %v859, %v891
      %v900 = vmul.f32 %v860, %v892
      %v901 = vpack.c.bf16 %v894, %v893
      %v902 = vpack.c.bf16 %v896, %v895
      %v903 = vpack.c.bf16 %v898, %v897
      %v904 = vpack.c.bf16 %v900, %v899
      %v905 = vld [vmem:[%s7] sm:$0xf]
      %v906 = vld [vmem:[%s7 + $0x4] sm:$0xf]
      %v907 = vld [vmem:[%s7 + $0x8] sm:$0xf]
      %v908 = vld [vmem:[%s7 + $0xc] sm:$0xf]
      %v913 = vunpack.c.l.b16 %v905
      %v914 = vunpack.c.l.b16 %v906
      %v915 = vunpack.c.l.b16 %v907
      %v916 = vunpack.c.l.b16 %v908
      %v917 = vpack.c.b16 %v914, %v913
      %v918 = vpack.c.b16 %v916, %v915
      %v922 = vsel %vm545, %v901, 0
      %v925 = vsel %vm545, %v902, 0
      %v928 = vsel %vm545, %v903, 0
      %v931 = vsel %vm545, %v904, 0
      %933 = vmatprep.subr.bf16.mxu0 0
      %934 = vmatpush1.bf16.msra.mxu0 %v917
      %935 = vmatprep.subr.bf16.mxu0 0
      %936 = vmatpush1.bf16.msra.mxu0 %v918
      %937 = vmatprep.subr.bf16.mxu0 0
      %938 = vmatpush1.bf16.msra.mxu0 0
      %939 = vmatprep.subr.bf16.mxu0 0
      %940 = vmatpush1.bf16.msra.mxu0 0
      %941 = vmatprep.subr.bf16.mxu0 0
      %942 = vmatpush1.bf16.msra.mxu0 0
      %943 = vmatprep.subr.bf16.mxu0 0
      %944 = vmatpush1.bf16.msra.mxu0 0
      %945 = vmatprep.subr.bf16.mxu0 0
      %946 = vmatpush1.bf16.msra.mxu0 0
      %947 = vmatprep.subr.bf16.mxu0 0
      %948 = vmatpush1.bf16.msra.mxu0 0
      %949 = vmatprep.subr.bf16.mxu0 0
      %950 = vmatpush1.bf16.msra.mxu0 0
      %951 = vmatprep.subr.bf16.mxu0 0
      %952 = vmatpush1.bf16.msra.mxu0 0
      %953 = vmatprep.subr.bf16.mxu0 0
      %954 = vmatpush1.bf16.msra.mxu0 0
      %955 = vmatprep.subr.bf16.mxu0 0
      %956 = vmatpush1.bf16.msra.mxu0 0
      %957 = vmatprep.subr.bf16.mxu0 0
      %958 = vmatpush1.bf16.msra.mxu0 0
      %959 = vmatprep.subr.bf16.mxu0 0
      %960 = vmatpush1.bf16.msra.mxu0 0
      %961 = vmatprep.subr.bf16.mxu0 0
      %962 = vmatpush1.bf16.msra.mxu0 0
      %963 = vmatprep.subr.bf16.mxu0 0
      %964 = vmatpush1.bf16.msra.mxu0 0
      %965 = vmatprep.mubr.bf16.mxu0 0
      %966 = vmatmul.mubr.bf16.gmra.mrb[0].mxu0 %v922
      %v967 = vpop.f32.mrb[0].mxu0
      %v968 = vadd.f32 0.0, %v967
      %v969 = vpop.f32.mrb[0].mxu0
      %v970 = vpop.f32.mrb[0].mxu0
      %v971 = vadd.f32 0.0, %v970
      %v972 = vpop.f32.mrb[0].mxu0
      %973 = vmatprep.mubr.bf16.mxu0 0
      %974 = vmatmul.mubr.bf16.gmra.mrb[0].mxu0 %v925
      %v975 = vpop.f32.mrb[0].mxu0
      %v976 = vadd.f32 0.0, %v975
      %v977 = vpop.f32.mrb[0].mxu0
      %v978 = vpop.f32.mrb[0].mxu0
      %v979 = vadd.f32 0.0, %v978
      %v980 = vpop.f32.mrb[0].mxu0
      %981 = vmatprep.mubr.bf16.mxu0 0
      %982 = vmatmul.mubr.bf16.gmra.mrb[0].mxu0 %v928
      %v983 = vpop.f32.mrb[0].mxu0
      %v984 = vadd.f32 0.0, %v983
      %v985 = vpop.f32.mrb[0].mxu0
      %v986 = vpop.f32.mrb[0].mxu0
      %v987 = vadd.f32 0.0, %v986
      %v988 = vpop.f32.mrb[0].mxu0
      %989 = vmatprep.mubr.bf16.mxu0 0
      %990 = vmatmul.mubr.bf16.gmra.mrb[0].mxu0 %v931
      %v991 = vpop.f32.mrb[0].mxu0
      %v992 = vadd.f32 0.0, %v991
      %v993 = vpop.f32.mrb[0].mxu0
      %v994 = vpop.f32.mrb[0].mxu0
      %v995 = vadd.f32 0.0, %v994
      %v996 = vpop.f32.mrb[0].mxu0
      %997 = vdwg.mxu0
      %v998 = vld [vmem:[%s8] sm:$0x1]
      %v1000 = vlaneseq
      %v1001 = vshrl.u32 %v1000, 7
      %v1002 = vsub.s32 0, %v1001
      %v1003 = vrot.slane %v998, %v1002
      %v1005 = vmul.f32 %v968, %v1003
      %v1006 = vmul.f32 %v971, %v1003
      %v1007 = vmul.f32 %v976, %v1003
      %v1008 = vmul.f32 %v979, %v1003
      %v1009 = vmul.f32 %v984, %v1003
      %v1010 = vmul.f32 %v987, %v1003
      %v1011 = vmul.f32 %v992, %v1003
      %v1012 = vmul.f32 %v995, %v1003
      %v1013 = vld [vmem:[%s9] sm:$0x1]
      %v1015 = vlaneseq
      %v1016 = vshrl.u32 %v1015, 7
      %v1017 = vsub.s32 0, %v1016
      %v1018 = vrot.slane %v1013, %v1017
      %v1020 = vadd.f32 %v1005, %v1018
      %v1021 = vadd.f32 %v1006, %v1018
      %v1022 = vadd.f32 %v1007, %v1018
      %v1023 = vadd.f32 %v1008, %v1018
      %v1024 = vadd.f32 %v1009, %v1018
      %v1025 = vadd.f32 %v1010, %v1018
      %v1026 = vadd.f32 %v1011, %v1018
      %v1027 = vadd.f32 %v1012, %v1018
      %v1028 = vunpack.c.l.bf16 %v361
      %v1029 = vunpack.c.l.bf16 %v362
      %v1030 = vunpack.c.l.bf16 %v363
      %v1031 = vunpack.c.l.bf16 %v364
      %v1032 = vunpack.c.l.bf16 %v365
      %v1033 = vunpack.c.l.bf16 %v366
      %v1034 = vunpack.c.l.bf16 %v367
      %v1035 = vunpack.c.l.bf16 %v368
      %v1036 = vadd.f32 %v1020, %v1028
      %v1037 = vadd.f32 %v1021, %v1029
      %v1038 = vadd.f32 %v1022, %v1030
      %v1039 = vadd.f32 %v1023, %v1031
      %v1040 = vadd.f32 %v1024, %v1032
      %v1041 = vadd.f32 %v1025, %v1033
      %v1042 = vadd.f32 %v1026, %v1034
      %v1043 = vadd.f32 %v1027, %v1035
      %v1044 = vpack.c.bf16 %v1036, %v1036
      %v1045 = vpack.c.bf16 %v1037, %v1037
      %v1046 = vpack.c.bf16 %v1038, %v1038
      %v1047 = vpack.c.bf16 %v1039, %v1039
      %v1048 = vpack.c.bf16 %v1040, %v1040
      %v1049 = vpack.c.bf16 %v1041, %v1041
      %v1050 = vpack.c.bf16 %v1042, %v1042
      %v1051 = vpack.c.bf16 %v1043, %v1043
      %vm1052 = vcmask 125952
      %1053 = vst.msk [vmem:[%s359] sm:$0xf] %vm1052, %v1044
      %1054 = vst.msk [vmem:[%s359 + $0x4] sm:$0xf] %vm1052, %v1045
      %1055 = vst.msk [vmem:[%s359 + $0x8] sm:$0xf] %vm1052, %v1046
      %1056 = vst.msk [vmem:[%s359 + $0xc] sm:$0xf] %vm1052, %v1047
      %1057 = vst.msk [vmem:[%s359 + $0x10] sm:$0xf] %vm1052, %v1048
      %1058 = vst.msk [vmem:[%s359 + $0x14] sm:$0xf] %vm1052, %v1049
      %1059 = vst.msk [vmem:[%s359 + $0x18] sm:$0xf] %vm1052, %v1050
      %1060 = vst.msk [vmem:[%s359 + $0x1c] sm:$0xf] %vm1052, %v1051
      %p1061 = scmp.lt.s32.totalorder %s21, 1
      %s1062 = scalar_select %p1061, %s21, 1
      %s1063 = smul.addr %s1062, 8
      %s1064 = smul.addr %s1063, 4
      %s1065 = scalar_lea.vmem %s10, %s1064
      // Predicated region
      $region61: #{slim_stage.4} parent=59 // pred_check
        %p1066 = pneg %p254
      $region62: #{slim_stage.4} parent=59 // pred_check_branch
        %1068 = sbr.rel (%p1066) target = $region64
      $region63: #{slim_stage.4} parent=59 // pred_region
        _
      $region64: #{slim_stage.4} parent=59 // pred_fallthru
        _
    $region60: #{slim_stage.4} parent=5 // pred_fallthru
      _
    %p1069 = scmp.le.s32.totalorder 2, %s16
    // Predicated region
    $region65: #{slim_stage.4} parent=5 // pred_check
      %p1070 = pneg %p1069
    $region66: #{slim_stage.4} parent=5 // pred_check_branch
      %1072 = sbr.rel (%p1070) target = $region68
    $region67: #{slim_stage.4} parent=5 // pred_region
      %s1073 = ssub.s32 %s16, 2
      // Predicated region
      $region69: #{slim_stage.4} parent=67 // pred_check
        %p1074 = pneg %p260
      $region70: #{slim_stage.4} parent=67 // pred_check_branch
        %1076 = sbr.rel (%p1074) target = $region72
      $region71: #{slim_stage.4} parent=67 // pred_region
        %p1077 = scmp.lt.s32.totalorder %s22, 1
        %s1078 = scalar_select %p1077, %s22, 1
        %s1079 = smul.addr %s1078, 8
        %s1080 = smul.addr %s1079, 4
        %s1081 = scalar_lea.vmem %s10, %s1080
      $region72: #{slim_stage.4} parent=67 // pred_fallthru
        _
    $region68: #{slim_stage.4} parent=5 // pred_fallthru
      _
  $region6: #{slim_stage.4} parent=0 // loop_footer
    %s20 = sadd.s32 1, %s16
  $region7: #{slim_stage.4} parent=0 // loop_footer_branch
    %15 = sbr.rel target = $region3
  $region8: #{slim_stage.4} parent=0 // loop_exit
    _

// kernel: slim_stage.5
$region0: #{slim_stage.5}
  #allocation0 [shape = 'u32[]', space=smem, size = 0x4, offset = 0x4, fixed_abs, tag = 'smem constant byte address 0x4 - core index']
  #allocation1 [shape = 'u32[144,128]{1,0:T(1,128)}', space=vmem, size = 0x12000, scoped, tag = 'internal scratch']
  #allocation2 [shape = 'f32[12,12,32]{2,1,0:T(8,128)}', space=vmem, size = 0x18000, scoped, tag = 'scratch operand']
  %s0 = inlined_call_operand.vmem [shape: bf16[2,8,8,16], index: 0, kind: input, shape index: {}]
  %s1 = inlined_call_operand.vmem [shape: bf16[16,32], index: 1, kind: input, shape index: {}]
  %s2 = inlined_call_operand.vmem [shape: f32[1,32], index: 2, kind: input, shape index: {}]
  %s3 = inlined_call_operand.vmem [shape: f32[1,32], index: 3, kind: input, shape index: {}]
  %s4 = inlined_call_operand.vmem [shape: f32[25,32], index: 4, kind: input, shape index: {}]
  %s5 = inlined_call_operand.vmem [shape: f32[1,32], index: 5, kind: input, shape index: {}]
  %s6 = inlined_call_operand.vmem [shape: f32[1,32], index: 6, kind: input, shape index: {}]
  %s7 = inlined_call_operand.vmem [shape: f32[32,8], index: 7, kind: input, shape index: {}]
  %s8 = inlined_call_operand.vmem [shape: f32[8,32], index: 8, kind: input, shape index: {}]
  %s9 = inlined_call_operand.vmem [shape: bf16[32,24], index: 9, kind: input, shape index: {}]
  %s10 = inlined_call_operand.vmem [shape: f32[1,24], index: 10, kind: input, shape index: {}]
  %s11 = inlined_call_operand.vmem [shape: f32[1,24], index: 11, kind: input, shape index: {}]
  %s12 = inlined_call_operand.hbm [shape: bf16[2,8,8,24], index: 12, kind: output, shape index: {}]
  %s13 = sld [smem:[#allocation0]]
  $region81: #{slim_stage.5} parent=0
    _
  %s15 = ssub.s32 1, %s13
  %s16 = scalar_select 0, %s15, %s13
  $region1: #{slim_stage.5} parent=0
    #allocation3 [shape = 'u8[32768]{0}', space=vmem, size = 0x8000, scoped, tag = 'output window, operand 0']
    #allocation4 [shape = 's32[2]{0}', space=sflag, size = 0x8, scoped, tag = 'scoped memory for slim_stage.5']
    %17 = vsyncpa [#allocation4], 0
    %s18 = scalar_lea.sflag [#allocation4], 1
    %19 = vsyncpa %s18, 0
    loop: start=0, step=1, limit=4
    $region2: #{slim_stage.5} parent=1 // loop_pre_header
      _
    $region3: #{slim_stage.5} parent=1 // loop_header
      %s21 = sphi 0, %s25
      %p22 = scmp.ge.s32.totalorder %s21, 4
      %s31 = sphi 0, %s33
      %s34 = sphi 0, %s31
      %s35 = sphi 0, %s34
      %s51 = sphi 0, %s35
      %s55 = sphi 0, %s55
      %s57 = sphi 0, %s55
      %s58 = sphi 0, %s57
      %s72 = sphi 0, %s58
      %s76 = sphi 0, %s76
      %s78 = sphi 0, %s76
      %s79 = sphi 0, %s78
      %s93 = sphi 0, %s79
      %s97 = sphi 0, %s97
      %s99 = sphi 0, %s97
      %s100 = sphi 0, %s99
      %s114 = sphi 0, %s100
      %s118 = sphi 0, %s118
      %s120 = sphi 0, %s118
      %s121 = sphi 0, %s120
      %s135 = sphi 0, %s121
      %s139 = sphi 0, %s139
      %s141 = sphi 0, %s139
      %s142 = sphi 0, %s141
      %s156 = sphi 0, %s142
      %s160 = sphi 0, %s160
      %s162 = sphi 0, %s160
      %s163 = sphi 0, %s162
      %s177 = sphi 0, %s163
      %s181 = sphi 0, %s181
      %s183 = sphi 0, %s181
      %s184 = sphi 0, %s183
      %s198 = sphi 0, %s184
      %s202 = sphi 0, %s202
      %s204 = sphi 0, %s202
      %s205 = sphi 0, %s204
      %s219 = sphi 0, %s205
      %s223 = sphi 0, %s223
      %s225 = sphi 0, %s223
      %s226 = sphi 0, %s225
      %s240 = sphi 0, %s226
      %s244 = sphi 0, %s244
      %s246 = sphi 0, %s244
      %s247 = sphi 0, %s246
      %s261 = sphi 0, %s247
      %s265 = sphi 0, %s265
      %s267 = sphi 0, %s265
      %s268 = sphi 0, %s267
      %s282 = sphi 0, %s268
      %s288 = sphi 0, %s290
      %s291 = sphi 0, %s288
      %s292 = sphi 0, %s291
      %s308 = sphi 0, %s292
    $region4: #{slim_stage.5} parent=1 // loop_header_branch
      %24 = sbr.rel (%p22) target = $region8
    $region5: #{slim_stage.5} parent=1 // loop_body
      %s26 = ssub.s32 %s21, 1
      %s27 = ssub.s32 %s21, 2
      %s28 = sadd.s32 %s21, 1
      %s29 = ssub.s32 %s21, %s28
      %p30 = scmp.eq.s32.totalorder %s29, 0
      %s32 = sadd.s32 %s31, 1
      %s33 = scalar_select %p30, %s31, %s32
      %p36 = pneg %p30
      %p37 = scmp.eq.s32.totalorder %s21, 1
      %p38 = por %p36, %p37
      %p39 = scmp.ne.s32.totalorder %s31, %s34
      %p40 = scmp.eq.s32.totalorder %s21, 0
      %p41 = por %p39, %p40
      %p42 = scmp.ne.s32.totalorder %s31, %s34
      %p43 = scmp.eq.s32.totalorder %s26, 1
      %p44 = por %p42, %p43
      %p45 = scmp.ne.s32.totalorder %s34, %s35
      %p46 = scmp.eq.s32.totalorder %s26, 0
      %p47 = por %p45, %p46
      %p48 = scmp.ne.s32.totalorder %s34, %s35
      %p49 = scmp.eq.s32.totalorder %s27, 1
      %p50 = por %p48, %p49
      %p52 = scmp.ne.s32.totalorder %s35, %s51
      %p53 = scmp.eq.s32.totalorder %s27, 0
      %p54 = por %p52, %p53
      %s56 = sadd.s32 %s55, 1
      %p59 = scmp.eq.s32.totalorder %s21, 1
      %p60 = scmp.ne.s32.totalorder %s55, %s57
      %p61 = scmp.eq.s32.totalorder %s21, 0
      %p62 = por %p60, %p61
      %p63 = scmp.ne.s32.totalorder %s55, %s57
      %p64 = scmp.eq.s32.totalorder %s26, 1
      %p65 = por %p63, %p64
      %p66 = scmp.ne.s32.totalorder %s57, %s58
      %p67 = scmp.eq.s32.totalorder %s26, 0
      %p68 = por %p66, %p67
      %p69 = scmp.ne.s32.totalorder %s57, %s58
      %p70 = scmp.eq.s32.totalorder %s27, 1
      %p71 = por %p69, %p70
      %p73 = scmp.ne.s32.totalorder %s58, %s72
      %p74 = scmp.eq.s32.totalorder %s27, 0
      %p75 = por %p73, %p74
      %s77 = sadd.s32 %s76, 1
      %p80 = scmp.eq.s32.totalorder %s21, 1
      %p81 = scmp.ne.s32.totalorder %s76, %s78
      %p82 = scmp.eq.s32.totalorder %s21, 0
      %p83 = por %p81, %p82
      %p84 = scmp.ne.s32.totalorder %s76, %s78
      %p85 = scmp.eq.s32.totalorder %s26, 1
      %p86 = por %p84, %p85
      %p87 = scmp.ne.s32.totalorder %s78, %s79
      %p88 = scmp.eq.s32.totalorder %s26, 0
      %p89 = por %p87, %p88
      %p90 = scmp.ne.s32.totalorder %s78, %s79
      %p91 = scmp.eq.s32.totalorder %s27, 1
      %p92 = por %p90, %p91
      %p94 = scmp.ne.s32.totalorder %s79, %s93
      %p95 = scmp.eq.s32.totalorder %s27, 0
      %p96 = por %p94, %p95
      %s98 = sadd.s32 %s97, 1
      %p101 = scmp.eq.s32.totalorder %s21, 1
      %p102 = scmp.ne.s32.totalorder %s97, %s99
      %p103 = scmp.eq.s32.totalorder %s21, 0
      %p104 = por %p102, %p103
      %p105 = scmp.ne.s32.totalorder %s97, %s99
      %p106 = scmp.eq.s32.totalorder %s26, 1
      %p107 = por %p105, %p106
      %p108 = scmp.ne.s32.totalorder %s99, %s100
      %p109 = scmp.eq.s32.totalorder %s26, 0
      %p110 = por %p108, %p109
      %p111 = scmp.ne.s32.totalorder %s99, %s100
      %p112 = scmp.eq.s32.totalorder %s27, 1
      %p113 = por %p111, %p112
      %p115 = scmp.ne.s32.totalorder %s100, %s114
      %p116 = scmp.eq.s32.totalorder %s27, 0
      %p117 = por %p115, %p116
      %s119 = sadd.s32 %s118, 1
      %p122 = scmp.eq.s32.totalorder %s21, 1
      %p123 = scmp.ne.s32.totalorder %s118, %s120
      %p124 = scmp.eq.s32.totalorder %s21, 0
      %p125 = por %p123, %p124
      %p126 = scmp.ne.s32.totalorder %s118, %s120
      %p127 = scmp.eq.s32.totalorder %s26, 1
      %p128 = por %p126, %p127
      %p129 = scmp.ne.s32.totalorder %s120, %s121
      %p130 = scmp.eq.s32.totalorder %s26, 0
      %p131 = por %p129, %p130
      %p132 = scmp.ne.s32.totalorder %s120, %s121
      %p133 = scmp.eq.s32.totalorder %s27, 1
      %p134 = por %p132, %p133
      %p136 = scmp.ne.s32.totalorder %s121, %s135
      %p137 = scmp.eq.s32.totalorder %s27, 0
      %p138 = por %p136, %p137
      %s140 = sadd.s32 %s139, 1
      %p143 = scmp.eq.s32.totalorder %s21, 1
      %p144 = scmp.ne.s32.totalorder %s139, %s141
      %p145 = scmp.eq.s32.totalorder %s21, 0
      %p146 = por %p144, %p145
      %p147 = scmp.ne.s32.totalorder %s139, %s141
      %p148 = scmp.eq.s32.totalorder %s26, 1
      %p149 = por %p147, %p148
      %p150 = scmp.ne.s32.totalorder %s141, %s142
      %p151 = scmp.eq.s32.totalorder %s26, 0
      %p152 = por %p150, %p151
      %p153 = scmp.ne.s32.totalorder %s141, %s142
      %p154 = scmp.eq.s32.totalorder %s27, 1
      %p155 = por %p153, %p154
      %p157 = scmp.ne.s32.totalorder %s142, %s156
      %p158 = scmp.eq.s32.totalorder %s27, 0
      %p159 = por %p157, %p158
      %s161 = sadd.s32 %s160, 1
      %p164 = scmp.eq.s32.totalorder %s21, 1
      %p165 = scmp.ne.s32.totalorder %s160, %s162
      %p166 = scmp.eq.s32.totalorder %s21, 0
      %p167 = por %p165, %p166
      %p168 = scmp.ne.s32.totalorder %s160, %s162
      %p169 = scmp.eq.s32.totalorder %s26, 1
      %p170 = por %p168, %p169
      %p171 = scmp.ne.s32.totalorder %s162, %s163
      %p172 = scmp.eq.s32.totalorder %s26, 0
      %p173 = por %p171, %p172
      %p174 = scmp.ne.s32.totalorder %s162, %s163
      %p175 = scmp.eq.s32.totalorder %s27, 1
      %p176 = por %p174, %p175
      %p178 = scmp.ne.s32.totalorder %s163, %s177
      %p179 = scmp.eq.s32.totalorder %s27, 0
      %p180 = por %p178, %p179
      %s182 = sadd.s32 %s181, 1
      %p185 = scmp.eq.s32.totalorder %s21, 1
      %p186 = scmp.ne.s32.totalorder %s181, %s183
      %p187 = scmp.eq.s32.totalorder %s21, 0
      %p188 = por %p186, %p187
      %p189 = scmp.ne.s32.totalorder %s181, %s183
      %p190 = scmp.eq.s32.totalorder %s26, 1
      %p191 = por %p189, %p190
      %p192 = scmp.ne.s32.totalorder %s183, %s184
      %p193 = scmp.eq.s32.totalorder %s26, 0
      %p194 = por %p192, %p193
      %p195 = scmp.ne.s32.totalorder %s183, %s184
      %p196 = scmp.eq.s32.totalorder %s27, 1
      %p197 = por %p195, %p196
      %p199 = scmp.ne.s32.totalorder %s184, %s198
      %p200 = scmp.eq.s32.totalorder %s27, 0
      %p201 = por %p199, %p200
      %s203 = sadd.s32 %s202, 1
      %p206 = scmp.eq.s32.totalorder %s21, 1
      %p207 = scmp.ne.s32.totalorder %s202, %s204
      %p208 = scmp.eq.s32.totalorder %s21, 0
      %p209 = por %p207, %p208
      %p210 = scmp.ne.s32.totalorder %s202, %s204
      %p211 = scmp.eq.s32.totalorder %s26, 1
      %p212 = por %p210, %p211
      %p213 = scmp.ne.s32.totalorder %s204, %s205
      %p214 = scmp.eq.s32.totalorder %s26, 0
      %p215 = por %p213, %p214
      %p216 = scmp.ne.s32.totalorder %s204, %s205
      %p217 = scmp.eq.s32.totalorder %s27, 1
      %p218 = por %p216, %p217
      %p220 = scmp.ne.s32.totalorder %s205, %s219
      %p221 = scmp.eq.s32.totalorder %s27, 0
      %p222 = por %p220, %p221
      %s224 = sadd.s32 %s223, 1
      %p227 = scmp.eq.s32.totalorder %s21, 1
      %p228 = scmp.ne.s32.totalorder %s223, %s225
      %p229 = scmp.eq.s32.totalorder %s21, 0
      %p230 = por %p228, %p229
      %p231 = scmp.ne.s32.totalorder %s223, %s225
      %p232 = scmp.eq.s32.totalorder %s26, 1
      %p233 = por %p231, %p232
      %p234 = scmp.ne.s32.totalorder %s225, %s226
      %p235 = scmp.eq.s32.totalorder %s26, 0
      %p236 = por %p234, %p235
      %p237 = scmp.ne.s32.totalorder %s225, %s226
      %p238 = scmp.eq.s32.totalorder %s27, 1
      %p239 = por %p237, %p238
      %p241 = scmp.ne.s32.totalorder %s226, %s240
      %p242 = scmp.eq.s32.totalorder %s27, 0
      %p243 = por %p241, %p242
      %s245 = sadd.s32 %s244, 1
      %p248 = scmp.eq.s32.totalorder %s21, 1
      %p249 = scmp.ne.s32.totalorder %s244, %s246
      %p250 = scmp.eq.s32.totalorder %s21, 0
      %p251 = por %p249, %p250
      %p252 = scmp.ne.s32.totalorder %s244, %s246
      %p253 = scmp.eq.s32.totalorder %s26, 1
      %p254 = por %p252, %p253
      %p255 = scmp.ne.s32.totalorder %s246, %s247
      %p256 = scmp.eq.s32.totalorder %s26, 0
      %p257 = por %p255, %p256
      %p258 = scmp.ne.s32.totalorder %s246, %s247
      %p259 = scmp.eq.s32.totalorder %s27, 1
      %p260 = por %p258, %p259
      %p262 = scmp.ne.s32.totalorder %s247, %s261
      %p263 = scmp.eq.s32.totalorder %s27, 0
      %p264 = por %p262, %p263
      %s266 = sadd.s32 %s265, 1
      %p269 = scmp.eq.s32.totalorder %s21, 1
      %p270 = scmp.ne.s32.totalorder %s265, %s267
      %p271 = scmp.eq.s32.totalorder %s21, 0
      %p272 = por %p270, %p271
      %p273 = scmp.ne.s32.totalorder %s265, %s267
      %p274 = scmp.eq.s32.totalorder %s26, 1
      %p275 = por %p273, %p274
      %p276 = scmp.ne.s32.totalorder %s267, %s268
      %p277 = scmp.eq.s32.totalorder %s26, 0
      %p278 = por %p276, %p277
      %p279 = scmp.ne.s32.totalorder %s267, %s268
      %p280 = scmp.eq.s32.totalorder %s27, 1
      %p281 = por %p279, %p280
      %p283 = scmp.ne.s32.totalorder %s268, %s282
      %p284 = scmp.eq.s32.totalorder %s27, 0
      %p285 = por %p283, %p284
      %s286 = ssub.s32 %s21, %s28
      %p287 = scmp.eq.s32.totalorder %s286, 0
      %s289 = sadd.s32 %s288, 1
      %s290 = scalar_select %p287, %s288, %s289
      %p293 = pneg %p287
      %p294 = scmp.eq.s32.totalorder %s21, 1
      %p295 = por %p293, %p294
      %p296 = scmp.ne.s32.totalorder %s288, %s291
      %p297 = scmp.eq.s32.totalorder %s21, 0
      %p298 = por %p296, %p297
      %p299 = scmp.ne.s32.totalorder %s288, %s291
      %p300 = scmp.eq.s32.totalorder %s26, 1
      %p301 = por %p299, %p300
      %p302 = scmp.ne.s32.totalorder %s291, %s292
      %p303 = scmp.eq.s32.totalorder %s26, 0
      %p304 = por %p302, %p303
      %p305 = scmp.ne.s32.totalorder %s291, %s292
      %p306 = scmp.eq.s32.totalorder %s27, 1
      %p307 = por %p305, %p306
      %p309 = scmp.ne.s32.totalorder %s292, %s308
      %p310 = scmp.eq.s32.totalorder %s27, 0
      %p311 = por %p309, %p310
      %p312 = scmp.le.s32.totalorder 1, %s21
      %p313 = scmp.lt.s32.totalorder %s21, 3
      %p314 = pnand %p312, %p313
      %p315 = pneg %p314
      // Predicated region
      $region9: #{slim_stage.5} parent=5 // pred_check
        _
      $region10: #{slim_stage.5} parent=5 // pred_check_branch
        %317 = sbr.rel (%p314) target = $region12
      $region11: #{slim_stage.5} parent=5 // pred_region
        %s318 = ssub.s32 %s21, 1
        // Predicated region
        $region13: #{slim_stage.5} parent=11 // pred_check
          %p319 = pneg %p68
        $region14: #{slim_stage.5} parent=11 // pred_check_branch
          %321 = sbr.rel (%p319) target = $region16
        $region15: #{slim_stage.5} parent=11 // pred_region
          _
        $region16: #{slim_stage.5} parent=11 // pred_fallthru
          _
        // Predicated region
        $region17: #{slim_stage.5} parent=11 // pred_check
          %p322 = pneg %p89
        $region18: #{slim_stage.5} parent=11 // pred_check_branch
          %324 = sbr.rel (%p322) target = $region20
        $region19: #{slim_stage.5} parent=11 // pred_region
          _
        $region20: #{slim_stage.5} parent=11 // pred_fallthru
          _
        // Predicated region
        $region21: #{slim_stage.5} parent=11 // pred_check
          %p325 = pneg %p110
        $region22: #{slim_stage.5} parent=11 // pred_check_branch
          %327 = sbr.rel (%p325) target = $region24
        $region23: #{slim_stage.5} parent=11 // pred_region
          _
        $region24: #{slim_stage.5} parent=11 // pred_fallthru
          _
        // Predicated region
        $region25: #{slim_stage.5} parent=11 // pred_check
          %p328 = pneg %p131
        $region26: #{slim_stage.5} parent=11 // pred_check_branch
          %330 = sbr.rel (%p328) target = $region28
        $region27: #{slim_stage.5} parent=11 // pred_region
          _
        $region28: #{slim_stage.5} parent=11 // pred_fallthru
          _
        // Predicated region
        $region29: #{slim_stage.5} parent=11 // pred_check
          %p331 = pneg %p152
        $region30: #{slim_stage.5} parent=11 // pred_check_branch
          %333 = sbr.rel (%p331) target = $region32
        $region31: #{slim_stage.5} parent=11 // pred_region
          _
        $region32: #{slim_stage.5} parent=11 // pred_fallthru
          _
        // Predicated region
        $region33: #{slim_stage.5} parent=11 // pred_check
          %p334 = pneg %p173
        $region34: #{slim_stage.5} parent=11 // pred_check_branch
          %336 = sbr.rel (%p334) target = $region36
        $region35: #{slim_stage.5} parent=11 // pred_region
          _
        $region36: #{slim_stage.5} parent=11 // pred_fallthru
          _
        // Predicated region
        $region37: #{slim_stage.5} parent=11 // pred_check
          %p337 = pneg %p194
        $region38: #{slim_stage.5} parent=11 // pred_check_branch
          %339 = sbr.rel (%p337) target = $region40
        $region39: #{slim_stage.5} parent=11 // pred_region
          _
        $region40: #{slim_stage.5} parent=11 // pred_fallthru
          _
        // Predicated region
        $region41: #{slim_stage.5} parent=11 // pred_check
          %p340 = pneg %p215
        $region42: #{slim_stage.5} parent=11 // pred_check_branch
          %342 = sbr.rel (%p340) target = $region44
        $region43: #{slim_stage.5} parent=11 // pred_region
          _
        $region44: #{slim_stage.5} parent=11 // pred_fallthru
          _
        // Predicated region
        $region45: #{slim_stage.5} parent=11 // pred_check
          %p343 = pneg %p236
        $region46: #{slim_stage.5} parent=11 // pred_check_branch
          %345 = sbr.rel (%p343) target = $region48
        $region47: #{slim_stage.5} parent=11 // pred_region
          _
        $region48: #{slim_stage.5} parent=11 // pred_fallthru
          _
        // Predicated region
        $region49: #{slim_stage.5} parent=11 // pred_check
          %p346 = pneg %p257
        $region50: #{slim_stage.5} parent=11 // pred_check_branch
          %348 = sbr.rel (%p346) target = $region52
        $region51: #{slim_stage.5} parent=11 // pred_region
          _
        $region52: #{slim_stage.5} parent=11 // pred_fallthru
          _
        // Predicated region
        $region53: #{slim_stage.5} parent=11 // pred_check
          %p349 = pneg %p278
        $region54: #{slim_stage.5} parent=11 // pred_check_branch
          %351 = sbr.rel (%p349) target = $region56
        $region55: #{slim_stage.5} parent=11 // pred_region
          _
        $region56: #{slim_stage.5} parent=11 // pred_fallthru
          _
      $region12: #{slim_stage.5} parent=5 // pred_fallthru
        _
      %p352 = scmp.lt.s32.totalorder %s21, 2
      // Predicated region
      $region57: #{slim_stage.5} parent=5 // pred_check
        %p353 = pneg %p352
      $region58: #{slim_stage.5} parent=5 // pred_check_branch
        %355 = sbr.rel (%p353) target = $region60
      $region59: #{slim_stage.5} parent=5 // pred_region
        // Predicated region
        $region61: #{slim_stage.5} parent=59 // pred_check
          %p356 = pneg %p41
        $region62: #{slim_stage.5} parent=59 // pred_check_branch
          %358 = sbr.rel (%p356) target = $region64
        $region63: #{slim_stage.5} parent=59 // pred_region
          %p359 = scmp.lt.s32.totalorder %s21, 1
          %s360 = scalar_select %p359, %s21, 1
          %s361 = smul.addr %s360, 8
          %s362 = smul.addr %s361, 4
          %s363 = scalar_lea.vmem %s0, %s362
        $region64: #{slim_stage.5} parent=59 // pred_fallthru
          _
      $region60: #{slim_stage.5} parent=5 // pred_fallthru
        _
      %p364 = scmp.le.s32.totalorder 1, %s21
      %p365 = scmp.lt.s32.totalorder %s21, 3
      %p366 = pnand %p364, %p365
      %p367 = pneg %p366
      // Predicated region
      $region65: #{slim_stage.5} parent=5 // pred_check
        _
      $region66: #{slim_stage.5} parent=5 // pred_check_branch
        %369 = sbr.rel (%p366) target = $region68
      $region67: #{slim_stage.5} parent=5 // pred_region
        %s370 = ssub.s32 %s21, 1
        %p371 = scmp.lt.s32.totalorder %s26, 1
        %s372 = scalar_select %p371, %s26, 1
        %s373 = smul.addr %s372, 8
        %s374 = smul.addr %s373, 4
        %s375 = scalar_lea.vmem %s0, %s374
        %p376 = pneg %p47
        %p377 = pneg %p44
        %p378 = pneg %p68
        %p379 = pneg %p65
        %p380 = pneg %p89
        %p381 = pneg %p86
        %p382 = pneg %p110
        %p383 = pneg %p107
        %p384 = pneg %p131
        %p385 = pneg %p128
        %p386 = pneg %p152
        %p387 = pneg %p149
        %p388 = pneg %p173
        %p389 = pneg %p170
        %p390 = pneg %p194
        %p391 = pneg %p191
        %p392 = pneg %p215
        %p393 = pneg %p212
        %p394 = pneg %p236
        %p395 = pneg %p233
        %p396 = pneg %p257
        %p397 = pneg %p254
        %p398 = pneg %p278
        %p399 = pneg %p275
        %p400 = pneg %p304
        %p401 = pneg %p301
        %s402 = sand.u32 %s291, 1
        %s403 = scalar_lea.sflag [#allocation4], %s402
        %s404 = sand.u32 %s291, 1
        %s405 = smul.addr %s404, 32
        %s406 = scalar_lea.vmem [#allocation3], %s405
        %p407 = scmp.lt.s32.totalorder %s26, 1
        %s408 = scalar_select %p407, %s26, 1
        %s409 = smul.addr %s408, 8
        %s410 = smul.addr %s409, 4
        %s411 = scalar_lea.vmem %s0, %s410
        %v413 = vld [vmem:[%s411] sm:$0xf]
        %v414 = vld [vmem:[%s411 + $0x4] sm:$0xf]
        %v415 = vld [vmem:[%s411 + $0x8] sm:$0xf]
        %v416 = vld [vmem:[%s411 + $0xc] sm:$0xf]
        %v417 = vld [vmem:[%s411 + $0x10] sm:$0xf]
        %v418 = vld [vmem:[%s411 + $0x14] sm:$0xf]
        %v419 = vld [vmem:[%s411 + $0x18] sm:$0xf]
        %v420 = vld [vmem:[%s411 + $0x1c] sm:$0xf]
        %v421 = vld [vmem:[%s1] sm:$0xf]
        %v422 = vld [vmem:[%s1 + $0x4] sm:$0xf]
        %v431 = vunpack.c.l.b16 %v413
        %v432 = vunpack.c.l.b16 %v414
        %v433 = vunpack.c.l.b16 %v415
        %v434 = vunpack.c.l.b16 %v416
        %v435 = vunpack.c.l.b16 %v417
        %v436 = vunpack.c.l.b16 %v418
        %v437 = vunpack.c.l.b16 %v419
        %v438 = vunpack.c.l.b16 %v420
        %v439 = vpack.c.b16 %v432, %v431
        %v440 = vpack.c.b16 %v434, %v433
        %v441 = vpack.c.b16 %v436, %v435
        %v442 = vpack.c.b16 %v438, %v437
        %v445 = vunpack.c.l.b16 %v421
        %v446 = vunpack.c.l.b16 %v422
        %v447 = vpack.c.b16 %v446, %v445
        %vm449 = vcmask 130048
        %v451 = vsel %vm449, %v439, 0
        %v454 = vsel %vm449, %v440, 0
        %v457 = vsel %vm449, %v441, 0
        %v460 = vsel %vm449, %v442, 0
        %462 = vmatprep.subr.bf16.mxu0 0
        %463 = vmatpush1.bf16.msra.mxu0 %v447
        %464 = vmatprep.subr.bf16.mxu0 0
        %465 = vmatpush1.bf16.msra.mxu0 0
        %466 = vmatprep.subr.bf16.mxu0 0
        %467 = vmatpush1.bf16.msra.mxu0 0
        %468 = vmatprep.subr.bf16.mxu0 0
        %469 = vmatpush1.bf16.msra.mxu0 0
        %470 = vmatprep.subr.bf16.mxu0 0
        %471 = vmatpush1.bf16.msra.mxu0 0
        %472 = vmatprep.subr.bf16.mxu0 0
        %473 = vmatpush1.bf16.msra.mxu0 0
        %474 = vmatprep.subr.bf16.mxu0 0
        %475 = vmatpush1.bf16.msra.mxu0 0
        %476 = vmatprep.subr.bf16.mxu0 0
        %477 = vmatpush1.bf16.msra.mxu0 0
        %478 = vmatprep.subr.bf16.mxu0 0
        %479 = vmatpush1.bf16.msra.mxu0 0
        %480 = vmatprep.subr.bf16.mxu0 0
        %481 = vmatpush1.bf16.msra.mxu0 0
        %482 = vmatprep.subr.bf16.mxu0 0
        %483 = vmatpush1.bf16.msra.mxu0 0
        %484 = vmatprep.subr.bf16.mxu0 0
        %485 = vmatpush1.bf16.msra.mxu0 0
        %486 = vmatprep.subr.bf16.mxu0 0
        %487 = vmatpush1.bf16.msra.mxu0 0
        %488 = vmatprep.subr.bf16.mxu0 0
        %489 = vmatpush1.bf16.msra.mxu0 0
        %490 = vmatprep.subr.bf16.mxu0 0
        %491 = vmatpush1.bf16.msra.mxu0 0
        %492 = vmatprep.subr.bf16.mxu0 0
        %493 = vmatpush1.bf16.msra.mxu0 0
        %494 = vmatprep.mubr.bf16.mxu0 0
        %495 = vmatmul.mubr.bf16.gmra.mrb[0].mxu0 %v451
        %v496 = vpop.f32.mrb[0].mxu0
        %v497 = vadd.f32 0.0, %v496
        %v498 = vpop.f32.mrb[0].mxu0
        %v499 = vpop.f32.mrb[0].mxu0
        %v500 = vadd.f32 0.0, %v499
        %v501 = vpop.f32.mrb[0].mxu0
        %502 = vmatprep.mubr.bf16.mxu0 0
        %503 = vmatmul.mubr.bf16.gmra.mrb[0].mxu0 %v454
        %v504 = vpop.f32.mrb[0].mxu0
        %v505 = vadd.f32 0.0, %v504
        %v506 = vpop.f32.mrb[0].mxu0
        %v507 = vpop.f32.mrb[0].mxu0
        %v508 = vadd.f32 0.0, %v507
        %v509 = vpop.f32.mrb[0].mxu0
        %510 = vmatprep.mubr.bf16.mxu0 0
        %511 = vmatmul.mubr.bf16.gmra.mrb[0].mxu0 %v457
        %v512 = vpop.f32.mrb[0].mxu0
        %v513 = vadd.f32 0.0, %v512
        %v514 = vpop.f32.mrb[0].mxu0
        %v515 = vpop.f32.mrb[0].mxu0
        %v516 = vadd.f32 0.0, %v515
        %v517 = vpop.f32.mrb[0].mxu0
        %518 = vmatprep.mubr.bf16.mxu0 0
        %519 = vmatmul.mubr.bf16.gmra.mrb[0].mxu0 %v460
        %v520 = vpop.f32.mrb[0].mxu0
        %v521 = vadd.f32 0.0, %v520
        %v522 = vpop.f32.mrb[0].mxu0
        %v523 = vpop.f32.mrb[0].mxu0
        %v524 = vadd.f32 0.0, %v523
        %v525 = vpop.f32.mrb[0].mxu0
        %526 = vdwg.mxu0
        %v527 = vld [vmem:[%s2] sm:$0x1]
        %v529 = vlaneseq
        %v530 = vshrl.u32 %v529, 7
        %v531 = vsub.s32 0, %v530
        %v532 = vrot.slane %v527, %v531
        %v534 = vmul.f32 %v497, %v532
        %v535 = vmul.f32 %v500, %v532
        %v536 = vmul.f32 %v505, %v532
        %v537 = vmul.f32 %v508, %v532
        %v538 = vmul.f32 %v513, %v532
        %v539 = vmul.f32 %v516, %v532
        %v540 = vmul.f32 %v521, %v532
        %v541 = vmul.f32 %v524, %v532
        %v542 = vld [vmem:[%s3] sm:$0x1]
        %v544 = vlaneseq
        %v545 = vshrl.u32 %v544, 7
        %v546 = vsub.s32 0, %v545
        %v547 = vrot.slane %v542, %v546
        %v549 = vadd.f32 %v534, %v547
        %v550 = vadd.f32 %v535, %v547
        %v551 = vadd.f32 %v536, %v547
        %v552 = vadd.f32 %v537, %v547
        %v553 = vadd.f32 %v538, %v547
        %v554 = vadd.f32 %v539, %v547
        %v555 = vadd.f32 %v540, %v547
        %v556 = vadd.f32 %v541, %v547
        %v557 = vadd.f32 %v549, 3.0
        %v558 = vadd.f32 %v550, 3.0
        %v559 = vadd.f32 %v551, 3.0
        %v560 = vadd.f32 %v552, 3.0
        %v561 = vadd.f32 %v553, 3.0
        %v562 = vadd.f32 %v554, 3.0
        %v563 = vadd.f32 %v555, 3.0
        %v564 = vadd.f32 %v556, 3.0
        %v565 = vmax.f32 %v557, 0.0
        %v566 = vmax.f32 %v558, 0.0
        %v567 = vmax.f32 %v559, 0.0
        %v568 = vmax.f32 %v560, 0.0
        %v569 = vmax.f32 %v561, 0.0
        %v570 = vmax.f32 %v562, 0.0
        %v571 = vmax.f32 %v563, 0.0
        %v572 = vmax.f32 %v564, 0.0
        %v573 = vmin.f32 %v565, 6.0
        %v574 = vmin.f32 %v566, 6.0
        %v575 = vmin.f32 %v567, 6.0
        %v576 = vmin.f32 %v568, 6.0
        %v577 = vmin.f32 %v569, 6.0
        %v578 = vmin.f32 %v570, 6.0
        %v579 = vmin.f32 %v571, 6.0
        %v580 = vmin.f32 %v572, 6.0
        %v581 = vmul.f32 %v573, 0.16666667
        %v582 = vmul.f32 %v574, 0.16666667
        %v583 = vmul.f32 %v575, 0.16666667
        %v584 = vmul.f32 %v576, 0.16666667
        %v585 = vmul.f32 %v577, 0.16666667
        %v586 = vmul.f32 %v578, 0.16666667
        %v587 = vmul.f32 %v579, 0.16666667
        %v588 = vmul.f32 %v580, 0.16666667
        %v589 = vmul.f32 %v549, %v581
        %v590 = vmul.f32 %v550, %v582
        %v591 = vmul.f32 %v551, %v583
        %v592 = vmul.f32 %v552, %v584
        %v593 = vmul.f32 %v553, %v585
        %v594 = vmul.f32 %v554, %v586
        %v595 = vmul.f32 %v555, %v587
        %v596 = vmul.f32 %v556, %v588
        %vm597 = vcmask 261120
        %598 = vst.msk [vmem:[#allocation2] sm:$0xff] %vm597, 0.0
        %vm599 = vcmask 257024
        %600 = vst.msk [vmem:[#allocation2 + $0x8] sm:$0xf] %vm599, 0.0
        %601 = vst.msk [vmem:[#allocation2 + $0x10] sm:$0xff] %vm597, 0.0
        %602 = vst.msk [vmem:[#allocation2 + $0x18] sm:$0xf] %vm599, 0.0
        %603 = vst.msk [vmem:[#allocation2 + $0x20] sm:$0xff] %vm597, 0.0
        %604 = vst.msk [vmem:[#allocation2 + $0x28] sm:$0xf] %vm599, 0.0
        %605 = vst.msk [vmem:[#allocation2 + $0x30] sm:$0xff] %vm597, 0.0
        %606 = vst.msk [vmem:[#allocation2 + $0x38] sm:$0xf] %vm599, 0.0
        %607 = vst.msk [vmem:[#allocation2 + $0x40] sm:$0xff] %vm597, 0.0
        %608 = vst.msk [vmem:[#allocation2 + $0x48] sm:$0xf] %vm599, 0.0
        %609 = vst.msk [vmem:[#allocation2 + $0x50] sm:$0xff] %vm597, 0.0
        %610 = vst.msk [vmem:[#allocation2 + $0x58] sm:$0xf] %vm599, 0.0
        %611 = vst.msk [vmem:[#allocation2 + $0x60] sm:$0xff] %vm597, 0.0
        %612 = vst.msk [vmem:[#allocation2 + $0x68] sm:$0xf] %vm599, 0.0
        %613 = vst.msk [vmem:[#allocation2 + $0x70] sm:$0xff] %vm597, 0.0
        %614 = vst.msk [vmem:[#allocation2 + $0x78] sm:$0xf] %vm599, 0.0
        %615 = vst.msk [vmem:[#allocation2 + $0x80] sm:$0xff] %vm597, 0.0
        %616 = vst.msk [vmem:[#allocation2 + $0x88] sm:$0xf] %vm599, 0.0
        %617 = vst.msk [vmem:[#allocation2 + $0x90] sm:$0xff] %vm597, 0.0
        %618 = vst.msk [vmem:[#allocation2 + $0x98] sm:$0xf] %vm599, 0.0
        %619 = vst.msk [vmem:[#allocation2 + $0xa0] sm:$0xff] %vm597, 0.0
        %620 = vst.msk [vmem:[#allocation2 + $0xa8] sm:$0xf] %vm599, 0.0
        %621 = vst.msk [vmem:[#allocation2 + $0xb0] sm:$0xff] %vm597, 0.0
        %622 = vst.msk [vmem:[#allocation2 + $0xb8] sm:$0xf] %vm599, 0.0
        %s623 = scalar_lea.vmem [#allocation2], 32
        %624 = vst.msk [vmem:[%s623 + $0x2] sm:$0xff] %vm597, %v589
        %625 = vst.msk [vmem:[%s623 + $0x12] sm:$0xff] %vm597, %v590
        %626 = vst.msk [vmem:[%s623 + $0x22] sm:$0xff] %vm597, %v591
        %627 = vst.msk [vmem:[%s623 + $0x32] sm:$0xff] %vm597, %v592
        %628 = vst.msk [vmem:[%s623 + $0x42] sm:$0xff] %vm597, %v593
        %629 = vst.msk [vmem:[%s623 + $0x52] sm:$0xff] %vm597, %v594
        %630 = vst.msk [vmem:[%s623 + $0x62] sm:$0xff] %vm597, %v595
        %631 = vst.msk [vmem:[%s623 + $0x72] sm:$0xff] %vm597, %v596
        %v632 = vld [vmem:[%s4] sm:$0xff]
        %v633 = vld [vmem:[%s4 + $0x8] sm:$0xff]
        %v634 = vld [vmem:[%s4 + $0x10] sm:$0xff]
        %v635 = vld [vmem:[%s4 + $0x18] sm:$0x1]
        %v636 = vld [vmem:[#allocation2] sm:$0xff]
        %v637 = vld [vmem:[#allocation2 + $0x10] sm:$0xff]
        %v638 = vld [vmem:[#allocation2 + $0x20] sm:$0xff]
        %v639 = vld [vmem:[#allocation2 + $0x30] sm:$0xff]
        %v640 = vld [vmem:[#allocation2 + $0x40] sm:$0xff]
        %v641 = vld [vmem:[#allocation2 + $0x50] sm:$0xff]
        %v642 = vld [vmem:[#allocation2 + $0x60] sm:$0xff]
        %v643 = vld [vmem:[#allocation2 + $0x70] sm:$0xff]
        %v644 = vlaneseq
        %v645 = vshrl.u32 %v644, 7
        %v646 = vsub.s32 0, %v645
        %v647 = vrot.slane %v632, %v646
        %v648 = vmul.f32 %v636, %v647
        %v649 = vmul.f32 %v637, %v647
        %v650 = vmul.f32 %v638, %v647
        %v651 = vmul.f32 %v639, %v647
        %v652 = vmul.f32 %v640, %v647
        %v653 = vmul.f32 %v641, %v647
        %v654 = vmul.f32 %v642, %v647
        %v655 = vmul.f32 %v643, %v647
        %v656 = vadd.f32 %v648, 0.0
        %v657 = vadd.f32 %v649, 0.0
        %v658 = vadd.f32 %v650, 0.0
        %v659 = vadd.f32 %v651, 0.0
        %v660 = vadd.f32 %v652, 0.0
        %v661 = vadd.f32 %v653, 0.0
        %v662 = vadd.f32 %v654, 0.0
        %v663 = vadd.f32 %v655, 0.0
        %v664 = vld [vmem:[#allocation2 + $0x1] sm:$0xff]
        %v665 = vld [vmem:[#allocation2 + $0x11] sm:$0xff]
        %v666 = vld [vmem:[#allocation2 + $0x21] sm:$0xff]
        %v667 = vld [vmem:[#allocation2 + $0x31] sm:$0xff]
        %v668 = vld [vmem:[#allocation2 + $0x41] sm:$0xff]
        %v669 = vld [vmem:[#allocation2 + $0x51] sm:$0xff]
        %v670 = vld [vmem:[#allocation2 + $0x61] sm:$0xff]
        %v671 = vld [vmem:[#allocation2 + $0x71] sm:$0xff]
        %v672 = vlaneseq
        %v673 = vshrl.u32 %v672, 7
        %v674 = vsub.s32 1, %v673
        %v675 = vrot.slane %v632, %v674
        %v676 = vmul.f32 %v664, %v675
        %v677 = vmul.f32 %v665, %v675
        %v678 = vmul.f32 %v666, %v675
        %v679 = vmul.f32 %v667, %v675
        %v680 = vmul.f32 %v668, %v675
        %v681 = vmul.f32 %v669, %v675
        %v682 = vmul.f32 %v670, %v675
        %v683 = vmul.f32 %v671, %v675
        %v684 = vadd.f32 %v656, %v676
        %v685 = vadd.f32 %v657, %v677
        %v686 = vadd.f32 %v658, %v678
        %v687 = vadd.f32 %v659, %v679
        %v688 = vadd.f32 %v660, %v680
        %v689 = vadd.f32 %v661, %v681
        %v690 = vadd.f32 %v662, %v682
        %v691 = vadd.f32 %v663, %v683
        %v692 = vld [vmem:[#allocation2 + $0x2] sm:$0xff]
        %v693 = vld [vmem:[#allocation2 + $0x12] sm:$0xff]
        %v694 = vld [vmem:[#allocation2 + $0x22] sm:$0xff]
        %v695 = vld [vmem:[#allocation2 + $0x32] sm:$0xff]
        %v696 = vld [vmem:[#allocation2 + $0x42] sm:$0xff]
        %v697 = vld [vmem:[#allocation2 + $0x52] sm:$0xff]
        %v698 = vld [vmem:[#allocation2 + $0x62] sm:$0xff]
        %v699 = vld [vmem:[#allocation2 + $0x72] sm:$0xff]
        %v700 = vlaneseq
        %v701 = vshrl.u32 %v700, 7
        %v702 = vsub.s32 2, %v701
        %v703 = vrot.slane %v632, %v702
        %v704 = vmul.f32 %v692, %v703
        %v705 = vmul.f32 %v693, %v703
        %v706 = vmul.f32 %v694, %v703
        %v707 = vmul.f32 %v695, %v703
        %v708 = vmul.f32 %v696, %v703
        %v709 = vmul.f32 %v697, %v703
        %v710 = vmul.f32 %v698, %v703
        %v711 = vmul.f32 %v699, %v703
        %v712 = vadd.f32 %v684, %v704
        %v713 = vadd.f32 %v685, %v705
        %v714 = vadd.f32 %v686, %v706
        %v715 = vadd.f32 %v687, %v707
        %v716 = vadd.f32 %v688, %v708
        %v717 = vadd.f32 %v689, %v709
        %v718 = vadd.f32 %v690, %v710
        %v719 = vadd.f32 %v691, %v711
        %v720 = vld [vmem:[#allocation2 + $0x3] sm:$0xff]
        %v721 = vld [vmem:[#allocation2 + $0x13] sm:$0xff]
        %v722 = vld [vmem:[#allocation2 + $0x23] sm:$0xff]
        %v723 = vld [vmem:[#allocation2 + $0x33] sm:$0xff]
        %v724 = vld [vmem:[#allocation2 + $0x43] sm:$0xff]
        %v725 = vld [vmem:[#allocation2 + $0x53] sm:$0xff]
        %v726 = vld [vmem:[#allocation2 + $0x63] sm:$0xff]
        %v727 = vld [vmem:[#allocation2 + $0x73] sm:$0xff]
        %v728 = vlaneseq
        %v729 = vshrl.u32 %v728, 7
        %v730 = vsub.s32 3, %v729
        %v731 = vrot.slane %v632, %v730
        %v732 = vmul.f32 %v720, %v731
        %v733 = vmul.f32 %v721, %v731
        %v734 = vmul.f32 %v722, %v731
        %v735 = vmul.f32 %v723, %v731
        %v736 = vmul.f32 %v724, %v731
        %v737 = vmul.f32 %v725, %v731
        %v738 = vmul.f32 %v726, %v731
        %v739 = vmul.f32 %v727, %v731
        %v740 = vadd.f32 %v712, %v732
        %v741 = vadd.f32 %v713, %v733
        %v742 = vadd.f32 %v714, %v734
        %v743 = vadd.f32 %v715, %v735
        %v744 = vadd.f32 %v716, %v736
        %v745 = vadd.f32 %v717, %v737
        %v746 = vadd.f32 %v718, %v738
        %v747 = vadd.f32 %v719, %v739
        %v748 = vld [vmem:[#allocation2 + $0x4] sm:$0xff]
        %v749 = vld [vmem:[#allocation2 + $0x14] sm:$0xff]
        %v750 = vld [vmem:[#allocation2 + $0x24] sm:$0xff]
        %v751 = vld [vmem:[#allocation2 + $0x34] sm:$0xff]
        %v752 = vld [vmem:[#allocation2 + $0x44] sm:$0xff]
        %v753 = vld [vmem:[#allocation2 + $0x54] sm:$0xff]
        %v754 = vld [vmem:[#allocation2 + $0x64] sm:$0xff]
        %v755 = vld [vmem:[#allocation2 + $0x74] sm:$0xff]
        %v756 = vlaneseq
        %v757 = vshrl.u32 %v756, 7
        %v758 = vsub.s32 4, %v757
        %v759 = vrot.slane %v632, %v758
        %v760 = vmul.f32 %v748, %v759
        %v761 = vmul.f32 %v749, %v759
        %v762 = vmul.f32 %v750, %v759
        %v763 = vmul.f32 %v751, %v759
        %v764 = vmul.f32 %v752, %v759
        %v765 = vmul.f32 %v753, %v759
        %v766 = vmul.f32 %v754, %v759
        %v767 = vmul.f32 %v755, %v759
        %v768 = vadd.f32 %v740, %v760
        %v769 = vadd.f32 %v741, %v761
        %v770 = vadd.f32 %v742, %v762
        %v771 = vadd.f32 %v743, %v763
        %v772 = vadd.f32 %v744, %v764
        %v773 = vadd.f32 %v745, %v765
        %v774 = vadd.f32 %v746, %v766
        %v775 = vadd.f32 %v747, %v767
        %s776 = scalar_lea.vmem [#allocation2], 16
        %v777 = vld [vmem:[%s776] sm:$0xff]
        %v778 = vld [vmem:[%s776 + $0x10] sm:$0xff]
        %v779 = vld [vmem:[%s776 + $0x20] sm:$0xff]
        %v780 = vld [vmem:[%s776 + $0x30] sm:$0xff]
        %v781 = vld [vmem:[%s776 + $0x40] sm:$0xff]
        %v782 = vld [vmem:[%s776 + $0x50] sm:$0xff]
        %v783 = vld [vmem:[%s776 + $0x60] sm:$0xff]
        %v784 = vld [vmem:[%s776 + $0x70] sm:$0xff]
        %v785 = vlaneseq
        %v786 = vshrl.u32 %v785, 7
        %v787 = vsub.s32 5, %v786
        %v788 = vrot.slane %v632, %v787
        %v789 = vmul.f32 %v777, %v788
        %v790 = vmul.f32 %v778, %v788
        %v791 = vmul.f32 %v779, %v788
        %v792 = vmul.f32 %v780, %v788
        %v793 = vmul.f32 %v781, %v788
        %v794 = vmul.f32 %v782, %v788
        %v795 = vmul.f32 %v783, %v788
        %v796 = vmul.f32 %v784, %v788
        %v797 = vadd.f32 %v768, %v789
        %v798 = vadd.f32 %v769, %v790
        %v799 = vadd.f32 %v770, %v791
        %v800 = vadd.f32 %v771, %v792
        %v801 = vadd.f32 %v772, %v793
        %v802 = vadd.f32 %v773, %v794
        %v803 = vadd.f32 %v774, %v795
        %v804 = vadd.f32 %v775, %v796
        %v805 = vld [vmem:[%s776 + $0x1] sm:$0xff]
        %v806 = vld [vmem:[%s776 + $0x11] sm:$0xff]
        %v807 = vld [vmem:[%s776 + $0x21] sm:$0xff]
        %v808 = vld [vmem:[%s776 + $0x31] sm:$0xff]
        %v809 = vld [vmem:[%s776 + $0x41] sm:$0xff]
        %v810 = vld [vmem:[%s776 + $0x51] sm:$0xff]
        %v811 = vld [vmem:[%s776 + $0x61] sm:$0xff]
        %v812 = vld [vmem:[%s776 + $0x71] sm:$0xff]
        %v813 = vlaneseq
        %v814 = vshrl.u32 %v813, 7
        %v815 = vsub.s32 6, %v814
        %v816 = vrot.slane %v632, %v815
        %v817 = vmul.f32 %v805, %v816
        %v818 = vmul.f32 %v806, %v816
        %v819 = vmul.f32 %v807, %v816
        %v820 = vmul.f32 %v808, %v816
        %v821 = vmul.f32 %v809, %v816
        %v822 = vmul.f32 %v810, %v816
        %v823 = vmul.f32 %v811, %v816
        %v824 = vmul.f32 %v812, %v816
        %v825 = vadd.f32 %v797, %v817
        %v826 = vadd.f32 %v798, %v818
        %v827 = vadd.f32 %v799, %v819
        %v828 = vadd.f32 %v800, %v820
        %v829 = vadd.f32 %v801, %v821
        %v830 = vadd.f32 %v802, %v822
        %v831 = vadd.f32 %v803, %v823
        %v832 = vadd.f32 %v804, %v824
        %v833 = vld [vmem:[%s776 + $0x2] sm:$0xff]
        %v834 = vld [vmem:[%s776 + $0x12] sm:$0xff]
        %v835 = vld [vmem:[%s776 + $0x22] sm:$0xff]
        %v836 = vld [vmem:[%s776 + $0x32] sm:$0xff]
        %v837 = vld [vmem:[%s776 + $0x42] sm:$0xff]
        %v838 = vld [vmem:[%s776 + $0x52] sm:$0xff]
        %v839 = vld [vmem:[%s776 + $0x62] sm:$0xff]
        %v840 = vld [vmem:[%s776 + $0x72] sm:$0xff]
        %v841 = vlaneseq
        %v842 = vshrl.u32 %v841, 7
        %v843 = vsub.s32 7, %v842
        %v844 = vrot.slane %v632, %v843
        %v845 = vmul.f32 %v833, %v844
        %v846 = vmul.f32 %v834, %v844
        %v847 = vmul.f32 %v835, %v844
        %v848 = vmul.f32 %v836, %v844
        %v849 = vmul.f32 %v837, %v844
        %v850 = vmul.f32 %v838, %v844
        %v851 = vmul.f32 %v839, %v844
        %v852 = vmul.f32 %v840, %v844
        %v853 = vadd.f32 %v825, %v845
        %v854 = vadd.f32 %v826, %v846
        %v855 = vadd.f32 %v827, %v847
        %v856 = vadd.f32 %v828, %v848
        %v857 = vadd.f32 %v829, %v849
        %v858 = vadd.f32 %v830, %v850
        %v859 = vadd.f32 %v831, %v851
        %v860 = vadd.f32 %v832, %v852
        %v861 = vld [vmem:[%s776 + $0x3] sm:$0xff]
        %v862 = vld [vmem:[%s776 + $0x13] sm:$0xff]
        %v863 = vld [vmem:[%s776 + $0x23] sm:$0xff]
        %v864 = vld [vmem:[%s776 + $0x33] sm:$0xff]
        %v865 = vld [vmem:[%s776 + $0x43] sm:$0xff]
        %v866 = vld [vmem:[%s776 + $0x53] sm:$0xff]
        %v867 = vld [vmem:[%s776 + $0x63] sm:$0xff]
        %v868 = vld [vmem:[%s776 + $0x73] sm:$0xff]
        %v869 = vlaneseq
        %v870 = vshrl.u32 %v869, 7
        %v871 = vsub.s32 0, %v870
        %v872 = vrot.slane %v633, %v871
        %v873 = vmul.f32 %v861, %v872
        %v874 = vmul.f32 %v862, %v872
        %v875 = vmul.f32 %v863, %v872
        %v876 = vmul.f32 %v864, %v872
        %v877 = vmul.f32 %v865, %v872
        %v878 = vmul.f32 %v866, %v872
        %v879 = vmul.f32 %v867, %v872
        %v880 = vmul.f32 %v868, %v872
        %v881 = vadd.f32 %v853, %v873
        %v882 = vadd.f32 %v854, %v874
        %v883 = vadd.f32 %v855, %v875
        %v884 = vadd.f32 %v856, %v876
        %v885 = vadd.f32 %v857, %v877
        %v886 = vadd.f32 %v858, %v878
        %v887 = vadd.f32 %v859, %v879
        %v888 = vadd.f32 %v860, %v880
        %v889 = vld [vmem:[%s776 + $0x4] sm:$0xff]
        %v890 = vld [vmem:[%s776 + $0x14] sm:$0xff]
        %v891 = vld [vmem:[%s776 + $0x24] sm:$0xff]
        %v892 = vld [vmem:[%s776 + $0x34] sm:$0xff]
        %v893 = vld [vmem:[%s776 + $0x44] sm:$0xff]
        %v894 = vld [vmem:[%s776 + $0x54] sm:$0xff]
        %v895 = vld [vmem:[%s776 + $0x64] sm:$0xff]
        %v896 = vld [vmem:[%s776 + $0x74] sm:$0xff]
        %v897 = vlaneseq
        %v898 = vshrl.u32 %v897, 7
        %v899 = vsub.s32 1, %v898
        %v900 = vrot.slane %v633, %v899
        %v901 = vmul.f32 %v889, %v900
        %v902 = vmul.f32 %v890, %v900
        %v903 = vmul.f32 %v891, %v900
        %v904 = vmul.f32 %v892, %v900
        %v905 = vmul.f32 %v893, %v900
        %v906 = vmul.f32 %v894, %v900
        %v907 = vmul.f32 %v895, %v900
        %v908 = vmul.f32 %v896, %v900
        %v909 = vadd.f32 %v881, %v901
        %v910 = vadd.f32 %v882, %v902
        %v911 = vadd.f32 %v883, %v903
        %v912 = vadd.f32 %v884, %v904
        %v913 = vadd.f32 %v885, %v905
        %v914 = vadd.f32 %v886, %v906
        %v915 = vadd.f32 %v887, %v907
        %v916 = vadd.f32 %v888, %v908
        %v917 = vld [vmem:[%s623] sm:$0xff]
        %v918 = vld [vmem:[%s623 + $0x10] sm:$0xff]
        %v919 = vld [vmem:[%s623 + $0x20] sm:$0xff]
        %v920 = vld [vmem:[%s623 + $0x30] sm:$0xff]
        %v921 = vld [vmem:[%s623 + $0x40] sm:$0xff]
        %v922 = vld [vmem:[%s623 + $0x50] sm:$0xff]
        %v923 = vld [vmem:[%s623 + $0x60] sm:$0xff]
        %v924 = vld [vmem:[%s623 + $0x70] sm:$0xff]
        %v925 = vlaneseq
        %v926 = vshrl.u32 %v925, 7
        %v927 = vsub.s32 2, %v926
        %v928 = vrot.slane %v633, %v927
        %v929 = vmul.f32 %v917, %v928
        %v930 = vmul.f32 %v918, %v928
        %v931 = vmul.f32 %v919, %v928
        %v932 = vmul.f32 %v920, %v928
        %v933 = vmul.f32 %v921, %v928
        %v934 = vmul.f32 %v922, %v928
        %v935 = vmul.f32 %v923, %v928
        %v936 = vmul.f32 %v924, %v928
        %v937 = vadd.f32 %v909, %v929
        %v938 = vadd.f32 %v910, %v930
        %v939 = vadd.f32 %v911, %v931
        %v940 = vadd.f32 %v912, %v932
        %v941 = vadd.f32 %v913, %v933
        %v942 = vadd.f32 %v914, %v934
        %v943 = vadd.f32 %v915, %v935
        %v944 = vadd.f32 %v916, %v936
        %v945 = vld [vmem:[%s623 + $0x1] sm:$0xff]
        %v946 = vld [vmem:[%s623 + $0x11] sm:$0xff]
        %v947 = vld [vmem:[%s623 + $0x21] sm:$0xff]
        %v948 = vld [vmem:[%s623 + $0x31] sm:$0xff]
        %v949 = vld [vmem:[%s623 + $0x41] sm:$0xff]
        %v950 = vld [vmem:[%s623 + $0x51] sm:$0xff]
        %v951 = vld [vmem:[%s623 + $0x61] sm:$0xff]
        %v952 = vld [vmem:[%s623 + $0x71] sm:$0xff]
        %v953 = vlaneseq
        %v954 = vshrl.u32 %v953, 7
        %v955 = vsub.s32 3, %v954
        %v956 = vrot.slane %v633, %v955
        %v957 = vmul.f32 %v945, %v956
        %v958 = vmul.f32 %v946, %v956
        %v959 = vmul.f32 %v947, %v956
        %v960 = vmul.f32 %v948, %v956
        %v961 = vmul.f32 %v949, %v956
        %v962 = vmul.f32 %v950, %v956
        %v963 = vmul.f32 %v951, %v956
        %v964 = vmul.f32 %v952, %v956
        %v965 = vadd.f32 %v937, %v957
        %v966 = vadd.f32 %v938, %v958
        %v967 = vadd.f32 %v939, %v959
        %v968 = vadd.f32 %v940, %v960
        %v969 = vadd.f32 %v941, %v961
        %v970 = vadd.f32 %v942, %v962
        %v971 = vadd.f32 %v943, %v963
        %v972 = vadd.f32 %v944, %v964
        %v973 = vld [vmem:[%s623 + $0x2] sm:$0xff]
        %v974 = vld [vmem:[%s623 + $0x12] sm:$0xff]
        %v975 = vld [vmem:[%s623 + $0x22] sm:$0xff]
        %v976 = vld [vmem:[%s623 + $0x32] sm:$0xff]
        %v977 = vld [vmem:[%s623 + $0x42] sm:$0xff]
        %v978 = vld [vmem:[%s623 + $0x52] sm:$0xff]
        %v979 = vld [vmem:[%s623 + $0x62] sm:$0xff]
        %v980 = vld [vmem:[%s623 + $0x72] sm:$0xff]
        %v981 = vlaneseq
        %v982 = vshrl.u32 %v981, 7
        %v983 = vsub.s32 4, %v982
        %v984 = vrot.slane %v633, %v983
        %v985 = vmul.f32 %v973, %v984
        %v986 = vmul.f32 %v974, %v984
        %v987 = vmul.f32 %v975, %v984
        %v988 = vmul.f32 %v976, %v984
        %v989 = vmul.f32 %v977, %v984
        %v990 = vmul.f32 %v978, %v984
        %v991 = vmul.f32 %v979, %v984
        %v992 = vmul.f32 %v980, %v984
        %v993 = vadd.f32 %v965, %v985
        %v994 = vadd.f32 %v966, %v986
        %v995 = vadd.f32 %v967, %v987
        %v996 = vadd.f32 %v968, %v988
        %v997 = vadd.f32 %v969, %v989
        %v998 = vadd.f32 %v970, %v990
        %v999 = vadd.f32 %v971, %v991
        %v1000 = vadd.f32 %v972, %v992
        %v1001 = vld [vmem:[%s623 + $0x3] sm:$0xff]
        %v1002 = vld [vmem:[%s623 + $0x13] sm:$0xff]
        %v1003 = vld [vmem:[%s623 + $0x23] sm:$0xff]
        %v1004 = vld [vmem:[%s623 + $0x33] sm:$0xff]
        %v1005 = vld [vmem:[%s623 + $0x43] sm:$0xff]
        %v1006 = vld [vmem:[%s623 + $0x53] sm:$0xff]
        %v1007 = vld [vmem:[%s623 + $0x63] sm:$0xff]
        %v1008 = vld [vmem:[%s623 + $0x73] sm:$0xff]
        %v1009 = vlaneseq
        %v1010 = vshrl.u32 %v1009, 7
        %v1011 = vsub.s32 5, %v1010
        %v1012 = vrot.slane %v633, %v1011
        %v1013 = vmul.f32 %v1001, %v1012
        %v1014 = vmul.f32 %v1002, %v1012
        %v1015 = vmul.f32 %v1003, %v1012
        %v1016 = vmul.f32 %v1004, %v1012
        %v1017 = vmul.f32 %v1005, %v1012
        %v1018 = vmul.f32 %v1006, %v1012
        %v1019 = vmul.f32 %v1007, %v1012
        %v1020 = vmul.f32 %v1008, %v1012
        %v1021 = vadd.f32 %v993, %v1013
        %v1022 = vadd.f32 %v994, %v1014
        %v1023 = vadd.f32 %v995, %v1015
        %v1024 = vadd.f32 %v996, %v1016
        %v1025 = vadd.f32 %v997, %v1017
        %v1026 = vadd.f32 %v998, %v1018
        %v1027 = vadd.f32 %v999, %v1019
        %v1028 = vadd.f32 %v1000, %v1020
        %v1029 = vld [vmem:[%s623 + $0x4] sm:$0xff]
        %v1030 = vld [vmem:[%s623 + $0x14] sm:$0xff]
        %v1031 = vld [vmem:[%s623 + $0x24] sm:$0xff]
        %v1032 = vld [vmem:[%s623 + $0x34] sm:$0xff]
        %v1033 = vld [vmem:[%s623 + $0x44] sm:$0xff]
        %v1034 = vld [vmem:[%s623 + $0x54] sm:$0xff]
        %v1035 = vld [vmem:[%s623 + $0x64] sm:$0xff]
        %v1036 = vld [vmem:[%s623 + $0x74] sm:$0xff]
        %v1037 = vlaneseq
        %v1038 = vshrl.u32 %v1037, 7
        %v1039 = vsub.s32 6, %v1038
        %v1040 = vrot.slane %v633, %v1039
        %v1041 = vmul.f32 %v1029, %v1040
        %v1042 = vmul.f32 %v1030, %v1040
        %v1043 = vmul.f32 %v1031, %v1040
        %v1044 = vmul.f32 %v1032, %v1040
        %v1045 = vmul.f32 %v1033, %v1040
        %v1046 = vmul.f32 %v1034, %v1040
        %v1047 = vmul.f32 %v1035, %v1040
        %v1048 = vmul.f32 %v1036, %v1040
        %v1049 = vadd.f32 %v1021, %v1041
        %v1050 = vadd.f32 %v1022, %v1042
        %v1051 = vadd.f32 %v1023, %v1043
        %v1052 = vadd.f32 %v1024, %v1044
        %v1053 = vadd.f32 %v1025, %v1045
        %v1054 = vadd.f32 %v1026, %v1046
        %v1055 = vadd.f32 %v1027, %v1047
        %v1056 = vadd.f32 %v1028, %v1048
        %s1057 = scalar_lea.vmem [#allocation2], 48
        %v1058 = vld [vmem:[%s1057] sm:$0xff]
        %v1059 = vld [vmem:[%s1057 + $0x10] sm:$0xff]
        %v1060 = vld [vmem:[%s1057 + $0x20] sm:$0xff]
        %v1061 = vld [vmem:[%s1057 + $0x30] sm:$0xff]
        %v1062 = vld [vmem:[%s1057 + $0x40] sm:$0xff]
        %v1063 = vld [vmem:[%s1057 + $0x50] sm:$0xff]
        %v1064 = vld [vmem:[%s1057 + $0x60] sm:$0xff]
        %v1065 = vld [vmem:[%s1057 + $0x70] sm:$0xff]
        %v1066 = vlaneseq
        %v1067 = vshrl.u32 %v1066, 7
        %v1068 = vsub.s32 7, %v1067
        %v1069 = vrot.slane %v633, %v1068
        %v1070 = vmul.f32 %v1058, %v1069
        %v1071 = vmul.f32 %v1059, %v1069
        %v1072 = vmul.f32 %v1060, %v1069
        %v1073 = vmul.f32 %v1061, %v1069
        %v1074 = vmul.f32 %v1062, %v1069
        %v1075 = vmul.f32 %v1063, %v1069
        %v1076 = vmul.f32 %v1064, %v1069
        %v1077 = vmul.f32 %v1065, %v1069
        %v1078 = vadd.f32 %v1049, %v1070
        %v1079 = vadd.f32 %v1050, %v1071
        %v1080 = vadd.f32 %v1051, %v1072
        %v1081 = vadd.f32 %v1052, %v1073
        %v1082 = vadd.f32 %v1053, %v1074
        %v1083 = vadd.f32 %v1054, %v1075
        %v1084 = vadd.f32 %v1055, %v1076
        %v1085 = vadd.f32 %v1056, %v1077
        %v1086 = vld [vmem:[%s1057 + $0x1] sm:$0xff]
        %v1087 = vld [vmem:[%s1057 + $0x11] sm:$0xff]
        %v1088 = vld [vmem:[%s1057 + $0x21] sm:$0xff]
        %v1089 = vld [vmem:[%s1057 + $0x31] sm:$0xff]
        %v1090 = vld [vmem:[%s1057 + $0x41] sm:$0xff]
        %v1091 = vld [vmem:[%s1057 + $0x51] sm:$0xff]
        %v1092 = vld [vmem:[%s1057 + $0x61] sm:$0xff]
        %v1093 = vld [vmem:[%s1057 + $0x71] sm:$0xff]
        %v1094 = vlaneseq
        %v1095 = vshrl.u32 %v1094, 7
        %v1096 = vsub.s32 0, %v1095
        %v1097 = vrot.slane %v634, %v1096
        %v1098 = vmul.f32 %v1086, %v1097
        %v1099 = vmul.f32 %v1087, %v1097
        %v1100 = vmul.f32 %v1088, %v1097
        %v1101 = vmul.f32 %v1089, %v1097
        %v1102 = vmul.f32 %v1090, %v1097
        %v1103 = vmul.f32 %v1091, %v1097
        %v1104 = vmul.f32 %v1092, %v1097
        %v1105 = vmul.f32 %v1093, %v1097
        %v1106 = vadd.f32 %v1078, %v1098
        %v1107 = vadd.f32 %v1079, %v1099
        %v1108 = vadd.f32 %v1080, %v1100
        %v1109 = vadd.f32 %v1081, %v1101
        %v1110 = vadd.f32 %v1082, %v1102
        %v1111 = vadd.f32 %v1083, %v1103
        %v1112 = vadd.f32 %v1084, %v1104
        %v1113 = vadd.f32 %v1085, %v1105
        %v1114 = vld [vmem:[%s1057 + $0x2] sm:$0xff]
        %v1115 = vld [vmem:[%s1057 + $0x12] sm:$0xff]
        %v1116 = vld [vmem:[%s1057 + $0x22] sm:$0xff]
        %v1117 = vld [vmem:[%s1057 + $0x32] sm:$0xff]
        %v1118 = vld [vmem:[%s1057 + $0x42] sm:$0xff]
        %v1119 = vld [vmem:[%s1057 + $0x52] sm:$0xff]
        %v1120 = vld [vmem:[%s1057 + $0x62] sm:$0xff]
        %v1121 = vld [vmem:[%s1057 + $0x72] sm:$0xff]
        %v1122 = vlaneseq
        %v1123 = vshrl.u32 %v1122, 7
        %v1124 = vsub.s32 1, %v1123
        %v1125 = vrot.slane %v634, %v1124
        %v1126 = vmul.f32 %v1114, %v1125
        %v1127 = vmul.f32 %v1115, %v1125
        %v1128 = vmul.f32 %v1116, %v1125
        %v1129 = vmul.f32 %v1117, %v1125
        %v1130 = vmul.f32 %v1118, %v1125
        %v1131 = vmul.f32 %v1119, %v1125
        %v1132 = vmul.f32 %v1120, %v1125
        %v1133 = vmul.f32 %v1121, %v1125
        %v1134 = vadd.f32 %v1106, %v1126
        %v1135 = vadd.f32 %v1107, %v1127
        %v1136 = vadd.f32 %v1108, %v1128
        %v1137 = vadd.f32 %v1109, %v1129
        %v1138 = vadd.f32 %v1110, %v1130
        %v1139 = vadd.f32 %v1111, %v1131
        %v1140 = vadd.f32 %v1112, %v1132
        %v1141 = vadd.f32 %v1113, %v1133
        %v1142 = vld [vmem:[%s1057 + $0x3] sm:$0xff]
        %v1143 = vld [vmem:[%s1057 + $0x13] sm:$0xff]
        %v1144 = vld [vmem:[%s1057 + $0x23] sm:$0xff]
        %v1145 = vld [vmem:[%s1057 + $0x33] sm:$0xff]
        %v1146 = vld [vmem:[%s1057 + $0x43] sm:$0xff]
        %v1147 = vld [vmem:[%s1057 + $0x53] sm:$0xff]
        %v1148 = vld [vmem:[%s1057 + $0x63] sm:$0xff]
        %v1149 = vld [vmem:[%s1057 + $0x73] sm:$0xff]
        %v1150 = vlaneseq
        %v1151 = vshrl.u32 %v1150, 7
        %v1152 = vsub.s32 2, %v1151
        %v1153 = vrot.slane %v634, %v1152
        %v1154 = vmul.f32 %v1142, %v1153
        %v1155 = vmul.f32 %v1143, %v1153
        %v1156 = vmul.f32 %v1144, %v1153
        %v1157 = vmul.f32 %v1145, %v1153
        %v1158 = vmul.f32 %v1146, %v1153
        %v1159 = vmul.f32 %v1147, %v1153
        %v1160 = vmul.f32 %v1148, %v1153
        %v1161 = vmul.f32 %v1149, %v1153
        %v1162 = vadd.f32 %v1134, %v1154
        %v1163 = vadd.f32 %v1135, %v1155
        %v1164 = vadd.f32 %v1136, %v1156
        %v1165 = vadd.f32 %v1137, %v1157
        %v1166 = vadd.f32 %v1138, %v1158
        %v1167 = vadd.f32 %v1139, %v1159
        %v1168 = vadd.f32 %v1140, %v1160
        %v1169 = vadd.f32 %v1141, %v1161
        %v1170 = vld [vmem:[%s1057 + $0x4] sm:$0xff]
        %v1171 = vld [vmem:[%s1057 + $0x14] sm:$0xff]
        %v1172 = vld [vmem:[%s1057 + $0x24] sm:$0xff]
        %v1173 = vld [vmem:[%s1057 + $0x34] sm:$0xff]
        %v1174 = vld [vmem:[%s1057 + $0x44] sm:$0xff]
        %v1175 = vld [vmem:[%s1057 + $0x54] sm:$0xff]
        %v1176 = vld [vmem:[%s1057 + $0x64] sm:$0xff]
        %v1177 = vld [vmem:[%s1057 + $0x74] sm:$0xff]
        %v1178 = vlaneseq
        %v1179 = vshrl.u32 %v1178, 7
        %v1180 = vsub.s32 3, %v1179
        %v1181 = vrot.slane %v634, %v1180
        %v1182 = vmul.f32 %v1170, %v1181
        %v1183 = vmul.f32 %v1171, %v1181
        %v1184 = vmul.f32 %v1172, %v1181
        %v1185 = vmul.f32 %v1173, %v1181
        %v1186 = vmul.f32 %v1174, %v1181
        %v1187 = vmul.f32 %v1175, %v1181
        %v1188 = vmul.f32 %v1176, %v1181
        %v1189 = vmul.f32 %v1177, %v1181
        %v1190 = vadd.f32 %v1162, %v1182
        %v1191 = vadd.f32 %v1163, %v1183
        %v1192 = vadd.f32 %v1164, %v1184
        %v1193 = vadd.f32 %v1165, %v1185
        %v1194 = vadd.f32 %v1166, %v1186
        %v1195 = vadd.f32 %v1167, %v1187
        %v1196 = vadd.f32 %v1168, %v1188
        %v1197 = vadd.f32 %v1169, %v1189
        %s1198 = scalar_lea.vmem [#allocation2], 64
        %v1199 = vld [vmem:[%s1198] sm:$0xff]
        %v1200 = vld [vmem:[%s1198 + $0x10] sm:$0xff]
        %v1201 = vld [vmem:[%s1198 + $0x20] sm:$0xff]
        %v1202 = vld [vmem:[%s1198 + $0x30] sm:$0xff]
        %v1203 = vld [vmem:[%s1198 + $0x40] sm:$0xff]
        %v1204 = vld [vmem:[%s1198 + $0x50] sm:$0xff]
        %v1205 = vld [vmem:[%s1198 + $0x60] sm:$0xff]
        %v1206 = vld [vmem:[%s1198 + $0x70] sm:$0xff]
        %v1207 = vlaneseq
        %v1208 = vshrl.u32 %v1207, 7
        %v1209 = vsub.s32 4, %v1208
        %v1210 = vrot.slane %v634, %v1209
        %v1211 = vmul.f32 %v1199, %v1210
        %v1212 = vmul.f32 %v1200, %v1210
        %v1213 = vmul.f32 %v1201, %v1210
        %v1214 = vmul.f32 %v1202, %v1210
        %v1215 = vmul.f32 %v1203, %v1210
        %v1216 = vmul.f32 %v1204, %v1210
        %v1217 = vmul.f32 %v1205, %v1210
        %v1218 = vmul.f32 %v1206, %v1210
        %v1219 = vadd.f32 %v1190, %v1211
        %v1220 = vadd.f32 %v1191, %v1212
        %v1221 = vadd.f32 %v1192, %v1213
        %v1222 = vadd.f32 %v1193, %v1214
        %v1223 = vadd.f32 %v1194, %v1215
        %v1224 = vadd.f32 %v1195, %v1216
        %v1225 = vadd.f32 %v1196, %v1217
        %v1226 = vadd.f32 %v1197, %v1218
        %v1227 = vld [vmem:[%s1198 + $0x1] sm:$0xff]
        %v1228 = vld [vmem:[%s1198 + $0x11] sm:$0xff]
        %v1229 = vld [vmem:[%s1198 + $0x21] sm:$0xff]
        %v1230 = vld [vmem:[%s1198 + $0x31] sm:$0xff]
        %v1231 = vld [vmem:[%s1198 + $0x41] sm:$0xff]
        %v1232 = vld [vmem:[%s1198 + $0x51] sm:$0xff]
        %v1233 = vld [vmem:[%s1198 + $0x61] sm:$0xff]
        %v1234 = vld [vmem:[%s1198 + $0x71] sm:$0xff]
        %v1235 = vlaneseq
        %v1236 = vshrl.u32 %v1235, 7
        %v1237 = vsub.s32 5, %v1236
        %v1238 = vrot.slane %v634, %v1237
        %v1239 = vmul.f32 %v1227, %v1238
        %v1240 = vmul.f32 %v1228, %v1238
        %v1241 = vmul.f32 %v1229, %v1238
        %v1242 = vmul.f32 %v1230, %v1238
        %v1243 = vmul.f32 %v1231, %v1238
        %v1244 = vmul.f32 %v1232, %v1238
        %v1245 = vmul.f32 %v1233, %v1238
        %v1246 = vmul.f32 %v1234, %v1238
        %v1247 = vadd.f32 %v1219, %v1239
        %v1248 = vadd.f32 %v1220, %v1240
        %v1249 = vadd.f32 %v1221, %v1241
        %v1250 = vadd.f32 %v1222, %v1242
        %v1251 = vadd.f32 %v1223, %v1243
        %v1252 = vadd.f32 %v1224, %v1244
        %v1253 = vadd.f32 %v1225, %v1245
        %v1254 = vadd.f32 %v1226, %v1246
        %v1255 = vld [vmem:[%s1198 + $0x2] sm:$0xff]
        %v1256 = vld [vmem:[%s1198 + $0x12] sm:$0xff]
        %v1257 = vld [vmem:[%s1198 + $0x22] sm:$0xff]
        %v1258 = vld [vmem:[%s1198 + $0x32] sm:$0xff]
        %v1259 = vld [vmem:[%s1198 + $0x42] sm:$0xff]
        %v1260 = vld [vmem:[%s1198 + $0x52] sm:$0xff]
        %v1261 = vld [vmem:[%s1198 + $0x62] sm:$0xff]
        %v1262 = vld [vmem:[%s1198 + $0x72] sm:$0xff]
        %v1263 = vlaneseq
        %v1264 = vshrl.u32 %v1263, 7
        %v1265 = vsub.s32 6, %v1264
        %v1266 = vrot.slane %v634, %v1265
        %v1267 = vmul.f32 %v1255, %v1266
        %v1268 = vmul.f32 %v1256, %v1266
        %v1269 = vmul.f32 %v1257, %v1266
        %v1270 = vmul.f32 %v1258, %v1266
        %v1271 = vmul.f32 %v1259, %v1266
        %v1272 = vmul.f32 %v1260, %v1266
        %v1273 = vmul.f32 %v1261, %v1266
        %v1274 = vmul.f32 %v1262, %v1266
        %v1275 = vadd.f32 %v1247, %v1267
        %v1276 = vadd.f32 %v1248, %v1268
        %v1277 = vadd.f32 %v1249, %v1269
        %v1278 = vadd.f32 %v1250, %v1270
        %v1279 = vadd.f32 %v1251, %v1271
        %v1280 = vadd.f32 %v1252, %v1272
        %v1281 = vadd.f32 %v1253, %v1273
        %v1282 = vadd.f32 %v1254, %v1274
        %v1283 = vld [vmem:[%s1198 + $0x3] sm:$0xff]
        %v1284 = vld [vmem:[%s1198 + $0x13] sm:$0xff]
        %v1285 = vld [vmem:[%s1198 + $0x23] sm:$0xff]
        %v1286 = vld [vmem:[%s1198 + $0x33] sm:$0xff]
        %v1287 = vld [vmem:[%s1198 + $0x43] sm:$0xff]
        %v1288 = vld [vmem:[%s1198 + $0x53] sm:$0xff]
        %v1289 = vld [vmem:[%s1198 + $0x63] sm:$0xff]
        %v1290 = vld [vmem:[%s1198 + $0x73] sm:$0xff]
        %v1291 = vlaneseq
        %v1292 = vshrl.u32 %v1291, 7
        %v1293 = vsub.s32 7, %v1292
        %v1294 = vrot.slane %v634, %v1293
        %v1295 = vmul.f32 %v1283, %v1294
        %v1296 = vmul.f32 %v1284, %v1294
        %v1297 = vmul.f32 %v1285, %v1294
        %v1298 = vmul.f32 %v1286, %v1294
        %v1299 = vmul.f32 %v1287, %v1294
        %v1300 = vmul.f32 %v1288, %v1294
        %v1301 = vmul.f32 %v1289, %v1294
        %v1302 = vmul.f32 %v1290, %v1294
        %v1303 = vadd.f32 %v1275, %v1295
        %v1304 = vadd.f32 %v1276, %v1296
        %v1305 = vadd.f32 %v1277, %v1297
        %v1306 = vadd.f32 %v1278, %v1298
        %v1307 = vadd.f32 %v1279, %v1299
        %v1308 = vadd.f32 %v1280, %v1300
        %v1309 = vadd.f32 %v1281, %v1301
        %v1310 = vadd.f32 %v1282, %v1302
        %v1311 = vld [vmem:[%s1198 + $0x4] sm:$0xff]
        %v1312 = vld [vmem:[%s1198 + $0x14] sm:$0xff]
        %v1313 = vld [vmem:[%s1198 + $0x24] sm:$0xff]
        %v1314 = vld [vmem:[%s1198 + $0x34] sm:$0xff]
        %v1315 = vld [vmem:[%s1198 + $0x44] sm:$0xff]
        %v1316 = vld [vmem:[%s1198 + $0x54] sm:$0xff]
        %v1317 = vld [vmem:[%s1198 + $0x64] sm:$0xff]
        %v1318 = vld [vmem:[%s1198 + $0x74] sm:$0xff]
        %v1319 = vlaneseq
        %v1320 = vshrl.u32 %v1319, 7
        %v1321 = vsub.s32 0, %v1320
        %v1322 = vrot.slane %v635, %v1321
        %v1323 = vmul.f32 %v1311, %v1322
        %v1324 = vmul.f32 %v1312, %v1322
        %v1325 = vmul.f32 %v1313, %v1322
        %v1326 = vmul.f32 %v1314, %v1322
        %v1327 = vmul.f32 %v1315, %v1322
        %v1328 = vmul.f32 %v1316, %v1322
        %v1329 = vmul.f32 %v1317, %v1322
        %v1330 = vmul.f32 %v1318, %v1322
        %v1331 = vadd.f32 %v1303, %v1323
        %v1332 = vadd.f32 %v1304, %v1324
        %v1333 = vadd.f32 %v1305, %v1325
        %v1334 = vadd.f32 %v1306, %v1326
        %v1335 = vadd.f32 %v1307, %v1327
        %v1336 = vadd.f32 %v1308, %v1328
        %v1337 = vadd.f32 %v1309, %v1329
        %v1338 = vadd.f32 %v1310, %v1330
        %v1339 = vld [vmem:[%s5] sm:$0x1]
        %v1341 = vlaneseq
        %v1342 = vshrl.u32 %v1341, 7
        %v1343 = vsub.s32 0, %v1342
        %v1344 = vrot.slane %v1339, %v1343
        %v1346 = vmul.f32 %v1331, %v1344
        %v1347 = vmul.f32 %v1332, %v1344
        %v1348 = vmul.f32 %v1333, %v1344
        %v1349 = vmul.f32 %v1334, %v1344
        %v1350 = vmul.f32 %v1335, %v1344
        %v1351 = vmul.f32 %v1336, %v1344
        %v1352 = vmul.f32 %v1337, %v1344
        %v1353 = vmul.f32 %v1338, %v1344
        %v1354 = vld [vmem:[%s6] sm:$0x1]
        %v1356 = vlaneseq
        %v1357 = vshrl.u32 %v1356, 7
        %v1358 = vsub.s32 0, %v1357
        %v1359 = vrot.slane %v1354, %v1358
        %v1361 = vadd.f32 %v1346, %v1359
        %v1362 = vadd.f32 %v1347, %v1359
        %v1363 = vadd.f32 %v1348, %v1359
        %v1364 = vadd.f32 %v1349, %v1359
        %v1365 = vadd.f32 %v1350, %v1359
        %v1366 = vadd.f32 %v1351, %v1359
        %v1367 = vadd.f32 %v1352, %v1359
        %v1368 = vadd.f32 %v1353, %v1359
        %v1369 = vsel %vm597, %v1361, 0.0
        %v1370 = vsel %vm597, %v1362, 0.0
        %v1371 = vadd.f32 %v1369, %v1370
        %v1372 = vsel %vm597, %v1363, 0.0
        %v1373 = vadd.f32 %v1371, %v1372
        %v1374 = vsel %vm597, %v1364, 0.0
        %v1375 = vadd.f32 %v1373, %v1374
        %v1376 = vsel %vm597, %v1365, 0.0
        %v1377 = vadd.f32 %v1375, %v1376
        %v1378 = vsel %vm597, %v1366, 0.0
        %v1379 = vadd.f32 %v1377, %v1378
        %v1380 = vsel %vm597, %v1367, 0.0
        %v1381 = vadd.f32 %v1379, %v1380
        %v1382 = vsel %vm597, %v1368, 0.0
        %v1383 = vadd.f32 %v1381, %v1382
        %v1384 = vrot.slane %v1383, 4
        %v1385 = vadd.f32 %v1383, %v1384
        %v1386 = vrot.slane %v1385, 2
        %v1387 = vadd.f32 %v1385, %v1386
        %v1388 = vrot.slane %v1387, 1
        %v1389 = vadd.f32 %v1387, %v1388
        %v1390 = vrcp.pop 64.0
        %v1391 = vmul.f32 %v1389, %v1390
        %v1392 = vld [vmem:[%s7] sm:$0xff]
        %v1393 = vld [vmem:[%s7 + $0x8] sm:$0xff]
        %v1394 = vld [vmem:[%s7 + $0x10] sm:$0xff]
        %v1395 = vld [vmem:[%s7 + $0x18] sm:$0xff]
        %v1397 = vsel %vm597, %v1391, 0
        %1399 = vmatprep.subr.mxu0 0.0
        %1400 = vmatpush1.msra.mxu0 %v1392
        %1401 = vmatprep.subr.mxu0 0.0
        %1402 = vmatpush1.msra.mxu0 %v1393
        %1403 = vmatprep.subr.mxu0 0.0
        %1404 = vmatpush1.msra.mxu0 %v1394
        %1405 = vmatprep.subr.mxu0 0.0
        %1406 = vmatpush1.msra.mxu0 %v1395
        %1407 = vmatprep.subr.mxu0 0.0
        %1408 = vmatpush1.msra.mxu0 0.0
        %1409 = vmatprep.subr.mxu0 0.0
        %1410 = vmatpush1.msra.mxu0 0.0
        %1411 = vmatprep.subr.mxu0 0.0
        %1412 = vmatpush1.msra.mxu0 0.0
        %1413 = vmatprep.subr.mxu0 0.0
        %1414 = vmatpush1.msra.mxu0 0.0
        %1415 = vmatprep.subr.mxu0 0.0
        %1416 = vmatpush1.msra.mxu0 0.0
        %1417 = vmatprep.subr.mxu0 0.0
        %1418 = vmatpush1.msra.mxu0 0.0
        %1419 = vmatprep.subr.mxu0 0.0
        %1420 = vmatpush1.msra.mxu0 0.0
        %1421 = vmatprep.subr.mxu0 0.0
        %1422 = vmatpush1.msra.mxu0 0.0
        %1423 = vmatprep.subr.mxu0 0.0
        %1424 = vmatpush1.msra.mxu0 0.0
        %1425 = vmatprep.subr.mxu0 0.0
        %1426 = vmatpush1.msra.mxu0 0.0
        %1427 = vmatprep.subr.mxu0 0.0
        %1428 = vmatpush1.msra.mxu0 0.0
        %1429 = vmatprep.subr.mxu0 0.0
        %1430 = vmatpush1.msra.mxu0 0.0
        %1431 = vmatprep.subr.mxu0 0.0
        %1432 = vmatpush1.msra.mxu0 0.0
        %1433 = vmatprep.subr.mxu0 0.0
        %1434 = vmatpush1.msra.mxu0 0.0
        %1435 = vmatprep.subr.mxu0 0.0
        %1436 = vmatpush1.msra.mxu0 0.0
        %1437 = vmatprep.subr.mxu0 0.0
        %1438 = vmatpush1.msra.mxu0 0.0
        %1439 = vmatprep.subr.mxu0 0.0
        %1440 = vmatpush1.msra.mxu0 0.0
        %1441 = vmatprep.subr.mxu0 0.0
        %1442 = vmatpush1.msra.mxu0 0.0
        %1443 = vmatprep.subr.mxu0 0.0
        %1444 = vmatpush1.msra.mxu0 0.0
        %1445 = vmatprep.subr.mxu0 0.0
        %1446 = vmatpush1.msra.mxu0 0.0
        %1447 = vmatprep.subr.mxu0 0.0
        %1448 = vmatpush1.msra.mxu0 0.0
        %1449 = vmatprep.subr.mxu0 0.0
        %1450 = vmatpush1.msra.mxu0 0.0
        %1451 = vmatprep.subr.mxu0 0.0
        %1452 = vmatpush1.msra.mxu0 0.0
        %1453 = vmatprep.subr.mxu0 0.0
        %1454 = vmatpush1.msra.mxu0 0.0
        %1455 = vmatprep.subr.mxu0 0.0
        %1456 = vmatpush1.msra.mxu0 0.0
        %1457 = vmatprep.subr.mxu0 0.0
        %1458 = vmatpush1.msra.mxu0 0.0
        %1459 = vmatprep.subr.mxu0 0.0
        %1460 = vmatpush1.msra.mxu0 0.0
        %1461 = vmatprep.subr.mxu0 0.0
        %1462 = vmatpush1.msra.mxu0 0.0
        %1463 = vmatprep.mubr.f32.mxu0 0.0
        %1464 = vmatmul.mubr.f32.gmra.mrb[0].mxu0 %v1397
        %v1465 = vpop.f32.mrb[0].mxu0
        %v1466 = vadd.f32 0.0, %v1465
        %v1467 = vpop.f32.mrb[0].mxu0
        %1468 = vdwg.mxu0
        %v1469 = vmax.f32 %v1466, 0.0
        %v1470 = vld [vmem:[%s8] sm:$0xff]
        %vm1471 = vcmask 64512
        %v1473 = vsel %vm1471, %v1469, 0
        %1475 = vmatprep.subr.mxu0 0.0
        %1476 = vmatpush1.msra.mxu0 %v1470
        %1477 = vmatprep.subr.mxu0 0.0
        %1478 = vmatpush1.msra.mxu0 0.0
        %1479 = vmatprep.subr.mxu0 0.0
        %1480 = vmatpush1.msra.mxu0 0.0
        %1481 = vmatprep.subr.mxu0 0.0
        %1482 = vmatpush1.msra.mxu0 0.0
        %1483 = vmatprep.subr.mxu0 0.0
        %1484 = vmatpush1.msra.mxu0 0.0
        %1485 = vmatprep.subr.mxu0 0.0
        %1486 = vmatpush1.msra.mxu0 0.0
        %1487 = vmatprep.subr.mxu0 0.0
        %1488 = vmatpush1.msra.mxu0 0.0
        %1489 = vmatprep.subr.mxu0 0.0
        %1490 = vmatpush1.msra.mxu0 0.0
        %1491 = vmatprep.subr.mxu0 0.0
        %1492 = vmatpush1.msra.mxu0 0.0
        %1493 = vmatprep.subr.mxu0 0.0
        %1494 = vmatpush1.msra.mxu0 0.0
        %1495 = vmatprep.subr.mxu0 0.0
        %1496 = vmatpush1.msra.mxu0 0.0
        %1497 = vmatprep.subr.mxu0 0.0
        %1498 = vmatpush1.msra.mxu0 0.0
        %1499 = vmatprep.subr.mxu0 0.0
        %1500 = vmatpush1.msra.mxu0 0.0
        %1501 = vmatprep.subr.mxu0 0.0
        %1502 = vmatpush1.msra.mxu0 0.0
        %1503 = vmatprep.subr.mxu0 0.0
        %1504 = vmatpush1.msra.mxu0 0.0
        %1505 = vmatprep.subr.mxu0 0.0
        %1506 = vmatpush1.msra.mxu0 0.0
        %1507 = vmatprep.subr.mxu0 0.0
        %1508 = vmatpush1.msra.mxu0 0.0
        %1509 = vmatprep.subr.mxu0 0.0
        %1510 = vmatpush1.msra.mxu0 0.0
        %1511 = vmatprep.subr.mxu0 0.0
        %1512 = vmatpush1.msra.mxu0 0.0
        %1513 = vmatprep.subr.mxu0 0.0
        %1514 = vmatpush1.msra.mxu0 0.0
        %1515 = vmatprep.subr.mxu0 0.0
        %1516 = vmatpush1.msra.mxu0 0.0
        %1517 = vmatprep.subr.mxu0 0.0
        %1518 = vmatpush1.msra.mxu0 0.0
        %1519 = vmatprep.subr.mxu0 0.0
        %1520 = vmatpush1.msra.mxu0 0.0
        %1521 = vmatprep.subr.mxu0 0.0
        %1522 = vmatpush1.msra.mxu0 0.0
        %1523 = vmatprep.subr.mxu0 0.0
        %1524 = vmatpush1.msra.mxu0 0.0
        %1525 = vmatprep.subr.mxu0 0.0
        %1526 = vmatpush1.msra.mxu0 0.0
        %1527 = vmatprep.subr.mxu0 0.0
        %1528 = vmatpush1.msra.mxu0 0.0
        %1529 = vmatprep.subr.mxu0 0.0
        %1530 = vmatpush1.msra.mxu0 0.0
        %1531 = vmatprep.subr.mxu0 0.0
        %1532 = vmatpush1.msra.mxu0 0.0
        %1533 = vmatprep.subr.mxu0 0.0
        %1534 = vmatpush1.msra.mxu0 0.0
        %1535 = vmatprep.subr.mxu0 0.0
        %1536 = vmatpush1.msra.mxu0 0.0
        %1537 = vmatprep.subr.mxu0 0.0
        %1538 = vmatpush1.msra.mxu0 0.0
        %1539 = vmatprep.mubr.f32.mxu0 0.0
        %1540 = vmatmul.mubr.f32.gmra.mrb[0].mxu0 %v1473
        %v1541 = vpop.f32.mrb[0].mxu0
        %v1542 = vadd.f32 3.0, %v1541
        %v1543 = vpop.f32.mrb[0].mxu0
        %1544 = vdwg.mxu0
        %v1545 = vmax.f32 %v1542, 0.0
        %v1546 = vmin.f32 %v1545, 6.0
        %v1547 = vmul.f32 %v1546, 0.16666667
        %v1548 = vlaneseq
        %v1549 = vshrl.u32 %v1548, 7
        %v1550 = vsub.s32 0, %v1549
        %v1551 = vrot.slane %v1547, %v1550
        %v1552 = vmul.f32 %v1361, %v1551
        %v1553 = vmul.f32 %v1362, %v1551
        %v1554 = vmul.f32 %v1363, %v1551
        %v1555 = vmul.f32 %v1364, %v1551
        %v1556 = vmul.f32 %v1365, %v1551
        %v1557 = vmul.f32 %v1366, %v1551
        %v1558 = vmul.f32 %v1367, %v1551
        %v1559 = vmul.f32 %v1368, %v1551
        %v1560 = vadd.f32 %v1552, 3.0
        %v1561 = vadd.f32 %v1553, 3.0
        %v1562 = vadd.f32 %v1554, 3.0
        %v1563 = vadd.f32 %v1555, 3.0
        %v1564 = vadd.f32 %v1556, 3.0
        %v1565 = vadd.f32 %v1557, 3.0
        %v1566 = vadd.f32 %v1558, 3.0
        %v1567 = vadd.f32 %v1559, 3.0
        %v1568 = vmax.f32 %v1560, 0.0
        %v1569 = vmax.f32 %v1561, 0.0
        %v1570 = vmax.f32 %v1562, 0.0
        %v1571 = vmax.f32 %v1563, 0.0
        %v1572 = vmax.f32 %v1564, 0.0
        %v1573 = vmax.f32 %v1565, 0.0
        %v1574 = vmax.f32 %v1566, 0.0
        %v1575 = vmax.f32 %v1567, 0.0
        %v1576 = vmin.f32 %v1568, 6.0
        %v1577 = vmin.f32 %v1569, 6.0
        %v1578 = vmin.f32 %v1570, 6.0
        %v1579 = vmin.f32 %v1571, 6.0
        %v1580 = vmin.f32 %v1572, 6.0
        %v1581 = vmin.f32 %v1573, 6.0
        %v1582 = vmin.f32 %v1574, 6.0
        %v1583 = vmin.f32 %v1575, 6.0
        %v1584 = vmul.f32 %v1576, 0.16666667
        %v1585 = vmul.f32 %v1577, 0.16666667
        %v1586 = vmul.f32 %v1578, 0.16666667
        %v1587 = vmul.f32 %v1579, 0.16666667
        %v1588 = vmul.f32 %v1580, 0.16666667
        %v1589 = vmul.f32 %v1581, 0.16666667
        %v1590 = vmul.f32 %v1582, 0.16666667
        %v1591 = vmul.f32 %v1583, 0.16666667
        %v1592 = vmul.f32 %v1552, %v1584
        %v1593 = vmul.f32 %v1553, %v1585
        %v1594 = vmul.f32 %v1554, %v1586
        %v1595 = vmul.f32 %v1555, %v1587
        %v1596 = vmul.f32 %v1556, %v1588
        %v1597 = vmul.f32 %v1557, %v1589
        %v1598 = vmul.f32 %v1558, %v1590
        %v1599 = vmul.f32 %v1559, %v1591
        %v1600 = vpack.c.bf16 %v1593, %v1592
        %v1601 = vpack.c.bf16 %v1595, %v1594
        %v1602 = vpack.c.bf16 %v1597, %v1596
        %v1603 = vpack.c.bf16 %v1599, %v1598
        %v1604 = vld [vmem:[%s9] sm:$0xf]
        %v1605 = vld [vmem:[%s9 + $0x4] sm:$0xf]
        %v1606 = vld [vmem:[%s9 + $0x8] sm:$0xf]
        %v1607 = vld [vmem:[%s9 + $0xc] sm:$0xf]
        %v1612 = vunpack.c.l.b16 %v1604
        %v1613 = vunpack.c.l.b16 %v1605
        %v1614 = vunpack.c.l.b16 %v1606
        %v1615 = vunpack.c.l.b16 %v1607
        %v1616 = vpack.c.b16 %v1613, %v1612
        %v1617 = vpack.c.b16 %v1615, %v1614
        %v1621 = vsel %vm597, %v1600, 0
        %v1624 = vsel %vm597, %v1601, 0
        %v1627 = vsel %vm597, %v1602, 0
        %v1630 = vsel %vm597, %v1603, 0
        %1632 = vmatprep.subr.bf16.mxu0 0
        %1633 = vmatpush1.bf16.msra.mxu0 %v1616
        %1634 = vmatprep.subr.bf16.mxu0 0
        %1635 = vmatpush1.bf16.msra.mxu0 %v1617
        %1636 = vmatprep.subr.bf16.mxu0 0
        %1637 = vmatpush1.bf16.msra.mxu0 0
        %1638 = vmatprep.subr.bf16.mxu0 0
        %1639 = vmatpush1.bf16.msra.mxu0 0
        %1640 = vmatprep.subr.bf16.mxu0 0
        %1641 = vmatpush1.bf16.msra.mxu0 0
        %1642 = vmatprep.subr.bf16.mxu0 0
        %1643 = vmatpush1.bf16.msra.mxu0 0
        %1644 = vmatprep.subr.bf16.mxu0 0
        %1645 = vmatpush1.bf16.msra.mxu0 0
        %1646 = vmatprep.subr.bf16.mxu0 0
        %1647 = vmatpush1.bf16.msra.mxu0 0
        %1648 = vmatprep.subr.bf16.mxu0 0
        %1649 = vmatpush1.bf16.msra.mxu0 0
        %1650 = vmatprep.subr.bf16.mxu0 0
        %1651 = vmatpush1.bf16.msra.mxu0 0
        %1652 = vmatprep.subr.bf16.mxu0 0
        %1653 = vmatpush1.bf16.msra.mxu0 0
        %1654 = vmatprep.subr.bf16.mxu0 0
        %1655 = vmatpush1.bf16.msra.mxu0 0
        %1656 = vmatprep.subr.bf16.mxu0 0
        %1657 = vmatpush1.bf16.msra.mxu0 0
        %1658 = vmatprep.subr.bf16.mxu0 0
        %1659 = vmatpush1.bf16.msra.mxu0 0
        %1660 = vmatprep.subr.bf16.mxu0 0
        %1661 = vmatpush1.bf16.msra.mxu0 0
        %1662 = vmatprep.subr.bf16.mxu0 0
        %1663 = vmatpush1.bf16.msra.mxu0 0
        %1664 = vmatprep.mubr.bf16.mxu0 0
        %1665 = vmatmul.mubr.bf16.gmra.mrb[0].mxu0 %v1621
        %v1666 = vpop.f32.mrb[0].mxu0
        %v1667 = vadd.f32 0.0, %v1666
        %v1668 = vpop.f32.mrb[0].mxu0
        %v1669 = vpop.f32.mrb[0].mxu0
        %v1670 = vadd.f32 0.0, %v1669
        %v1671 = vpop.f32.mrb[0].mxu0
        %1672 = vmatprep.mubr.bf16.mxu0 0
        %1673 = vmatmul.mubr.bf16.gmra.mrb[0].mxu0 %v1624
        %v1674 = vpop.f32.mrb[0].mxu0
        %v1675 = vadd.f32 0.0, %v1674
        %v1676 = vpop.f32.mrb[0].mxu0
        %v1677 = vpop.f32.mrb[0].mxu0
        %v1678 = vadd.f32 0.0, %v1677
        %v1679 = vpop.f32.mrb[0].mxu0
        %1680 = vmatprep.mubr.bf16.mxu0 0
        %1681 = vmatmul.mubr.bf16.gmra.mrb[0].mxu0 %v1627
        %v1682 = vpop.f32.mrb[0].mxu0
        %v1683 = vadd.f32 0.0, %v1682
        %v1684 = vpop.f32.mrb[0].mxu0
        %v1685 = vpop.f32.mrb[0].mxu0
        %v1686 = vadd.f32 0.0, %v1685
        %v1687 = vpop.f32.mrb[0].mxu0
        %1688 = vmatprep.mubr.bf16.mxu0 0
        %1689 = vmatmul.mubr.bf16.gmra.mrb[0].mxu0 %v1630
        %v1690 = vpop.f32.mrb[0].mxu0
        %v1691 = vadd.f32 0.0, %v1690
        %v1692 = vpop.f32.mrb[0].mxu0
        %v1693 = vpop.f32.mrb[0].mxu0
        %v1694 = vadd.f32 0.0, %v1693
        %v1695 = vpop.f32.mrb[0].mxu0
        %1696 = vdwg.mxu0
        %v1697 = vld [vmem:[%s10] sm:$0x1]
        %v1699 = vlaneseq
        %v1700 = vshrl.u32 %v1699, 7
        %v1701 = vsub.s32 0, %v1700
        %v1702 = vrot.slane %v1697, %v1701
        %v1704 = vmul.f32 %v1667, %v1702
        %v1705 = vmul.f32 %v1670, %v1702
        %v1706 = vmul.f32 %v1675, %v1702
        %v1707 = vmul.f32 %v1678, %v1702
        %v1708 = vmul.f32 %v1683, %v1702
        %v1709 = vmul.f32 %v1686, %v1702
        %v1710 = vmul.f32 %v1691, %v1702
        %v1711 = vmul.f32 %v1694, %v1702
        %v1712 = vld [vmem:[%s11] sm:$0x1]
        %v1714 = vlaneseq
        %v1715 = vshrl.u32 %v1714, 7
        %v1716 = vsub.s32 0, %v1715
        %v1717 = vrot.slane %v1712, %v1716
        %v1719 = vadd.f32 %v1704, %v1717
        %v1720 = vadd.f32 %v1705, %v1717
        %v1721 = vadd.f32 %v1706, %v1717
        %v1722 = vadd.f32 %v1707, %v1717
        %v1723 = vadd.f32 %v1708, %v1717
        %v1724 = vadd.f32 %v1709, %v1717
        %v1725 = vadd.f32 %v1710, %v1717
        %v1726 = vadd.f32 %v1711, %v1717
        %v1727 = vpack.c.bf16 %v1719, %v1719
        %v1728 = vpack.c.bf16 %v1720, %v1720
        %v1729 = vpack.c.bf16 %v1721, %v1721
        %v1730 = vpack.c.bf16 %v1722, %v1722
        %v1731 = vpack.c.bf16 %v1723, %v1723
        %v1732 = vpack.c.bf16 %v1724, %v1724
        %v1733 = vpack.c.bf16 %v1725, %v1725
        %v1734 = vpack.c.bf16 %v1726, %v1726
        %vm1735 = vcmask 191488
        %1736 = vst.msk [vmem:[%s406] sm:$0xf] %vm1735, %v1727
        %1737 = vst.msk [vmem:[%s406 + $0x4] sm:$0xf] %vm1735, %v1728
        %1738 = vst.msk [vmem:[%s406 + $0x8] sm:$0xf] %vm1735, %v1729
        %1739 = vst.msk [vmem:[%s406 + $0xc] sm:$0xf] %vm1735, %v1730
        %1740 = vst.msk [vmem:[%s406 + $0x10] sm:$0xf] %vm1735, %v1731
        %1741 = vst.msk [vmem:[%s406 + $0x14] sm:$0xf] %vm1735, %v1732
        %1742 = vst.msk [vmem:[%s406 + $0x18] sm:$0xf] %vm1735, %v1733
        %1743 = vst.msk [vmem:[%s406 + $0x1c] sm:$0xf] %vm1735, %v1734
        %s1744 = sand.u32 %s291, 1
        %s1745 = scalar_lea.sflag [#allocation4], %s1744
        %s1746 = sand.u32 %s291, 1
        %s1747 = smul.addr %s1746, 32
        %s1748 = scalar_lea.vmem [#allocation3], %s1747
        // Predicated region
        $region69: #{slim_stage.5} parent=67 // pred_check
          %p1749 = pneg %p301
        $region70: #{slim_stage.5} parent=67 // pred_check_branch
          %1751 = sbr.rel (%p1749) target = $region72
        $region71: #{slim_stage.5} parent=67 // pred_region
          %s1753 = ssub.s32 512, 512
          %1754 = vsyncadd %s1745, %s1753
          %s1755 = smul.addr %s26, 8
          %s1756 = smul.addr %s1755, 64
          %s1757 = scalar_lea.hbm %s12, %s1756
          %s1758 = sshll.u32 %s1748, 4
          %s1759 = int_to_ptr.vmem [resolvable:$true] %s1758
          %1764 = dma.vmem_to_hbm [thread:$0]  %s1759, 512, %s1757, %s1745, 64, 64, 4
        $region72: #{slim_stage.5} parent=67 // pred_fallthru
          _
      $region68: #{slim_stage.5} parent=5 // pred_fallthru
        _
      %p1765 = scmp.le.s32.totalorder 2, %s21
      // Predicated region
      $region73: #{slim_stage.5} parent=5 // pred_check
        %p1766 = pneg %p1765
      $region74: #{slim_stage.5} parent=5 // pred_check_branch
        %1768 = sbr.rel (%p1766) target = $region76
      $region75: #{slim_stage.5} parent=5 // pred_region
        %s1769 = ssub.s32 %s21, 2
        // Predicated region
        $region77: #{slim_stage.5} parent=75 // pred_check
          %p1770 = pneg %p307
        $region78: #{slim_stage.5} parent=75 // pred_check_branch
          %1772 = sbr.rel (%p1770) target = $region80
        $region79: #{slim_stage.5} parent=75 // pred_region
          %s1773 = sand.u32 %s292, 1
          %s1774 = scalar_lea.sflag [#allocation4], %s1773
          %s1775 = sand.u32 %s292, 1
          %s1776 = smul.addr %s1775, 32
          %s1777 = scalar_lea.vmem [#allocation3], %s1776
          %1778 = dma.done %s1774, 512
        $region80: #{slim_stage.5} parent=75 // pred_fallthru
          _
      $region76: #{slim_stage.5} parent=5 // pred_fallthru
        _
    $region6: #{slim_stage.5} parent=1 // loop_footer
      %s25 = sadd.s32 1, %s21
    $region7: #{slim_stage.5} parent=1 // loop_footer_branch
      %20 = sbr.rel target = $region3
    $region8: #{slim_stage.5} parent=1 // loop_exit
      _
    %1779 = vsyncpa [#allocation4], 1
    %s1780 = scalar_lea.sflag [#allocation4], 1
    %1781 = vsyncpa %s1780, 1

// kernel: slim_stage.3
$region0: #{slim_stage.3}
  #allocation0 [shape = 'u32[]', space=smem, size = 0x4, offset = 0x4, fixed_abs, tag = 'smem constant byte address 0x4 - core index']
  #allocation1 [shape = 'u32[144,128]{1,0:T(1,128)}', space=vmem, size = 0x12000, scoped, tag = 'internal scratch']
  #allocation2 [shape = 'f32[18,18,16]{2,1,0:T(8,128)}', space=vmem, size = 0x36000, scoped, tag = 'scratch operand']
  %s0 = inlined_call_operand.vmem [shape: bf16[2,16,16,8], index: 0, kind: input, shape index: {}]
  %s1 = inlined_call_operand.vmem [shape: bf16[8,16], index: 1, kind: input, shape index: {}]
  %s2 = inlined_call_operand.vmem [shape: f32[1,16], index: 2, kind: input, shape index: {}]
  %s3 = inlined_call_operand.vmem [shape: f32[1,16], index: 3, kind: input, shape index: {}]
  %s4 = inlined_call_operand.vmem [shape: f32[9,16], index: 4, kind: input, shape index: {}]
  %s5 = inlined_call_operand.vmem [shape: f32[1,16], index: 5, kind: input, shape index: {}]
  %s6 = inlined_call_operand.vmem [shape: f32[1,16], index: 6, kind: input, shape index: {}]
  %s7 = inlined_call_operand.vmem [shape: f32[64,256], index: 7, kind: input, shape index: {}]
  %s8 = inlined_call_operand.vmem [shape: f32[16,4], index: 8, kind: input, shape index: {}]
  %s9 = inlined_call_operand.vmem [shape: f32[4,16], index: 9, kind: input, shape index: {}]
  %s10 = inlined_call_operand.vmem [shape: bf16[16,16], index: 10, kind: input, shape index: {}]
  %s11 = inlined_call_operand.vmem [shape: f32[1,16], index: 11, kind: input, shape index: {}]
  %s12 = inlined_call_operand.vmem [shape: f32[1,16], index: 12, kind: input, shape index: {}]
  %s13 = inlined_call_operand.vmem [shape: bf16[2,8,8,16], index: 13, kind: output, shape index: {}]
  %s14 = sld [smem:[#allocation0]]
  $region85: #{slim_stage.3} parent=0
    _
  %s16 = ssub.s32 1, %s14
  %s17 = scalar_select 0, %s16, %s14
  loop: start=0, step=1, limit=4
  $region2: #{slim_stage.3} parent=0 // loop_pre_header
    _
  $region3: #{slim_stage.3} parent=0 // loop_header
    %s19 = sphi 0, %s23
    %p20 = scmp.ge.s32.totalorder %s19, 4
    %s29 = sphi 0, %s31
    %s32 = sphi 0, %s29
    %s33 = sphi 0, %s32
    %s49 = sphi 0, %s33
    %s53 = sphi 0, %s53
    %s55 = sphi 0, %s53
    %s56 = sphi 0, %s55
    %s70 = sphi 0, %s56
    %s74 = sphi 0, %s74
    %s76 = sphi 0, %s74
    %s77 = sphi 0, %s76
    %s91 = sphi 0, %s77
    %s95 = sphi 0, %s95
    %s97 = sphi 0, %s95
    %s98 = sphi 0, %s97
    %s112 = sphi 0, %s98
    %s116 = sphi 0, %s116
    %s118 = sphi 0, %s116
    %s119 = sphi 0, %s118
    %s133 = sphi 0, %s119
    %s137 = sphi 0, %s137
    %s139 = sphi 0, %s137
    %s140 = sphi 0, %s139
    %s154 = sphi 0, %s140
    %s158 = sphi 0, %s158
    %s160 = sphi 0, %s158
    %s161 = sphi 0, %s160
    %s175 = sphi 0, %s161
    %s179 = sphi 0, %s179
    %s181 = sphi 0, %s179
    %s182 = sphi 0, %s181
    %s196 = sphi 0, %s182
    %s200 = sphi 0, %s200
    %s202 = sphi 0, %s200
    %s203 = sphi 0, %s202
    %s217 = sphi 0, %s203
    %s221 = sphi 0, %s221
    %s223 = sphi 0, %s221
    %s224 = sphi 0, %s223
    %s238 = sphi 0, %s224
    %s242 = sphi 0, %s242
    %s244 = sphi 0, %s242
    %s245 = sphi 0, %s244
    %s259 = sphi 0, %s245
    %s263 = sphi 0, %s263
    %s265 = sphi 0, %s263
    %s266 = sphi 0, %s265
    %s280 = sphi 0, %s266
    %s284 = sphi 0, %s284
    %s286 = sphi 0, %s284
    %s287 = sphi 0, %s286
    %s301 = sphi 0, %s287
    %s307 = sphi 0, %s309
    %s310 = sphi 0, %s307
    %s311 = sphi 0, %s310
    %s327 = sphi 0, %s311
  $region4: #{slim_stage.3} parent=0 // loop_header_branch
    %22 = sbr.rel (%p20) target = $region8
  $region5: #{slim_stage.3} parent=0 // loop_body
    %s24 = ssub.s32 %s19, 1
    %s25 = ssub.s32 %s19, 2
    %s26 = sadd.s32 %s19, 1
    %s27 = ssub.s32 %s19, %s26
    %p28 = scmp.eq.s32.totalorder %s27, 0
    %s30 = sadd.s32 %s29, 1
    %s31 = scalar_select %p28, %s29, %s30
    %p34 = pneg %p28
    %p35 = scmp.eq.s32.totalorder %s19, 1
    %p36 = por %p34, %p35
    %p37 = scmp.ne.s32.totalorder %s29, %s32
    %p38 = scmp.eq.s32.totalorder %s19, 0
    %p39 = por %p37, %p38
    %p40 = scmp.ne.s32.totalorder %s29, %s32
    %p41 = scmp.eq.s32.totalorder %s24, 1
    %p42 = por %p40, %p41
    %p43 = scmp.ne.s32.totalorder %s32, %s33
    %p44 = scmp.eq.s32.totalorder %s24, 0
    %p45 = por %p43, %p44
    %p46 = scmp.ne.s32.totalorder %s32, %s33
    %p47 = scmp.eq.s32.totalorder %s25, 1
    %p48 = por %p46, %p47
    %p50 = scmp.ne.s32.totalorder %s33, %s49
    %p51 = scmp.eq.s32.totalorder %s25, 0
    %p52 = por %p50, %p51
    %s54 = sadd.s32 %s53, 1
    %p57 = scmp.eq.s32.totalorder %s19, 1
    %p58 = scmp.ne.s32.totalorder %s53, %s55
    %p59 = scmp.eq.s32.totalorder %s19, 0
    %p60 = por %p58, %p59
    %p61 = scmp.ne.s32.totalorder %s53, %s55
    %p62 = scmp.eq.s32.totalorder %s24, 1
    %p63 = por %p61, %p62
    %p64 = scmp.ne.s32.totalorder %s55, %s56
    %p65 = scmp.eq.s32.totalorder %s24, 0
    %p66 = por %p64, %p65
    %p67 = scmp.ne.s32.totalorder %s55, %s56
    %p68 = scmp.eq.s32.totalorder %s25, 1
    %p69 = por %p67, %p68
    %p71 = scmp.ne.s32.totalorder %s56, %s70
    %p72 = scmp.eq.s32.totalorder %s25, 0
    %p73 = por %p71, %p72
    %s75 = sadd.s32 %s74, 1
    %p78 = scmp.eq.s32.totalorder %s19, 1
    %p79 = scmp.ne.s32.totalorder %s74, %s76
    %p80 = scmp.eq.s32.totalorder %s19, 0
    %p81 = por %p79, %p80
    %p82 = scmp.ne.s32.totalorder %s74, %s76
    %p83 = scmp.eq.s32.totalorder %s24, 1
    %p84 = por %p82, %p83
    %p85 = scmp.ne.s32.totalorder %s76, %s77
    %p86 = scmp.eq.s32.totalorder %s24, 0
    %p87 = por %p85, %p86
    %p88 = scmp.ne.s32.totalorder %s76, %s77
    %p89 = scmp.eq.s32.totalorder %s25, 1
    %p90 = por %p88, %p89
    %p92 = scmp.ne.s32.totalorder %s77, %s91
    %p93 = scmp.eq.s32.totalorder %s25, 0
    %p94 = por %p92, %p93
    %s96 = sadd.s32 %s95, 1
    %p99 = scmp.eq.s32.totalorder %s19, 1
    %p100 = scmp.ne.s32.totalorder %s95, %s97
    %p101 = scmp.eq.s32.totalorder %s19, 0
    %p102 = por %p100, %p101
    %p103 = scmp.ne.s32.totalorder %s95, %s97
    %p104 = scmp.eq.s32.totalorder %s24, 1
    %p105 = por %p103, %p104
    %p106 = scmp.ne.s32.totalorder %s97, %s98
    %p107 = scmp.eq.s32.totalorder %s24, 0
    %p108 = por %p106, %p107
    %p109 = scmp.ne.s32.totalorder %s97, %s98
    %p110 = scmp.eq.s32.totalorder %s25, 1
    %p111 = por %p109, %p110
    %p113 = scmp.ne.s32.totalorder %s98, %s112
    %p114 = scmp.eq.s32.totalorder %s25, 0
    %p115 = por %p113, %p114
    %s117 = sadd.s32 %s116, 1
    %p120 = scmp.eq.s32.totalorder %s19, 1
    %p121 = scmp.ne.s32.totalorder %s116, %s118
    %p122 = scmp.eq.s32.totalorder %s19, 0
    %p123 = por %p121, %p122
    %p124 = scmp.ne.s32.totalorder %s116, %s118
    %p125 = scmp.eq.s32.totalorder %s24, 1
    %p126 = por %p124, %p125
    %p127 = scmp.ne.s32.totalorder %s118, %s119
    %p128 = scmp.eq.s32.totalorder %s24, 0
    %p129 = por %p127, %p128
    %p130 = scmp.ne.s32.totalorder %s118, %s119
    %p131 = scmp.eq.s32.totalorder %s25, 1
    %p132 = por %p130, %p131
    %p134 = scmp.ne.s32.totalorder %s119, %s133
    %p135 = scmp.eq.s32.totalorder %s25, 0
    %p136 = por %p134, %p135
    %s138 = sadd.s32 %s137, 1
    %p141 = scmp.eq.s32.totalorder %s19, 1
    %p142 = scmp.ne.s32.totalorder %s137, %s139
    %p143 = scmp.eq.s32.totalorder %s19, 0
    %p144 = por %p142, %p143
    %p145 = scmp.ne.s32.totalorder %s137, %s139
    %p146 = scmp.eq.s32.totalorder %s24, 1
    %p147 = por %p145, %p146
    %p148 = scmp.ne.s32.totalorder %s139, %s140
    %p149 = scmp.eq.s32.totalorder %s24, 0
    %p150 = por %p148, %p149
    %p151 = scmp.ne.s32.totalorder %s139, %s140
    %p152 = scmp.eq.s32.totalorder %s25, 1
    %p153 = por %p151, %p152
    %p155 = scmp.ne.s32.totalorder %s140, %s154
    %p156 = scmp.eq.s32.totalorder %s25, 0
    %p157 = por %p155, %p156
    %s159 = sadd.s32 %s158, 1
    %p162 = scmp.eq.s32.totalorder %s19, 1
    %p163 = scmp.ne.s32.totalorder %s158, %s160
    %p164 = scmp.eq.s32.totalorder %s19, 0
    %p165 = por %p163, %p164
    %p166 = scmp.ne.s32.totalorder %s158, %s160
    %p167 = scmp.eq.s32.totalorder %s24, 1
    %p168 = por %p166, %p167
    %p169 = scmp.ne.s32.totalorder %s160, %s161
    %p170 = scmp.eq.s32.totalorder %s24, 0
    %p171 = por %p169, %p170
    %p172 = scmp.ne.s32.totalorder %s160, %s161
    %p173 = scmp.eq.s32.totalorder %s25, 1
    %p174 = por %p172, %p173
    %p176 = scmp.ne.s32.totalorder %s161, %s175
    %p177 = scmp.eq.s32.totalorder %s25, 0
    %p178 = por %p176, %p177
    %s180 = sadd.s32 %s179, 1
    %p183 = scmp.eq.s32.totalorder %s19, 1
    %p184 = scmp.ne.s32.totalorder %s179, %s181
    %p185 = scmp.eq.s32.totalorder %s19, 0
    %p186 = por %p184, %p185
    %p187 = scmp.ne.s32.totalorder %s179, %s181
    %p188 = scmp.eq.s32.totalorder %s24, 1
    %p189 = por %p187, %p188
    %p190 = scmp.ne.s32.totalorder %s181, %s182
    %p191 = scmp.eq.s32.totalorder %s24, 0
    %p192 = por %p190, %p191
    %p193 = scmp.ne.s32.totalorder %s181, %s182
    %p194 = scmp.eq.s32.totalorder %s25, 1
    %p195 = por %p193, %p194
    %p197 = scmp.ne.s32.totalorder %s182, %s196
    %p198 = scmp.eq.s32.totalorder %s25, 0
    %p199 = por %p197, %p198
    %s201 = sadd.s32 %s200, 1
    %p204 = scmp.eq.s32.totalorder %s19, 1
    %p205 = scmp.ne.s32.totalorder %s200, %s202
    %p206 = scmp.eq.s32.totalorder %s19, 0
    %p207 = por %p205, %p206
    %p208 = scmp.ne.s32.totalorder %s200, %s202
    %p209 = scmp.eq.s32.totalorder %s24, 1
    %p210 = por %p208, %p209
    %p211 = scmp.ne.s32.totalorder %s202, %s203
    %p212 = scmp.eq.s32.totalorder %s24, 0
    %p213 = por %p211, %p212
    %p214 = scmp.ne.s32.totalorder %s202, %s203
    %p215 = scmp.eq.s32.totalorder %s25, 1
    %p216 = por %p214, %p215
    %p218 = scmp.ne.s32.totalorder %s203, %s217
    %p219 = scmp.eq.s32.totalorder %s25, 0
    %p220 = por %p218, %p219
    %s222 = sadd.s32 %s221, 1
    %p225 = scmp.eq.s32.totalorder %s19, 1
    %p226 = scmp.ne.s32.totalorder %s221, %s223
    %p227 = scmp.eq.s32.totalorder %s19, 0
    %p228 = por %p226, %p227
    %p229 = scmp.ne.s32.totalorder %s221, %s223
    %p230 = scmp.eq.s32.totalorder %s24, 1
    %p231 = por %p229, %p230
    %p232 = scmp.ne.s32.totalorder %s223, %s224
    %p233 = scmp.eq.s32.totalorder %s24, 0
    %p234 = por %p232, %p233
    %p235 = scmp.ne.s32.totalorder %s223, %s224
    %p236 = scmp.eq.s32.totalorder %s25, 1
    %p237 = por %p235, %p236
    %p239 = scmp.ne.s32.totalorder %s224, %s238
    %p240 = scmp.eq.s32.totalorder %s25, 0
    %p241 = por %p239, %p240
    %s243 = sadd.s32 %s242, 1
    %p246 = scmp.eq.s32.totalorder %s19, 1
    %p247 = scmp.ne.s32.totalorder %s242, %s244
    %p248 = scmp.eq.s32.totalorder %s19, 0
    %p249 = por %p247, %p248
    %p250 = scmp.ne.s32.totalorder %s242, %s244
    %p251 = scmp.eq.s32.totalorder %s24, 1
    %p252 = por %p250, %p251
    %p253 = scmp.ne.s32.totalorder %s244, %s245
    %p254 = scmp.eq.s32.totalorder %s24, 0
    %p255 = por %p253, %p254
    %p256 = scmp.ne.s32.totalorder %s244, %s245
    %p257 = scmp.eq.s32.totalorder %s25, 1
    %p258 = por %p256, %p257
    %p260 = scmp.ne.s32.totalorder %s245, %s259
    %p261 = scmp.eq.s32.totalorder %s25, 0
    %p262 = por %p260, %p261
    %s264 = sadd.s32 %s263, 1
    %p267 = scmp.eq.s32.totalorder %s19, 1
    %p268 = scmp.ne.s32.totalorder %s263, %s265
    %p269 = scmp.eq.s32.totalorder %s19, 0
    %p270 = por %p268, %p269
    %p271 = scmp.ne.s32.totalorder %s263, %s265
    %p272 = scmp.eq.s32.totalorder %s24, 1
    %p273 = por %p271, %p272
    %p274 = scmp.ne.s32.totalorder %s265, %s266
    %p275 = scmp.eq.s32.totalorder %s24, 0
    %p276 = por %p274, %p275
    %p277 = scmp.ne.s32.totalorder %s265, %s266
    %p278 = scmp.eq.s32.totalorder %s25, 1
    %p279 = por %p277, %p278
    %p281 = scmp.ne.s32.totalorder %s266, %s280
    %p282 = scmp.eq.s32.totalorder %s25, 0
    %p283 = por %p281, %p282
    %s285 = sadd.s32 %s284, 1
    %p288 = scmp.eq.s32.totalorder %s19, 1
    %p289 = scmp.ne.s32.totalorder %s284, %s286
    %p290 = scmp.eq.s32.totalorder %s19, 0
    %p291 = por %p289, %p290
    %p292 = scmp.ne.s32.totalorder %s284, %s286
    %p293 = scmp.eq.s32.totalorder %s24, 1
    %p294 = por %p292, %p293
    %p295 = scmp.ne.s32.totalorder %s286, %s287
    %p296 = scmp.eq.s32.totalorder %s24, 0
    %p297 = por %p295, %p296
    %p298 = scmp.ne.s32.totalorder %s286, %s287
    %p299 = scmp.eq.s32.totalorder %s25, 1
    %p300 = por %p298, %p299
    %p302 = scmp.ne.s32.totalorder %s287, %s301
    %p303 = scmp.eq.s32.totalorder %s25, 0
    %p304 = por %p302, %p303
    %s305 = ssub.s32 %s19, %s26
    %p306 = scmp.eq.s32.totalorder %s305, 0
    %s308 = sadd.s32 %s307, 1
    %s309 = scalar_select %p306, %s307, %s308
    %p312 = pneg %p306
    %p313 = scmp.eq.s32.totalorder %s19, 1
    %p314 = por %p312, %p313
    %p315 = scmp.ne.s32.totalorder %s307, %s310
    %p316 = scmp.eq.s32.totalorder %s19, 0
    %p317 = por %p315, %p316
    %p318 = scmp.ne.s32.totalorder %s307, %s310
    %p319 = scmp.eq.s32.totalorder %s24, 1
    %p320 = por %p318, %p319
    %p321 = scmp.ne.s32.totalorder %s310, %s311
    %p322 = scmp.eq.s32.totalorder %s24, 0
    %p323 = por %p321, %p322
    %p324 = scmp.ne.s32.totalorder %s310, %s311
    %p325 = scmp.eq.s32.totalorder %s25, 1
    %p326 = por %p324, %p325
    %p328 = scmp.ne.s32.totalorder %s311, %s327
    %p329 = scmp.eq.s32.totalorder %s25, 0
    %p330 = por %p328, %p329
    %p331 = scmp.le.s32.totalorder 1, %s19
    %p332 = scmp.lt.s32.totalorder %s19, 3
    %p333 = pnand %p331, %p332
    %p334 = pneg %p333
    // Predicated region
    $region9: #{slim_stage.3} parent=5 // pred_check
      _
    $region10: #{slim_stage.3} parent=5 // pred_check_branch
      %336 = sbr.rel (%p333) target = $region12
    $region11: #{slim_stage.3} parent=5 // pred_region
      %s337 = ssub.s32 %s19, 1
      // Predicated region
      $region13: #{slim_stage.3} parent=11 // pred_check
        %p338 = pneg %p66
      $region14: #{slim_stage.3} parent=11 // pred_check_branch
        %340 = sbr.rel (%p338) target = $region16
      $region15: #{slim_stage.3} parent=11 // pred_region
        _
      $region16: #{slim_stage.3} parent=11 // pred_fallthru
        _
      // Predicated region
      $region17: #{slim_stage.3} parent=11 // pred_check
        %p341 = pneg %p87
      $region18: #{slim_stage.3} parent=11 // pred_check_branch
        %343 = sbr.rel (%p341) target = $region20
      $region19: #{slim_stage.3} parent=11 // pred_region
        _
      $region20: #{slim_stage.3} parent=11 // pred_fallthru
        _
      // Predicated region
      $region21: #{slim_stage.3} parent=11 // pred_check
        %p344 = pneg %p108
      $region22: #{slim_stage.3} parent=11 // pred_check_branch
        %346 = sbr.rel (%p344) target = $region24
      $region23: #{slim_stage.3} parent=11 // pred_region
        _
      $region24: #{slim_stage.3} parent=11 // pred_fallthru
        _
      // Predicated region
      $region25: #{slim_stage.3} parent=11 // pred_check
        %p347 = pneg %p129
      $region26: #{slim_stage.3} parent=11 // pred_check_branch
        %349 = sbr.rel (%p347) target = $region28
      $region27: #{slim_stage.3} parent=11 // pred_region
        _
      $region28: #{slim_stage.3} parent=11 // pred_fallthru
        _
      // Predicated region
      $region29: #{slim_stage.3} parent=11 // pred_check
        %p350 = pneg %p150
      $region30: #{slim_stage.3} parent=11 // pred_check_branch
        %352 = sbr.rel (%p350) target = $region32
      $region31: #{slim_stage.3} parent=11 // pred_region
        _
      $region32: #{slim_stage.3} parent=11 // pred_fallthru
        _
      // Predicated region
      $region33: #{slim_stage.3} parent=11 // pred_check
        %p353 = pneg %p171
      $region34: #{slim_stage.3} parent=11 // pred_check_branch
        %355 = sbr.rel (%p353) target = $region36
      $region35: #{slim_stage.3} parent=11 // pred_region
        _
      $region36: #{slim_stage.3} parent=11 // pred_fallthru
        _
      // Predicated region
      $region37: #{slim_stage.3} parent=11 // pred_check
        %p356 = pneg %p192
      $region38: #{slim_stage.3} parent=11 // pred_check_branch
        %358 = sbr.rel (%p356) target = $region40
      $region39: #{slim_stage.3} parent=11 // pred_region
        _
      $region40: #{slim_stage.3} parent=11 // pred_fallthru
        _
      // Predicated region
      $region41: #{slim_stage.3} parent=11 // pred_check
        %p359 = pneg %p213
      $region42: #{slim_stage.3} parent=11 // pred_check_branch
        %361 = sbr.rel (%p359) target = $region44
      $region43: #{slim_stage.3} parent=11 // pred_region
        _
      $region44: #{slim_stage.3} parent=11 // pred_fallthru
        _
      // Predicated region
      $region45: #{slim_stage.3} parent=11 // pred_check
        %p362 = pneg %p234
      $region46: #{slim_stage.3} parent=11 // pred_check_branch
        %364 = sbr.rel (%p362) target = $region48
      $region47: #{slim_stage.3} parent=11 // pred_region
        _
      $region48: #{slim_stage.3} parent=11 // pred_fallthru
        _
      // Predicated region
      $region49: #{slim_stage.3} parent=11 // pred_check
        %p365 = pneg %p255
      $region50: #{slim_stage.3} parent=11 // pred_check_branch
        %367 = sbr.rel (%p365) target = $region52
      $region51: #{slim_stage.3} parent=11 // pred_region
        _
      $region52: #{slim_stage.3} parent=11 // pred_fallthru
        _
      // Predicated region
      $region53: #{slim_stage.3} parent=11 // pred_check
        %p368 = pneg %p276
      $region54: #{slim_stage.3} parent=11 // pred_check_branch
        %370 = sbr.rel (%p368) target = $region56
      $region55: #{slim_stage.3} parent=11 // pred_region
        _
      $region56: #{slim_stage.3} parent=11 // pred_fallthru
        _
      // Predicated region
      $region57: #{slim_stage.3} parent=11 // pred_check
        %p371 = pneg %p297
      $region58: #{slim_stage.3} parent=11 // pred_check_branch
        %373 = sbr.rel (%p371) target = $region60
      $region59: #{slim_stage.3} parent=11 // pred_region
        _
      $region60: #{slim_stage.3} parent=11 // pred_fallthru
        _
    $region12: #{slim_stage.3} parent=5 // pred_fallthru
      _
    %p374 = scmp.lt.s32.totalorder %s19, 2
    // Predicated region
    $region61: #{slim_stage.3} parent=5 // pred_check
      %p375 = pneg %p374
    $region62: #{slim_stage.3} parent=5 // pred_check_branch
      %377 = sbr.rel (%p375) target = $region64
    $region63: #{slim_stage.3} parent=5 // pred_region
      // Predicated region
      $region65: #{slim_stage.3} parent=63 // pred_check
        %p378 = pneg %p39
      $region66: #{slim_stage.3} parent=63 // pred_check_branch
        %380 = sbr.rel (%p378) target = $region68
      $region67: #{slim_stage.3} parent=63 // pred_region
        %p381 = scmp.lt.s32.totalorder %s19, 1
        %s382 = scalar_select %p381, %s19, 1
        %s383 = smul.addr %s382, 32
        %s384 = smul.addr %s383, 4
        %s385 = scalar_lea.vmem %s0, %s384
      $region68: #{slim_stage.3} parent=63 // pred_fallthru
        _
    $region64: #{slim_stage.3} parent=5 // pred_fallthru
      _
    %p386 = scmp.le.s32.totalorder 1, %s19
    %p387 = scmp.lt.s32.totalorder %s19, 3
    %p388 = pnand %p386, %p387
    %p389 = pneg %p388
    // Predicated region
    $region69: #{slim_stage.3} parent=5 // pred_check
      _
    $region70: #{slim_stage.3} parent=5 // pred_check_branch
      %391 = sbr.rel (%p388) target = $region72
    $region71: #{slim_stage.3} parent=5 // pred_region
      %s392 = ssub.s32 %s19, 1
      %p393 = scmp.lt.s32.totalorder %s24, 1
      %s394 = scalar_select %p393, %s24, 1
      %s395 = smul.addr %s394, 32
      %s396 = smul.addr %s395, 4
      %s397 = scalar_lea.vmem %s0, %s396
      %p398 = pneg %p45
      %p399 = pneg %p42
      %p400 = pneg %p66
      %p401 = pneg %p63
      %p402 = pneg %p87
      %p403 = pneg %p84
      %p404 = pneg %p108
      %p405 = pneg %p105
      %p406 = pneg %p129
      %p407 = pneg %p126
      %p408 = pneg %p150
      %p409 = pneg %p147
      %p410 = pneg %p171
      %p411 = pneg %p168
      %p412 = pneg %p192
      %p413 = pneg %p189
      %p414 = pneg %p213
      %p415 = pneg %p210
      %p416 = pneg %p234
      %p417 = pneg %p231
      %p418 = pneg %p255
      %p419 = pneg %p252
      %p420 = pneg %p276
      %p421 = pneg %p273
      %p422 = pneg %p297
      %p423 = pneg %p294
      %p424 = pneg %p323
      %p425 = pneg %p320
      %p426 = scmp.lt.s32.totalorder %s24, 1
      %s427 = scalar_select %p426, %s24, 1
      %s428 = smul.addr %s427, 8
      %s429 = smul.addr %s428, 4
      %s430 = scalar_lea.vmem %s13, %s429
      %p431 = scmp.lt.s32.totalorder %s24, 1
      %s432 = scalar_select %p431, %s24, 1
      %s433 = smul.addr %s432, 32
      %s434 = smul.addr %s433, 4
      %s435 = scalar_lea.vmem %s0, %s434
      %p436 = scmp.lt.s32.totalorder %s24, 1
      %s437 = scalar_select %p436, %s24, 1
      %s438 = smul.addr %s437, 8
      %s439 = smul.addr %s438, 4
      %s440 = scalar_lea.vmem %s13, %s439
      %v442 = vld [vmem:[%s435] sm:$0xf]
      %v443 = vld [vmem:[%s435 + $0x4] sm:$0xf]
      %v444 = vld [vmem:[%s435 + $0x8] sm:$0xf]
      %v445 = vld [vmem:[%s435 + $0xc] sm:$0xf]
      %v446 = vld [vmem:[%s435 + $0x10] sm:$0xf]
      %v447 = vld [vmem:[%s435 + $0x14] sm:$0xf]
      %v448 = vld [vmem:[%s435 + $0x18] sm:$0xf]
      %v449 = vld [vmem:[%s435 + $0x1c] sm:$0xf]
      %v450 = vld [vmem:[%s435 + $0x20] sm:$0xf]
      %v451 = vld [vmem:[%s435 + $0x24] sm:$0xf]
      %v452 = vld [vmem:[%s435 + $0x28] sm:$0xf]
      %v453 = vld [vmem:[%s435 + $0x2c] sm:$0xf]
      %v454 = vld [vmem:[%s435 + $0x30] sm:$0xf]
      %v455 = vld [vmem:[%s435 + $0x34] sm:$0xf]
      %v456 = vld [vmem:[%s435 + $0x38] sm:$0xf]
      %v457 = vld [vmem:[%s435 + $0x3c] sm:$0xf]
      %v458 = vld [vmem:[%s435 + $0x40] sm:$0xf]
      %v459 = vld [vmem:[%s435 + $0x44] sm:$0xf]
      %v460 = vld [vmem:[%s435 + $0x48] sm:$0xf]
      %v461 = vld [vmem:[%s435 + $0x4c] sm:$0xf]
      %v462 = vld [vmem:[%s435 + $0x50] sm:$0xf]
      %v463 = vld [vmem:[%s435 + $0x54] sm:$0xf]
      %v464 = vld [vmem:[%s435 + $0x58] sm:$0xf]
      %v465 = vld [vmem:[%s435 + $0x5c] sm:$0xf]
      %v466 = vld [vmem:[%s435 + $0x60] sm:$0xf]
      %v467 = vld [vmem:[%s435 + $0x64] sm:$0xf]
      %v468 = vld [vmem:[%s435 + $0x68] sm:$0xf]
      %v469 = vld [vmem:[%s435 + $0x6c] sm:$0xf]
      %v470 = vld [vmem:[%s435 + $0x70] sm:$0xf]
      %v471 = vld [vmem:[%s435 + $0x74] sm:$0xf]
      %v472 = vld [vmem:[%s435 + $0x78] sm:$0xf]
      %v473 = vld [vmem:[%s435 + $0x7c] sm:$0xf]
      %v474 = vld [vmem:[%s1] sm:$0xf]
      %v507 = vunpack.c.l.b16 %v442
      %v508 = vunpack.c.l.b16 %v443
      %v509 = vunpack.c.l.b16 %v444
      %v510 = vunpack.c.l.b16 %v445
      %v511 = vunpack.c.l.b16 %v446
      %v512 = vunpack.c.l.b16 %v447
      %v513 = vunpack.c.l.b16 %v448
      %v514 = vunpack.c.l.b16 %v449
      %v515 = vunpack.c.l.b16 %v450
      %v516 = vunpack.c.l.b16 %v451
      %v517 = vunpack.c.l.b16 %v452
      %v518 = vunpack.c.l.b16 %v453
      %v519 = vunpack.c.l.b16 %v454
      %v520 = vunpack.c.l.b16 %v455
      %v521 = vunpack.c.l.b16 %v456
      %v522 = vunpack.c.l.b16 %v457
      %v523 = vunpack.c.l.b16 %v458
      %v524 = vunpack.c.l.b16 %v459
      %v525 = vunpack.c.l.b16 %v460
      %v526 = vunpack.c.l.b16 %v461
      %v527 = vunpack.c.l.b16 %v462
      %v528 = vunpack.c.l.b16 %v463
      %v529 = vunpack.c.l.b16 %v464
      %v530 = vunpack.c.l.b16 %v465
      %v531 = vunpack.c.l.b16 %v466
      %v532 = vunpack.c.l.b16 %v467
      %v533 = vunpack.c.l.b16 %v468
      %v534 = vunpack.c.l.b16 %v469
      %v535 = vunpack.c.l.b16 %v470
      %v536 = vunpack.c.l.b16 %v471
      %v537 = vunpack.c.l.b16 %v472
      %v538 = vunpack.c.l.b16 %v473
      %v539 = vpack.c.b16 %v508, %v507
      %v540 = vpack.c.b16 %v510, %v509
      %v541 = vpack.c.b16 %v512, %v511
      %v542 = vpack.c.b16 %v514, %v513
      %v543 = vpack.c.b16 %v516, %v515
      %v544 = vpack.c.b16 %v518, %v517
      %v545 = vpack.c.b16 %v520, %v519
      %v546 = vpack.c.b16 %v522, %v521
      %v547 = vpack.c.b16 %v524, %v523
      %v548 = vpack.c.b16 %v526, %v525
      %v549 = vpack.c.b16 %v528, %v527
      %v550 = vpack.c.b16 %v530, %v529
      %v551 = vpack.c.b16 %v532, %v531
      %v552 = vpack.c.b16 %v534, %v533
      %v553 = vpack.c.b16 %v536, %v535
      %v554 = vpack.c.b16 %v538, %v537
      %vm555 = vcmask 64512
      %v557 = vsel %vm555, %v539, 0
      %v560 = vsel %vm555, %v540, 0
      %v563 = vsel %vm555, %v541, 0
      %v566 = vsel %vm555, %v542, 0
      %v569 = vsel %vm555, %v543, 0
      %v572 = vsel %vm555, %v544, 0
      %v575 = vsel %vm555, %v545, 0
      %v578 = vsel %vm555, %v546, 0
      %v581 = vsel %vm555, %v547, 0
      %v584 = vsel %vm555, %v548, 0
      %v587 = vsel %vm555, %v549, 0
      %v590 = vsel %vm555, %v550, 0
      %v593 = vsel %vm555, %v551, 0
      %v596 = vsel %vm555, %v552, 0
      %v599 = vsel %vm555, %v553, 0
      %v602 = vsel %vm555, %v554, 0
      %vm604 = vcmask 1043456
      %v606 = vsel %vm604, %v474, 0
      %608 = vmatprep.subr.bf16.mxu0 0
      %609 = vmatpush1.bf16.msra.mxu0 %v606
      %610 = vmatprep.subr.bf16.mxu0 0
      %611 = vmatpush1.bf16.msra.mxu0 0
      %612 = vmatprep.subr.bf16.mxu0 0
      %613 = vmatpush1.bf16.msra.mxu0 0
      %614 = vmatprep.subr.bf16.mxu0 0
      %615 = vmatpush1.bf16.msra.mxu0 0
      %616 = vmatprep.subr.bf16.mxu0 0
      %617 = vmatpush1.bf16.msra.mxu0 0
      %618 = vmatprep.subr.bf16.mxu0 0
      %619 = vmatpush1.bf16.msra.mxu0 0
      %620 = vmatprep.subr.bf16.mxu0 0
      %621 = vmatpush1.bf16.msra.mxu0 0
      %622 = vmatprep.subr.bf16.mxu0 0
      %623 = vmatpush1.bf16.msra.mxu0 0
      %624 = vmatprep.subr.bf16.mxu0 0
      %625 = vmatpush1.bf16.msra.mxu0 0
      %626 = vmatprep.subr.bf16.mxu0 0
      %627 = vmatpush1.bf16.msra.mxu0 0
      %628 = vmatprep.subr.bf16.mxu0 0
      %629 = vmatpush1.bf16.msra.mxu0 0
      %630 = vmatprep.subr.bf16.mxu0 0
      %631 = vmatpush1.bf16.msra.mxu0 0
      %632 = vmatprep.subr.bf16.mxu0 0
      %633 = vmatpush1.bf16.msra.mxu0 0
      %634 = vmatprep.subr.bf16.mxu0 0
      %635 = vmatpush1.bf16.msra.mxu0 0
      %636 = vmatprep.subr.bf16.mxu0 0
      %637 = vmatpush1.bf16.msra.mxu0 0
      %638 = vmatprep.subr.bf16.mxu0 0
      %639 = vmatpush1.bf16.msra.mxu0 0
      %640 = vmatprep.mubr.bf16.mxu0 0
      %641 = vmatmul.mubr.bf16.gmra.mrb[0].mxu0 %v557
      %v642 = vpop.f32.mrb[0].mxu0
      %v643 = vadd.f32 0.0, %v642
      %v644 = vpop.f32.mrb[0].mxu0
      %v645 = vpop.f32.mrb[0].mxu0
      %v646 = vadd.f32 0.0, %v645
      %v647 = vpop.f32.mrb[0].mxu0
      %648 = vmatprep.mubr.bf16.mxu0 0
      %649 = vmatmul.mubr.bf16.gmra.mrb[0].mxu0 %v560
      %v650 = vpop.f32.mrb[0].mxu0
      %v651 = vadd.f32 0.0, %v650
      %v652 = vpop.f32.mrb[0].mxu0
      %v653 = vpop.f32.mrb[0].mxu0
      %v654 = vadd.f32 0.0, %v653
      %v655 = vpop.f32.mrb[0].mxu0
      %656 = vmatprep.mubr.bf16.mxu0 0
      %657 = vmatmul.mubr.bf16.gmra.mrb[0].mxu0 %v563
      %v658 = vpop.f32.mrb[0].mxu0
      %v659 = vadd.f32 0.0, %v658
      %v660 = vpop.f32.mrb[0].mxu0
      %v661 = vpop.f32.mrb[0].mxu0
      %v662 = vadd.f32 0.0, %v661
      %v663 = vpop.f32.mrb[0].mxu0
      %664 = vmatprep.mubr.bf16.mxu0 0
      %665 = vmatmul.mubr.bf16.gmra.mrb[0].mxu0 %v566
      %v666 = vpop.f32.mrb[0].mxu0
      %v667 = vadd.f32 0.0, %v666
      %v668 = vpop.f32.mrb[0].mxu0
      %v669 = vpop.f32.mrb[0].mxu0
      %v670 = vadd.f32 0.0, %v669
      %v671 = vpop.f32.mrb[0].mxu0
      %672 = vmatprep.mubr.bf16.mxu0 0
      %673 = vmatmul.mubr.bf16.gmra.mrb[0].mxu0 %v569
      %v674 = vpop.f32.mrb[0].mxu0
      %v675 = vadd.f32 0.0, %v674
      %v676 = vpop.f32.mrb[0].mxu0
      %v677 = vpop.f32.mrb[0].mxu0
      %v678 = vadd.f32 0.0, %v677
      %v679 = vpop.f32.mrb[0].mxu0
      %680 = vmatprep.mubr.bf16.mxu0 0
      %681 = vmatmul.mubr.bf16.gmra.mrb[0].mxu0 %v572
      %v682 = vpop.f32.mrb[0].mxu0
      %v683 = vadd.f32 0.0, %v682
      %v684 = vpop.f32.mrb[0].mxu0
      %v685 = vpop.f32.mrb[0].mxu0
      %v686 = vadd.f32 0.0, %v685
      %v687 = vpop.f32.mrb[0].mxu0
      %688 = vmatprep.mubr.bf16.mxu0 0
      %689 = vmatmul.mubr.bf16.gmra.mrb[0].mxu0 %v575
      %v690 = vpop.f32.mrb[0].mxu0
      %v691 = vadd.f32 0.0, %v690
      %v692 = vpop.f32.mrb[0].mxu0
      %v693 = vpop.f32.mrb[0].mxu0
      %v694 = vadd.f32 0.0, %v693
      %v695 = vpop.f32.mrb[0].mxu0
      %696 = vmatprep.mubr.bf16.mxu0 0
      %697 = vmatmul.mubr.bf16.gmra.mrb[0].mxu0 %v578
      %v698 = vpop.f32.mrb[0].mxu0
      %v699 = vadd.f32 0.0, %v698
      %v700 = vpop.f32.mrb[0].mxu0
      %v701 = vpop.f32.mrb[0].mxu0
      %v702 = vadd.f32 0.0, %v701
      %v703 = vpop.f32.mrb[0].mxu0
      %704 = vmatprep.mubr.bf16.mxu0 0
      %705 = vmatmul.mubr.bf16.gmra.mrb[0].mxu0 %v581
      %v706 = vpop.f32.mrb[0].mxu0
      %v707 = vadd.f32 0.0, %v706
      %v708 = vpop.f32.mrb[0].mxu0
      %v709 = vpop.f32.mrb[0].mxu0
      %v710 = vadd.f32 0.0, %v709
      %v711 = vpop.f32.mrb[0].mxu0
      %712 = vmatprep.mubr.bf16.mxu0 0
      %713 = vmatmul.mubr.bf16.gmra.mrb[0].mxu0 %v584
      %v714 = vpop.f32.mrb[0].mxu0
      %v715 = vadd.f32 0.0, %v714
      %v716 = vpop.f32.mrb[0].mxu0
      %v717 = vpop.f32.mrb[0].mxu0
      %v718 = vadd.f32 0.0, %v717
      %v719 = vpop.f32.mrb[0].mxu0
      %720 = vmatprep.mubr.bf16.mxu0 0
      %721 = vmatmul.mubr.bf16.gmra.mrb[0].mxu0 %v587
      %v722 = vpop.f32.mrb[0].mxu0
      %v723 = vadd.f32 0.0, %v722
      %v724 = vpop.f32.mrb[0].mxu0
      %v725 = vpop.f32.mrb[0].mxu0
      %v726 = vadd.f32 0.0, %v725
      %v727 = vpop.f32.mrb[0].mxu0
      %728 = vmatprep.mubr.bf16.mxu0 0
      %729 = vmatmul.mubr.bf16.gmra.mrb[0].mxu0 %v590
      %v730 = vpop.f32.mrb[0].mxu0
      %v731 = vadd.f32 0.0, %v730
      %v732 = vpop.f32.mrb[0].mxu0
      %v733 = vpop.f32.mrb[0].mxu0
      %v734 = vadd.f32 0.0, %v733
      %v735 = vpop.f32.mrb[0].mxu0
      %736 = vmatprep.mubr.bf16.mxu0 0
      %737 = vmatmul.mubr.bf16.gmra.mrb[0].mxu0 %v593
      %v738 = vpop.f32.mrb[0].mxu0
      %v739 = vadd.f32 0.0, %v738
      %v740 = vpop.f32.mrb[0].mxu0
      %v741 = vpop.f32.mrb[0].mxu0
      %v742 = vadd.f32 0.0, %v741
      %v743 = vpop.f32.mrb[0].mxu0
      %744 = vmatprep.mubr.bf16.mxu0 0
      %745 = vmatmul.mubr.bf16.gmra.mrb[0].mxu0 %v596
      %v746 = vpop.f32.mrb[0].mxu0
      %v747 = vadd.f32 0.0, %v746
      %v748 = vpop.f32.mrb[0].mxu0
      %v749 = vpop.f32.mrb[0].mxu0
      %v750 = vadd.f32 0.0, %v749
      %v751 = vpop.f32.mrb[0].mxu0
      %752 = vmatprep.mubr.bf16.mxu0 0
      %753 = vmatmul.mubr.bf16.gmra.mrb[0].mxu0 %v599
      %v754 = vpop.f32.mrb[0].mxu0
      %v755 = vadd.f32 0.0, %v754
      %v756 = vpop.f32.mrb[0].mxu0
      %v757 = vpop.f32.mrb[0].mxu0
      %v758 = vadd.f32 0.0, %v757
      %v759 = vpop.f32.mrb[0].mxu0
      %760 = vmatprep.mubr.bf16.mxu0 0
      %761 = vmatmul.mubr.bf16.gmra.mrb[0].mxu0 %v602
      %v762 = vpop.f32.mrb[0].mxu0
      %v763 = vadd.f32 0.0, %v762
      %v764 = vpop.f32.mrb[0].mxu0
      %v765 = vpop.f32.mrb[0].mxu0
      %v766 = vadd.f32 0.0, %v765
      %v767 = vpop.f32.mrb[0].mxu0
      %768 = vdwg.mxu0
      %v769 = vld [vmem:[%s2] sm:$0x1]
      %v771 = vlaneseq
      %v772 = vshrl.u32 %v771, 7
      %v773 = vsub.s32 0, %v772
      %v774 = vrot.slane %v769, %v773
      %v776 = vmul.f32 %v643, %v774
      %v777 = vmul.f32 %v646, %v774
      %v778 = vmul.f32 %v651, %v774
      %v779 = vmul.f32 %v654, %v774
      %v780 = vmul.f32 %v659, %v774
      %v781 = vmul.f32 %v662, %v774
      %v782 = vmul.f32 %v667, %v774
      %v783 = vmul.f32 %v670, %v774
      %v784 = vmul.f32 %v675, %v774
      %v785 = vmul.f32 %v678, %v774
      %v786 = vmul.f32 %v683, %v774
      %v787 = vmul.f32 %v686, %v774
      %v788 = vmul.f32 %v691, %v774
      %v789 = vmul.f32 %v694, %v774
      %v790 = vmul.f32 %v699, %v774
      %v791 = vmul.f32 %v702, %v774
      %v792 = vmul.f32 %v707, %v774
      %v793 = vmul.f32 %v710, %v774
      %v794 = vmul.f32 %v715, %v774
      %v795 = vmul.f32 %v718, %v774
      %v796 = vmul.f32 %v723, %v774
      %v797 = vmul.f32 %v726, %v774
      %v798 = vmul.f32 %v731, %v774
      %v799 = vmul.f32 %v734, %v774
      %v800 = vmul.f32 %v739, %v774
      %v801 = vmul.f32 %v742, %v774
      %v802 = vmul.f32 %v747, %v774
      %v803 = vmul.f32 %v750, %v774
      %v804 = vmul.f32 %v755, %v774
      %v805 = vmul.f32 %v758, %v774
      %v806 = vmul.f32 %v763, %v774
      %v807 = vmul.f32 %v766, %v774
      %v808 = vld [vmem:[%s3] sm:$0x1]
      %v810 = vlaneseq
      %v811 = vshrl.u32 %v810, 7
      %v812 = vsub.s32 0, %v811
      %v813 = vrot.slane %v808, %v812
      %v815 = vadd.f32 %v776, %v813
      %v816 = vadd.f32 %v777, %v813
      %v817 = vadd.f32 %v778, %v813
      %v818 = vadd.f32 %v779, %v813
      %v819 = vadd.f32 %v780, %v813
      %v820 = vadd.f32 %v781, %v813
      %v821 = vadd.f32 %v782, %v813
      %v822 = vadd.f32 %v783, %v813
      %v823 = vadd.f32 %v784, %v813
      %v824 = vadd.f32 %v785, %v813
      %v825 = vadd.f32 %v786, %v813
      %v826 = vadd.f32 %v787, %v813
      %v827 = vadd.f32 %v788, %v813
      %v828 = vadd.f32 %v789, %v813
      %v829 = vadd.f32 %v790, %v813
      %v830 = vadd.f32 %v791, %v813
      %v831 = vadd.f32 %v792, %v813
      %v832 = vadd.f32 %v793, %v813
      %v833 = vadd.f32 %v794, %v813
      %v834 = vadd.f32 %v795, %v813
      %v835 = vadd.f32 %v796, %v813
      %v836 = vadd.f32 %v797, %v813
      %v837 = vadd.f32 %v798, %v813
      %v838 = vadd.f32 %v799, %v813
      %v839 = vadd.f32 %v800, %v813
      %v840 = vadd.f32 %v801, %v813
      %v841 = vadd.f32 %v802, %v813
      %v842 = vadd.f32 %v803, %v813
      %v843 = vadd.f32 %v804, %v813
      %v844 = vadd.f32 %v805, %v813
      %v845 = vadd.f32 %v806, %v813
      %v846 = vadd.f32 %v807, %v813
      %v847 = vmax.f32 %v815, 0.0
      %v848 = vmax.f32 %v816, 0.0
      %v849 = vmax.f32 %v817, 0.0
      %v850 = vmax.f32 %v818, 0.0
      %v851 = vmax.f32 %v819, 0.0
      %v852 = vmax.f32 %v820, 0.0
      %v853 = vmax.f32 %v821, 0.0
      %v854 = vmax.f32 %v822, 0.0
      %v855 = vmax.f32 %v823, 0.0
      %v856 = vmax.f32 %v824, 0.0
      %v857 = vmax.f32 %v825, 0.0
      %v858 = vmax.f32 %v826, 0.0
      %v859 = vmax.f32 %v827, 0.0
      %v860 = vmax.f32 %v828, 0.0
      %v861 = vmax.f32 %v829, 0.0
      %v862 = vmax.f32 %v830, 0.0
      %v863 = vmax.f32 %v831, 0.0
      %v864 = vmax.f32 %v832, 0.0
      %v865 = vmax.f32 %v833, 0.0
      %v866 = vmax.f32 %v834, 0.0
      %v867 = vmax.f32 %v835, 0.0
      %v868 = vmax.f32 %v836, 0.0
      %v869 = vmax.f32 %v837, 0.0
      %v870 = vmax.f32 %v838, 0.0
      %v871 = vmax.f32 %v839, 0.0
      %v872 = vmax.f32 %v840, 0.0
      %v873 = vmax.f32 %v841, 0.0
      %v874 = vmax.f32 %v842, 0.0
      %v875 = vmax.f32 %v843, 0.0
      %v876 = vmax.f32 %v844, 0.0
      %v877 = vmax.f32 %v845, 0.0
      %v878 = vmax.f32 %v846, 0.0
      %vm879 = vcmask 130048
      %880 = vst.msk [vmem:[#allocation2] sm:$0xff] %vm879, 0.0
      %881 = vst.msk [vmem:[#allocation2 + $0x8] sm:$0xff] %vm879, 0.0
      %vm882 = vcmask 123904
      %883 = vst.msk [vmem:[#allocation2 + $0x10] sm:$0x3] %vm882, 0.0
      %884 = vst.msk [vmem:[#allocation2 + $0x18] sm:$0xff] %vm879, 0.0
      %885 = vst.msk [vmem:[#allocation2 + $0x20] sm:$0xff] %vm879, 0.0
      %886 = vst.msk [vmem:[#allocation2 + $0x28] sm:$0x3] %vm882, 0.0
      %887 = vst.msk [vmem:[#allocation2 + $0x30] sm:$0xff] %vm879, 0.0
      %888 = vst.msk [vmem:[#allocation2 + $0x38] sm:$0xff] %vm879, 0.0
      %889 = vst.msk [vmem:[#allocation2 + $0x40] sm:$0x3] %vm882, 0.0
      %890 = vst.msk [vmem:[#allocation2 + $0x48] sm:$0xff] %vm879, 0.0
      %891 = vst.msk [vmem:[#allocation2 + $0x50] sm:$0xff] %vm879, 0.0
      %892 = vst.msk [vmem:[#allocation2 + $0x58] sm:$0x3] %vm882, 0.0
      %893 = vst.msk [vmem:[#allocation2 + $0x60] sm:$0xff] %vm879, 0.0
      %894 = vst.msk [vmem:[#allocation2 + $0x68] sm:$0xff] %vm879, 0.0
      %895 = vst.msk [vmem:[#allocation2 + $0x70] sm:$0x3] %vm882, 0.0
      %896 = vst.msk [vmem:[#allocation2 + $0x78] sm:$0xff] %vm879, 0.0
      %897 = vst.msk [vmem:[#allocation2 + $0x80] sm:$0xff] %vm879, 0.0
      %898 = vst.msk [vmem:[#allocation2 + $0x88] sm:$0x3] %vm882, 0.0
      %899 = vst.msk [vmem:[#allocation2 + $0x90] sm:$0xff] %vm879, 0.0
      %900 = vst.msk [vmem:[#allocation2 + $0x98] sm:$0xff] %vm879, 0.0
      %901 = vst.msk [vmem:[#allocation2 + $0xa0] sm:$0x3] %vm882, 0.0
      %902 = vst.msk [vmem:[#allocation2 + $0xa8] sm:$0xff] %vm879, 0.0
      %903 = vst.msk [vmem:[#allocation2 + $0xb0] sm:$0xff] %vm879, 0.0
      %904 = vst.msk [vmem:[#allocation2 + $0xb8] sm:$0x3] %vm882, 0.0
      %905 = vst.msk [vmem:[#allocation2 + $0xc0] sm:$0xff] %vm879, 0.0
      %906 = vst.msk [vmem:[#allocation2 + $0xc8] sm:$0xff] %vm879, 0.0
      %907 = vst.msk [vmem:[#allocation2 + $0xd0] sm:$0x3] %vm882, 0.0
      %908 = vst.msk [vmem:[#allocation2 + $0xd8] sm:$0xff] %vm879, 0.0
      %909 = vst.msk [vmem:[#allocation2 + $0xe0] sm:$0xff] %vm879, 0.0
      %910 = vst.msk [vmem:[#allocation2 + $0xe8] sm:$0x3] %vm882, 0.0
      %911 = vst.msk [vmem:[#allocation2 + $0xf0] sm:$0xff] %vm879, 0.0
      %912 = vst.msk [vmem:[#allocation2 + $0xf8] sm:$0xff] %vm879, 0.0
      %913 = vst.msk [vmem:[#allocation2 + $0x100] sm:$0x3] %vm882, 0.0
      %914 = vst.msk [vmem:[#allocation2 + $0x108] sm:$0xff] %vm879, 0.0
      %915 = vst.msk [vmem:[#allocation2 + $0x110] sm:$0xff] %vm879, 0.0
      %916 = vst.msk [vmem:[#allocation2 + $0x118] sm:$0x3] %vm882, 0.0
      %917 = vst.msk [vmem:[#allocation2 + $0x120] sm:$0xff] %vm879, 0.0
      %918 = vst.msk [vmem:[#allocation2 + $0x128] sm:$0xff] %vm879, 0.0
      %919 = vst.msk [vmem:[#allocation2 + $0x130] sm:$0x3] %vm882, 0.0
      %920 = vst.msk [vmem:[#allocation2 + $0x138] sm:$0xff] %vm879, 0.0
      %921 = vst.msk [vmem:[#allocation2 + $0x140] sm:$0xff] %vm879, 0.0
      %922 = vst.msk [vmem:[#allocation2 + $0x148] sm:$0x3] %vm882, 0.0
      %923 = vst.msk [vmem:[#allocation2 + $0x150] sm:$0xff] %vm879, 0.0
      %924 = vst.msk [vmem:[#allocation2 + $0x158] sm:$0xff] %vm879, 0.0
      %925 = vst.msk [vmem:[#allocation2 + $0x160] sm:$0x3] %vm882, 0.0
      %926 = vst.msk [vmem:[#allocation2 + $0x168] sm:$0xff] %vm879, 0.0
      %927 = vst.msk [vmem:[#allocation2 + $0x170] sm:$0xff] %vm879, 0.0
      %928 = vst.msk [vmem:[#allocation2 + $0x178] sm:$0x3] %vm882, 0.0
      %929 = vst.msk [vmem:[#allocation2 + $0x180] sm:$0xff] %vm879, 0.0
      %930 = vst.msk [vmem:[#allocation2 + $0x188] sm:$0xff] %vm879, 0.0
      %931 = vst.msk [vmem:[#allocation2 + $0x190] sm:$0x3] %vm882, 0.0
      %932 = vst.msk [vmem:[#allocation2 + $0x198] sm:$0xff] %vm879, 0.0
      %933 = vst.msk [vmem:[#allocation2 + $0x1a0] sm:$0xff] %vm879, 0.0
      %934 = vst.msk [vmem:[#allocation2 + $0x1a8] sm:$0x3] %vm882, 0.0
      %s935 = scalar_lea.vmem [#allocation2], 24
      %936 = vst.msk [vmem:[%s935 + $0x1] sm:$0xff] %vm879, %v847
      %937 = vst.msk [vmem:[%s935 + $0x9] sm:$0xff] %vm879, %v848
      %938 = vst.msk [vmem:[%s935 + $0x19] sm:$0xff] %vm879, %v849
      %939 = vst.msk [vmem:[%s935 + $0x21] sm:$0xff] %vm879, %v850
      %940 = vst.msk [vmem:[%s935 + $0x31] sm:$0xff] %vm879, %v851
      %941 = vst.msk [vmem:[%s935 + $0x39] sm:$0xff] %vm879, %v852
      %942 = vst.msk [vmem:[%s935 + $0x49] sm:$0xff] %vm879, %v853
      %943 = vst.msk [vmem:[%s935 + $0x51] sm:$0xff] %vm879, %v854
      %944 = vst.msk [vmem:[%s935 + $0x61] sm:$0xff] %vm879, %v855
      %945 = vst.msk [vmem:[%s935 + $0x69] sm:$0xff] %vm879, %v856
      %946 = vst.msk [vmem:[%s935 + $0x79] sm:$0xff] %vm879, %v857
      %947 = vst.msk [vmem:[%s935 + $0x81] sm:$0xff] %vm879, %v858
      %948 = vst.msk [vmem:[%s935 + $0x91] sm:$0xff] %vm879, %v859
      %949 = vst.msk [vmem:[%s935 + $0x99] sm:$0xff] %vm879, %v860
      %950 = vst.msk [vmem:[%s935 + $0xa9] sm:$0xff] %vm879, %v861
      %951 = vst.msk [vmem:[%s935 + $0xb1] sm:$0xff] %vm879, %v862
      %952 = vst.msk [vmem:[%s935 + $0xc1] sm:$0xff] %vm879, %v863
      %953 = vst.msk [vmem:[%s935 + $0xc9] sm:$0xff] %vm879, %v864
      %954 = vst.msk [vmem:[%s935 + $0xd9] sm:$0xff] %vm879, %v865
      %955 = vst.msk [vmem:[%s935 + $0xe1] sm:$0xff] %vm879, %v866
      %956 = vst.msk [vmem:[%s935 + $0xf1] sm:$0xff] %vm879, %v867
      %957 = vst.msk [vmem:[%s935 + $0xf9] sm:$0xff] %vm879, %v868
      %958 = vst.msk [vmem:[%s935 + $0x109] sm:$0xff] %vm879, %v869
      %959 = vst.msk [vmem:[%s935 + $0x111] sm:$0xff] %vm879, %v870
      %960 = vst.msk [vmem:[%s935 + $0x121] sm:$0xff] %vm879, %v871
      %961 = vst.msk [vmem:[%s935 + $0x129] sm:$0xff] %vm879, %v872
      %962 = vst.msk [vmem:[%s935 + $0x139] sm:$0xff] %vm879, %v873
      %963 = vst.msk [vmem:[%s935 + $0x141] sm:$0xff] %vm879, %v874
      %964 = vst.msk [vmem:[%s935 + $0x151] sm:$0xff] %vm879, %v875
      %965 = vst.msk [vmem:[%s935 + $0x159] sm:$0xff] %vm879, %v876
      %966 = vst.msk [vmem:[%s935 + $0x169] sm:$0xff] %vm879, %v877
      %967 = vst.msk [vmem:[%s935 + $0x171] sm:$0xff] %vm879, %v878
      %v968 = vld [vmem:[%s4] sm:$0xff]
      %v969 = vld [vmem:[%s4 + $0x8] sm:$0x1]
      %v970 = vld [vmem:[#allocation2] sm:$0xff]
      %v971 = vld [vmem:[#allocation2 + $0x8] sm:$0xff]
      %v972 = vld [vmem:[#allocation2 + $0x18] sm:$0xff]
      %v973 = vld [vmem:[#allocation2 + $0x20] sm:$0xff]
      %v974 = vld [vmem:[#allocation2 + $0x30] sm:$0xff]
      %v975 = vld [vmem:[#allocation2 + $0x38] sm:$0xff]
      %v976 = vld [vmem:[#allocation2 + $0x48] sm:$0xff]
      %v977 = vld [vmem:[#allocation2 + $0x50] sm:$0xff]
      %v978 = vld [vmem:[#allocation2 + $0x60] sm:$0xff]
      %v979 = vld [vmem:[#allocation2 + $0x68] sm:$0xff]
      %v980 = vld [vmem:[#allocation2 + $0x78] sm:$0xff]
      %v981 = vld [vmem:[#allocation2 + $0x80] sm:$0xff]
      %v982 = vld [vmem:[#allocation2 + $0x90] sm:$0xff]
      %v983 = vld [vmem:[#allocation2 + $0x98] sm:$0xff]
      %v984 = vld [vmem:[#allocation2 + $0xa8] sm:$0xff]
      %v985 = vld [vmem:[#allocation2 + $0xb0] sm:$0xff]
      %v986 = vld [vmem:[#allocation2 + $0xc0] sm:$0xff]
      %v987 = vld [vmem:[#allocation2 + $0xc8] sm:$0xff]
      %v988 = vld [vmem:[#allocation2 + $0xd8] sm:$0xff]
      %v989 = vld [vmem:[#allocation2 + $0xe0] sm:$0xff]
      %v990 = vld [vmem:[#allocation2 + $0xf0] sm:$0xff]
      %v991 = vld [vmem:[#allocation2 + $0xf8] sm:$0xff]
      %v992 = vld [vmem:[#allocation2 + $0x108] sm:$0xff]
      %v993 = vld [vmem:[#allocation2 + $0x110] sm:$0xff]
      %v994 = vld [vmem:[#allocation2 + $0x120] sm:$0xff]
      %v995 = vld [vmem:[#allocation2 + $0x128] sm:$0xff]
      %v996 = vld [vmem:[#allocation2 + $0x138] sm:$0xff]
      %v997 = vld [vmem:[#allocation2 + $0x140] sm:$0xff]
      %v998 = vld [vmem:[#allocation2 + $0x150] sm:$0xff]
      %v999 = vld [vmem:[#allocation2 + $0x158] sm:$0xff]
      %v1000 = vld [vmem:[#allocation2 + $0x168] sm:$0xff]
      %v1001 = vld [vmem:[#allocation2 + $0x170] sm:$0xff]
      %v1002 = vlaneseq
      %v1003 = vshrl.u32 %v1002, 7
      %v1004 = vsub.s32 0, %v1003
      %v1005 = vrot.slane %v968, %v1004
      %v1006 = vmul.f32 %v970, %v1005
      %v1007 = vmul.f32 %v971, %v1005
      %v1008 = vmul.f32 %v972, %v1005
      %v1009 = vmul.f32 %v973, %v1005
      %v1010 = vmul.f32 %v974, %v1005
      %v1011 = vmul.f32 %v975, %v1005
      %v1012 = vmul.f32 %v976, %v1005
      %v1013 = vmul.f32 %v977, %v1005
      %v1014 = vmul.f32 %v978, %v1005
      %v1015 = vmul.f32 %v979, %v1005
      %v1016 = vmul.f32 %v980, %v1005
      %v1017 = vmul.f32 %v981, %v1005
      %v1018 = vmul.f32 %v982, %v1005
      %v1019 = vmul.f32 %v983, %v1005
      %v1020 = vmul.f32 %v984, %v1005
      %v1021 = vmul.f32 %v985, %v1005
      %v1022 = vmul.f32 %v986, %v1005
      %v1023 = vmul.f32 %v987, %v1005
      %v1024 = vmul.f32 %v988, %v1005
      %v1025 = vmul.f32 %v989, %v1005
      %v1026 = vmul.f32 %v990, %v1005
      %v1027 = vmul.f32 %v991, %v1005
      %v1028 = vmul.f32 %v992, %v1005
      %v1029 = vmul.f32 %v993, %v1005
      %v1030 = vmul.f32 %v994, %v1005
      %v1031 = vmul.f32 %v995, %v1005
      %v1032 = vmul.f32 %v996, %v1005
      %v1033 = vmul.f32 %v997, %v1005
      %v1034 = vmul.f32 %v998, %v1005
      %v1035 = vmul.f32 %v999, %v1005
      %v1036 = vmul.f32 %v1000, %v1005
      %v1037 = vmul.f32 %v1001, %v1005
      %v1038 = vadd.f32 %v1006, 0.0
      %v1039 = vadd.f32 %v1007, 0.0
      %v1040 = vadd.f32 %v1008, 0.0
      %v1041 = vadd.f32 %v1009, 0.0
      %v1042 = vadd.f32 %v1010, 0.0
      %v1043 = vadd.f32 %v1011, 0.0
      %v1044 = vadd.f32 %v1012, 0.0
      %v1045 = vadd.f32 %v1013, 0.0
      %v1046 = vadd.f32 %v1014, 0.0
      %v1047 = vadd.f32 %v1015, 0.0
      %v1048 = vadd.f32 %v1016, 0.0
      %v1049 = vadd.f32 %v1017, 0.0
      %v1050 = vadd.f32 %v1018, 0.0
      %v1051 = vadd.f32 %v1019, 0.0
      %v1052 = vadd.f32 %v1020, 0.0
      %v1053 = vadd.f32 %v1021, 0.0
      %v1054 = vadd.f32 %v1022, 0.0
      %v1055 = vadd.f32 %v1023, 0.0
      %v1056 = vadd.f32 %v1024, 0.0
      %v1057 = vadd.f32 %v1025, 0.0
      %v1058 = vadd.f32 %v1026, 0.0
      %v1059 = vadd.f32 %v1027, 0.0
      %v1060 = vadd.f32 %v1028, 0.0
      %v1061 = vadd.f32 %v1029, 0.0
      %v1062 = vadd.f32 %v1030, 0.0
      %v1063 = vadd.f32 %v1031, 0.0
      %v1064 = vadd.f32 %v1032, 0.0
      %v1065 = vadd.f32 %v1033, 0.0
      %v1066 = vadd.f32 %v1034, 0.0
      %v1067 = vadd.f32 %v1035, 0.0
      %v1068 = vadd.f32 %v1036, 0.0
      %v1069 = vadd.f32 %v1037, 0.0
      %v1070 = vld [vmem:[#allocation2 + $0x1] sm:$0xff]
      %v1071 = vld [vmem:[#allocation2 + $0x9] sm:$0xff]
      %v1072 = vld [vmem:[#allocation2 + $0x19] sm:$0xff]
      %v1073 = vld [vmem:[#allocation2 + $0x21] sm:$0xff]
      %v1074 = vld [vmem:[#allocation2 + $0x31] sm:$0xff]
      %v1075 = vld [vmem:[#allocation2 + $0x39] sm:$0xff]
      %v1076 = vld [vmem:[#allocation2 + $0x49] sm:$0xff]
      %v1077 = vld [vmem:[#allocation2 + $0x51] sm:$0xff]
      %v1078 = vld [vmem:[#allocation2 + $0x61] sm:$0xff]
      %v1079 = vld [vmem:[#allocation2 + $0x69] sm:$0xff]
      %v1080 = vld [vmem:[#allocation2 + $0x79] sm:$0xff]
      %v1081 = vld [vmem:[#allocation2 + $0x81] sm:$0xff]
      %v1082 = vld [vmem:[#allocation2 + $0x91] sm:$0xff]
      %v1083 = vld [vmem:[#allocation2 + $0x99] sm:$0xff]
      %v1084 = vld [vmem:[#allocation2 + $0xa9] sm:$0xff]
      %v1085 = vld [vmem:[#allocation2 + $0xb1] sm:$0xff]
      %v1086 = vld [vmem:[#allocation2 + $0xc1] sm:$0xff]
      %v1087 = vld [vmem:[#allocation2 + $0xc9] sm:$0xff]
      %v1088 = vld [vmem:[#allocation2 + $0xd9] sm:$0xff]
      %v1089 = vld [vmem:[#allocation2 + $0xe1] sm:$0xff]
      %v1090 = vld [vmem:[#allocation2 + $0xf1] sm:$0xff]
      %v1091 = vld [vmem:[#allocation2 + $0xf9] sm:$0xff]
      %v1092 = vld [vmem:[#allocation2 + $0x109] sm:$0xff]
      %v1093 = vld [vmem:[#allocation2 + $0x111] sm:$0xff]
      %v1094 = vld [vmem:[#allocation2 + $0x121] sm:$0xff]
      %v1095 = vld [vmem:[#allocation2 + $0x129] sm:$0xff]
      %v1096 = vld [vmem:[#allocation2 + $0x139] sm:$0xff]
      %v1097 = vld [vmem:[#allocation2 + $0x141] sm:$0xff]
      %v1098 = vld [vmem:[#allocation2 + $0x151] sm:$0xff]
      %v1099 = vld [vmem:[#allocation2 + $0x159] sm:$0xff]
      %v1100 = vld [vmem:[#allocation2 + $0x169] sm:$0xff]
      %v1101 = vld [vmem:[#allocation2 + $0x171] sm:$0xff]
      %v1102 = vlaneseq
      %v1103 = vshrl.u32 %v1102, 7
      %v1104 = vsub.s32 1, %v1103
      %v1105 = vrot.slane %v968, %v1104
      %v1106 = vmul.f32 %v1070, %v1105
      %v1107 = vmul.f32 %v1071, %v1105
      %v1108 = vmul.f32 %v1072, %v1105
      %v1109 = vmul.f32 %v1073, %v1105
      %v1110 = vmul.f32 %v1074, %v1105
      %v1111 = vmul.f32 %v1075, %v1105
      %v1112 = vmul.f32 %v1076, %v1105
      %v1113 = vmul.f32 %v1077, %v1105
      %v1114 = vmul.f32 %v1078, %v1105
      %v1115 = vmul.f32 %v1079, %v1105
      %v1116 = vmul.f32 %v1080, %v1105
      %v1117 = vmul.f32 %v1081, %v1105
      %v1118 = vmul.f32 %v1082, %v1105
      %v1119 = vmul.f32 %v1083, %v1105
      %v1120 = vmul.f32 %v1084, %v1105
      %v1121 = vmul.f32 %v1085, %v1105
      %v1122 = vmul.f32 %v1086, %v1105
      %v1123 = vmul.f32 %v1087, %v1105
      %v1124 = vmul.f32 %v1088, %v1105
      %v1125 = vmul.f32 %v1089, %v1105
      %v1126 = vmul.f32 %v1090, %v1105
      %v1127 = vmul.f32 %v1091, %v1105
      %v1128 = vmul.f32 %v1092, %v1105
      %v1129 = vmul.f32 %v1093, %v1105
      %v1130 = vmul.f32 %v1094, %v1105
      %v1131 = vmul.f32 %v1095, %v1105
      %v1132 = vmul.f32 %v1096, %v1105
      %v1133 = vmul.f32 %v1097, %v1105
      %v1134 = vmul.f32 %v1098, %v1105
      %v1135 = vmul.f32 %v1099, %v1105
      %v1136 = vmul.f32 %v1100, %v1105
      %v1137 = vmul.f32 %v1101, %v1105
      %v1138 = vadd.f32 %v1038, %v1106
      %v1139 = vadd.f32 %v1039, %v1107
      %v1140 = vadd.f32 %v1040, %v1108
      %v1141 = vadd.f32 %v1041, %v1109
      %v1142 = vadd.f32 %v1042, %v1110
      %v1143 = vadd.f32 %v1043, %v1111
      %v1144 = vadd.f32 %v1044, %v1112
      %v1145 = vadd.f32 %v1045, %v1113
      %v1146 = vadd.f32 %v1046, %v1114
      %v1147 = vadd.f32 %v1047, %v1115
      %v1148 = vadd.f32 %v1048, %v1116
      %v1149 = vadd.f32 %v1049, %v1117
      %v1150 = vadd.f32 %v1050, %v1118
      %v1151 = vadd.f32 %v1051, %v1119
      %v1152 = vadd.f32 %v1052, %v1120
      %v1153 = vadd.f32 %v1053, %v1121
      %v1154 = vadd.f32 %v1054, %v1122
      %v1155 = vadd.f32 %v1055, %v1123
      %v1156 = vadd.f32 %v1056, %v1124
      %v1157 = vadd.f32 %v1057, %v1125
      %v1158 = vadd.f32 %v1058, %v1126
      %v1159 = vadd.f32 %v1059, %v1127
      %v1160 = vadd.f32 %v1060, %v1128
      %v1161 = vadd.f32 %v1061, %v1129
      %v1162 = vadd.f32 %v1062, %v1130
      %v1163 = vadd.f32 %v1063, %v1131
      %v1164 = vadd.f32 %v1064, %v1132
      %v1165 = vadd.f32 %v1065, %v1133
      %v1166 = vadd.f32 %v1066, %v1134
      %v1167 = vadd.f32 %v1067, %v1135
      %v1168 = vadd.f32 %v1068, %v1136
      %v1169 = vadd.f32 %v1069, %v1137
      %v1170 = vld [vmem:[#allocation2 + $0x2] sm:$0xff]
      %v1171 = vld [vmem:[#allocation2 + $0xa] sm:$0xff]
      %v1172 = vld [vmem:[#allocation2 + $0x1a] sm:$0xff]
      %v1173 = vld [vmem:[#allocation2 + $0x22] sm:$0xff]
      %v1174 = vld [vmem:[#allocation2 + $0x32] sm:$0xff]
      %v1175 = vld [vmem:[#allocation2 + $0x3a] sm:$0xff]
      %v1176 = vld [vmem:[#allocation2 + $0x4a] sm:$0xff]
      %v1177 = vld [vmem:[#allocation2 + $0x52] sm:$0xff]
      %v1178 = vld [vmem:[#allocation2 + $0x62] sm:$0xff]
      %v1179 = vld [vmem:[#allocation2 + $0x6a] sm:$0xff]
      %v1180 = vld [vmem:[#allocation2 + $0x7a] sm:$0xff]
      %v1181 = vld [vmem:[#allocation2 + $0x82] sm:$0xff]
      %v1182 = vld [vmem:[#allocation2 + $0x92] sm:$0xff]
      %v1183 = vld [vmem:[#allocation2 + $0x9a] sm:$0xff]
      %v1184 = vld [vmem:[#allocation2 + $0xaa] sm:$0xff]
      %v1185 = vld [vmem:[#allocation2 + $0xb2] sm:$0xff]
      %v1186 = vld [vmem:[#allocation2 + $0xc2] sm:$0xff]
      %v1187 = vld [vmem:[#allocation2 + $0xca] sm:$0xff]
      %v1188 = vld [vmem:[#allocation2 + $0xda] sm:$0xff]
      %v1189 = vld [vmem:[#allocation2 + $0xe2] sm:$0xff]
      %v1190 = vld [vmem:[#allocation2 + $0xf2] sm:$0xff]
      %v1191 = vld [vmem:[#allocation2 + $0xfa] sm:$0xff]
      %v1192 = vld [vmem:[#allocation2 + $0x10a] sm:$0xff]
      %v1193 = vld [vmem:[#allocation2 + $0x112] sm:$0xff]
      %v1194 = vld [vmem:[#allocation2 + $0x122] sm:$0xff]
      %v1195 = vld [vmem:[#allocation2 + $0x12a] sm:$0xff]
      %v1196 = vld [vmem:[#allocation2 + $0x13a] sm:$0xff]
      %v1197 = vld [vmem:[#allocation2 + $0x142] sm:$0xff]
      %v1198 = vld [vmem:[#allocation2 + $0x152] sm:$0xff]
      %v1199 = vld [vmem:[#allocation2 + $0x15a] sm:$0xff]
      %v1200 = vld [vmem:[#allocation2 + $0x16a] sm:$0xff]
      %v1201 = vld [vmem:[#allocation2 + $0x172] sm:$0xff]
      %v1202 = vlaneseq
      %v1203 = vshrl.u32 %v1202, 7
      %v1204 = vsub.s32 2, %v1203
      %v1205 = vrot.slane %v968, %v1204
      %v1206 = vmul.f32 %v1170, %v1205
      %v1207 = vmul.f32 %v1171, %v1205
      %v1208 = vmul.f32 %v1172, %v1205
      %v1209 = vmul.f32 %v1173, %v1205
      %v1210 = vmul.f32 %v1174, %v1205
      %v1211 = vmul.f32 %v1175, %v1205
      %v1212 = vmul.f32 %v1176, %v1205
      %v1213 = vmul.f32 %v1177, %v1205
      %v1214 = vmul.f32 %v1178, %v1205
      %v1215 = vmul.f32 %v1179, %v1205
      %v1216 = vmul.f32 %v1180, %v1205
      %v1217 = vmul.f32 %v1181, %v1205
      %v1218 = vmul.f32 %v1182, %v1205
      %v1219 = vmul.f32 %v1183, %v1205
      %v1220 = vmul.f32 %v1184, %v1205
      %v1221 = vmul.f32 %v1185, %v1205
      %v1222 = vmul.f32 %v1186, %v1205
      %v1223 = vmul.f32 %v1187, %v1205
      %v1224 = vmul.f32 %v1188, %v1205
      %v1225 = vmul.f32 %v1189, %v1205
      %v1226 = vmul.f32 %v1190, %v1205
      %v1227 = vmul.f32 %v1191, %v1205
      %v1228 = vmul.f32 %v1192, %v1205
      %v1229 = vmul.f32 %v1193, %v1205
      %v1230 = vmul.f32 %v1194, %v1205
      %v1231 = vmul.f32 %v1195, %v1205
      %v1232 = vmul.f32 %v1196, %v1205
      %v1233 = vmul.f32 %v1197, %v1205
      %v1234 = vmul.f32 %v1198, %v1205
      %v1235 = vmul.f32 %v1199, %v1205
      %v1236 = vmul.f32 %v1200, %v1205
      %v1237 = vmul.f32 %v1201, %v1205
      %v1238 = vadd.f32 %v1138, %v1206
      %v1239 = vadd.f32 %v1139, %v1207
      %v1240 = vadd.f32 %v1140, %v1208
      %v1241 = vadd.f32 %v1141, %v1209
      %v1242 = vadd.f32 %v1142, %v1210
      %v1243 = vadd.f32 %v1143, %v1211
      %v1244 = vadd.f32 %v1144, %v1212
      %v1245 = vadd.f32 %v1145, %v1213
      %v1246 = vadd.f32 %v1146, %v1214
      %v1247 = vadd.f32 %v1147, %v1215
      %v1248 = vadd.f32 %v1148, %v1216
      %v1249 = vadd.f32 %v1149, %v1217
      %v1250 = vadd.f32 %v1150, %v1218
      %v1251 = vadd.f32 %v1151, %v1219
      %v1252 = vadd.f32 %v1152, %v1220
      %v1253 = vadd.f32 %v1153, %v1221
      %v1254 = vadd.f32 %v1154, %v1222
      %v1255 = vadd.f32 %v1155, %v1223
      %v1256 = vadd.f32 %v1156, %v1224
      %v1257 = vadd.f32 %v1157, %v1225
      %v1258 = vadd.f32 %v1158, %v1226
      %v1259 = vadd.f32 %v1159, %v1227
      %v1260 = vadd.f32 %v1160, %v1228
      %v1261 = vadd.f32 %v1161, %v1229
      %v1262 = vadd.f32 %v1162, %v1230
      %v1263 = vadd.f32 %v1163, %v1231
      %v1264 = vadd.f32 %v1164, %v1232
      %v1265 = vadd.f32 %v1165, %v1233
      %v1266 = vadd.f32 %v1166, %v1234
      %v1267 = vadd.f32 %v1167, %v1235
      %v1268 = vadd.f32 %v1168, %v1236
      %v1269 = vadd.f32 %v1169, %v1237
      %v1270 = vld [vmem:[%s935] sm:$0xff]
      %v1271 = vld [vmem:[%s935 + $0x8] sm:$0xff]
      %v1272 = vld [vmem:[%s935 + $0x18] sm:$0xff]
      %v1273 = vld [vmem:[%s935 + $0x20] sm:$0xff]
      %v1274 = vld [vmem:[%s935 + $0x30] sm:$0xff]
      %v1275 = vld [vmem:[%s935 + $0x38] sm:$0xff]
      %v1276 = vld [vmem:[%s935 + $0x48] sm:$0xff]
      %v1277 = vld [vmem:[%s935 + $0x50] sm:$0xff]
      %v1278 = vld [vmem:[%s935 + $0x60] sm:$0xff]
      %v1279 = vld [vmem:[%s935 + $0x68] sm:$0xff]
      %v1280 = vld [vmem:[%s935 + $0x78] sm:$0xff]
      %v1281 = vld [vmem:[%s935 + $0x80] sm:$0xff]
      %v1282 = vld [vmem:[%s935 + $0x90] sm:$0xff]
      %v1283 = vld [vmem:[%s935 + $0x98] sm:$0xff]
      %v1284 = vld [vmem:[%s935 + $0xa8] sm:$0xff]
      %v1285 = vld [vmem:[%s935 + $0xb0] sm:$0xff]
      %v1286 = vld [vmem:[%s935 + $0xc0] sm:$0xff]
      %v1287 = vld [vmem:[%s935 + $0xc8] sm:$0xff]
      %v1288 = vld [vmem:[%s935 + $0xd8] sm:$0xff]
      %v1289 = vld [vmem:[%s935 + $0xe0] sm:$0xff]
      %v1290 = vld [vmem:[%s935 + $0xf0] sm:$0xff]
      %v1291 = vld [vmem:[%s935 + $0xf8] sm:$0xff]
      %v1292 = vld [vmem:[%s935 + $0x108] sm:$0xff]
      %v1293 = vld [vmem:[%s935 + $0x110] sm:$0xff]
      %v1294 = vld [vmem:[%s935 + $0x120] sm:$0xff]
      %v1295 = vld [vmem:[%s935 + $0x128] sm:$0xff]
      %v1296 = vld [vmem:[%s935 + $0x138] sm:$0xff]
      %v1297 = vld [vmem:[%s935 + $0x140] sm:$0xff]
      %v1298 = vld [vmem:[%s935 + $0x150] sm:$0xff]
      %v1299 = vld [vmem:[%s935 + $0x158] sm:$0xff]
      %v1300 = vld [vmem:[%s935 + $0x168] sm:$0xff]
      %v1301 = vld [vmem:[%s935 + $0x170] sm:$0xff]
      %v1302 = vlaneseq
      %v1303 = vshrl.u32 %v1302, 7
      %v1304 = vsub.s32 3, %v1303
      %v1305 = vrot.slane %v968, %v1304
      %v1306 = vmul.f32 %v1270, %v1305
      %v1307 = vmul.f32 %v1271, %v1305
      %v1308 = vmul.f32 %v1272, %v1305
      %v1309 = vmul.f32 %v1273, %v1305
      %v1310 = vmul.f32 %v1274, %v1305
      %v1311 = vmul.f32 %v1275, %v1305
      %v1312 = vmul.f32 %v1276, %v1305
      %v1313 = vmul.f32 %v1277, %v1305
      %v1314 = vmul.f32 %v1278, %v1305
      %v1315 = vmul.f32 %v1279, %v1305
      %v1316 = vmul.f32 %v1280, %v1305
      %v1317 = vmul.f32 %v1281, %v1305
      %v1318 = vmul.f32 %v1282, %v1305
      %v1319 = vmul.f32 %v1283, %v1305
      %v1320 = vmul.f32 %v1284, %v1305
      %v1321 = vmul.f32 %v1285, %v1305
      %v1322 = vmul.f32 %v1286, %v1305
      %v1323 = vmul.f32 %v1287, %v1305
      %v1324 = vmul.f32 %v1288, %v1305
      %v1325 = vmul.f32 %v1289, %v1305
      %v1326 = vmul.f32 %v1290, %v1305
      %v1327 = vmul.f32 %v1291, %v1305
      %v1328 = vmul.f32 %v1292, %v1305
      %v1329 = vmul.f32 %v1293, %v1305
      %v1330 = vmul.f32 %v1294, %v1305
      %v1331 = vmul.f32 %v1295, %v1305
      %v1332 = vmul.f32 %v1296, %v1305
      %v1333 = vmul.f32 %v1297, %v1305
      %v1334 = vmul.f32 %v1298, %v1305
      %v1335 = vmul.f32 %v1299, %v1305
      %v1336 = vmul.f32 %v1300, %v1305
      %v1337 = vmul.f32 %v1301, %v1305
      %v1338 = vadd.f32 %v1238, %v1306
      %v1339 = vadd.f32 %v1239, %v1307
      %v1340 = vadd.f32 %v1240, %v1308
      %v1341 = vadd.f32 %v1241, %v1309
      %v1342 = vadd.f32 %v1242, %v1310
      %v1343 = vadd.f32 %v1243, %v1311
      %v1344 = vadd.f32 %v1244, %v1312
      %v1345 = vadd.f32 %v1245, %v1313
      %v1346 = vadd.f32 %v1246, %v1314
      %v1347 = vadd.f32 %v1247, %v1315
      %v1348 = vadd.f32 %v1248, %v1316
      %v1349 = vadd.f32 %v1249, %v1317
      %v1350 = vadd.f32 %v1250, %v1318
      %v1351 = vadd.f32 %v1251, %v1319
      %v1352 = vadd.f32 %v1252, %v1320
      %v1353 = vadd.f32 %v1253, %v1321
      %v1354 = vadd.f32 %v1254, %v1322
      %v1355 = vadd.f32 %v1255, %v1323
      %v1356 = vadd.f32 %v1256, %v1324
      %v1357 = vadd.f32 %v1257, %v1325
      %v1358 = vadd.f32 %v1258, %v1326
      %v1359 = vadd.f32 %v1259, %v1327
      %v1360 = vadd.f32 %v1260, %v1328
      %v1361 = vadd.f32 %v1261, %v1329
      %v1362 = vadd.f32 %v1262, %v1330
      %v1363 = vadd.f32 %v1263, %v1331
      %v1364 = vadd.f32 %v1264, %v1332
      %v1365 = vadd.f32 %v1265, %v1333
      %v1366 = vadd.f32 %v1266, %v1334
      %v1367 = vadd.f32 %v1267, %v1335
      %v1368 = vadd.f32 %v1268, %v1336
      %v1369 = vadd.f32 %v1269, %v1337
      %v1370 = vld [vmem:[%s935 + $0x1] sm:$0xff]
      %v1371 = vld [vmem:[%s935 + $0x9] sm:$0xff]
      %v1372 = vld [vmem:[%s935 + $0x19] sm:$0xff]
      %v1373 = vld [vmem:[%s935 + $0x21] sm:$0xff]
      %v1374 = vld [vmem:[%s935 + $0x31] sm:$0xff]
      %v1375 = vld [vmem:[%s935 + $0x39] sm:$0xff]
      %v1376 = vld [vmem:[%s935 + $0x49] sm:$0xff]
      %v1377 = vld [vmem:[%s935 + $0x51] sm:$0xff]
      %v1378 = vld [vmem:[%s935 + $0x61] sm:$0xff]
      %v1379 = vld [vmem:[%s935 + $0x69] sm:$0xff]
      %v1380 = vld [vmem:[%s935 + $0x79] sm:$0xff]
      %v1381 = vld [vmem:[%s935 + $0x81] sm:$0xff]
      %v1382 = vld [vmem:[%s935 + $0x91] sm:$0xff]
      %v1383 = vld [vmem:[%s935 + $0x99] sm:$0xff]
      %v1384 = vld [vmem:[%s935 + $0xa9] sm:$0xff]
      %v1385 = vld [vmem:[%s935 + $0xb1] sm:$0xff]
      %v1386 = vld [vmem:[%s935 + $0xc1] sm:$0xff]
      %v1387 = vld [vmem:[%s935 + $0xc9] sm:$0xff]
      %v1388 = vld [vmem:[%s935 + $0xd9] sm:$0xff]
      %v1389 = vld [vmem:[%s935 + $0xe1] sm:$0xff]
      %v1390 = vld [vmem:[%s935 + $0xf1] sm:$0xff]
      %v1391 = vld [vmem:[%s935 + $0xf9] sm:$0xff]
      %v1392 = vld [vmem:[%s935 + $0x109] sm:$0xff]
      %v1393 = vld [vmem:[%s935 + $0x111] sm:$0xff]
      %v1394 = vld [vmem:[%s935 + $0x121] sm:$0xff]
      %v1395 = vld [vmem:[%s935 + $0x129] sm:$0xff]
      %v1396 = vld [vmem:[%s935 + $0x139] sm:$0xff]
      %v1397 = vld [vmem:[%s935 + $0x141] sm:$0xff]
      %v1398 = vld [vmem:[%s935 + $0x151] sm:$0xff]
      %v1399 = vld [vmem:[%s935 + $0x159] sm:$0xff]
      %v1400 = vld [vmem:[%s935 + $0x169] sm:$0xff]
      %v1401 = vld [vmem:[%s935 + $0x171] sm:$0xff]
      %v1402 = vlaneseq
      %v1403 = vshrl.u32 %v1402, 7
      %v1404 = vsub.s32 4, %v1403
      %v1405 = vrot.slane %v968, %v1404
      %v1406 = vmul.f32 %v1370, %v1405
      %v1407 = vmul.f32 %v1371, %v1405
      %v1408 = vmul.f32 %v1372, %v1405
      %v1409 = vmul.f32 %v1373, %v1405
      %v1410 = vmul.f32 %v1374, %v1405
      %v1411 = vmul.f32 %v1375, %v1405
      %v1412 = vmul.f32 %v1376, %v1405
      %v1413 = vmul.f32 %v1377, %v1405
      %v1414 = vmul.f32 %v1378, %v1405
      %v1415 = vmul.f32 %v1379, %v1405
      %v1416 = vmul.f32 %v1380, %v1405
      %v1417 = vmul.f32 %v1381, %v1405
      %v1418 = vmul.f32 %v1382, %v1405
      %v1419 = vmul.f32 %v1383, %v1405
      %v1420 = vmul.f32 %v1384, %v1405
      %v1421 = vmul.f32 %v1385, %v1405
      %v1422 = vmul.f32 %v1386, %v1405
      %v1423 = vmul.f32 %v1387, %v1405
      %v1424 = vmul.f32 %v1388, %v1405
      %v1425 = vmul.f32 %v1389, %v1405
      %v1426 = vmul.f32 %v1390, %v1405
      %v1427 = vmul.f32 %v1391, %v1405
      %v1428 = vmul.f32 %v1392, %v1405
      %v1429 = vmul.f32 %v1393, %v1405
      %v1430 = vmul.f32 %v1394, %v1405
      %v1431 = vmul.f32 %v1395, %v1405
      %v1432 = vmul.f32 %v1396, %v1405
      %v1433 = vmul.f32 %v1397, %v1405
      %v1434 = vmul.f32 %v1398, %v1405
      %v1435 = vmul.f32 %v1399, %v1405
      %v1436 = vmul.f32 %v1400, %v1405
      %v1437 = vmul.f32 %v1401, %v1405
      %v1438 = vadd.f32 %v1338, %v1406
      %v1439 = vadd.f32 %v1339, %v1407
      %v1440 = vadd.f32 %v1340, %v1408
      %v1441 = vadd.f32 %v1341, %v1409
      %v1442 = vadd.f32 %v1342, %v1410
      %v1443 = vadd.f32 %v1343, %v1411
      %v1444 = vadd.f32 %v1344, %v1412
      %v1445 = vadd.f32 %v1345, %v1413
      %v1446 = vadd.f32 %v1346, %v1414
      %v1447 = vadd.f32 %v1347, %v1415
      %v1448 = vadd.f32 %v1348, %v1416
      %v1449 = vadd.f32 %v1349, %v1417
      %v1450 = vadd.f32 %v1350, %v1418
      %v1451 = vadd.f32 %v1351, %v1419
      %v1452 = vadd.f32 %v1352, %v1420
      %v1453 = vadd.f32 %v1353, %v1421
      %v1454 = vadd.f32 %v1354, %v1422
      %v1455 = vadd.f32 %v1355, %v1423
      %v1456 = vadd.f32 %v1356, %v1424
      %v1457 = vadd.f32 %v1357, %v1425
      %v1458 = vadd.f32 %v1358, %v1426
      %v1459 = vadd.f32 %v1359, %v1427
      %v1460 = vadd.f32 %v1360, %v1428
      %v1461 = vadd.f32 %v1361, %v1429
      %v1462 = vadd.f32 %v1362, %v1430
      %v1463 = vadd.f32 %v1363, %v1431
      %v1464 = vadd.f32 %v1364, %v1432
      %v1465 = vadd.f32 %v1365, %v1433
      %v1466 = vadd.f32 %v1366, %v1434
      %v1467 = vadd.f32 %v1367, %v1435
      %v1468 = vadd.f32 %v1368, %v1436
      %v1469 = vadd.f32 %v1369, %v1437
      %v1470 = vld [vmem:[%s935 + $0x2] sm:$0xff]
      %v1471 = vld [vmem:[%s935 + $0xa] sm:$0xff]
      %v1472 = vld [vmem:[%s935 + $0x1a] sm:$0xff]
      %v1473 = vld [vmem:[%s935 + $0x22] sm:$0xff]
      %v1474 = vld [vmem:[%s935 + $0x32] sm:$0xff]
      %v1475 = vld [vmem:[%s935 + $0x3a] sm:$0xff]
      %v1476 = vld [vmem:[%s935 + $0x4a] sm:$0xff]
      %v1477 = vld [vmem:[%s935 + $0x52] sm:$0xff]
      %v1478 = vld [vmem:[%s935 + $0x62] sm:$0xff]
      %v1479 = vld [vmem:[%s935 + $0x6a] sm:$0xff]
      %v1480 = vld [vmem:[%s935 + $0x7a] sm:$0xff]
      %v1481 = vld [vmem:[%s935 + $0x82] sm:$0xff]
      %v1482 = vld [vmem:[%s935 + $0x92] sm:$0xff]
      %v1483 = vld [vmem:[%s935 + $0x9a] sm:$0xff]
      %v1484 = vld [vmem:[%s935 + $0xaa] sm:$0xff]
      %v1485 = vld [vmem:[%s935 + $0xb2] sm:$0xff]
      %v1486 = vld [vmem:[%s935 + $0xc2] sm:$0xff]
      %v1487 = vld [vmem:[%s935 + $0xca] sm:$0xff]
      %v1488 = vld [vmem:[%s935 + $0xda] sm:$0xff]
      %v1489 = vld [vmem:[%s935 + $0xe2] sm:$0xff]
      %v1490 = vld [vmem:[%s935 + $0xf2] sm:$0xff]
      %v1491 = vld [vmem:[%s935 + $0xfa] sm:$0xff]
      %v1492 = vld [vmem:[%s935 + $0x10a] sm:$0xff]
      %v1493 = vld [vmem:[%s935 + $0x112] sm:$0xff]
      %v1494 = vld [vmem:[%s935 + $0x122] sm:$0xff]
      %v1495 = vld [vmem:[%s935 + $0x12a] sm:$0xff]
      %v1496 = vld [vmem:[%s935 + $0x13a] sm:$0xff]
      %v1497 = vld [vmem:[%s935 + $0x142] sm:$0xff]
      %v1498 = vld [vmem:[%s935 + $0x152] sm:$0xff]
      %v1499 = vld [vmem:[%s935 + $0x15a] sm:$0xff]
      %v1500 = vld [vmem:[%s935 + $0x16a] sm:$0xff]
      %v1501 = vld [vmem:[%s935 + $0x172] sm:$0xff]
      %v1502 = vlaneseq
      %v1503 = vshrl.u32 %v1502, 7
      %v1504 = vsub.s32 5, %v1503
      %v1505 = vrot.slane %v968, %v1504
      %v1506 = vmul.f32 %v1470, %v1505
      %v1507 = vmul.f32 %v1471, %v1505
      %v1508 = vmul.f32 %v1472, %v1505
      %v1509 = vmul.f32 %v1473, %v1505
      %v1510 = vmul.f32 %v1474, %v1505
      %v1511 = vmul.f32 %v1475, %v1505
      %v1512 = vmul.f32 %v1476, %v1505
      %v1513 = vmul.f32 %v1477, %v1505
      %v1514 = vmul.f32 %v1478, %v1505
      %v1515 = vmul.f32 %v1479, %v1505
      %v1516 = vmul.f32 %v1480, %v1505
      %v1517 = vmul.f32 %v1481, %v1505
      %v1518 = vmul.f32 %v1482, %v1505
      %v1519 = vmul.f32 %v1483, %v1505
      %v1520 = vmul.f32 %v1484, %v1505
      %v1521 = vmul.f32 %v1485, %v1505
      %v1522 = vmul.f32 %v1486, %v1505
      %v1523 = vmul.f32 %v1487, %v1505
      %v1524 = vmul.f32 %v1488, %v1505
      %v1525 = vmul.f32 %v1489, %v1505
      %v1526 = vmul.f32 %v1490, %v1505
      %v1527 = vmul.f32 %v1491, %v1505
      %v1528 = vmul.f32 %v1492, %v1505
      %v1529 = vmul.f32 %v1493, %v1505
      %v1530 = vmul.f32 %v1494, %v1505
      %v1531 = vmul.f32 %v1495, %v1505
      %v1532 = vmul.f32 %v1496, %v1505
      %v1533 = vmul.f32 %v1497, %v1505
      %v1534 = vmul.f32 %v1498, %v1505
      %v1535 = vmul.f32 %v1499, %v1505
      %v1536 = vmul.f32 %v1500, %v1505
      %v1537 = vmul.f32 %v1501, %v1505
      %v1538 = vadd.f32 %v1438, %v1506
      %v1539 = vadd.f32 %v1439, %v1507
      %v1540 = vadd.f32 %v1440, %v1508
      %v1541 = vadd.f32 %v1441, %v1509
      %v1542 = vadd.f32 %v1442, %v1510
      %v1543 = vadd.f32 %v1443, %v1511
      %v1544 = vadd.f32 %v1444, %v1512
      %v1545 = vadd.f32 %v1445, %v1513
      %v1546 = vadd.f32 %v1446, %v1514
      %v1547 = vadd.f32 %v1447, %v1515
      %v1548 = vadd.f32 %v1448, %v1516
      %v1549 = vadd.f32 %v1449, %v1517
      %v1550 = vadd.f32 %v1450, %v1518
      %v1551 = vadd.f32 %v1451, %v1519
      %v1552 = vadd.f32 %v1452, %v1520
      %v1553 = vadd.f32 %v1453, %v1521
      %v1554 = vadd.f32 %v1454, %v1522
      %v1555 = vadd.f32 %v1455, %v1523
      %v1556 = vadd.f32 %v1456, %v1524
      %v1557 = vadd.f32 %v1457, %v1525
      %v1558 = vadd.f32 %v1458, %v1526
      %v1559 = vadd.f32 %v1459, %v1527
      %v1560 = vadd.f32 %v1460, %v1528
      %v1561 = vadd.f32 %v1461, %v1529
      %v1562 = vadd.f32 %v1462, %v1530
      %v1563 = vadd.f32 %v1463, %v1531
      %v1564 = vadd.f32 %v1464, %v1532
      %v1565 = vadd.f32 %v1465, %v1533
      %v1566 = vadd.f32 %v1466, %v1534
      %v1567 = vadd.f32 %v1467, %v1535
      %v1568 = vadd.f32 %v1468, %v1536
      %v1569 = vadd.f32 %v1469, %v1537
      %s1570 = scalar_lea.vmem [#allocation2], 48
      %v1571 = vld [vmem:[%s1570] sm:$0xff]
      %v1572 = vld [vmem:[%s1570 + $0x8] sm:$0xff]
      %v1573 = vld [vmem:[%s1570 + $0x18] sm:$0xff]
      %v1574 = vld [vmem:[%s1570 + $0x20] sm:$0xff]
      %v1575 = vld [vmem:[%s1570 + $0x30] sm:$0xff]
      %v1576 = vld [vmem:[%s1570 + $0x38] sm:$0xff]
      %v1577 = vld [vmem:[%s1570 + $0x48] sm:$0xff]
      %v1578 = vld [vmem:[%s1570 + $0x50] sm:$0xff]
      %v1579 = vld [vmem:[%s1570 + $0x60] sm:$0xff]
      %v1580 = vld [vmem:[%s1570 + $0x68] sm:$0xff]
      %v1581 = vld [vmem:[%s1570 + $0x78] sm:$0xff]
      %v1582 = vld [vmem:[%s1570 + $0x80] sm:$0xff]
      %v1583 = vld [vmem:[%s1570 + $0x90] sm:$0xff]
      %v1584 = vld [vmem:[%s1570 + $0x98] sm:$0xff]
      %v1585 = vld [vmem:[%s1570 + $0xa8] sm:$0xff]
      %v1586 = vld [vmem:[%s1570 + $0xb0] sm:$0xff]
      %v1587 = vld [vmem:[%s1570 + $0xc0] sm:$0xff]
      %v1588 = vld [vmem:[%s1570 + $0xc8] sm:$0xff]
      %v1589 = vld [vmem:[%s1570 + $0xd8] sm:$0xff]
      %v1590 = vld [vmem:[%s1570 + $0xe0] sm:$0xff]
      %v1591 = vld [vmem:[%s1570 + $0xf0] sm:$0xff]
      %v1592 = vld [vmem:[%s1570 + $0xf8] sm:$0xff]
      %v1593 = vld [vmem:[%s1570 + $0x108] sm:$0xff]
      %v1594 = vld [vmem:[%s1570 + $0x110] sm:$0xff]
      %v1595 = vld [vmem:[%s1570 + $0x120] sm:$0xff]
      %v1596 = vld [vmem:[%s1570 + $0x128] sm:$0xff]
      %v1597 = vld [vmem:[%s1570 + $0x138] sm:$0xff]
      %v1598 = vld [vmem:[%s1570 + $0x140] sm:$0xff]
      %v1599 = vld [vmem:[%s1570 + $0x150] sm:$0xff]
      %v1600 = vld [vmem:[%s1570 + $0x158] sm:$0xff]
      %v1601 = vld [vmem:[%s1570 + $0x168] sm:$0xff]
      %v1602 = vld [vmem:[%s1570 + $0x170] sm:$0xff]
      %v1603 = vlaneseq
      %v1604 = vshrl.u32 %v1603, 7
      %v1605 = vsub.s32 6, %v1604
      %v1606 = vrot.slane %v968, %v1605
      %v1607 = vmul.f32 %v1571, %v1606
      %v1608 = vmul.f32 %v1572, %v1606
      %v1609 = vmul.f32 %v1573, %v1606
      %v1610 = vmul.f32 %v1574, %v1606
      %v1611 = vmul.f32 %v1575, %v1606
      %v1612 = vmul.f32 %v1576, %v1606
      %v1613 = vmul.f32 %v1577, %v1606
      %v1614 = vmul.f32 %v1578, %v1606
      %v1615 = vmul.f32 %v1579, %v1606
      %v1616 = vmul.f32 %v1580, %v1606
      %v1617 = vmul.f32 %v1581, %v1606
      %v1618 = vmul.f32 %v1582, %v1606
      %v1619 = vmul.f32 %v1583, %v1606
      %v1620 = vmul.f32 %v1584, %v1606
      %v1621 = vmul.f32 %v1585, %v1606
      %v1622 = vmul.f32 %v1586, %v1606
      %v1623 = vmul.f32 %v1587, %v1606
      %v1624 = vmul.f32 %v1588, %v1606
      %v1625 = vmul.f32 %v1589, %v1606
      %v1626 = vmul.f32 %v1590, %v1606
      %v1627 = vmul.f32 %v1591, %v1606
      %v1628 = vmul.f32 %v1592, %v1606
      %v1629 = vmul.f32 %v1593, %v1606
      %v1630 = vmul.f32 %v1594, %v1606
      %v1631 = vmul.f32 %v1595, %v1606
      %v1632 = vmul.f32 %v1596, %v1606
      %v1633 = vmul.f32 %v1597, %v1606
      %v1634 = vmul.f32 %v1598, %v1606
      %v1635 = vmul.f32 %v1599, %v1606
      %v1636 = vmul.f32 %v1600, %v1606
      %v1637 = vmul.f32 %v1601, %v1606
      %v1638 = vmul.f32 %v1602, %v1606
      %v1639 = vadd.f32 %v1538, %v1607
      %v1640 = vadd.f32 %v1539, %v1608
      %v1641 = vadd.f32 %v1540, %v1609
      %v1642 = vadd.f32 %v1541, %v1610
      %v1643 = vadd.f32 %v1542, %v1611
      %v1644 = vadd.f32 %v1543, %v1612
      %v1645 = vadd.f32 %v1544, %v1613
      %v1646 = vadd.f32 %v1545, %v1614
      %v1647 = vadd.f32 %v1546, %v1615
      %v1648 = vadd.f32 %v1547, %v1616
      %v1649 = vadd.f32 %v1548, %v1617
      %v1650 = vadd.f32 %v1549, %v1618
      %v1651 = vadd.f32 %v1550, %v1619
      %v1652 = vadd.f32 %v1551, %v1620
      %v1653 = vadd.f32 %v1552, %v1621
      %v1654 = vadd.f32 %v1553, %v1622
      %v1655 = vadd.f32 %v1554, %v1623
      %v1656 = vadd.f32 %v1555, %v1624
      %v1657 = vadd.f32 %v1556, %v1625
      %v1658 = vadd.f32 %v1557, %v1626
      %v1659 = vadd.f32 %v1558, %v1627
      %v1660 = vadd.f32 %v1559, %v1628
      %v1661 = vadd.f32 %v1560, %v1629
      %v1662 = vadd.f32 %v1561, %v1630
      %v1663 = vadd.f32 %v1562, %v1631
      %v1664 = vadd.f32 %v1563, %v1632
      %v1665 = vadd.f32 %v1564, %v1633
      %v1666 = vadd.f32 %v1565, %v1634
      %v1667 = vadd.f32 %v1566, %v1635
      %v1668 = vadd.f32 %v1567, %v1636
      %v1669 = vadd.f32 %v1568, %v1637
      %v1670 = vadd.f32 %v1569, %v1638
      %v1671 = vld [vmem:[%s1570 + $0x1] sm:$0xff]
      %v1672 = vld [vmem:[%s1570 + $0x9] sm:$0xff]
      %v1673 = vld [vmem:[%s1570 + $0x19] sm:$0xff]
      %v1674 = vld [vmem:[%s1570 + $0x21] sm:$0xff]
      %v1675 = vld [vmem:[%s1570 + $0x31] sm:$0xff]
      %v1676 = vld [vmem:[%s1570 + $0x39] sm:$0xff]
      %v1677 = vld [vmem:[%s1570 + $0x49] sm:$0xff]
      %v1678 = vld [vmem:[%s1570 + $0x51] sm:$0xff]
      %v1679 = vld [vmem:[%s1570 + $0x61] sm:$0xff]
      %v1680 = vld [vmem:[%s1570 + $0x69] sm:$0xff]
      %v1681 = vld [vmem:[%s1570 + $0x79] sm:$0xff]
      %v1682 = vld [vmem:[%s1570 + $0x81] sm:$0xff]
      %v1683 = vld [vmem:[%s1570 + $0x91] sm:$0xff]
      %v1684 = vld [vmem:[%s1570 + $0x99] sm:$0xff]
      %v1685 = vld [vmem:[%s1570 + $0xa9] sm:$0xff]
      %v1686 = vld [vmem:[%s1570 + $0xb1] sm:$0xff]
      %v1687 = vld [vmem:[%s1570 + $0xc1] sm:$0xff]
      %v1688 = vld [vmem:[%s1570 + $0xc9] sm:$0xff]
      %v1689 = vld [vmem:[%s1570 + $0xd9] sm:$0xff]
      %v1690 = vld [vmem:[%s1570 + $0xe1] sm:$0xff]
      %v1691 = vld [vmem:[%s1570 + $0xf1] sm:$0xff]
      %v1692 = vld [vmem:[%s1570 + $0xf9] sm:$0xff]
      %v1693 = vld [vmem:[%s1570 + $0x109] sm:$0xff]
      %v1694 = vld [vmem:[%s1570 + $0x111] sm:$0xff]
      %v1695 = vld [vmem:[%s1570 + $0x121] sm:$0xff]
      %v1696 = vld [vmem:[%s1570 + $0x129] sm:$0xff]
      %v1697 = vld [vmem:[%s1570 + $0x139] sm:$0xff]
      %v1698 = vld [vmem:[%s1570 + $0x141] sm:$0xff]
      %v1699 = vld [vmem:[%s1570 + $0x151] sm:$0xff]
      %v1700 = vld [vmem:[%s1570 + $0x159] sm:$0xff]
      %v1701 = vld [vmem:[%s1570 + $0x169] sm:$0xff]
      %v1702 = vld [vmem:[%s1570 + $0x171] sm:$0xff]
      %v1703 = vlaneseq
      %v1704 = vshrl.u32 %v1703, 7
      %v1705 = vsub.s32 7, %v1704
      %v1706 = vrot.slane %v968, %v1705
      %v1707 = vmul.f32 %v1671, %v1706
      %v1708 = vmul.f32 %v1672, %v1706
      %v1709 = vmul.f32 %v1673, %v1706
      %v1710 = vmul.f32 %v1674, %v1706
      %v1711 = vmul.f32 %v1675, %v1706
      %v1712 = vmul.f32 %v1676, %v1706
      %v1713 = vmul.f32 %v1677, %v1706
      %v1714 = vmul.f32 %v1678, %v1706
      %v1715 = vmul.f32 %v1679, %v1706
      %v1716 = vmul.f32 %v1680, %v1706
      %v1717 = vmul.f32 %v1681, %v1706
      %v1718 = vmul.f32 %v1682, %v1706
      %v1719 = vmul.f32 %v1683, %v1706
      %v1720 = vmul.f32 %v1684, %v1706
      %v1721 = vmul.f32 %v1685, %v1706
      %v1722 = vmul.f32 %v1686, %v1706
      %v1723 = vmul.f32 %v1687, %v1706
      %v1724 = vmul.f32 %v1688, %v1706
      %v1725 = vmul.f32 %v1689, %v1706
      %v1726 = vmul.f32 %v1690, %v1706
      %v1727 = vmul.f32 %v1691, %v1706
      %v1728 = vmul.f32 %v1692, %v1706
      %v1729 = vmul.f32 %v1693, %v1706
      %v1730 = vmul.f32 %v1694, %v1706
      %v1731 = vmul.f32 %v1695, %v1706
      %v1732 = vmul.f32 %v1696, %v1706
      %v1733 = vmul.f32 %v1697, %v1706
      %v1734 = vmul.f32 %v1698, %v1706
      %v1735 = vmul.f32 %v1699, %v1706
      %v1736 = vmul.f32 %v1700, %v1706
      %v1737 = vmul.f32 %v1701, %v1706
      %v1738 = vmul.f32 %v1702, %v1706
      %v1739 = vadd.f32 %v1639, %v1707
      %v1740 = vadd.f32 %v1640, %v1708
      %v1741 = vadd.f32 %v1641, %v1709
      %v1742 = vadd.f32 %v1642, %v1710
      %v1743 = vadd.f32 %v1643, %v1711
      %v1744 = vadd.f32 %v1644, %v1712
      %v1745 = vadd.f32 %v1645, %v1713
      %v1746 = vadd.f32 %v1646, %v1714
      %v1747 = vadd.f32 %v1647, %v1715
      %v1748 = vadd.f32 %v1648, %v1716
      %v1749 = vadd.f32 %v1649, %v1717
      %v1750 = vadd.f32 %v1650, %v1718
      %v1751 = vadd.f32 %v1651, %v1719
      %v1752 = vadd.f32 %v1652, %v1720
      %v1753 = vadd.f32 %v1653, %v1721
      %v1754 = vadd.f32 %v1654, %v1722
      %v1755 = vadd.f32 %v1655, %v1723
      %v1756 = vadd.f32 %v1656, %v1724
      %v1757 = vadd.f32 %v1657, %v1725
      %v1758 = vadd.f32 %v1658, %v1726
      %v1759 = vadd.f32 %v1659, %v1727
      %v1760 = vadd.f32 %v1660, %v1728
      %v1761 = vadd.f32 %v1661, %v1729
      %v1762 = vadd.f32 %v1662, %v1730
      %v1763 = vadd.f32 %v1663, %v1731
      %v1764 = vadd.f32 %v1664, %v1732
      %v1765 = vadd.f32 %v1665, %v1733
      %v1766 = vadd.f32 %v1666, %v1734
      %v1767 = vadd.f32 %v1667, %v1735
      %v1768 = vadd.f32 %v1668, %v1736
      %v1769 = vadd.f32 %v1669, %v1737
      %v1770 = vadd.f32 %v1670, %v1738
      %v1771 = vld [vmem:[%s1570 + $0x2] sm:$0xff]
      %v1772 = vld [vmem:[%s1570 + $0xa] sm:$0xff]
      %v1773 = vld [vmem:[%s1570 + $0x1a] sm:$0xff]
      %v1774 = vld [vmem:[%s1570 + $0x22] sm:$0xff]
      %v1775 = vld [vmem:[%s1570 + $0x32] sm:$0xff]
      %v1776 = vld [vmem:[%s1570 + $0x3a] sm:$0xff]
      %v1777 = vld [vmem:[%s1570 + $0x4a] sm:$0xff]
      %v1778 = vld [vmem:[%s1570 + $0x52] sm:$0xff]
      %v1779 = vld [vmem:[%s1570 + $0x62] sm:$0xff]
      %v1780 = vld [vmem:[%s1570 + $0x6a] sm:$0xff]
      %v1781 = vld [vmem:[%s1570 + $0x7a] sm:$0xff]
      %v1782 = vld [vmem:[%s1570 + $0x82] sm:$0xff]
      %v1783 = vld [vmem:[%s1570 + $0x92] sm:$0xff]
      %v1784 = vld [vmem:[%s1570 + $0x9a] sm:$0xff]
      %v1785 = vld [vmem:[%s1570 + $0xaa] sm:$0xff]
      %v1786 = vld [vmem:[%s1570 + $0xb2] sm:$0xff]
      %v1787 = vld [vmem:[%s1570 + $0xc2] sm:$0xff]
      %v1788 = vld [vmem:[%s1570 + $0xca] sm:$0xff]
      %v1789 = vld [vmem:[%s1570 + $0xda] sm:$0xff]
      %v1790 = vld [vmem:[%s1570 + $0xe2] sm:$0xff]
      %v1791 = vld [vmem:[%s1570 + $0xf2] sm:$0xff]
      %v1792 = vld [vmem:[%s1570 + $0xfa] sm:$0xff]
      %v1793 = vld [vmem:[%s1570 + $0x10a] sm:$0xff]
      %v1794 = vld [vmem:[%s1570 + $0x112] sm:$0xff]
      %v1795 = vld [vmem:[%s1570 + $0x122] sm:$0xff]
      %v1796 = vld [vmem:[%s1570 + $0x12a] sm:$0xff]
      %v1797 = vld [vmem:[%s1570 + $0x13a] sm:$0xff]
      %v1798 = vld [vmem:[%s1570 + $0x142] sm:$0xff]
      %v1799 = vld [vmem:[%s1570 + $0x152] sm:$0xff]
      %v1800 = vld [vmem:[%s1570 + $0x15a] sm:$0xff]
      %v1801 = vld [vmem:[%s1570 + $0x16a] sm:$0xff]
      %v1802 = vld [vmem:[%s1570 + $0x172] sm:$0xff]
      %v1803 = vlaneseq
      %v1804 = vshrl.u32 %v1803, 7
      %v1805 = vsub.s32 0, %v1804
      %v1806 = vrot.slane %v969, %v1805
      %v1807 = vmul.f32 %v1771, %v1806
      %v1808 = vmul.f32 %v1772, %v1806
      %v1809 = vmul.f32 %v1773, %v1806
      %v1810 = vmul.f32 %v1774, %v1806
      %v1811 = vmul.f32 %v1775, %v1806
      %v1812 = vmul.f32 %v1776, %v1806
      %v1813 = vmul.f32 %v1777, %v1806
      %v1814 = vmul.f32 %v1778, %v1806
      %v1815 = vmul.f32 %v1779, %v1806
      %v1816 = vmul.f32 %v1780, %v1806
      %v1817 = vmul.f32 %v1781, %v1806
      %v1818 = vmul.f32 %v1782, %v1806
      %v1819 = vmul.f32 %v1783, %v1806
      %v1820 = vmul.f32 %v1784, %v1806
      %v1821 = vmul.f32 %v1785, %v1806
      %v1822 = vmul.f32 %v1786, %v1806
      %v1823 = vmul.f32 %v1787, %v1806
      %v1824 = vmul.f32 %v1788, %v1806
      %v1825 = vmul.f32 %v1789, %v1806
      %v1826 = vmul.f32 %v1790, %v1806
      %v1827 = vmul.f32 %v1791, %v1806
      %v1828 = vmul.f32 %v1792, %v1806
      %v1829 = vmul.f32 %v1793, %v1806
      %v1830 = vmul.f32 %v1794, %v1806
      %v1831 = vmul.f32 %v1795, %v1806
      %v1832 = vmul.f32 %v1796, %v1806
      %v1833 = vmul.f32 %v1797, %v1806
      %v1834 = vmul.f32 %v1798, %v1806
      %v1835 = vmul.f32 %v1799, %v1806
      %v1836 = vmul.f32 %v1800, %v1806
      %v1837 = vmul.f32 %v1801, %v1806
      %v1838 = vmul.f32 %v1802, %v1806
      %v1839 = vadd.f32 %v1739, %v1807
      %v1840 = vadd.f32 %v1740, %v1808
      %v1841 = vadd.f32 %v1741, %v1809
      %v1842 = vadd.f32 %v1742, %v1810
      %v1843 = vadd.f32 %v1743, %v1811
      %v1844 = vadd.f32 %v1744, %v1812
      %v1845 = vadd.f32 %v1745, %v1813
      %v1846 = vadd.f32 %v1746, %v1814
      %v1847 = vadd.f32 %v1747, %v1815
      %v1848 = vadd.f32 %v1748, %v1816
      %v1849 = vadd.f32 %v1749, %v1817
      %v1850 = vadd.f32 %v1750, %v1818
      %v1851 = vadd.f32 %v1751, %v1819
      %v1852 = vadd.f32 %v1752, %v1820
      %v1853 = vadd.f32 %v1753, %v1821
      %v1854 = vadd.f32 %v1754, %v1822
      %v1855 = vadd.f32 %v1755, %v1823
      %v1856 = vadd.f32 %v1756, %v1824
      %v1857 = vadd.f32 %v1757, %v1825
      %v1858 = vadd.f32 %v1758, %v1826
      %v1859 = vadd.f32 %v1759, %v1827
      %v1860 = vadd.f32 %v1760, %v1828
      %v1861 = vadd.f32 %v1761, %v1829
      %v1862 = vadd.f32 %v1762, %v1830
      %v1863 = vadd.f32 %v1763, %v1831
      %v1864 = vadd.f32 %v1764, %v1832
      %v1865 = vadd.f32 %v1765, %v1833
      %v1866 = vadd.f32 %v1766, %v1834
      %v1867 = vadd.f32 %v1767, %v1835
      %v1868 = vadd.f32 %v1768, %v1836
      %v1869 = vadd.f32 %v1769, %v1837
      %v1870 = vadd.f32 %v1770, %v1838
      %v1871 = vld [vmem:[%s7] sm:$0xff]
      %v1872 = vld [vmem:[%s7 + $0x8] sm:$0xff]
      %v1873 = vld [vmem:[%s7 + $0x10] sm:$0xff]
      %v1874 = vld [vmem:[%s7 + $0x18] sm:$0xff]
      %v1875 = vld [vmem:[%s7 + $0x20] sm:$0xff]
      %v1876 = vld [vmem:[%s7 + $0x28] sm:$0xff]
      %v1877 = vld [vmem:[%s7 + $0x30] sm:$0xff]
      %v1878 = vld [vmem:[%s7 + $0x38] sm:$0xff]
      %v1879 = vld [vmem:[%s7 + $0x40] sm:$0xff]
      %v1880 = vld [vmem:[%s7 + $0x48] sm:$0xff]
      %v1881 = vld [vmem:[%s7 + $0x50] sm:$0xff]
      %v1882 = vld [vmem:[%s7 + $0x58] sm:$0xff]
      %v1883 = vld [vmem:[%s7 + $0x60] sm:$0xff]
      %v1884 = vld [vmem:[%s7 + $0x68] sm:$0xff]
      %v1885 = vld [vmem:[%s7 + $0x70] sm:$0xff]
      %v1886 = vld [vmem:[%s7 + $0x78] sm:$0xff]
      %1887 = vmatprep.subr.mxu0 0.0
      %1888 = vmatpush1.msra.mxu0 %v1839
      %1889 = vmatprep.subr.mxu0 0.0
      %1890 = vmatpush1.msra.mxu0 %v1840
      %1891 = vmatprep.subr.mxu0 0.0
      %1892 = vmatpush1.msra.mxu0 %v1841
      %1893 = vmatprep.subr.mxu0 0.0
      %1894 = vmatpush1.msra.mxu0 %v1842
      %1895 = vmatprep.subr.mxu0 0.0
      %1896 = vmatpush1.msra.mxu0 %v1843
      %1897 = vmatprep.subr.mxu0 0.0
      %1898 = vmatpush1.msra.mxu0 %v1844
      %1899 = vmatprep.subr.mxu0 0.0
      %1900 = vmatpush1.msra.mxu0 %v1845
      %1901 = vmatprep.subr.mxu0 0.0
      %1902 = vmatpush1.msra.mxu0 %v1846
      %1903 = vmatprep.subr.mxu0 0.0
      %1904 = vmatpush1.msra.mxu0 %v1847
      %1905 = vmatprep.subr.mxu0 0.0
      %1906 = vmatpush1.msra.mxu0 %v1848
      %1907 = vmatprep.subr.mxu0 0.0
      %1908 = vmatpush1.msra.mxu0 %v1849
      %1909 = vmatprep.subr.mxu0 0.0
      %1910 = vmatpush1.msra.mxu0 %v1850
      %1911 = vmatprep.subr.mxu0 0.0
      %1912 = vmatpush1.msra.mxu0 %v1851
      %1913 = vmatprep.subr.mxu0 0.0
      %1914 = vmatpush1.msra.mxu0 %v1852
      %1915 = vmatprep.subr.mxu0 0.0
      %1916 = vmatpush1.msra.mxu0 %v1853
      %1917 = vmatprep.subr.mxu0 0.0
      %1918 = vmatpush1.msra.mxu0 %v1854
      %1919 = vmatprep.subr.mxu0 0.0
      %1920 = vmatpush1.msra.mxu0 %v1855
      %1921 = vmatprep.subr.mxu0 0.0
      %1922 = vmatpush1.msra.mxu0 %v1856
      %1923 = vmatprep.subr.mxu0 0.0
      %1924 = vmatpush1.msra.mxu0 %v1857
      %1925 = vmatprep.subr.mxu0 0.0
      %1926 = vmatpush1.msra.mxu0 %v1858
      %1927 = vmatprep.subr.mxu0 0.0
      %1928 = vmatpush1.msra.mxu0 %v1859
      %1929 = vmatprep.subr.mxu0 0.0
      %1930 = vmatpush1.msra.mxu0 %v1860
      %1931 = vmatprep.subr.mxu0 0.0
      %1932 = vmatpush1.msra.mxu0 %v1861
      %1933 = vmatprep.subr.mxu0 0.0
      %1934 = vmatpush1.msra.mxu0 %v1862
      %1935 = vmatprep.subr.mxu0 0.0
      %1936 = vmatpush1.msra.mxu0 %v1863
      %1937 = vmatprep.subr.mxu0 0.0
      %1938 = vmatpush1.msra.mxu0 %v1864
      %1939 = vmatprep.subr.mxu0 0.0
      %1940 = vmatpush1.msra.mxu0 %v1865
      %1941 = vmatprep.subr.mxu0 0.0
      %1942 = vmatpush1.msra.mxu0 %v1866
      %1943 = vmatprep.subr.mxu0 0.0
      %1944 = vmatpush1.msra.mxu0 %v1867
      %1945 = vmatprep.subr.mxu0 0.0
      %1946 = vmatpush1.msra.mxu0 %v1868
      %1947 = vmatprep.subr.mxu0 0.0
      %1948 = vmatpush1.msra.mxu0 %v1869
      %1949 = vmatprep.subr.mxu0 0.0
      %1950 = vmatpush1.msra.mxu0 %v1870
      %1951 = vmatprep.mubr.f32.mxu0 %v1872
      %1952 = vmatmul.mubr.f32.gmra.mrb[0].mxu0 %v1871
      %v1953 = vpop.f32.mrb[0].mxu0
      %v1954 = vadd.f32 0.0, %v1953
      %v1955 = vpop.f32.mrb[0].mxu0
      %1956 = vmatprep.mubr.f32.mxu0 %v1874
      %1957 = vmatmul.mubr.f32.gmra.mrb[0].mxu0 %v1873
      %v1958 = vpop.f32.mrb[0].mxu0
      %v1959 = vadd.f32 0.0, %v1958
      %v1960 = vpop.f32.mrb[0].mxu0
      %1961 = vmatprep.mubr.f32.mxu0 %v1876
      %1962 = vmatmul.mubr.f32.gmra.mrb[0].mxu0 %v1875
      %v1963 = vpop.f32.mrb[0].mxu0
      %v1964 = vadd.f32 0.0, %v1963
      %v1965 = vpop.f32.mrb[0].mxu0
      %1966 = vmatprep.mubr.f32.mxu0 %v1878
      %1967 = vmatmul.mubr.f32.gmra.mrb[0].mxu0 %v1877
      %v1968 = vpop.f32.mrb[0].mxu0
      %v1969 = vadd.f32 0.0, %v1968
      %v1970 = vpop.f32.mrb[0].mxu0
      %1971 = vmatprep.mubr.f32.mxu0 %v1880
      %1972 = vmatmul.mubr.f32.gmra.mrb[0].mxu0 %v1879
      %v1973 = vpop.f32.mrb[0].mxu0
      %v1974 = vadd.f32 0.0, %v1973
      %v1975 = vpop.f32.mrb[0].mxu0
      %1976 = vmatprep.mubr.f32.mxu0 %v1882
      %1977 = vmatmul.mubr.f32.gmra.mrb[0].mxu0 %v1881
      %v1978 = vpop.f32.mrb[0].mxu0
      %v1979 = vadd.f32 0.0, %v1978
      %v1980 = vpop.f32.mrb[0].mxu0
      %1981 = vmatprep.mubr.f32.mxu0 %v1884
      %1982 = vmatmul.mubr.f32.gmra.mrb[0].mxu0 %v1883
      %v1983 = vpop.f32.mrb[0].mxu0
      %v1984 = vadd.f32 0.0, %v1983
      %v1985 = vpop.f32.mrb[0].mxu0
      %1986 = vmatprep.mubr.f32.mxu0 %v1886
      %1987 = vmatmul.mubr.f32.gmra.mrb[0].mxu0 %v1885
      %v1988 = vpop.f32.mrb[0].mxu0
      %v1989 = vadd.f32 0.0, %v1988
      %v1990 = vpop.f32.mrb[0].mxu0
      %1991 = vdwg.mxu0
      %v1992 = vld [vmem:[%s5] sm:$0x1]
      %v1994 = vlaneseq
      %v1995 = vshrl.u32 %v1994, 7
      %v1996 = vsub.s32 0, %v1995
      %v1997 = vrot.slane %v1992, %v1996
      %v1999 = vmul.f32 %v1954, %v1997
      %v2000 = vmul.f32 %v1959, %v1997
      %v2001 = vmul.f32 %v1964, %v1997
      %v2002 = vmul.f32 %v1969, %v1997
      %v2003 = vmul.f32 %v1974, %v1997
      %v2004 = vmul.f32 %v1979, %v1997
      %v2005 = vmul.f32 %v1984, %v1997
      %v2006 = vmul.f32 %v1989, %v1997
      %v2007 = vld [vmem:[%s6] sm:$0x1]
      %v2009 = vlaneseq
      %v2010 = vshrl.u32 %v2009, 7
      %v2011 = vsub.s32 0, %v2010
      %v2012 = vrot.slane %v2007, %v2011
      %v2014 = vadd.f32 %v1999, %v2012
      %v2015 = vadd.f32 %v2000, %v2012
      %v2016 = vadd.f32 %v2001, %v2012
      %v2017 = vadd.f32 %v2002, %v2012
      %v2018 = vadd.f32 %v2003, %v2012
      %v2019 = vadd.f32 %v2004, %v2012
      %v2020 = vadd.f32 %v2005, %v2012
      %v2021 = vadd.f32 %v2006, %v2012
      %v2022 = vsel %vm879, %v2014, 0.0
      %v2023 = vsel %vm879, %v2015, 0.0
      %v2024 = vadd.f32 %v2022, %v2023
      %v2025 = vsel %vm879, %v2016, 0.0
      %v2026 = vadd.f32 %v2024, %v2025
      %v2027 = vsel %vm879, %v2017, 0.0
      %v2028 = vadd.f32 %v2026, %v2027
      %v2029 = vsel %vm879, %v2018, 0.0
      %v2030 = vadd.f32 %v2028, %v2029
      %v2031 = vsel %vm879, %v2019, 0.0
      %v2032 = vadd.f32 %v2030, %v2031
      %v2033 = vsel %vm879, %v2020, 0.0
      %v2034 = vadd.f32 %v2032, %v2033
      %v2035 = vsel %vm879, %v2021, 0.0
      %v2036 = vadd.f32 %v2034, %v2035
      %v2037 = vrot.slane %v2036, 4
      %v2038 = vadd.f32 %v2036, %v2037
      %v2039 = vrot.slane %v2038, 2
      %v2040 = vadd.f32 %v2038, %v2039
      %v2041 = vrot.slane %v2040, 1
      %v2042 = vadd.f32 %v2040, %v2041
      %v2043 = vrcp.pop 64.0
      %v2044 = vmul.f32 %v2042, %v2043
      %v2045 = vld [vmem:[%s8] sm:$0xff]
      %v2046 = vld [vmem:[%s8 + $0x8] sm:$0xff]
      %v2048 = vsel %vm879, %v2044, 0
      %2050 = vmatprep.subr.mxu0 0.0
      %2051 = vmatpush1.msra.mxu0 %v2045
      %2052 = vmatprep.subr.mxu0 0.0
      %2053 = vmatpush1.msra.mxu0 %v2046
      %2054 = vmatprep.subr.mxu0 0.0
      %2055 = vmatpush1.msra.mxu0 0.0
      %2056 = vmatprep.subr.mxu0 0.0
      %2057 = vmatpush1.msra.mxu0 0.0
      %2058 = vmatprep.subr.mxu0 0.0
      %2059 = vmatpush1.msra.mxu0 0.0
      %2060 = vmatprep.subr.mxu0 0.0
      %2061 = vmatpush1.msra.mxu0 0.0
      %2062 = vmatprep.subr.mxu0 0.0
      %2063 = vmatpush1.msra.mxu0 0.0
      %2064 = vmatprep.subr.mxu0 0.0
      %2065 = vmatpush1.msra.mxu0 0.0
      %2066 = vmatprep.subr.mxu0 0.0
      %2067 = vmatpush1.msra.mxu0 0.0
      %2068 = vmatprep.subr.mxu0 0.0
      %2069 = vmatpush1.msra.mxu0 0.0
      %2070 = vmatprep.subr.mxu0 0.0
      %2071 = vmatpush1.msra.mxu0 0.0
      %2072 = vmatprep.subr.mxu0 0.0
      %2073 = vmatpush1.msra.mxu0 0.0
      %2074 = vmatprep.subr.mxu0 0.0
      %2075 = vmatpush1.msra.mxu0 0.0
      %2076 = vmatprep.subr.mxu0 0.0
      %2077 = vmatpush1.msra.mxu0 0.0
      %2078 = vmatprep.subr.mxu0 0.0
      %2079 = vmatpush1.msra.mxu0 0.0
      %2080 = vmatprep.subr.mxu0 0.0
      %2081 = vmatpush1.msra.mxu0 0.0
      %2082 = vmatprep.subr.mxu0 0.0
      %2083 = vmatpush1.msra.mxu0 0.0
      %2084 = vmatprep.subr.mxu0 0.0
      %2085 = vmatpush1.msra.mxu0 0.0
      %2086 = vmatprep.subr.mxu0 0.0
      %2087 = vmatpush1.msra.mxu0 0.0
      %2088 = vmatprep.subr.mxu0 0.0
      %2089 = vmatpush1.msra.mxu0 0.0
      %2090 = vmatprep.subr.mxu0 0.0
      %2091 = vmatpush1.msra.mxu0 0.0
      %2092 = vmatprep.subr.mxu0 0.0
      %2093 = vmatpush1.msra.mxu0 0.0
      %2094 = vmatprep.subr.mxu0 0.0
      %2095 = vmatpush1.msra.mxu0 0.0
      %2096 = vmatprep.subr.mxu0 0.0
      %2097 = vmatpush1.msra.mxu0 0.0
      %2098 = vmatprep.subr.mxu0 0.0
      %2099 = vmatpush1.msra.mxu0 0.0
      %2100 = vmatprep.subr.mxu0 0.0
      %2101 = vmatpush1.msra.mxu0 0.0
      %2102 = vmatprep.subr.mxu0 0.0
      %2103 = vmatpush1.msra.mxu0 0.0
      %2104 = vmatprep.subr.mxu0 0.0
      %2105 = vmatpush1.msra.mxu0 0.0
      %2106 = vmatprep.subr.mxu0 0.0
      %2107 = vmatpush1.msra.mxu0 0.0
      %2108 = vmatprep.subr.mxu0 0.0
      %2109 = vmatpush1.msra.mxu0 0.0
      %2110 = vmatprep.subr.mxu0 0.0
      %2111 = vmatpush1.msra.mxu0 0.0
      %2112 = vmatprep.subr.mxu0 0.0
      %2113 = vmatpush1.msra.mxu0 0.0
      %2114 = vmatprep.mubr.f32.mxu0 0.0
      %2115 = vmatmul.mubr.f32.gmra.mrb[0].mxu0 %v2048
      %v2116 = vpop.f32.mrb[0].mxu0
      %v2117 = vadd.f32 0.0, %v2116
      %v2118 = vpop.f32.mrb[0].mxu0
      %2119 = vdwg.mxu0
      %v2120 = vmax.f32 %v2117, 0.0
      %v2121 = vld [vmem:[%s9] sm:$0xf]
      %vm2122 = vcmask 31744
      %v2124 = vsel %vm2122, %v2120, 0
      %v2127 = vsel %vm604, %v2121, 0
      %2129 = vmatprep.subr.mxu0 0.0
      %2130 = vmatpush1.msra.mxu0 %v2127
      %2131 = vmatprep.subr.mxu0 0.0
      %2132 = vmatpush1.msra.mxu0 0.0
      %2133 = vmatprep.subr.mxu0 0.0
      %2134 = vmatpush1.msra.mxu0 0.0
      %2135 = vmatprep.subr.mxu0 0.0
      %2136 = vmatpush1.msra.mxu0 0.0
      %2137 = vmatprep.subr.mxu0 0.0
      %2138 = vmatpush1.msra.mxu0 0.0
      %2139 = vmatprep.subr.mxu0 0.0
      %2140 = vmatpush1.msra.mxu0 0.0
      %2141 = vmatprep.subr.mxu0 0.0
      %2142 = vmatpush1.msra.mxu0 0.0
      %2143 = vmatprep.subr.mxu0 0.0
      %2144 = vmatpush1.msra.mxu0 0.0
      %2145 = vmatprep.subr.mxu0 0.0
      %2146 = vmatpush1.msra.mxu0 0.0
      %2147 = vmatprep.subr.mxu0 0.0
      %2148 = vmatpush1.msra.mxu0 0.0
      %2149 = vmatprep.subr.mxu0 0.0
      %2150 = vmatpush1.msra.mxu0 0.0
      %2151 = vmatprep.subr.mxu0 0.0
      %2152 = vmatpush1.msra.mxu0 0.0
      %2153 = vmatprep.subr.mxu0 0.0
      %2154 = vmatpush1.msra.mxu0 0.0
      %2155 = vmatprep.subr.mxu0 0.0
      %2156 = vmatpush1.msra.mxu0 0.0
      %2157 = vmatprep.subr.mxu0 0.0
      %2158 = vmatpush1.msra.mxu0 0.0
      %2159 = vmatprep.subr.mxu0 0.0
      %2160 = vmatpush1.msra.mxu0 0.0
      %2161 = vmatprep.subr.mxu0 0.0
      %2162 = vmatpush1.msra.mxu0 0.0
      %2163 = vmatprep.subr.mxu0 0.0
      %2164 = vmatpush1.msra.mxu0 0.0
      %2165 = vmatprep.subr.mxu0 0.0
      %2166 = vmatpush1.msra.mxu0 0.0
      %2167 = vmatprep.subr.mxu0 0.0
      %2168 = vmatpush1.msra.mxu0 0.0
      %2169 = vmatprep.subr.mxu0 0.0
      %2170 = vmatpush1.msra.mxu0 0.0
      %2171 = vmatprep.subr.mxu0 0.0
      %2172 = vmatpush1.msra.mxu0 0.0
      %2173 = vmatprep.subr.mxu0 0.0
      %2174 = vmatpush1.msra.mxu0 0.0
      %2175 = vmatprep.subr.mxu0 0.0
      %2176 = vmatpush1.msra.mxu0 0.0
      %2177 = vmatprep.subr.mxu0 0.0
      %2178 = vmatpush1.msra.mxu0 0.0
      %2179 = vmatprep.subr.mxu0 0.0
      %2180 = vmatpush1.msra.mxu0 0.0
      %2181 = vmatprep.subr.mxu0 0.0
      %2182 = vmatpush1.msra.mxu0 0.0
      %2183 = vmatprep.subr.mxu0 0.0
      %2184 = vmatpush1.msra.mxu0 0.0
      %2185 = vmatprep.subr.mxu0 0.0
      %2186 = vmatpush1.msra.mxu0 0.0
      %2187 = vmatprep.subr.mxu0 0.0
      %2188 = vmatpush1.msra.mxu0 0.0
      %2189 = vmatprep.subr.mxu0 0.0
      %2190 = vmatpush1.msra.mxu0 0.0
      %2191 = vmatprep.subr.mxu0 0.0
      %2192 = vmatpush1.msra.mxu0 0.0
      %2193 = vmatprep.mubr.f32.mxu0 0.0
      %2194 = vmatmul.mubr.f32.gmra.mrb[0].mxu0 %v2124
      %v2195 = vpop.f32.mrb[0].mxu0
      %v2196 = vadd.f32 3.0, %v2195
      %v2197 = vpop.f32.mrb[0].mxu0
      %2198 = vdwg.mxu0
      %v2199 = vmax.f32 %v2196, 0.0
      %v2200 = vmin.f32 %v2199, 6.0
      %v2201 = vmul.f32 %v2200, 0.16666667
      %v2202 = vlaneseq
      %v2203 = vshrl.u32 %v2202, 7
      %v2204 = vsub.s32 0, %v2203
      %v2205 = vrot.slane %v2201, %v2204
      %v2206 = vmul.f32 %v2014, %v2205
      %v2207 = vmul.f32 %v2015, %v2205
      %v2208 = vmul.f32 %v2016, %v2205
      %v2209 = vmul.f32 %v2017, %v2205
      %v2210 = vmul.f32 %v2018, %v2205
      %v2211 = vmul.f32 %v2019, %v2205
      %v2212 = vmul.f32 %v2020, %v2205
      %v2213 = vmul.f32 %v2021, %v2205
      %v2214 = vmax.f32 %v2206, 0.0
      %v2215 = vmax.f32 %v2207, 0.0
      %v2216 = vmax.f32 %v2208, 0.0
      %v2217 = vmax.f32 %v2209, 0.0
      %v2218 = vmax.f32 %v2210, 0.0
      %v2219 = vmax.f32 %v2211, 0.0
      %v2220 = vmax.f32 %v2212, 0.0
      %v2221 = vmax.f32 %v2213, 0.0
      %v2222 = vpack.c.bf16 %v2215, %v2214
      %v2223 = vpack.c.bf16 %v2217, %v2216
      %v2224 = vpack.c.bf16 %v2219, %v2218
      %v2225 = vpack.c.bf16 %v2221, %v2220
      %v2226 = vld [vmem:[%s10] sm:$0xf]
      %v2227 = vld [vmem:[%s10 + $0x4] sm:$0xf]
      %v2230 = vunpack.c.l.b16 %v2226
      %v2231 = vunpack.c.l.b16 %v2227
      %v2232 = vpack.c.b16 %v2231, %v2230
      %v2235 = vsel %vm879, %v2222, 0
      %v2238 = vsel %vm879, %v2223, 0
      %v2241 = vsel %vm879, %v2224, 0
      %v2244 = vsel %vm879, %v2225, 0
      %2246 = vmatprep.subr.bf16.mxu0 0
      %2247 = vmatpush1.bf16.msra.mxu0 %v2232
      %2248 = vmatprep.subr.bf16.mxu0 0
      %2249 = vmatpush1.bf16.msra.mxu0 0
      %2250 = vmatprep.subr.bf16.mxu0 0
      %2251 = vmatpush1.bf16.msra.mxu0 0
      %2252 = vmatprep.subr.bf16.mxu0 0
      %2253 = vmatpush1.bf16.msra.mxu0 0
      %2254 = vmatprep.subr.bf16.mxu0 0
      %2255 = vmatpush1.bf16.msra.mxu0 0
      %2256 = vmatprep.subr.bf16.mxu0 0
      %2257 = vmatpush1.bf16.msra.mxu0 0
      %2258 = vmatprep.subr.bf16.mxu0 0
      %2259 = vmatpush1.bf16.msra.mxu0 0
      %2260 = vmatprep.subr.bf16.mxu0 0
      %2261 = vmatpush1.bf16.msra.mxu0 0
      %2262 = vmatprep.subr.bf16.mxu0 0
      %2263 = vmatpush1.bf16.msra.mxu0 0
      %2264 = vmatprep.subr.bf16.mxu0 0
      %2265 = vmatpush1.bf16.msra.mxu0 0
      %2266 = vmatprep.subr.bf16.mxu0 0
      %2267 = vmatpush1.bf16.msra.mxu0 0
      %2268 = vmatprep.subr.bf16.mxu0 0
      %2269 = vmatpush1.bf16.msra.mxu0 0
      %2270 = vmatprep.subr.bf16.mxu0 0
      %2271 = vmatpush1.bf16.msra.mxu0 0
      %2272 = vmatprep.subr.bf16.mxu0 0
      %2273 = vmatpush1.bf16.msra.mxu0 0
      %2274 = vmatprep.subr.bf16.mxu0 0
      %2275 = vmatpush1.bf16.msra.mxu0 0
      %2276 = vmatprep.subr.bf16.mxu0 0
      %2277 = vmatpush1.bf16.msra.mxu0 0
      %2278 = vmatprep.mubr.bf16.mxu0 0
      %2279 = vmatmul.mubr.bf16.gmra.mrb[0].mxu0 %v2235
      %v2280 = vpop.f32.mrb[0].mxu0
      %v2281 = vadd.f32 0.0, %v2280
      %v2282 = vpop.f32.mrb[0].mxu0
      %v2283 = vpop.f32.mrb[0].mxu0
      %v2284 = vadd.f32 0.0, %v2283
      %v2285 = vpop.f32.mrb[0].mxu0
      %2286 = vmatprep.mubr.bf16.mxu0 0
      %2287 = vmatmul.mubr.bf16.gmra.mrb[0].mxu0 %v2238
      %v2288 = vpop.f32.mrb[0].mxu0
      %v2289 = vadd.f32 0.0, %v2288
      %v2290 = vpop.f32.mrb[0].mxu0
      %v2291 = vpop.f32.mrb[0].mxu0
      %v2292 = vadd.f32 0.0, %v2291
      %v2293 = vpop.f32.mrb[0].mxu0
      %2294 = vmatprep.mubr.bf16.mxu0 0
      %2295 = vmatmul.mubr.bf16.gmra.mrb[0].mxu0 %v2241
      %v2296 = vpop.f32.mrb[0].mxu0
      %v2297 = vadd.f32 0.0, %v2296
      %v2298 = vpop.f32.mrb[0].mxu0
      %v2299 = vpop.f32.mrb[0].mxu0
      %v2300 = vadd.f32 0.0, %v2299
      %v2301 = vpop.f32.mrb[0].mxu0
      %2302 = vmatprep.mubr.bf16.mxu0 0
      %2303 = vmatmul.mubr.bf16.gmra.mrb[0].mxu0 %v2244
      %v2304 = vpop.f32.mrb[0].mxu0
      %v2305 = vadd.f32 0.0, %v2304
      %v2306 = vpop.f32.mrb[0].mxu0
      %v2307 = vpop.f32.mrb[0].mxu0
      %v2308 = vadd.f32 0.0, %v2307
      %v2309 = vpop.f32.mrb[0].mxu0
      %2310 = vdwg.mxu0
      %v2311 = vld [vmem:[%s11] sm:$0x1]
      %v2313 = vlaneseq
      %v2314 = vshrl.u32 %v2313, 7
      %v2315 = vsub.s32 0, %v2314
      %v2316 = vrot.slane %v2311, %v2315
      %v2318 = vmul.f32 %v2281, %v2316
      %v2319 = vmul.f32 %v2284, %v2316
      %v2320 = vmul.f32 %v2289, %v2316
      %v2321 = vmul.f32 %v2292, %v2316
      %v2322 = vmul.f32 %v2297, %v2316
      %v2323 = vmul.f32 %v2300, %v2316
      %v2324 = vmul.f32 %v2305, %v2316
      %v2325 = vmul.f32 %v2308, %v2316
      %v2326 = vld [vmem:[%s12] sm:$0x1]
      %v2328 = vlaneseq
      %v2329 = vshrl.u32 %v2328, 7
      %v2330 = vsub.s32 0, %v2329
      %v2331 = vrot.slane %v2326, %v2330
      %v2333 = vadd.f32 %v2318, %v2331
      %v2334 = vadd.f32 %v2319, %v2331
      %v2335 = vadd.f32 %v2320, %v2331
      %v2336 = vadd.f32 %v2321, %v2331
      %v2337 = vadd.f32 %v2322, %v2331
      %v2338 = vadd.f32 %v2323, %v2331
      %v2339 = vadd.f32 %v2324, %v2331
      %v2340 = vadd.f32 %v2325, %v2331
      %v2341 = vpack.c.bf16 %v2333, %v2333
      %v2342 = vpack.c.bf16 %v2334, %v2334
      %v2343 = vpack.c.bf16 %v2335, %v2335
      %v2344 = vpack.c.bf16 %v2336, %v2336
      %v2345 = vpack.c.bf16 %v2337, %v2337
      %v2346 = vpack.c.bf16 %v2338, %v2338
      %v2347 = vpack.c.bf16 %v2339, %v2339
      %v2348 = vpack.c.bf16 %v2340, %v2340
      %vm2349 = vcmask 125952
      %2350 = vst.msk [vmem:[%s440] sm:$0xf] %vm2349, %v2341
      %2351 = vst.msk [vmem:[%s440 + $0x4] sm:$0xf] %vm2349, %v2342
      %2352 = vst.msk [vmem:[%s440 + $0x8] sm:$0xf] %vm2349, %v2343
      %2353 = vst.msk [vmem:[%s440 + $0xc] sm:$0xf] %vm2349, %v2344
      %2354 = vst.msk [vmem:[%s440 + $0x10] sm:$0xf] %vm2349, %v2345
      %2355 = vst.msk [vmem:[%s440 + $0x14] sm:$0xf] %vm2349, %v2346
      %2356 = vst.msk [vmem:[%s440 + $0x18] sm:$0xf] %vm2349, %v2347
      %2357 = vst.msk [vmem:[%s440 + $0x1c] sm:$0xf] %vm2349, %v2348
      %p2358 = scmp.lt.s32.totalorder %s24, 1
      %s2359 = scalar_select %p2358, %s24, 1
      %s2360 = smul.addr %s2359, 8
      %s2361 = smul.addr %s2360, 4
      %s2362 = scalar_lea.vmem %s13, %s2361
      // Predicated region
      $region73: #{slim_stage.3} parent=71 // pred_check
        %p2363 = pneg %p320
      $region74: #{slim_stage.3} parent=71 // pred_check_branch
        %2365 = sbr.rel (%p2363) target = $region76
      $region75: #{slim_stage.3} parent=71 // pred_region
        _
      $region76: #{slim_stage.3} parent=71 // pred_fallthru
        _
    $region72: #{slim_stage.3} parent=5 // pred_fallthru
      _
    %p2366 = scmp.le.s32.totalorder 2, %s19
    // Predicated region
    $region77: #{slim_stage.3} parent=5 // pred_check
      %p2367 = pneg %p2366
    $region78: #{slim_stage.3} parent=5 // pred_check_branch
      %2369 = sbr.rel (%p2367) target = $region80
    $region79: #{slim_stage.3} parent=5 // pred_region
      %s2370 = ssub.s32 %s19, 2
      // Predicated region
      $region81: #{slim_stage.3} parent=79 // pred_check
        %p2371 = pneg %p326
      $region82: #{slim_stage.3} parent=79 // pred_check_branch
        %2373 = sbr.rel (%p2371) target = $region84
      $region83: #{slim_stage.3} parent=79 // pred_region
        %p2374 = scmp.lt.s32.totalorder %s25, 1
        %s2375 = scalar_select %p2374, %s25, 1
        %s2376 = smul.addr %s2375, 8
        %s2377 = smul.addr %s2376, 4
        %s2378 = scalar_lea.vmem %s13, %s2377
      $region84: #{slim_stage.3} parent=79 // pred_fallthru
        _
    $region80: #{slim_stage.3} parent=5 // pred_fallthru
      _
  $region6: #{slim_stage.3} parent=0 // loop_footer
    %s23 = sadd.s32 1, %s19
  $region7: #{slim_stage.3} parent=0 // loop_footer_branch
    %18 = sbr.rel target = $region3
  $region8: #{slim_stage.3} parent=0 // loop_exit
    _

</llo_original>
